<compile_context>
chip_gen: v5e
topology: v5e:2x2
jax: 0.10.0
libtpu: 0.0.40
codegen_flags: <defaults>
</compile_context>

<pallas_src>
import functools

import jax
import jax.numpy as jnp
from jax.experimental import pallas as pl
from jax.experimental.pallas import tpu as pltpu

LEAKY_SLOPE = 0.2
BN_EPS = 1e-5
VMEM_LIMIT = 32 * 1024 * 1024  # explicit: above v5e's 16MiB scoped default


def _round_up(x, m):
    return ((x + m - 1) // m) * m


def _pick_tile(dim, target, align):
    """Largest multiple of `align` that divides `dim` and is <= target (or full dim)."""
    if dim <= target:
        return dim
    t = (min(target, dim) // align) * align
    while t >= align:
        if dim % t == 0:
            return t
        t -= align
    return dim


# ----------------------------------------------------------------------------
# Pallas kernels
# ----------------------------------------------------------------------------
def _conv_act_kernel(a_ref, w_ref, b_ref, o_ref, acc_ref, *, act):
    # grid = (M tiles [parallel], K tiles [arbitrary])
    k = pl.program_id(1)

    @pl.when(k == 0)
    def _():
        acc_ref[...] = jnp.zeros_like(acc_ref)

    acc_ref[...] += jnp.dot(a_ref[...], w_ref[...],
                            preferred_element_type=jnp.float32)

    @pl.when(k == pl.num_programs(1) - 1)
    def _():
        y = acc_ref[...] + b_ref[...]
        if act == "leaky":
            y = jnp.where(y > 0, y, LEAKY_SLOPE * y)
        else:  # sigmoid: EUP approx reciprocal, clamped to [0, 1]
            y = jnp.minimum(pl.reciprocal(1.0 + jnp.exp(-y), approx=True), 1.0)
        o_ref[...] = y.astype(o_ref.dtype)


def _conv_bn_lrelu_kernel(a_ref, w_ref, g_ref, beta_ref, o_ref, acc_ref):
    # grid = (K tiles [arbitrary]); full M resident so BN sees all rows.
    # Conv bias omitted: a per-channel bias before BatchNorm (batch statistics)
    # is exactly cancelled by the mean subtraction.
    k = pl.program_id(0)

    @pl.when(k == 0)
    def _():
        acc_ref[...] = jnp.zeros_like(acc_ref)

    acc_ref[...] += jnp.dot(a_ref[...], w_ref[...],
                            preferred_element_type=jnp.float32)

    @pl.when(k == pl.num_programs(0) - 1)
    def _():
        y = acc_ref[...]
        inv_m = 1.0 / y.shape[0]           # static: N*Do*Ho*Wo (BatchNorm3d set)
        mean = jnp.sum(y, axis=0, keepdims=True) * inv_m
        mean_sq = jnp.sum(y * y, axis=0, keepdims=True) * inv_m
        var = jnp.maximum(mean_sq - mean * mean, 0.0)   # single-pass, biased var
        yn = (y - mean) * jax.lax.rsqrt(var + BN_EPS)
        yn = yn * g_ref[...] + beta_ref[...]
        o_ref[...] = jnp.where(yn > 0, yn, LEAKY_SLOPE * yn).astype(o_ref.dtype)


# ----------------------------------------------------------------------------
# pallas_call wrappers
# ----------------------------------------------------------------------------
def conv_matmul_act(a, w, b, act, out_dtype):
    M, K = a.shape
    c_pad = w.shape[1]
    tm = _pick_tile(M, 512, 8)
    tk = _pick_tile(K, 1024, 128)
    gm, gk = M // tm, K // tk
    return pl.pallas_call(
        functools.partial(_conv_act_kernel, act=act),
        out_shape=jax.ShapeDtypeStruct((M, c_pad), out_dtype),
        grid_spec=pltpu.PrefetchScalarGridSpec(
            num_scalar_prefetch=0,
            grid=(gm, gk),
            in_specs=[
                pl.BlockSpec((tm, tk), lambda i, k: (i, k)),
                pl.BlockSpec((tk, c_pad), lambda i, k: (k, 0)),
                pl.BlockSpec((1, c_pad), lambda i, k: (0, 0)),
            ],
            out_specs=pl.BlockSpec((tm, c_pad), lambda i, k: (i, 0)),
            scratch_shapes=[pltpu.VMEM((tm, c_pad), jnp.float32)],
        ),
        compiler_params=pltpu.CompilerParams(
            dimension_semantics=("parallel", "arbitrary"),
            vmem_limit_bytes=VMEM_LIMIT,
        ),
    )(a, w, b)


def conv_matmul_bn_lrelu(a, w, gamma, beta, out_dtype):
    M, K = a.shape
    c_pad = w.shape[1]
    tk = _pick_tile(K, 1024, 128)
    gk = K // tk
    return pl.pallas_call(
        _conv_bn_lrelu_kernel,
        out_shape=jax.ShapeDtypeStruct((M, c_pad), out_dtype),
        grid_spec=pltpu.PrefetchScalarGridSpec(
            num_scalar_prefetch=0,
            grid=(gk,),
            in_specs=[
                pl.BlockSpec((M, tk), lambda k: (0, k)),
                pl.BlockSpec((tk, c_pad), lambda k: (k, 0)),
                pl.BlockSpec((1, c_pad), lambda k: (0, 0)),
                pl.BlockSpec((1, c_pad), lambda k: (0, 0)),
            ],
            out_specs=pl.BlockSpec((M, c_pad), lambda k: (0, 0)),
            scratch_shapes=[pltpu.VMEM((M, c_pad), jnp.float32)],
        ),
        compiler_params=pltpu.CompilerParams(
            dimension_semantics=("arbitrary",),
            vmem_limit_bytes=VMEM_LIMIT,
        ),
    )(a, w, gamma, beta)


# ----------------------------------------------------------------------------
# Plain-JAX glue: channels-last im2col for Conv3d(kernel=k, stride, padding)
# ----------------------------------------------------------------------------
def im2col_3d_ndhwc(x, k, stride, pad):
    # x: (N, D, H, W, C) -> A: (N*Do*Ho*Wo, k^3*C); column order (kd, kh, kw, C)
    xp = jnp.pad(x, ((0, 0), (pad, pad), (pad, pad), (pad, pad), (0, 0)))
    N, D, H, W, C = xp.shape
    Do = (D - k) // stride + 1
    Ho = (H - k) // stride + 1
    Wo = (W - k) // stride + 1
    cols = []
    for kd in range(k):
        for kh in range(k):
            for kw in range(k):
                sl = xp[:,
                        kd:kd + stride * (Do - 1) + 1:stride,
                        kh:kh + stride * (Ho - 1) + 1:stride,
                        kw:kw + stride * (Wo - 1) + 1:stride,
                        :]
                cols.append(sl)                      # (N, Do, Ho, Wo, C)
    patches = jnp.stack(cols, axis=4)                # (N, Do, Ho, Wo, k^3, C)
    A = patches.reshape(N * Do * Ho * Wo, k * k * k * C)
    return A, (N, Do, Ho, Wo)


def prep_weight(w, c_pad):
    # PyTorch (Cout, Cin, kd, kh, kw) -> (k^3*Cin, Cout_pad), matching the
    # im2col column order (kd, kh, kw, Cin); zero-pad Cout to a lane-dense width.
    c_out = w.shape[0]
    wt = jnp.transpose(w, (2, 3, 4, 1, 0)).reshape(-1, c_out)
    if c_pad > c_out:
        wt = jnp.pad(wt, ((0, 0), (0, c_pad - c_out)))
    return wt.astype(jnp.bfloat16)


# ----------------------------------------------------------------------------
# Discriminator forward
# ----------------------------------------------------------------------------
def init_params(key, d):
    std = 0.02  # normal_init(mean=0.0, std=0.02) as in DCGAN
    shapes = [
        (d, 1, 4, 4, 4),
        (2 * d, d, 4, 4, 4),
        (4 * d, 2 * d, 4, 4, 4),
        (8 * d, 4 * d, 4, 4, 4),
        (1, 8 * d, 4, 4, 4),
    ]
    keys = jax.random.split(key, len(shapes))
    params = {}
    for i, (kk, shp) in enumerate(zip(keys, shapes), start=1):
        c_out = shp[0]
        c_pad = _round_up(c_out, 128)
        w = jax.random.normal(kk, shp, dtype=jnp.float32) * std
        params[f"conv{i}_w"] = prep_weight(w, c_pad)
        if i in (1, 5):
            # conv2-4 biases are dropped on purpose: they precede BatchNorm with
            # batch statistics and are exactly cancelled by the mean subtraction.
            params[f"conv{i}_b"] = jnp.zeros((1, c_pad), dtype=jnp.float32)
    for i, c in zip((2, 3, 4), (2 * d, 4 * d, 8 * d)):
        c_pad = _round_up(c, 128)
        params[f"bn{i}_gamma"] = jnp.pad(jnp.ones((1, c), jnp.float32),
                                         ((0, 0), (0, c_pad - c)))
        params[f"bn{i}_beta"] = jnp.zeros((1, c_pad), jnp.float32)
    # TODO(synk): BatchNorm running statistics are not tracked (forward uses
    # training-mode batch statistics, which is what is implemented here).
    return params


def discriminator_forward(params, x, d):
    # NCDHW -> NDHWC once; channels-last (and bf16) kept through all layers.
    x = jnp.transpose(x, (0, 2, 3, 4, 1)).astype(jnp.bfloat16)

    # conv1 + leaky_relu
    a, dims = im2col_3d_ndhwc(x, 4, 2, 1)
    y = conv_matmul_act(a, params["conv1_w"], params["conv1_b"],
                        "leaky", jnp.bfloat16)
    x = y.reshape(*dims, -1)[..., :d]

    # conv2/3/4 + bn + leaky_relu (fused in one kernel each)
    for i, c in zip((2, 3, 4), (2 * d, 4 * d, 8 * d)):
        a, dims = im2col_3d_ndhwc(x, 4, 2, 1)
        y = conv_matmul_bn_lrelu(a, params[f"conv{i}_w"],
                                 params[f"bn{i}_gamma"], params[f"bn{i}_beta"],
                                 jnp.bfloat16)
        x = y.reshape(*dims, -1)[..., :c]

    # conv5 (stride 1, pad 1) + sigmoid
    a, dims = im2col_3d_ndhwc(x, 4, 1, 1)
    y = conv_matmul_act(a, params["conv5_w"], params["conv5_b"],
                        "sigmoid", jnp.float32)
    x = y.reshape(*dims, -1)[..., :1]          # (N, 1, 1, 1, 1) NDHWC
    return jnp.transpose(x, (0, 4, 1, 2, 3))   # back to NCDHW


if __name__ == "__main__":
    d = 8                     # small width for the synthetic test (module default is 64)
    N, spatial = 2, 32        # 32^3 is the smallest cube valid through all 5 convs
    key = jax.random.PRNGKey(0)
    k_in, k_par = jax.random.split(key)

    x = jax.random.normal(k_in, (N, 1, spatial, spatial, spatial), dtype=jnp.float32)
    params = init_params(k_par, d)

    fwd = jax.jit(functools.partial(discriminator_forward, d=d))
    out = fwd(params, x)
    out = jax.block_until_ready(out)

    assert out.shape == (N, 1, 1, 1, 1), out.shape
    assert bool(jnp.all(jnp.isfinite(out)))
    assert bool(jnp.all((out >= 0.0) & (out <= 1.0)))
    print("KERNEL_OK")
</pallas_src>

<mosaic_0001>
module attributes {stable_mosaic.version = 11 : i64} {
  func.func @_conv_act_kernel(%arg0: i32, %arg1: i32, %arg2: memref<512x64xbf16, #tpu.memory_space<vmem>>, %arg3: memref<64x128xbf16, #tpu.memory_space<vmem>>, %arg4: memref<1x128xf32, #tpu.memory_space<vmem>>, %arg5: memref<512x128xbf16, #tpu.memory_space<vmem>>, %arg6: memref<512x128xf32, #tpu.memory_space<vmem>>) attributes {dimension_semantics = [#tpu.dimension_semantics<parallel>, #tpu.dimension_semantics<arbitrary>], iteration_bounds = array<i64: 16, 1>, scalar_prefetch = 0 : i64, scratch_operands = 1 : i64, tpu.core_type = #tpu.core_type<tc>, window_params = [{transform_indices = @transform_0, window_bounds = array<i64: 512, 64>}, {transform_indices = @transform_1, window_bounds = array<i64: 64, 128>}, {pipeline_mode = #tpu.pipeline_mode<synchronous>, transform_indices = @transform_2, window_bounds = array<i64: 1, 128>}, {transform_indices = @transform_3, window_bounds = array<i64: 512, 128>}]} {
    %c0_i32 = arith.constant 0 : i32
    %0 = arith.cmpi eq, %arg1, %c0_i32 : i32
    %1 = arith.extui %0 : i1 to i32
    %c0_i32_0 = arith.constant 0 : i32
    %2 = arith.cmpi ne, %1, %c0_i32_0 : i32
    scf.if %2 {
      %cst_10 = arith.constant 0.000000e+00 : f32
      %12 = vector.broadcast %cst_10 : f32 to vector<512x128xf32>
      %c0_11 = arith.constant 0 : index
      %c0_12 = arith.constant 0 : index
      %13 = vector.load %arg6[%c0_11, %c0_12] : memref<512x128xf32, #tpu.memory_space<vmem>>, vector<512x128xf32>
      tpu.vector_store %arg6[%c0_11, %c0_12], %12 {strides = array<i32>} : memref<512x128xf32, #tpu.memory_space<vmem>>, vector<512x128xf32>,
    } else {
    }
    %c0 = arith.constant 0 : index
    %c0_1 = arith.constant 0 : index
    %3 = vector.load %arg6[%c0, %c0_1] : memref<512x128xf32, #tpu.memory_space<vmem>>, vector<512x128xf32>
    %c0_2 = arith.constant 0 : index
    %c0_3 = arith.constant 0 : index
    %4 = vector.load %arg2[%c0_2, %c0_3] : memref<512x64xbf16, #tpu.memory_space<vmem>>, vector<512x64xbf16>
    %c0_4 = arith.constant 0 : index
    %c0_5 = arith.constant 0 : index
    %5 = vector.load %arg3[%c0_4, %c0_5] : memref<64x128xbf16, #tpu.memory_space<vmem>>, vector<64x128xbf16>
    %cst = arith.constant dense<0.000000e+00> : vector<512x128xf32>
    %6 = tpu.matmul %4, %5, %cst {dimension_numbers = #tpu.dot_dimension_numbers<[1], [0], [0], [1], [0, 0, 1, 1], [], []>} : vector<512x64xbf16>, vector<64x128xbf16>, vector<512x128xf32> -> vector<512x128xf32>
    %7 = arith.addf %3, %6 : vector<512x128xf32>
    %c0_6 = arith.constant 0 : index
    %c0_7 = arith.constant 0 : index
    %8 = vector.load %arg6[%c0_6, %c0_7] : memref<512x128xf32, #tpu.memory_space<vmem>>, vector<512x128xf32>
    tpu.vector_store %arg6[%c0_6, %c0_7], %7 {strides = array<i32>} : memref<512x128xf32, #tpu.memory_space<vmem>>, vector<512x128xf32>,
    %c0_i32_8 = arith.constant 0 : i32
    %9 = arith.cmpi eq, %arg1, %c0_i32_8 : i32
    %10 = arith.extui %9 : i1 to i32
    %c0_i32_9 = arith.constant 0 : i32
    %11 = arith.cmpi ne, %10, %c0_i32_9 : i32
    scf.if %11 {
      %c0_10 = arith.constant 0 : index
      %c0_11 = arith.constant 0 : index
      %12 = vector.load %arg6[%c0_10, %c0_11] : memref<512x128xf32, #tpu.memory_space<vmem>>, vector<512x128xf32>
      %c0_12 = arith.constant 0 : index
      %c0_13 = arith.constant 0 : index
      %13 = vector.load %arg4[%c0_12, %c0_13] : memref<1x128xf32, #tpu.memory_space<vmem>>, vector<1x128xf32>
      %14 = vector.broadcast %13 : vector<1x128xf32> to vector<512x128xf32>
      %15 = arith.addf %12, %14 : vector<512x128xf32>
      %cst_14 = arith.constant 0.000000e+00 : f32
      %16 = vector.broadcast %cst_14 : f32 to vector<512x128xf32>
      %17 = arith.cmpf ogt, %15, %16 : vector<512x128xf32>
      %cst_15 = arith.constant 2.000000e-01 : f32
      %18 = vector.broadcast %cst_15 : f32 to vector<512x128xf32>
      %19 = arith.mulf %18, %15 : vector<512x128xf32>
      %20 = arith.select %17, %15, %19 : vector<512x128xi1>, vector<512x128xf32>
      %21 = arith.truncf %20 : vector<512x128xf32> to vector<512x128xbf16>
      %c0_16 = arith.constant 0 : index
      %c0_17 = arith.constant 0 : index
      %22 = vector.load %arg5[%c0_16, %c0_17] : memref<512x128xbf16, #tpu.memory_space<vmem>>, vector<512x128xbf16>
      tpu.vector_store %arg5[%c0_16, %c0_17], %21 {strides = array<i32>} : memref<512x128xbf16, #tpu.memory_space<vmem>>, vector<512x128xbf16>,
    } else {
    }
    return
  }
  func.func @transform_0(%arg0: i32, %arg1: i32) -> (i32, i32) {
    %c0_i32 = arith.constant 0 : i32
    return %arg0, %arg1 : i32, i32
  }
  func.func @transform_1(%arg0: i32, %arg1: i32) -> (i32, i32) {
    %c0_i32 = arith.constant 0 : i32
    %c0_i32_0 = arith.constant 0 : i32
    return %arg1, %c0_i32 : i32, i32
  }
  func.func @transform_2(%arg0: i32, %arg1: i32) -> (i32, i32) {
    %c0_i32 = arith.constant 0 : i32
    %c0_i32_0 = arith.constant 0 : i32
    %c0_i32_1 = arith.constant 0 : i32
    return %c0_i32, %c0_i32_0 : i32, i32
  }
  func.func @transform_3(%arg0: i32, %arg1: i32) -> (i32, i32) {
    %c0_i32 = arith.constant 0 : i32
    %c0_i32_0 = arith.constant 0 : i32
    return %arg0, %c0_i32 : i32, i32
  }
}

module attributes {stable_mosaic.version = 11 : i64} {
  func.func @_conv_bn_lrelu_kernel(%arg0: i32, %arg1: memref<1024x512xbf16, #tpu.memory_space<vmem>>, %arg2: memref<512x128xbf16, #tpu.memory_space<vmem>>, %arg3: memref<1x128xf32, #tpu.memory_space<vmem>>, %arg4: memref<1x128xf32, #tpu.memory_space<vmem>>, %arg5: memref<1024x128xbf16, #tpu.memory_space<vmem>>, %arg6: memref<1024x128xf32, #tpu.memory_space<vmem>>) attributes {dimension_semantics = [#tpu.dimension_semantics<arbitrary>], iteration_bounds = array<i64: 1>, scalar_prefetch = 0 : i64, scratch_operands = 1 : i64, tpu.core_type = #tpu.core_type<tc>, window_params = [{transform_indices = @transform_0, window_bounds = array<i64: 1024, 512>}, {transform_indices = @transform_1, window_bounds = array<i64: 512, 128>}, {pipeline_mode = #tpu.pipeline_mode<synchronous>, transform_indices = @transform_2, window_bounds = array<i64: 1, 128>}, {pipeline_mode = #tpu.pipeline_mode<synchronous>, transform_indices = @transform_3, window_bounds = array<i64: 1, 128>}, {pipeline_mode = #tpu.pipeline_mode<synchronous>, transform_indices = @transform_4, window_bounds = array<i64: 1024, 128>}]} {
    %c0_i32 = arith.constant 0 : i32
    %0 = arith.cmpi eq, %arg0, %c0_i32 : i32
    %1 = arith.extui %0 : i1 to i32
    %c0_i32_0 = arith.constant 0 : i32
    %2 = arith.cmpi ne, %1, %c0_i32_0 : i32
    scf.if %2 {
      %cst_10 = arith.constant 0.000000e+00 : f32
      %12 = vector.broadcast %cst_10 : f32 to vector<1024x128xf32>
      %c0_11 = arith.constant 0 : index
      %c0_12 = arith.constant 0 : index
      %13 = vector.load %arg6[%c0_11, %c0_12] : memref<1024x128xf32, #tpu.memory_space<vmem>>, vector<1024x128xf32>
      tpu.vector_store %arg6[%c0_11, %c0_12], %12 {strides = array<i32>} : memref<1024x128xf32, #tpu.memory_space<vmem>>, vector<1024x128xf32>,
    } else {
    }
    %c0 = arith.constant 0 : index
    %c0_1 = arith.constant 0 : index
    %3 = vector.load %arg6[%c0, %c0_1] : memref<1024x128xf32, #tpu.memory_space<vmem>>, vector<1024x128xf32>
    %c0_2 = arith.constant 0 : index
    %c0_3 = arith.constant 0 : index
    %4 = vector.load %arg1[%c0_2, %c0_3] : memref<1024x512xbf16, #tpu.memory_space<vmem>>, vector<1024x512xbf16>
    %c0_4 = arith.constant 0 : index
    %c0_5 = arith.constant 0 : index
    %5 = vector.load %arg2[%c0_4, %c0_5] : memref<512x128xbf16, #tpu.memory_space<vmem>>, vector<512x128xbf16>
    %cst = arith.constant dense<0.000000e+00> : vector<1024x128xf32>
    %6 = tpu.matmul %4, %5, %cst {dimension_numbers = #tpu.dot_dimension_numbers<[1], [0], [0], [1], [0, 0, 1, 1], [], []>} : vector<1024x512xbf16>, vector<512x128xbf16>, vector<1024x128xf32> -> vector<1024x128xf32>
    %7 = arith.addf %3, %6 : vector<1024x128xf32>
    %c0_6 = arith.constant 0 : index
    %c0_7 = arith.constant 0 : index
    %8 = vector.load %arg6[%c0_6, %c0_7] : memref<1024x128xf32, #tpu.memory_space<vmem>>, vector<1024x128xf32>
    tpu.vector_store %arg6[%c0_6, %c0_7], %7 {strides = array<i32>} : memref<1024x128xf32, #tpu.memory_space<vmem>>, vector<1024x128xf32>,
    %c0_i32_8 = arith.constant 0 : i32
    %9 = arith.cmpi eq, %arg0, %c0_i32_8 : i32
    %10 = arith.extui %9 : i1 to i32
    %c0_i32_9 = arith.constant 0 : i32
    %11 = arith.cmpi ne, %10, %c0_i32_9 : i32
    scf.if %11 {
      %c0_10 = arith.constant 0 : index
      %c0_11 = arith.constant 0 : index
      %12 = vector.load %arg6[%c0_10, %c0_11] : memref<1024x128xf32, #tpu.memory_space<vmem>>, vector<1024x128xf32>
      %cst_12 = arith.constant dense<0.000000e+00> : vector<128xf32>
      %13 = vector.multi_reduction <add>, %12, %cst_12 [0] : vector<1024x128xf32> to vector<128xf32>
      %14 = vector.shape_cast %13 : vector<128xf32> to vector<1x128xf32>
      %cst_13 = arith.constant 9.765625E-4 : f32
      %15 = vector.broadcast %cst_13 : f32 to vector<1x128xf32>
      %16 = arith.mulf %14, %15 : vector<1x128xf32>
      %17 = arith.mulf %12, %12 : vector<1024x128xf32>
      %cst_14 = arith.constant dense<0.000000e+00> : vector<128xf32>
      %18 = vector.multi_reduction <add>, %17, %cst_14 [0] : vector<1024x128xf32> to vector<128xf32>
      %19 = vector.shape_cast %18 : vector<128xf32> to vector<1x128xf32>
      %cst_15 = arith.constant 9.765625E-4 : f32
      %20 = vector.broadcast %cst_15 : f32 to vector<1x128xf32>
      %21 = arith.mulf %19, %20 : vector<1x128xf32>
      %22 = arith.mulf %16, %16 : vector<1x128xf32>
      %23 = arith.subf %21, %22 : vector<1x128xf32>
      %cst_16 = arith.constant 0.000000e+00 : f32
      %24 = vector.broadcast %cst_16 : f32 to vector<1x128xf32>
      %25 = arith.maximumf %23, %24 : vector<1x128xf32>
      %26 = vector.broadcast %16 : vector<1x128xf32> to vector<1024x128xf32>
      %27 = arith.subf %12, %26 : vector<1024x128xf32>
      %cst_17 = arith.constant 9.99999974E-6 : f32
      %28 = vector.broadcast %cst_17 : f32 to vector<1x128xf32>
      %29 = arith.addf %25, %28 : vector<1x128xf32>
      %30 = math.rsqrt %29 : vector<1x128xf32>
      %31 = vector.broadcast %30 : vector<1x128xf32> to vector<1024x128xf32>
      %32 = arith.mulf %27, %31 : vector<1024x128xf32>
      %c0_18 = arith.constant 0 : index
      %c0_19 = arith.constant 0 : index
      %33 = vector.load %arg3[%c0_18, %c0_19] : memref<1x128xf32, #tpu.memory_space<vmem>>, vector<1x128xf32>
      %34 = vector.broadcast %33 : vector<1x128xf32> to vector<1024x128xf32>
      %35 = arith.mulf %32, %34 : vector<1024x128xf32>
      %c0_20 = arith.constant 0 : index
      %c0_21 = arith.constant 0 : index
      %36 = vector.load %arg4[%c0_20, %c0_21] : memref<1x128xf32, #tpu.memory_space<vmem>>, vector<1x128xf32>
      %37 = vector.broadcast %36 : vector<1x128xf32> to vector<1024x128xf32>
      %38 = arith.addf %35, %37 : vector<1024x128xf32>
      %cst_22 = arith.constant 0.000000e+00 : f32
      %39 = vector.broadcast %cst_22 : f32 to vector<1024x128xf32>
      %40 = arith.cmpf ogt, %38, %39 : vector<1024x128xf32>
      %cst_23 = arith.constant 2.000000e-01 : f32
      %41 = vector.broadcast %cst_23 : f32 to vector<1024x128xf32>
      %42 = arith.mulf %41, %38 : vector<1024x128xf32>
      %43 = arith.select %40, %38, %42 : vector<1024x128xi1>, vector<1024x128xf32>
      %44 = arith.truncf %43 : vector<1024x128xf32> to vector<1024x128xbf16>
      %c0_24 = arith.constant 0 : index
      %c0_25 = arith.constant 0 : index
      %45 = vector.load %arg5[%c0_24, %c0_25] : memref<1024x128xbf16, #tpu.memory_space<vmem>>, vector<1024x128xbf16>
      tpu.vector_store %arg5[%c0_24, %c0_25], %44 {strides = array<i32>} : memref<1024x128xbf16, #tpu.memory_space<vmem>>, vector<1024x128xbf16>,
    } else {
    }
    return
  }
  func.func @transform_0(%arg0: i32) -> (i32, i32) {
    %c0_i32 = arith.constant 0 : i32
    %c0_i32_0 = arith.constant 0 : i32
    return %c0_i32, %arg0 : i32, i32
  }
  func.func @transform_1(%arg0: i32) -> (i32, i32) {
    %c0_i32 = arith.constant 0 : i32
    %c0_i32_0 = arith.constant 0 : i32
    return %arg0, %c0_i32 : i32, i32
  }
  func.func @transform_2(%arg0: i32) -> (i32, i32) {
    %c0_i32 = arith.constant 0 : i32
    %c0_i32_0 = arith.constant 0 : i32
    %c0_i32_1 = arith.constant 0 : i32
    return %c0_i32, %c0_i32_0 : i32, i32
  }
  func.func @transform_3(%arg0: i32) -> (i32, i32) {
    %c0_i32 = arith.constant 0 : i32
    %c0_i32_0 = arith.constant 0 : i32
    %c0_i32_1 = arith.constant 0 : i32
    return %c0_i32, %c0_i32_0 : i32, i32
  }
  func.func @transform_4(%arg0: i32) -> (i32, i32) {
    %c0_i32 = arith.constant 0 : i32
    %c0_i32_0 = arith.constant 0 : i32
    %c0_i32_1 = arith.constant 0 : i32
    return %c0_i32, %c0_i32_0 : i32, i32
  }
}

module attributes {stable_mosaic.version = 11 : i64} {
  func.func @_conv_bn_lrelu_kernel(%arg0: i32, %arg1: memref<128x1024xbf16, #tpu.memory_space<vmem>>, %arg2: memref<1024x128xbf16, #tpu.memory_space<vmem>>, %arg3: memref<1x128xf32, #tpu.memory_space<vmem>>, %arg4: memref<1x128xf32, #tpu.memory_space<vmem>>, %arg5: memref<128x128xbf16, #tpu.memory_space<vmem>>, %arg6: memref<128x128xf32, #tpu.memory_space<vmem>>) attributes {dimension_semantics = [#tpu.dimension_semantics<arbitrary>], iteration_bounds = array<i64: 1>, scalar_prefetch = 0 : i64, scratch_operands = 1 : i64, tpu.core_type = #tpu.core_type<tc>, window_params = [{transform_indices = @transform_0, window_bounds = array<i64: 128, 1024>}, {transform_indices = @transform_1, window_bounds = array<i64: 1024, 128>}, {pipeline_mode = #tpu.pipeline_mode<synchronous>, transform_indices = @transform_2, window_bounds = array<i64: 1, 128>}, {pipeline_mode = #tpu.pipeline_mode<synchronous>, transform_indices = @transform_3, window_bounds = array<i64: 1, 128>}, {pipeline_mode = #tpu.pipeline_mode<synchronous>, transform_indices = @transform_4, window_bounds = array<i64: 128, 128>}]} {
    %c0_i32 = arith.constant 0 : i32
    %0 = arith.cmpi eq, %arg0, %c0_i32 : i32
    %1 = arith.extui %0 : i1 to i32
    %c0_i32_0 = arith.constant 0 : i32
    %2 = arith.cmpi ne, %1, %c0_i32_0 : i32
    scf.if %2 {
      %cst_10 = arith.constant 0.000000e+00 : f32
      %12 = vector.broadcast %cst_10 : f32 to vector<128x128xf32>
      %c0_11 = arith.constant 0 : index
      %c0_12 = arith.constant 0 : index
      %13 = vector.load %arg6[%c0_11, %c0_12] : memref<128x128xf32, #tpu.memory_space<vmem>>, vector<128x128xf32>
      tpu.vector_store %arg6[%c0_11, %c0_12], %12 {strides = array<i32>} : memref<128x128xf32, #tpu.memory_space<vmem>>, vector<128x128xf32>,
    } else {
    }
    %c0 = arith.constant 0 : index
    %c0_1 = arith.constant 0 : index
    %3 = vector.load %arg6[%c0, %c0_1] : memref<128x128xf32, #tpu.memory_space<vmem>>, vector<128x128xf32>
    %c0_2 = arith.constant 0 : index
    %c0_3 = arith.constant 0 : index
    %4 = vector.load %arg1[%c0_2, %c0_3] : memref<128x1024xbf16, #tpu.memory_space<vmem>>, vector<128x1024xbf16>
    %c0_4 = arith.constant 0 : index
    %c0_5 = arith.constant 0 : index
    %5 = vector.load %arg2[%c0_4, %c0_5] : memref<1024x128xbf16, #tpu.memory_space<vmem>>, vector<1024x128xbf16>
    %cst = arith.constant dense<0.000000e+00> : vector<128x128xf32>
    %6 = tpu.matmul %4, %5, %cst {dimension_numbers = #tpu.dot_dimension_numbers<[1], [0], [0], [1], [0, 0, 1, 1], [], []>} : vector<128x1024xbf16>, vector<1024x128xbf16>, vector<128x128xf32> -> vector<128x128xf32>
    %7 = arith.addf %3, %6 : vector<128x128xf32>
    %c0_6 = arith.constant 0 : index
    %c0_7 = arith.constant 0 : index
    %8 = vector.load %arg6[%c0_6, %c0_7] : memref<128x128xf32, #tpu.memory_space<vmem>>, vector<128x128xf32>
    tpu.vector_store %arg6[%c0_6, %c0_7], %7 {strides = array<i32>} : memref<128x128xf32, #tpu.memory_space<vmem>>, vector<128x128xf32>,
    %c0_i32_8 = arith.constant 0 : i32
    %9 = arith.cmpi eq, %arg0, %c0_i32_8 : i32
    %10 = arith.extui %9 : i1 to i32
    %c0_i32_9 = arith.constant 0 : i32
    %11 = arith.cmpi ne, %10, %c0_i32_9 : i32
    scf.if %11 {
      %c0_10 = arith.constant 0 : index
      %c0_11 = arith.constant 0 : index
      %12 = vector.load %arg6[%c0_10, %c0_11] : memref<128x128xf32, #tpu.memory_space<vmem>>, vector<128x128xf32>
      %cst_12 = arith.constant dense<0.000000e+00> : vector<128xf32>
      %13 = vector.multi_reduction <add>, %12, %cst_12 [0] : vector<128x128xf32> to vector<128xf32>
      %14 = vector.shape_cast %13 : vector<128xf32> to vector<1x128xf32>
      %cst_13 = arith.constant 7.812500e-03 : f32
      %15 = vector.broadcast %cst_13 : f32 to vector<1x128xf32>
      %16 = arith.mulf %14, %15 : vector<1x128xf32>
      %17 = arith.mulf %12, %12 : vector<128x128xf32>
      %cst_14 = arith.constant dense<0.000000e+00> : vector<128xf32>
      %18 = vector.multi_reduction <add>, %17, %cst_14 [0] : vector<128x128xf32> to vector<128xf32>
      %19 = vector.shape_cast %18 : vector<128xf32> to vector<1x128xf32>
      %cst_15 = arith.constant 7.812500e-03 : f32
      %20 = vector.broadcast %cst_15 : f32 to vector<1x128xf32>
      %21 = arith.mulf %19, %20 : vector<1x128xf32>
      %22 = arith.mulf %16, %16 : vector<1x128xf32>
      %23 = arith.subf %21, %22 : vector<1x128xf32>
      %cst_16 = arith.constant 0.000000e+00 : f32
      %24 = vector.broadcast %cst_16 : f32 to vector<1x128xf32>
      %25 = arith.maximumf %23, %24 : vector<1x128xf32>
      %26 = vector.broadcast %16 : vector<1x128xf32> to vector<128x128xf32>
      %27 = arith.subf %12, %26 : vector<128x128xf32>
      %cst_17 = arith.constant 9.99999974E-6 : f32
      %28 = vector.broadcast %cst_17 : f32 to vector<1x128xf32>
      %29 = arith.addf %25, %28 : vector<1x128xf32>
      %30 = math.rsqrt %29 : vector<1x128xf32>
      %31 = vector.broadcast %30 : vector<1x128xf32> to vector<128x128xf32>
      %32 = arith.mulf %27, %31 : vector<128x128xf32>
      %c0_18 = arith.constant 0 : index
      %c0_19 = arith.constant 0 : index
      %33 = vector.load %arg3[%c0_18, %c0_19] : memref<1x128xf32, #tpu.memory_space<vmem>>, vector<1x128xf32>
      %34 = vector.broadcast %33 : vector<1x128xf32> to vector<128x128xf32>
      %35 = arith.mulf %32, %34 : vector<128x128xf32>
      %c0_20 = arith.constant 0 : index
      %c0_21 = arith.constant 0 : index
      %36 = vector.load %arg4[%c0_20, %c0_21] : memref<1x128xf32, #tpu.memory_space<vmem>>, vector<1x128xf32>
      %37 = vector.broadcast %36 : vector<1x128xf32> to vector<128x128xf32>
      %38 = arith.addf %35, %37 : vector<128x128xf32>
      %cst_22 = arith.constant 0.000000e+00 : f32
      %39 = vector.broadcast %cst_22 : f32 to vector<128x128xf32>
      %40 = arith.cmpf ogt, %38, %39 : vector<128x128xf32>
      %cst_23 = arith.constant 2.000000e-01 : f32
      %41 = vector.broadcast %cst_23 : f32 to vector<128x128xf32>
      %42 = arith.mulf %41, %38 : vector<128x128xf32>
      %43 = arith.select %40, %38, %42 : vector<128x128xi1>, vector<128x128xf32>
      %44 = arith.truncf %43 : vector<128x128xf32> to vector<128x128xbf16>
      %c0_24 = arith.constant 0 : index
      %c0_25 = arith.constant 0 : index
      %45 = vector.load %arg5[%c0_24, %c0_25] : memref<128x128xbf16, #tpu.memory_space<vmem>>, vector<128x128xbf16>
      tpu.vector_store %arg5[%c0_24, %c0_25], %44 {strides = array<i32>} : memref<128x128xbf16, #tpu.memory_space<vmem>>, vector<128x128xbf16>,
    } else {
    }
    return
  }
  func.func @transform_0(%arg0: i32) -> (i32, i32) {
    %c0_i32 = arith.constant 0 : i32
    %c0_i32_0 = arith.constant 0 : i32
    return %c0_i32, %arg0 : i32, i32
  }
  func.func @transform_1(%arg0: i32) -> (i32, i32) {
    %c0_i32 = arith.constant 0 : i32
    %c0_i32_0 = arith.constant 0 : i32
    return %arg0, %c0_i32 : i32, i32
  }
  func.func @transform_2(%arg0: i32) -> (i32, i32) {
    %c0_i32 = arith.constant 0 : i32
    %c0_i32_0 = arith.constant 0 : i32
    %c0_i32_1 = arith.constant 0 : i32
    return %c0_i32, %c0_i32_0 : i32, i32
  }
  func.func @transform_3(%arg0: i32) -> (i32, i32) {
    %c0_i32 = arith.constant 0 : i32
    %c0_i32_0 = arith.constant 0 : i32
    %c0_i32_1 = arith.constant 0 : i32
    return %c0_i32, %c0_i32_0 : i32, i32
  }
  func.func @transform_4(%arg0: i32) -> (i32, i32) {
    %c0_i32 = arith.constant 0 : i32
    %c0_i32_0 = arith.constant 0 : i32
    %c0_i32_1 = arith.constant 0 : i32
    return %c0_i32, %c0_i32_0 : i32, i32
  }
}

module attributes {stable_mosaic.version = 11 : i64} {
  func.func @_conv_bn_lrelu_kernel(%arg0: i32, %arg1: memref<16x1024xbf16, #tpu.memory_space<vmem>>, %arg2: memref<1024x128xbf16, #tpu.memory_space<vmem>>, %arg3: memref<1x128xf32, #tpu.memory_space<vmem>>, %arg4: memref<1x128xf32, #tpu.memory_space<vmem>>, %arg5: memref<16x128xbf16, #tpu.memory_space<vmem>>, %arg6: memref<16x128xf32, #tpu.memory_space<vmem>>) attributes {dimension_semantics = [#tpu.dimension_semantics<arbitrary>], iteration_bounds = array<i64: 2>, scalar_prefetch = 0 : i64, scratch_operands = 1 : i64, tpu.core_type = #tpu.core_type<tc>, window_params = [{transform_indices = @transform_0, window_bounds = array<i64: 16, 1024>}, {transform_indices = @transform_1, window_bounds = array<i64: 1024, 128>}, {pipeline_mode = #tpu.pipeline_mode<synchronous>, transform_indices = @transform_2, window_bounds = array<i64: 1, 128>}, {pipeline_mode = #tpu.pipeline_mode<synchronous>, transform_indices = @transform_3, window_bounds = array<i64: 1, 128>}, {pipeline_mode = #tpu.pipeline_mode<synchronous>, transform_indices = @transform_4, window_bounds = array<i64: 16, 128>}]} {
    %c0_i32 = arith.constant 0 : i32
    %0 = arith.cmpi eq, %arg0, %c0_i32 : i32
    %1 = arith.extui %0 : i1 to i32
    %c0_i32_0 = arith.constant 0 : i32
    %2 = arith.cmpi ne, %1, %c0_i32_0 : i32
    scf.if %2 {
      %cst_9 = arith.constant 0.000000e+00 : f32
      %12 = vector.broadcast %cst_9 : f32 to vector<16x128xf32>
      %c0_10 = arith.constant 0 : index
      %c0_11 = arith.constant 0 : index
      %13 = vector.load %arg6[%c0_10, %c0_11] : memref<16x128xf32, #tpu.memory_space<vmem>>, vector<16x128xf32>
      tpu.vector_store %arg6[%c0_10, %c0_11], %12 {strides = array<i32>} : memref<16x128xf32, #tpu.memory_space<vmem>>, vector<16x128xf32>,
    } else {
    }
    %c0 = arith.constant 0 : index
    %c0_1 = arith.constant 0 : index
    %3 = vector.load %arg6[%c0, %c0_1] : memref<16x128xf32, #tpu.memory_space<vmem>>, vector<16x128xf32>
    %c0_2 = arith.constant 0 : index
    %c0_3 = arith.constant 0 : index
    %4 = vector.load %arg1[%c0_2, %c0_3] : memref<16x1024xbf16, #tpu.memory_space<vmem>>, vector<16x1024xbf16>
    %c0_4 = arith.constant 0 : index
    %c0_5 = arith.constant 0 : index
    %5 = vector.load %arg2[%c0_4, %c0_5] : memref<1024x128xbf16, #tpu.memory_space<vmem>>, vector<1024x128xbf16>
    %cst = arith.constant dense<0.000000e+00> : vector<16x128xf32>
    %6 = tpu.matmul %4, %5, %cst {dimension_numbers = #tpu.dot_dimension_numbers<[1], [0], [0], [1], [0, 0, 1, 1], [], []>} : vector<16x1024xbf16>, vector<1024x128xbf16>, vector<16x128xf32> -> vector<16x128xf32>
    %7 = arith.addf %3, %6 : vector<16x128xf32>
    %c0_6 = arith.constant 0 : index
    %c0_7 = arith.constant 0 : index
    %8 = vector.load %arg6[%c0_6, %c0_7] : memref<16x128xf32, #tpu.memory_space<vmem>>, vector<16x128xf32>
    tpu.vector_store %arg6[%c0_6, %c0_7], %7 {strides = array<i32>} : memref<16x128xf32, #tpu.memory_space<vmem>>, vector<16x128xf32>,
    %c1_i32 = arith.constant 1 : i32
    %9 = arith.cmpi eq, %arg0, %c1_i32 : i32
    %10 = arith.extui %9 : i1 to i32
    %c0_i32_8 = arith.constant 0 : i32
    %11 = arith.cmpi ne, %10, %c0_i32_8 : i32
    scf.if %11 {
      %c0_9 = arith.constant 0 : index
      %c0_10 = arith.constant 0 : index
      %12 = vector.load %arg6[%c0_9, %c0_10] : memref<16x128xf32, #tpu.memory_space<vmem>>, vector<16x128xf32>
      %cst_11 = arith.constant dense<0.000000e+00> : vector<128xf32>
      %13 = vector.multi_reduction <add>, %12, %cst_11 [0] : vector<16x128xf32> to vector<128xf32>
      %14 = vector.shape_cast %13 : vector<128xf32> to vector<1x128xf32>
      %cst_12 = arith.constant 6.250000e-02 : f32
      %15 = vector.broadcast %cst_12 : f32 to vector<1x128xf32>
      %16 = arith.mulf %14, %15 : vector<1x128xf32>
      %17 = arith.mulf %12, %12 : vector<16x128xf32>
      %cst_13 = arith.constant dense<0.000000e+00> : vector<128xf32>
      %18 = vector.multi_reduction <add>, %17, %cst_13 [0] : vector<16x128xf32> to vector<128xf32>
      %19 = vector.shape_cast %18 : vector<128xf32> to vector<1x128xf32>
      %cst_14 = arith.constant 6.250000e-02 : f32
      %20 = vector.broadcast %cst_14 : f32 to vector<1x128xf32>
      %21 = arith.mulf %19, %20 : vector<1x128xf32>
      %22 = arith.mulf %16, %16 : vector<1x128xf32>
      %23 = arith.subf %21, %22 : vector<1x128xf32>
      %cst_15 = arith.constant 0.000000e+00 : f32
      %24 = vector.broadcast %cst_15 : f32 to vector<1x128xf32>
      %25 = arith.maximumf %23, %24 : vector<1x128xf32>
      %26 = vector.broadcast %16 : vector<1x128xf32> to vector<16x128xf32>
      %27 = arith.subf %12, %26 : vector<16x128xf32>
      %cst_16 = arith.constant 9.99999974E-6 : f32
      %28 = vector.broadcast %cst_16 : f32 to vector<1x128xf32>
      %29 = arith.addf %25, %28 : vector<1x128xf32>
      %30 = math.rsqrt %29 : vector<1x128xf32>
      %31 = vector.broadcast %30 : vector<1x128xf32> to vector<16x128xf32>
      %32 = arith.mulf %27, %31 : vector<16x128xf32>
      %c0_17 = arith.constant 0 : index
      %c0_18 = arith.constant 0 : index
      %33 = vector.load %arg3[%c0_17, %c0_18] : memref<1x128xf32, #tpu.memory_space<vmem>>, vector<1x128xf32>
      %34 = vector.broadcast %33 : vector<1x128xf32> to vector<16x128xf32>
      %35 = arith.mulf %32, %34 : vector<16x128xf32>
      %c0_19 = arith.constant 0 : index
      %c0_20 = arith.constant 0 : index
      %36 = vector.load %arg4[%c0_19, %c0_20] : memref<1x128xf32, #tpu.memory_space<vmem>>, vector<1x128xf32>
      %37 = vector.broadcast %36 : vector<1x128xf32> to vector<16x128xf32>
      %38 = arith.addf %35, %37 : vector<16x128xf32>
      %cst_21 = arith.constant 0.000000e+00 : f32
      %39 = vector.broadcast %cst_21 : f32 to vector<16x128xf32>
      %40 = arith.cmpf ogt, %38, %39 : vector<16x128xf32>
      %cst_22 = arith.constant 2.000000e-01 : f32
      %41 = vector.broadcast %cst_22 : f32 to vector<16x128xf32>
      %42 = arith.mulf %41, %38 : vector<16x128xf32>
      %43 = arith.select %40, %38, %42 : vector<16x128xi1>, vector<16x128xf32>
      %44 = arith.truncf %43 : vector<16x128xf32> to vector<16x128xbf16>
      %c0_23 = arith.constant 0 : index
      %c0_24 = arith.constant 0 : index
      %45 = vector.load %arg5[%c0_23, %c0_24] : memref<16x128xbf16, #tpu.memory_space<vmem>>, vector<16x128xbf16>
      tpu.vector_store %arg5[%c0_23, %c0_24], %44 {strides = array<i32>} : memref<16x128xbf16, #tpu.memory_space<vmem>>, vector<16x128xbf16>,
    } else {
    }
    return
  }
  func.func @transform_0(%arg0: i32) -> (i32, i32) {
    %c0_i32 = arith.constant 0 : i32
    %c0_i32_0 = arith.constant 0 : i32
    return %c0_i32, %arg0 : i32, i32
  }
  func.func @transform_1(%arg0: i32) -> (i32, i32) {
    %c0_i32 = arith.constant 0 : i32
    %c0_i32_0 = arith.constant 0 : i32
    return %arg0, %c0_i32 : i32, i32
  }
  func.func @transform_2(%arg0: i32) -> (i32, i32) {
    %c0_i32 = arith.constant 0 : i32
    %c0_i32_0 = arith.constant 0 : i32
    %c0_i32_1 = arith.constant 0 : i32
    return %c0_i32, %c0_i32_0 : i32, i32
  }
  func.func @transform_3(%arg0: i32) -> (i32, i32) {
    %c0_i32 = arith.constant 0 : i32
    %c0_i32_0 = arith.constant 0 : i32
    %c0_i32_1 = arith.constant 0 : i32
    return %c0_i32, %c0_i32_0 : i32, i32
  }
  func.func @transform_4(%arg0: i32) -> (i32, i32) {
    %c0_i32 = arith.constant 0 : i32
    %c0_i32_0 = arith.constant 0 : i32
    %c0_i32_1 = arith.constant 0 : i32
    return %c0_i32, %c0_i32_0 : i32, i32
  }
}

module attributes {stable_mosaic.version = 11 : i64} {
  func.func @_conv_act_kernel(%arg0: i32, %arg1: i32, %arg2: memref<2x1024xbf16, #tpu.memory_space<vmem>>, %arg3: memref<1024x128xbf16, #tpu.memory_space<vmem>>, %arg4: memref<1x128xf32, #tpu.memory_space<vmem>>, %arg5: memref<2x128xf32, #tpu.memory_space<vmem>>, %arg6: memref<2x128xf32, #tpu.memory_space<vmem>>) attributes {dimension_semantics = [#tpu.dimension_semantics<parallel>, #tpu.dimension_semantics<arbitrary>], iteration_bounds = array<i64: 1, 4>, scalar_prefetch = 0 : i64, scratch_operands = 1 : i64, tpu.core_type = #tpu.core_type<tc>, window_params = [{transform_indices = @transform_0, window_bounds = array<i64: 2, 1024>}, {transform_indices = @transform_1, window_bounds = array<i64: 1024, 128>}, {pipeline_mode = #tpu.pipeline_mode<synchronous>, transform_indices = @transform_2, window_bounds = array<i64: 1, 128>}, {transform_indices = @transform_3, window_bounds = array<i64: 2, 128>}]} {
    %c0_i32 = arith.constant 0 : i32
    %0 = arith.cmpi eq, %arg1, %c0_i32 : i32
    %1 = arith.extui %0 : i1 to i32
    %c0_i32_0 = arith.constant 0 : i32
    %2 = arith.cmpi ne, %1, %c0_i32_0 : i32
    scf.if %2 {
      %cst_9 = arith.constant 0.000000e+00 : f32
      %12 = vector.broadcast %cst_9 : f32 to vector<2x128xf32>
      %c0_10 = arith.constant 0 : index
      %c0_11 = arith.constant 0 : index
      %13 = vector.load %arg6[%c0_10, %c0_11] : memref<2x128xf32, #tpu.memory_space<vmem>>, vector<2x128xf32>
      tpu.vector_store %arg6[%c0_10, %c0_11], %12 {strides = array<i32>} : memref<2x128xf32, #tpu.memory_space<vmem>>, vector<2x128xf32>,
    } else {
    }
    %c0 = arith.constant 0 : index
    %c0_1 = arith.constant 0 : index
    %3 = vector.load %arg6[%c0, %c0_1] : memref<2x128xf32, #tpu.memory_space<vmem>>, vector<2x128xf32>
    %c0_2 = arith.constant 0 : index
    %c0_3 = arith.constant 0 : index
    %4 = vector.load %arg2[%c0_2, %c0_3] : memref<2x1024xbf16, #tpu.memory_space<vmem>>, vector<2x1024xbf16>
    %c0_4 = arith.constant 0 : index
    %c0_5 = arith.constant 0 : index
    %5 = vector.load %arg3[%c0_4, %c0_5] : memref<1024x128xbf16, #tpu.memory_space<vmem>>, vector<1024x128xbf16>
    %cst = arith.constant dense<0.000000e+00> : vector<2x128xf32>
    %6 = tpu.matmul %4, %5, %cst {dimension_numbers = #tpu.dot_dimension_numbers<[1], [0], [0], [1], [0, 0, 1, 1], [], []>} : vector<2x1024xbf16>, vector<1024x128xbf16>, vector<2x128xf32> -> vector<2x128xf32>
    %7 = arith.addf %3, %6 : vector<2x128xf32>
    %c0_6 = arith.constant 0 : index
    %c0_7 = arith.constant 0 : index
    %8 = vector.load %arg6[%c0_6, %c0_7] : memref<2x128xf32, #tpu.memory_space<vmem>>, vector<2x128xf32>
    tpu.vector_store %arg6[%c0_6, %c0_7], %7 {strides = array<i32>} : memref<2x128xf32, #tpu.memory_space<vmem>>, vector<2x128xf32>,
    %c3_i32 = arith.constant 3 : i32
    %9 = arith.cmpi eq, %arg1, %c3_i32 : i32
    %10 = arith.extui %9 : i1 to i32
    %c0_i32_8 = arith.constant 0 : i32
    %11 = arith.cmpi ne, %10, %c0_i32_8 : i32
    scf.if %11 {
      %c0_9 = arith.constant 0 : index
      %c0_10 = arith.constant 0 : index
      %12 = vector.load %arg6[%c0_9, %c0_10] : memref<2x128xf32, #tpu.memory_space<vmem>>, vector<2x128xf32>
      %c0_11 = arith.constant 0 : index
      %c0_12 = arith.constant 0 : index
      %13 = vector.load %arg4[%c0_11, %c0_12] : memref<1x128xf32, #tpu.memory_space<vmem>>, vector<1x128xf32>
      %14 = vector.broadcast %13 : vector<1x128xf32> to vector<2x128xf32>
      %15 = arith.addf %12, %14 : vector<2x128xf32>
      %cst_13 = arith.constant 0.000000e+00 : f32
      %16 = vector.broadcast %cst_13 : f32 to vector<2x128xf32>
      %17 = arith.subf %16, %15 : vector<2x128xf32>
      %18 = math.exp %17 : vector<2x128xf32>
      %cst_14 = arith.constant 1.000000e+00 : f32
      %19 = vector.broadcast %cst_14 : f32 to vector<2x128xf32>
      %20 = arith.addf %19, %18 : vector<2x128xf32>
      %21 = tpu.reciprocal %20 {approx = true} : vector<2x128xf32> -> vector<2x128xf32>
      %cst_15 = arith.constant 1.000000e+00 : f32
      %22 = vector.broadcast %cst_15 : f32 to vector<2x128xf32>
      %23 = arith.minimumf %21, %22 : vector<2x128xf32>
      %c0_16 = arith.constant 0 : index
      %c0_17 = arith.constant 0 : index
      %24 = vector.load %arg5[%c0_16, %c0_17] : memref<2x128xf32, #tpu.memory_space<vmem>>, vector<2x128xf32>
      tpu.vector_store %arg5[%c0_16, %c0_17], %23 {strides = array<i32>} : memref<2x128xf32, #tpu.memory_space<vmem>>, vector<2x128xf32>,
    } else {
    }
    return
  }
  func.func @transform_0(%arg0: i32, %arg1: i32) -> (i32, i32) {
    %c0_i32 = arith.constant 0 : i32
    return %arg0, %arg1 : i32, i32
  }
  func.func @transform_1(%arg0: i32, %arg1: i32) -> (i32, i32) {
    %c0_i32 = arith.constant 0 : i32
    %c0_i32_0 = arith.constant 0 : i32
    return %arg1, %c0_i32 : i32, i32
  }
  func.func @transform_2(%arg0: i32, %arg1: i32) -> (i32, i32) {
    %c0_i32 = arith.constant 0 : i32
    %c0_i32_0 = arith.constant 0 : i32
    %c0_i32_1 = arith.constant 0 : i32
    return %c0_i32, %c0_i32_0 : i32, i32
  }
  func.func @transform_3(%arg0: i32, %arg1: i32) -> (i32, i32) {
    %c0_i32 = arith.constant 0 : i32
    %c0_i32_0 = arith.constant 0 : i32
    return %arg0, %c0_i32 : i32, i32
  }
}

</mosaic_0001>

<llo_original>
// kernel: discriminator_forward.5
$region0: #{discriminator_forward.5}
  #allocation0 [shape = 'u32[]', space=smem, size = 0x4, offset = 0x4, fixed_abs, tag = 'smem constant byte address 0x4 - core index']
  #allocation1 [shape = 'u32[72,128]{1,0:T(1,128)}', space=vmem, size = 0x9000, scoped, tag = 'internal scratch']
  #allocation2 [shape = 'f32[512,128]{1,0:T(8,128)}', space=vmem, size = 0x40000, scoped, tag = 'scratch operand']
  %s0 = inlined_call_operand.hbm [shape: bf16[8192,64], index: 0, kind: input, shape index: {}]
  %s1 = inlined_call_operand.vmem [shape: bf16[64,128], index: 1, kind: input, shape index: {}]
  %s2 = inlined_call_operand.vmem [shape: f32[1,128], index: 2, kind: input, shape index: {}]
  %s3 = inlined_call_operand.vmem [shape: bf16[8192,128], index: 3, kind: output, shape index: {}]
  %s4 = sld [smem:[#allocation0]]
  $region57: #{discriminator_forward.5} parent=0
    _
  %s6 = ssub.s32 1, %s4
  %s7 = scalar_select 0, %s6, %s4
  $region1: #{discriminator_forward.5} parent=0
    #allocation3 [shape = 'u8[262144]{0}', space=vmem, size = 0x40000, scoped, tag = 'input window, operand 0']
    #allocation4 [shape = 's32[2]{0}', space=sflag, size = 0x8, scoped, tag = 'scoped memory for discriminator_forward.5']
    %8 = vsyncpa [#allocation4], 0
    %s9 = scalar_lea.sflag [#allocation4], 1
    %10 = vsyncpa %s9, 0
    loop: start=0, step=1, limit=18
    $region2: #{discriminator_forward.5} parent=1 // loop_pre_header
      _
    $region3: #{discriminator_forward.5} parent=1 // loop_header
      %s12 = sphi 0, %s16
      %p13 = scmp.ge.s32.totalorder %s12, 18
      %s19 = sphi 0, %s31
      %s20 = sphi 0, %s27
      %s21 = sphi 0, %s19
      %s22 = sphi 0, %s20
      %s23 = sphi 0, %s21
      %s24 = sphi 0, %s22
      %s36 = sphi 0, %s38
      %s39 = sphi 0, %s36
      %s40 = sphi 0, %s39
      %s56 = sphi 0, %s40
      %s62 = sphi 0, %s64
      %s65 = sphi 0, %s62
      %s66 = sphi 0, %s65
      %s82 = sphi 0, %s66
      %s86 = sphi 0, %s86
      %s88 = sphi 0, %s86
      %s89 = sphi 0, %s88
      %s103 = sphi 0, %s89
      %s109 = sphi 0, %s111
      %s112 = sphi 0, %s109
      %s113 = sphi 0, %s112
      %s129 = sphi 0, %s113
    $region4: #{discriminator_forward.5} parent=1 // loop_header_branch
      %15 = sbr.rel (%p13) target = $region8
    $region5: #{discriminator_forward.5} parent=1 // loop_body
      %s17 = ssub.s32 %s12, 1
      %s18 = ssub.s32 %s12, 2
      %s25 = sadd.s32 1, %s20
      %p26 = scmp.ge.s32.totalorder %s25, 1
      %s27 = scalar_select %p26, 0, %s25
      %s28 = sadd.s32 1, %s19
      %s29 = scalar_select %p26, %s28, %s19
      %p30 = scmp.ge.s32.totalorder %s29, 16
      %s31 = scalar_select %p30, 0, %s29
      %s32 = ssub.s32 %s19, %s31
      %s33 = ssub.s32 %s20, %s27
      %s34 = sor.u32 %s32, %s33
      %p35 = scmp.eq.s32.totalorder %s34, 0
      %s37 = sadd.s32 %s36, 1
      %s38 = scalar_select %p35, %s36, %s37
      %p41 = pneg %p35
      %p42 = scmp.eq.s32.totalorder %s12, 15
      %p43 = por %p41, %p42
      %p44 = scmp.ne.s32.totalorder %s36, %s39
      %p45 = scmp.eq.s32.totalorder %s12, 0
      %p46 = por %p44, %p45
      %p47 = scmp.ne.s32.totalorder %s36, %s39
      %p48 = scmp.eq.s32.totalorder %s17, 15
      %p49 = por %p47, %p48
      %p50 = scmp.ne.s32.totalorder %s39, %s40
      %p51 = scmp.eq.s32.totalorder %s17, 0
      %p52 = por %p50, %p51
      %p53 = scmp.ne.s32.totalorder %s39, %s40
      %p54 = scmp.eq.s32.totalorder %s18, 15
      %p55 = por %p53, %p54
      %p57 = scmp.ne.s32.totalorder %s40, %s56
      %p58 = scmp.eq.s32.totalorder %s18, 0
      %p59 = por %p57, %p58
      %s60 = ssub.s32 %s20, %s27
      %p61 = scmp.eq.s32.totalorder %s60, 0
      %s63 = sadd.s32 %s62, 1
      %s64 = scalar_select %p61, %s62, %s63
      %p67 = pneg %p61
      %p68 = scmp.eq.s32.totalorder %s12, 15
      %p69 = por %p67, %p68
      %p70 = scmp.ne.s32.totalorder %s62, %s65
      %p71 = scmp.eq.s32.totalorder %s12, 0
      %p72 = por %p70, %p71
      %p73 = scmp.ne.s32.totalorder %s62, %s65
      %p74 = scmp.eq.s32.totalorder %s17, 15
      %p75 = por %p73, %p74
      %p76 = scmp.ne.s32.totalorder %s65, %s66
      %p77 = scmp.eq.s32.totalorder %s17, 0
      %p78 = por %p76, %p77
      %p79 = scmp.ne.s32.totalorder %s65, %s66
      %p80 = scmp.eq.s32.totalorder %s18, 15
      %p81 = por %p79, %p80
      %p83 = scmp.ne.s32.totalorder %s66, %s82
      %p84 = scmp.eq.s32.totalorder %s18, 0
      %p85 = por %p83, %p84
      %s87 = sadd.s32 %s86, 1
      %p90 = scmp.eq.s32.totalorder %s12, 15
      %p91 = scmp.ne.s32.totalorder %s86, %s88
      %p92 = scmp.eq.s32.totalorder %s12, 0
      %p93 = por %p91, %p92
      %p94 = scmp.ne.s32.totalorder %s86, %s88
      %p95 = scmp.eq.s32.totalorder %s17, 15
      %p96 = por %p94, %p95
      %p97 = scmp.ne.s32.totalorder %s88, %s89
      %p98 = scmp.eq.s32.totalorder %s17, 0
      %p99 = por %p97, %p98
      %p100 = scmp.ne.s32.totalorder %s88, %s89
      %p101 = scmp.eq.s32.totalorder %s18, 15
      %p102 = por %p100, %p101
      %p104 = scmp.ne.s32.totalorder %s89, %s103
      %p105 = scmp.eq.s32.totalorder %s18, 0
      %p106 = por %p104, %p105
      %s107 = ssub.s32 %s19, %s31
      %p108 = scmp.eq.s32.totalorder %s107, 0
      %s110 = sadd.s32 %s109, 1
      %s111 = scalar_select %p108, %s109, %s110
      %p114 = pneg %p108
      %p115 = scmp.eq.s32.totalorder %s12, 15
      %p116 = por %p114, %p115
      %p117 = scmp.ne.s32.totalorder %s109, %s112
      %p118 = scmp.eq.s32.totalorder %s12, 0
      %p119 = por %p117, %p118
      %p120 = scmp.ne.s32.totalorder %s109, %s112
      %p121 = scmp.eq.s32.totalorder %s17, 15
      %p122 = por %p120, %p121
      %p123 = scmp.ne.s32.totalorder %s112, %s113
      %p124 = scmp.eq.s32.totalorder %s17, 0
      %p125 = por %p123, %p124
      %p126 = scmp.ne.s32.totalorder %s112, %s113
      %p127 = scmp.eq.s32.totalorder %s18, 15
      %p128 = por %p126, %p127
      %p130 = scmp.ne.s32.totalorder %s113, %s129
      %p131 = scmp.eq.s32.totalorder %s18, 0
      %p132 = por %p130, %p131
      %p133 = scmp.le.s32.totalorder 1, %s12
      %p134 = scmp.lt.s32.totalorder %s12, 17
      %p135 = pnand %p133, %p134
      %p136 = pneg %p135
      // Predicated region
      $region9: #{discriminator_forward.5} parent=5 // pred_check
        _
      $region10: #{discriminator_forward.5} parent=5 // pred_check_branch
        %138 = sbr.rel (%p135) target = $region12
      $region11: #{discriminator_forward.5} parent=5 // pred_region
        %s139 = ssub.s32 %s12, 1
        // Predicated region
        $region13: #{discriminator_forward.5} parent=11 // pred_check
          %p140 = pneg %p78
        $region14: #{discriminator_forward.5} parent=11 // pred_check_branch
          %142 = sbr.rel (%p140) target = $region16
        $region15: #{discriminator_forward.5} parent=11 // pred_region
          %s143 = smul.u32 8, %s22
          %p144 = scmp.lt.s32.totalorder %s143, 7
          %s145 = scalar_select %p144, %s143, 7
          %s146 = smul.addr %s145, 4
          %s147 = scalar_lea.vmem %s1, %s146
          %s148 = smul.u32 8, %s22
        $region16: #{discriminator_forward.5} parent=11 // pred_fallthru
          _
        // Predicated region
        $region17: #{discriminator_forward.5} parent=11 // pred_check
          %p149 = pneg %p99
        $region18: #{discriminator_forward.5} parent=11 // pred_check_branch
          %151 = sbr.rel (%p149) target = $region20
        $region19: #{discriminator_forward.5} parent=11 // pred_region
          _
        $region20: #{discriminator_forward.5} parent=11 // pred_fallthru
          _
      $region12: #{discriminator_forward.5} parent=5 // pred_fallthru
        _
      %p152 = scmp.lt.s32.totalorder %s12, 16
      // Predicated region
      $region21: #{discriminator_forward.5} parent=5 // pred_check
        %p153 = pneg %p152
      $region22: #{discriminator_forward.5} parent=5 // pred_check_branch
        %155 = sbr.rel (%p153) target = $region24
      $region23: #{discriminator_forward.5} parent=5 // pred_region
        // Predicated region
        $region25: #{discriminator_forward.5} parent=23 // pred_check
          %p156 = pneg %p46
        $region26: #{discriminator_forward.5} parent=23 // pred_check_branch
          %158 = sbr.rel (%p156) target = $region28
        $region27: #{discriminator_forward.5} parent=23 // pred_region
          %s159 = sand.u32 %s36, 1
          %s160 = scalar_lea.sflag [#allocation4], %s159
          %s161 = sand.u32 %s36, 1
          %s162 = smul.addr %s161, 256
          %s163 = scalar_lea.vmem [#allocation3], %s162
          %s164 = smul.u32 64, %s19
          %166 = vsyncadd %s160, 0
          %s167 = sadd.s32 %s20, %s164
          %s168 = smul.addr %s167, 4
          %s169 = scalar_lea.hbm %s0, %s168
          %s170 = sshll.u32 %s169, 4
          %s171 = int_to_ptr.hbm [resolvable:$true] %s170
          %s172 = sshll.u32 %s163, 4
          %s173 = int_to_ptr.vmem [resolvable:$true] %s172
          %178 = dma.hbm_to_vmem [thread:$0]  %s171, 4096, %s173, %s160, 64, 64, 4
        $region28: #{discriminator_forward.5} parent=23 // pred_fallthru
          _
      $region24: #{discriminator_forward.5} parent=5 // pred_fallthru
        _
      %p179 = scmp.le.s32.totalorder 1, %s12
      %p180 = scmp.lt.s32.totalorder %s12, 17
      %p181 = pnand %p179, %p180
      %p182 = pneg %p181
      // Predicated region
      $region29: #{discriminator_forward.5} parent=5 // pred_check
        _
      $region30: #{discriminator_forward.5} parent=5 // pred_check_branch
        %184 = sbr.rel (%p181) target = $region32
      $region31: #{discriminator_forward.5} parent=5 // pred_region
        %s185 = ssub.s32 %s12, 1
        %s186 = sand.u32 %s39, 1
        %s187 = scalar_lea.sflag [#allocation4], %s186
        %s188 = sand.u32 %s39, 1
        %s189 = smul.addr %s188, 256
        %s190 = scalar_lea.vmem [#allocation3], %s189
        // Predicated region
        $region33: #{discriminator_forward.5} parent=31 // pred_check
          %p191 = pneg %p52
        $region34: #{discriminator_forward.5} parent=31 // pred_check_branch
          %193 = sbr.rel (%p191) target = $region36
        $region35: #{discriminator_forward.5} parent=31 // pred_region
          %195 = dma.done %s187, 4096
        $region36: #{discriminator_forward.5} parent=31 // pred_fallthru
          _
        %s196 = sand.u32 %s39, 1
        %s197 = scalar_lea.sflag [#allocation4], %s196
        %s198 = sand.u32 %s39, 1
        %s199 = smul.addr %s198, 256
        %s200 = scalar_lea.vmem [#allocation3], %s199
        %p201 = pneg %p52
        %p202 = pneg %p49
        %s203 = smul.u32 8, %s22
        %p204 = scmp.lt.s32.totalorder %s203, 7
        %s205 = scalar_select %p204, %s203, 7
        %s206 = smul.addr %s205, 4
        %s207 = scalar_lea.vmem %s1, %s206
        %p208 = pneg %p78
        %p209 = pneg %p75
        %p210 = pneg %p99
        %p211 = pneg %p96
        %p212 = pneg %p125
        %p213 = pneg %p122
        %s214 = smul.u32 64, %s21
        %p215 = scmp.lt.s32.totalorder %s214, 1023
        %s216 = scalar_select %p215, %s214, 1023
        %s217 = smul.addr %s216, 4
        %s218 = scalar_lea.vmem %s3, %s217
        %s219 = smul.u32 64, %s21
        %s220 = smul.u32 8, %s22
        %p221 = scmp.lt.s32.totalorder %s220, 7
        %s222 = scalar_select %p221, %s220, 7
        %s223 = smul.addr %s222, 4
        %s224 = scalar_lea.vmem %s1, %s223
        %s225 = smul.u32 8, %s22
        %s226 = smul.u32 64, %s21
        %p227 = scmp.lt.s32.totalorder %s226, 1023
        %s228 = scalar_select %p227, %s226, 1023
        %s229 = smul.addr %s228, 4
        %s230 = scalar_lea.vmem %s3, %s229
        %s231 = smul.u32 64, %s21
        %p233 = scmp.eq.s32.totalorder %s22, 0
        // Predicated region
        $region37: #{discriminator_forward.5} parent=31 // pred_check
          %p234 = pneg %p233
        $region38: #{discriminator_forward.5} parent=31 // pred_check_branch
          %236 = sbr.rel (%p234) target = $region40
        $region39: #{discriminator_forward.5} parent=31 // pred_region
          %237 = vst [vmem:[#allocation2] sm:$0xff] 0.0
          %238 = vst [vmem:[#allocation2 + $0x8] sm:$0xff] 0.0
          %239 = vst [vmem:[#allocation2 + $0x10] sm:$0xff] 0.0
          %240 = vst [vmem:[#allocation2 + $0x18] sm:$0xff] 0.0
          %241 = vst [vmem:[#allocation2 + $0x20] sm:$0xff] 0.0
          %242 = vst [vmem:[#allocation2 + $0x28] sm:$0xff] 0.0
          %243 = vst [vmem:[#allocation2 + $0x30] sm:$0xff] 0.0
          %244 = vst [vmem:[#allocation2 + $0x38] sm:$0xff] 0.0
          %245 = vst [vmem:[#allocation2 + $0x40] sm:$0xff] 0.0
          %246 = vst [vmem:[#allocation2 + $0x48] sm:$0xff] 0.0
          %247 = vst [vmem:[#allocation2 + $0x50] sm:$0xff] 0.0
          %248 = vst [vmem:[#allocation2 + $0x58] sm:$0xff] 0.0
          %249 = vst [vmem:[#allocation2 + $0x60] sm:$0xff] 0.0
          %250 = vst [vmem:[#allocation2 + $0x68] sm:$0xff] 0.0
          %251 = vst [vmem:[#allocation2 + $0x70] sm:$0xff] 0.0
          %252 = vst [vmem:[#allocation2 + $0x78] sm:$0xff] 0.0
          %253 = vst [vmem:[#allocation2 + $0x80] sm:$0xff] 0.0
          %254 = vst [vmem:[#allocation2 + $0x88] sm:$0xff] 0.0
          %255 = vst [vmem:[#allocation2 + $0x90] sm:$0xff] 0.0
          %256 = vst [vmem:[#allocation2 + $0x98] sm:$0xff] 0.0
          %257 = vst [vmem:[#allocation2 + $0xa0] sm:$0xff] 0.0
          %258 = vst [vmem:[#allocation2 + $0xa8] sm:$0xff] 0.0
          %259 = vst [vmem:[#allocation2 + $0xb0] sm:$0xff] 0.0
          %260 = vst [vmem:[#allocation2 + $0xb8] sm:$0xff] 0.0
          %261 = vst [vmem:[#allocation2 + $0xc0] sm:$0xff] 0.0
          %262 = vst [vmem:[#allocation2 + $0xc8] sm:$0xff] 0.0
          %263 = vst [vmem:[#allocation2 + $0xd0] sm:$0xff] 0.0
          %264 = vst [vmem:[#allocation2 + $0xd8] sm:$0xff] 0.0
          %265 = vst [vmem:[#allocation2 + $0xe0] sm:$0xff] 0.0
          %266 = vst [vmem:[#allocation2 + $0xe8] sm:$0xff] 0.0
          %267 = vst [vmem:[#allocation2 + $0xf0] sm:$0xff] 0.0
          %268 = vst [vmem:[#allocation2 + $0xf8] sm:$0xff] 0.0
          %269 = vst [vmem:[#allocation2 + $0x100] sm:$0xff] 0.0
          %270 = vst [vmem:[#allocation2 + $0x108] sm:$0xff] 0.0
          %271 = vst [vmem:[#allocation2 + $0x110] sm:$0xff] 0.0
          %272 = vst [vmem:[#allocation2 + $0x118] sm:$0xff] 0.0
          %273 = vst [vmem:[#allocation2 + $0x120] sm:$0xff] 0.0
          %274 = vst [vmem:[#allocation2 + $0x128] sm:$0xff] 0.0
          %275 = vst [vmem:[#allocation2 + $0x130] sm:$0xff] 0.0
          %276 = vst [vmem:[#allocation2 + $0x138] sm:$0xff] 0.0
          %277 = vst [vmem:[#allocation2 + $0x140] sm:$0xff] 0.0
          %278 = vst [vmem:[#allocation2 + $0x148] sm:$0xff] 0.0
          %279 = vst [vmem:[#allocation2 + $0x150] sm:$0xff] 0.0
          %280 = vst [vmem:[#allocation2 + $0x158] sm:$0xff] 0.0
          %281 = vst [vmem:[#allocation2 + $0x160] sm:$0xff] 0.0
          %282 = vst [vmem:[#allocation2 + $0x168] sm:$0xff] 0.0
          %283 = vst [vmem:[#allocation2 + $0x170] sm:$0xff] 0.0
          %284 = vst [vmem:[#allocation2 + $0x178] sm:$0xff] 0.0
          %285 = vst [vmem:[#allocation2 + $0x180] sm:$0xff] 0.0
          %286 = vst [vmem:[#allocation2 + $0x188] sm:$0xff] 0.0
          %287 = vst [vmem:[#allocation2 + $0x190] sm:$0xff] 0.0
          %288 = vst [vmem:[#allocation2 + $0x198] sm:$0xff] 0.0
          %289 = vst [vmem:[#allocation2 + $0x1a0] sm:$0xff] 0.0
          %290 = vst [vmem:[#allocation2 + $0x1a8] sm:$0xff] 0.0
          %291 = vst [vmem:[#allocation2 + $0x1b0] sm:$0xff] 0.0
          %292 = vst [vmem:[#allocation2 + $0x1b8] sm:$0xff] 0.0
          %293 = vst [vmem:[#allocation2 + $0x1c0] sm:$0xff] 0.0
          %294 = vst [vmem:[#allocation2 + $0x1c8] sm:$0xff] 0.0
          %295 = vst [vmem:[#allocation2 + $0x1d0] sm:$0xff] 0.0
          %296 = vst [vmem:[#allocation2 + $0x1d8] sm:$0xff] 0.0
          %297 = vst [vmem:[#allocation2 + $0x1e0] sm:$0xff] 0.0
          %298 = vst [vmem:[#allocation2 + $0x1e8] sm:$0xff] 0.0
          %299 = vst [vmem:[#allocation2 + $0x1f0] sm:$0xff] 0.0
          %300 = vst [vmem:[#allocation2 + $0x1f8] sm:$0xff] 0.0
        $region40: #{discriminator_forward.5} parent=31 // pred_fallthru
          _
        %v301 = vld [vmem:[#allocation2] sm:$0xff]
        %v302 = vld [vmem:[#allocation2 + $0x8] sm:$0xff]
        %v303 = vld [vmem:[#allocation2 + $0x10] sm:$0xff]
        %v304 = vld [vmem:[#allocation2 + $0x18] sm:$0xff]
        %v305 = vld [vmem:[#allocation2 + $0x20] sm:$0xff]
        %v306 = vld [vmem:[#allocation2 + $0x28] sm:$0xff]
        %v307 = vld [vmem:[#allocation2 + $0x30] sm:$0xff]
        %v308 = vld [vmem:[#allocation2 + $0x38] sm:$0xff]
        %v309 = vld [vmem:[#allocation2 + $0x40] sm:$0xff]
        %v310 = vld [vmem:[#allocation2 + $0x48] sm:$0xff]
        %v311 = vld [vmem:[#allocation2 + $0x50] sm:$0xff]
        %v312 = vld [vmem:[#allocation2 + $0x58] sm:$0xff]
        %v313 = vld [vmem:[#allocation2 + $0x60] sm:$0xff]
        %v314 = vld [vmem:[#allocation2 + $0x68] sm:$0xff]
        %v315 = vld [vmem:[#allocation2 + $0x70] sm:$0xff]
        %v316 = vld [vmem:[#allocation2 + $0x78] sm:$0xff]
        %v317 = vld [vmem:[#allocation2 + $0x80] sm:$0xff]
        %v318 = vld [vmem:[#allocation2 + $0x88] sm:$0xff]
        %v319 = vld [vmem:[#allocation2 + $0x90] sm:$0xff]
        %v320 = vld [vmem:[#allocation2 + $0x98] sm:$0xff]
        %v321 = vld [vmem:[#allocation2 + $0xa0] sm:$0xff]
        %v322 = vld [vmem:[#allocation2 + $0xa8] sm:$0xff]
        %v323 = vld [vmem:[#allocation2 + $0xb0] sm:$0xff]
        %v324 = vld [vmem:[#allocation2 + $0xb8] sm:$0xff]
        %v325 = vld [vmem:[#allocation2 + $0xc0] sm:$0xff]
        %v326 = vld [vmem:[#allocation2 + $0xc8] sm:$0xff]
        %v327 = vld [vmem:[#allocation2 + $0xd0] sm:$0xff]
        %v328 = vld [vmem:[#allocation2 + $0xd8] sm:$0xff]
        %v329 = vld [vmem:[#allocation2 + $0xe0] sm:$0xff]
        %v330 = vld [vmem:[#allocation2 + $0xe8] sm:$0xff]
        %v331 = vld [vmem:[#allocation2 + $0xf0] sm:$0xff]
        %v332 = vld [vmem:[#allocation2 + $0xf8] sm:$0xff]
        %v333 = vld [vmem:[#allocation2 + $0x100] sm:$0xff]
        %v334 = vld [vmem:[#allocation2 + $0x108] sm:$0xff]
        %v335 = vld [vmem:[#allocation2 + $0x110] sm:$0xff]
        %v336 = vld [vmem:[#allocation2 + $0x118] sm:$0xff]
        %v337 = vld [vmem:[#allocation2 + $0x120] sm:$0xff]
        %v338 = vld [vmem:[#allocation2 + $0x128] sm:$0xff]
        %v339 = vld [vmem:[#allocation2 + $0x130] sm:$0xff]
        %v340 = vld [vmem:[#allocation2 + $0x138] sm:$0xff]
        %v341 = vld [vmem:[#allocation2 + $0x140] sm:$0xff]
        %v342 = vld [vmem:[#allocation2 + $0x148] sm:$0xff]
        %v343 = vld [vmem:[#allocation2 + $0x150] sm:$0xff]
        %v344 = vld [vmem:[#allocation2 + $0x158] sm:$0xff]
        %v345 = vld [vmem:[#allocation2 + $0x160] sm:$0xff]
        %v346 = vld [vmem:[#allocation2 + $0x168] sm:$0xff]
        %v347 = vld [vmem:[#allocation2 + $0x170] sm:$0xff]
        %v348 = vld [vmem:[#allocation2 + $0x178] sm:$0xff]
        %v349 = vld [vmem:[#allocation2 + $0x180] sm:$0xff]
        %v350 = vld [vmem:[#allocation2 + $0x188] sm:$0xff]
        %v351 = vld [vmem:[#allocation2 + $0x190] sm:$0xff]
        %v352 = vld [vmem:[#allocation2 + $0x198] sm:$0xff]
        %v353 = vld [vmem:[#allocation2 + $0x1a0] sm:$0xff]
        %v354 = vld [vmem:[#allocation2 + $0x1a8] sm:$0xff]
        %v355 = vld [vmem:[#allocation2 + $0x1b0] sm:$0xff]
        %v356 = vld [vmem:[#allocation2 + $0x1b8] sm:$0xff]
        %v357 = vld [vmem:[#allocation2 + $0x1c0] sm:$0xff]
        %v358 = vld [vmem:[#allocation2 + $0x1c8] sm:$0xff]
        %v359 = vld [vmem:[#allocation2 + $0x1d0] sm:$0xff]
        %v360 = vld [vmem:[#allocation2 + $0x1d8] sm:$0xff]
        %v361 = vld [vmem:[#allocation2 + $0x1e0] sm:$0xff]
        %v362 = vld [vmem:[#allocation2 + $0x1e8] sm:$0xff]
        %v363 = vld [vmem:[#allocation2 + $0x1f0] sm:$0xff]
        %v364 = vld [vmem:[#allocation2 + $0x1f8] sm:$0xff]
        %v365 = vld [vmem:[%s190] sm:$0xf]
        %v366 = vld [vmem:[%s190 + $0x4] sm:$0xf]
        %v367 = vld [vmem:[%s190 + $0x8] sm:$0xf]
        %v368 = vld [vmem:[%s190 + $0xc] sm:$0xf]
        %v369 = vld [vmem:[%s190 + $0x10] sm:$0xf]
        %v370 = vld [vmem:[%s190 + $0x14] sm:$0xf]
        %v371 = vld [vmem:[%s190 + $0x18] sm:$0xf]
        %v372 = vld [vmem:[%s190 + $0x1c] sm:$0xf]
        %v373 = vld [vmem:[%s190 + $0x20] sm:$0xf]
        %v374 = vld [vmem:[%s190 + $0x24] sm:$0xf]
        %v375 = vld [vmem:[%s190 + $0x28] sm:$0xf]
        %v376 = vld [vmem:[%s190 + $0x2c] sm:$0xf]
        %v377 = vld [vmem:[%s190 + $0x30] sm:$0xf]
        %v378 = vld [vmem:[%s190 + $0x34] sm:$0xf]
        %v379 = vld [vmem:[%s190 + $0x38] sm:$0xf]
        %v380 = vld [vmem:[%s190 + $0x3c] sm:$0xf]
        %v381 = vld [vmem:[%s190 + $0x40] sm:$0xf]
        %v382 = vld [vmem:[%s190 + $0x44] sm:$0xf]
        %v383 = vld [vmem:[%s190 + $0x48] sm:$0xf]
        %v384 = vld [vmem:[%s190 + $0x4c] sm:$0xf]
        %v385 = vld [vmem:[%s190 + $0x50] sm:$0xf]
        %v386 = vld [vmem:[%s190 + $0x54] sm:$0xf]
        %v387 = vld [vmem:[%s190 + $0x58] sm:$0xf]
        %v388 = vld [vmem:[%s190 + $0x5c] sm:$0xf]
        %v389 = vld [vmem:[%s190 + $0x60] sm:$0xf]
        %v390 = vld [vmem:[%s190 + $0x64] sm:$0xf]
        %v391 = vld [vmem:[%s190 + $0x68] sm:$0xf]
        %v392 = vld [vmem:[%s190 + $0x6c] sm:$0xf]
        %v393 = vld [vmem:[%s190 + $0x70] sm:$0xf]
        %v394 = vld [vmem:[%s190 + $0x74] sm:$0xf]
        %v395 = vld [vmem:[%s190 + $0x78] sm:$0xf]
        %v396 = vld [vmem:[%s190 + $0x7c] sm:$0xf]
        %v397 = vld [vmem:[%s190 + $0x80] sm:$0xf]
        %v398 = vld [vmem:[%s190 + $0x84] sm:$0xf]
        %v399 = vld [vmem:[%s190 + $0x88] sm:$0xf]
        %v400 = vld [vmem:[%s190 + $0x8c] sm:$0xf]
        %v401 = vld [vmem:[%s190 + $0x90] sm:$0xf]
        %v402 = vld [vmem:[%s190 + $0x94] sm:$0xf]
        %v403 = vld [vmem:[%s190 + $0x98] sm:$0xf]
        %v404 = vld [vmem:[%s190 + $0x9c] sm:$0xf]
        %v405 = vld [vmem:[%s190 + $0xa0] sm:$0xf]
        %v406 = vld [vmem:[%s190 + $0xa4] sm:$0xf]
        %v407 = vld [vmem:[%s190 + $0xa8] sm:$0xf]
        %v408 = vld [vmem:[%s190 + $0xac] sm:$0xf]
        %v409 = vld [vmem:[%s190 + $0xb0] sm:$0xf]
        %v410 = vld [vmem:[%s190 + $0xb4] sm:$0xf]
        %v411 = vld [vmem:[%s190 + $0xb8] sm:$0xf]
        %v412 = vld [vmem:[%s190 + $0xbc] sm:$0xf]
        %v413 = vld [vmem:[%s190 + $0xc0] sm:$0xf]
        %v414 = vld [vmem:[%s190 + $0xc4] sm:$0xf]
        %v415 = vld [vmem:[%s190 + $0xc8] sm:$0xf]
        %v416 = vld [vmem:[%s190 + $0xcc] sm:$0xf]
        %v417 = vld [vmem:[%s190 + $0xd0] sm:$0xf]
        %v418 = vld [vmem:[%s190 + $0xd4] sm:$0xf]
        %v419 = vld [vmem:[%s190 + $0xd8] sm:$0xf]
        %v420 = vld [vmem:[%s190 + $0xdc] sm:$0xf]
        %v421 = vld [vmem:[%s190 + $0xe0] sm:$0xf]
        %v422 = vld [vmem:[%s190 + $0xe4] sm:$0xf]
        %v423 = vld [vmem:[%s190 + $0xe8] sm:$0xf]
        %v424 = vld [vmem:[%s190 + $0xec] sm:$0xf]
        %v425 = vld [vmem:[%s190 + $0xf0] sm:$0xf]
        %v426 = vld [vmem:[%s190 + $0xf4] sm:$0xf]
        %v427 = vld [vmem:[%s190 + $0xf8] sm:$0xf]
        %v428 = vld [vmem:[%s190 + $0xfc] sm:$0xf]
        %v429 = vld [vmem:[%s224] sm:$0xf]
        %v430 = vld [vmem:[%s224 + $0x4] sm:$0xf]
        %v431 = vld [vmem:[%s224 + $0x8] sm:$0xf]
        %v432 = vld [vmem:[%s224 + $0xc] sm:$0xf]
        %v433 = vld [vmem:[%s224 + $0x10] sm:$0xf]
        %v434 = vld [vmem:[%s224 + $0x14] sm:$0xf]
        %v435 = vld [vmem:[%s224 + $0x18] sm:$0xf]
        %v436 = vld [vmem:[%s224 + $0x1c] sm:$0xf]
        %v501 = vunpack.c.l.b16 %v365
        %v502 = vunpack.c.l.b16 %v366
        %v503 = vunpack.c.l.b16 %v367
        %v504 = vunpack.c.l.b16 %v368
        %v505 = vunpack.c.l.b16 %v369
        %v506 = vunpack.c.l.b16 %v370
        %v507 = vunpack.c.l.b16 %v371
        %v508 = vunpack.c.l.b16 %v372
        %v509 = vunpack.c.l.b16 %v373
        %v510 = vunpack.c.l.b16 %v374
        %v511 = vunpack.c.l.b16 %v375
        %v512 = vunpack.c.l.b16 %v376
        %v513 = vunpack.c.l.b16 %v377
        %v514 = vunpack.c.l.b16 %v378
        %v515 = vunpack.c.l.b16 %v379
        %v516 = vunpack.c.l.b16 %v380
        %v517 = vunpack.c.l.b16 %v381
        %v518 = vunpack.c.l.b16 %v382
        %v519 = vunpack.c.l.b16 %v383
        %v520 = vunpack.c.l.b16 %v384
        %v521 = vunpack.c.l.b16 %v385
        %v522 = vunpack.c.l.b16 %v386
        %v523 = vunpack.c.l.b16 %v387
        %v524 = vunpack.c.l.b16 %v388
        %v525 = vunpack.c.l.b16 %v389
        %v526 = vunpack.c.l.b16 %v390
        %v527 = vunpack.c.l.b16 %v391
        %v528 = vunpack.c.l.b16 %v392
        %v529 = vunpack.c.l.b16 %v393
        %v530 = vunpack.c.l.b16 %v394
        %v531 = vunpack.c.l.b16 %v395
        %v532 = vunpack.c.l.b16 %v396
        %v533 = vunpack.c.l.b16 %v397
        %v534 = vunpack.c.l.b16 %v398
        %v535 = vunpack.c.l.b16 %v399
        %v536 = vunpack.c.l.b16 %v400
        %v537 = vunpack.c.l.b16 %v401
        %v538 = vunpack.c.l.b16 %v402
        %v539 = vunpack.c.l.b16 %v403
        %v540 = vunpack.c.l.b16 %v404
        %v541 = vunpack.c.l.b16 %v405
        %v542 = vunpack.c.l.b16 %v406
        %v543 = vunpack.c.l.b16 %v407
        %v544 = vunpack.c.l.b16 %v408
        %v545 = vunpack.c.l.b16 %v409
        %v546 = vunpack.c.l.b16 %v410
        %v547 = vunpack.c.l.b16 %v411
        %v548 = vunpack.c.l.b16 %v412
        %v549 = vunpack.c.l.b16 %v413
        %v550 = vunpack.c.l.b16 %v414
        %v551 = vunpack.c.l.b16 %v415
        %v552 = vunpack.c.l.b16 %v416
        %v553 = vunpack.c.l.b16 %v417
        %v554 = vunpack.c.l.b16 %v418
        %v555 = vunpack.c.l.b16 %v419
        %v556 = vunpack.c.l.b16 %v420
        %v557 = vunpack.c.l.b16 %v421
        %v558 = vunpack.c.l.b16 %v422
        %v559 = vunpack.c.l.b16 %v423
        %v560 = vunpack.c.l.b16 %v424
        %v561 = vunpack.c.l.b16 %v425
        %v562 = vunpack.c.l.b16 %v426
        %v563 = vunpack.c.l.b16 %v427
        %v564 = vunpack.c.l.b16 %v428
        %v565 = vpack.c.b16 %v502, %v501
        %v566 = vpack.c.b16 %v504, %v503
        %v567 = vpack.c.b16 %v506, %v505
        %v568 = vpack.c.b16 %v508, %v507
        %v569 = vpack.c.b16 %v510, %v509
        %v570 = vpack.c.b16 %v512, %v511
        %v571 = vpack.c.b16 %v514, %v513
        %v572 = vpack.c.b16 %v516, %v515
        %v573 = vpack.c.b16 %v518, %v517
        %v574 = vpack.c.b16 %v520, %v519
        %v575 = vpack.c.b16 %v522, %v521
        %v576 = vpack.c.b16 %v524, %v523
        %v577 = vpack.c.b16 %v526, %v525
        %v578 = vpack.c.b16 %v528, %v527
        %v579 = vpack.c.b16 %v530, %v529
        %v580 = vpack.c.b16 %v532, %v531
        %v581 = vpack.c.b16 %v534, %v533
        %v582 = vpack.c.b16 %v536, %v535
        %v583 = vpack.c.b16 %v538, %v537
        %v584 = vpack.c.b16 %v540, %v539
        %v585 = vpack.c.b16 %v542, %v541
        %v586 = vpack.c.b16 %v544, %v543
        %v587 = vpack.c.b16 %v546, %v545
        %v588 = vpack.c.b16 %v548, %v547
        %v589 = vpack.c.b16 %v550, %v549
        %v590 = vpack.c.b16 %v552, %v551
        %v591 = vpack.c.b16 %v554, %v553
        %v592 = vpack.c.b16 %v556, %v555
        %v593 = vpack.c.b16 %v558, %v557
        %v594 = vpack.c.b16 %v560, %v559
        %v595 = vpack.c.b16 %v562, %v561
        %v596 = vpack.c.b16 %v564, %v563
        %v605 = vunpack.c.l.b16 %v429
        %v606 = vunpack.c.l.b16 %v430
        %v607 = vunpack.c.l.b16 %v431
        %v608 = vunpack.c.l.b16 %v432
        %v609 = vunpack.c.l.b16 %v433
        %v610 = vunpack.c.l.b16 %v434
        %v611 = vunpack.c.l.b16 %v435
        %v612 = vunpack.c.l.b16 %v436
        %v613 = vpack.c.b16 %v606, %v605
        %v614 = vpack.c.b16 %v608, %v607
        %v615 = vpack.c.b16 %v610, %v609
        %v616 = vpack.c.b16 %v612, %v611
        %vm621 = vcmask 523264
        %v623 = vsel %vm621, %v565, 0
        %v626 = vsel %vm621, %v566, 0
        %v629 = vsel %vm621, %v567, 0
        %v632 = vsel %vm621, %v568, 0
        %v635 = vsel %vm621, %v569, 0
        %v638 = vsel %vm621, %v570, 0
        %v641 = vsel %vm621, %v571, 0
        %v644 = vsel %vm621, %v572, 0
        %v647 = vsel %vm621, %v573, 0
        %v650 = vsel %vm621, %v574, 0
        %v653 = vsel %vm621, %v575, 0
        %v656 = vsel %vm621, %v576, 0
        %v659 = vsel %vm621, %v577, 0
        %v662 = vsel %vm621, %v578, 0
        %v665 = vsel %vm621, %v579, 0
        %v668 = vsel %vm621, %v580, 0
        %v671 = vsel %vm621, %v581, 0
        %v674 = vsel %vm621, %v582, 0
        %v677 = vsel %vm621, %v583, 0
        %v680 = vsel %vm621, %v584, 0
        %v683 = vsel %vm621, %v585, 0
        %v686 = vsel %vm621, %v586, 0
        %v689 = vsel %vm621, %v587, 0
        %v692 = vsel %vm621, %v588, 0
        %v695 = vsel %vm621, %v589, 0
        %v698 = vsel %vm621, %v590, 0
        %v701 = vsel %vm621, %v591, 0
        %v704 = vsel %vm621, %v592, 0
        %v707 = vsel %vm621, %v593, 0
        %v710 = vsel %vm621, %v594, 0
        %v713 = vsel %vm621, %v595, 0
        %v716 = vsel %vm621, %v596, 0
        %718 = vmatpush.bf16.msra.mxu0 0
        %719 = vmatpush.bf16.msra.mxu0 0
        %720 = vmatpush.bf16.msra.mxu0 0
        %721 = vmatpush.bf16.msra.mxu0 0
        %722 = vmatpush.bf16.msra.mxu0 %v616
        %723 = vmatpush.bf16.msra.mxu0 %v615
        %724 = vmatpush.bf16.msra.mxu0 %v614
        %725 = vmatpush.bf16.msra.mxu0 %v613
        %726 = vmatmul.bf16.gmra.mxu0 %v623
        %v727 = vpop.f32.mrf.mxu0
        %v728 = vadd.f32 0.0, %v727
        %v729 = vpop.f32.mrf.mxu0
        %v730 = vadd.f32 0.0, %v729
        %731 = vmatmul.bf16.gmra.mxu0 %v626
        %v732 = vpop.f32.mrf.mxu0
        %v733 = vadd.f32 0.0, %v732
        %v734 = vpop.f32.mrf.mxu0
        %v735 = vadd.f32 0.0, %v734
        %736 = vmatmul.bf16.gmra.mxu0 %v629
        %v737 = vpop.f32.mrf.mxu0
        %v738 = vadd.f32 0.0, %v737
        %v739 = vpop.f32.mrf.mxu0
        %v740 = vadd.f32 0.0, %v739
        %741 = vmatmul.bf16.gmra.mxu0 %v632
        %v742 = vpop.f32.mrf.mxu0
        %v743 = vadd.f32 0.0, %v742
        %v744 = vpop.f32.mrf.mxu0
        %v745 = vadd.f32 0.0, %v744
        %746 = vmatmul.bf16.gmra.mxu0 %v635
        %v747 = vpop.f32.mrf.mxu0
        %v748 = vadd.f32 0.0, %v747
        %v749 = vpop.f32.mrf.mxu0
        %v750 = vadd.f32 0.0, %v749
        %751 = vmatmul.bf16.gmra.mxu0 %v638
        %v752 = vpop.f32.mrf.mxu0
        %v753 = vadd.f32 0.0, %v752
        %v754 = vpop.f32.mrf.mxu0
        %v755 = vadd.f32 0.0, %v754
        %756 = vmatmul.bf16.gmra.mxu0 %v641
        %v757 = vpop.f32.mrf.mxu0
        %v758 = vadd.f32 0.0, %v757
        %v759 = vpop.f32.mrf.mxu0
        %v760 = vadd.f32 0.0, %v759
        %761 = vmatmul.bf16.gmra.mxu0 %v644
        %v762 = vpop.f32.mrf.mxu0
        %v763 = vadd.f32 0.0, %v762
        %v764 = vpop.f32.mrf.mxu0
        %v765 = vadd.f32 0.0, %v764
        %766 = vmatmul.bf16.gmra.mxu0 %v647
        %v767 = vpop.f32.mrf.mxu0
        %v768 = vadd.f32 0.0, %v767
        %v769 = vpop.f32.mrf.mxu0
        %v770 = vadd.f32 0.0, %v769
        %771 = vmatmul.bf16.gmra.mxu0 %v650
        %v772 = vpop.f32.mrf.mxu0
        %v773 = vadd.f32 0.0, %v772
        %v774 = vpop.f32.mrf.mxu0
        %v775 = vadd.f32 0.0, %v774
        %776 = vmatmul.bf16.gmra.mxu0 %v653
        %v777 = vpop.f32.mrf.mxu0
        %v778 = vadd.f32 0.0, %v777
        %v779 = vpop.f32.mrf.mxu0
        %v780 = vadd.f32 0.0, %v779
        %781 = vmatmul.bf16.gmra.mxu0 %v656
        %v782 = vpop.f32.mrf.mxu0
        %v783 = vadd.f32 0.0, %v782
        %v784 = vpop.f32.mrf.mxu0
        %v785 = vadd.f32 0.0, %v784
        %786 = vmatmul.bf16.gmra.mxu0 %v659
        %v787 = vpop.f32.mrf.mxu0
        %v788 = vadd.f32 0.0, %v787
        %v789 = vpop.f32.mrf.mxu0
        %v790 = vadd.f32 0.0, %v789
        %791 = vmatmul.bf16.gmra.mxu0 %v662
        %v792 = vpop.f32.mrf.mxu0
        %v793 = vadd.f32 0.0, %v792
        %v794 = vpop.f32.mrf.mxu0
        %v795 = vadd.f32 0.0, %v794
        %796 = vmatmul.bf16.gmra.mxu0 %v665
        %v797 = vpop.f32.mrf.mxu0
        %v798 = vadd.f32 0.0, %v797
        %v799 = vpop.f32.mrf.mxu0
        %v800 = vadd.f32 0.0, %v799
        %801 = vmatmul.bf16.gmra.mxu0 %v668
        %v802 = vpop.f32.mrf.mxu0
        %v803 = vadd.f32 0.0, %v802
        %v804 = vpop.f32.mrf.mxu0
        %v805 = vadd.f32 0.0, %v804
        %806 = vmatmul.bf16.gmra.mxu0 %v671
        %v807 = vpop.f32.mrf.mxu0
        %v808 = vadd.f32 0.0, %v807
        %v809 = vpop.f32.mrf.mxu0
        %v810 = vadd.f32 0.0, %v809
        %811 = vmatmul.bf16.gmra.mxu0 %v674
        %v812 = vpop.f32.mrf.mxu0
        %v813 = vadd.f32 0.0, %v812
        %v814 = vpop.f32.mrf.mxu0
        %v815 = vadd.f32 0.0, %v814
        %816 = vmatmul.bf16.gmra.mxu0 %v677
        %v817 = vpop.f32.mrf.mxu0
        %v818 = vadd.f32 0.0, %v817
        %v819 = vpop.f32.mrf.mxu0
        %v820 = vadd.f32 0.0, %v819
        %821 = vmatmul.bf16.gmra.mxu0 %v680
        %v822 = vpop.f32.mrf.mxu0
        %v823 = vadd.f32 0.0, %v822
        %v824 = vpop.f32.mrf.mxu0
        %v825 = vadd.f32 0.0, %v824
        %826 = vmatmul.bf16.gmra.mxu0 %v683
        %v827 = vpop.f32.mrf.mxu0
        %v828 = vadd.f32 0.0, %v827
        %v829 = vpop.f32.mrf.mxu0
        %v830 = vadd.f32 0.0, %v829
        %831 = vmatmul.bf16.gmra.mxu0 %v686
        %v832 = vpop.f32.mrf.mxu0
        %v833 = vadd.f32 0.0, %v832
        %v834 = vpop.f32.mrf.mxu0
        %v835 = vadd.f32 0.0, %v834
        %836 = vmatmul.bf16.gmra.mxu0 %v689
        %v837 = vpop.f32.mrf.mxu0
        %v838 = vadd.f32 0.0, %v837
        %v839 = vpop.f32.mrf.mxu0
        %v840 = vadd.f32 0.0, %v839
        %841 = vmatmul.bf16.gmra.mxu0 %v692
        %v842 = vpop.f32.mrf.mxu0
        %v843 = vadd.f32 0.0, %v842
        %v844 = vpop.f32.mrf.mxu0
        %v845 = vadd.f32 0.0, %v844
        %846 = vmatmul.bf16.gmra.mxu0 %v695
        %v847 = vpop.f32.mrf.mxu0
        %v848 = vadd.f32 0.0, %v847
        %v849 = vpop.f32.mrf.mxu0
        %v850 = vadd.f32 0.0, %v849
        %851 = vmatmul.bf16.gmra.mxu0 %v698
        %v852 = vpop.f32.mrf.mxu0
        %v853 = vadd.f32 0.0, %v852
        %v854 = vpop.f32.mrf.mxu0
        %v855 = vadd.f32 0.0, %v854
        %856 = vmatmul.bf16.gmra.mxu0 %v701
        %v857 = vpop.f32.mrf.mxu0
        %v858 = vadd.f32 0.0, %v857
        %v859 = vpop.f32.mrf.mxu0
        %v860 = vadd.f32 0.0, %v859
        %861 = vmatmul.bf16.gmra.mxu0 %v704
        %v862 = vpop.f32.mrf.mxu0
        %v863 = vadd.f32 0.0, %v862
        %v864 = vpop.f32.mrf.mxu0
        %v865 = vadd.f32 0.0, %v864
        %866 = vmatmul.bf16.gmra.mxu0 %v707
        %v867 = vpop.f32.mrf.mxu0
        %v868 = vadd.f32 0.0, %v867
        %v869 = vpop.f32.mrf.mxu0
        %v870 = vadd.f32 0.0, %v869
        %871 = vmatmul.bf16.gmra.mxu0 %v710
        %v872 = vpop.f32.mrf.mxu0
        %v873 = vadd.f32 0.0, %v872
        %v874 = vpop.f32.mrf.mxu0
        %v875 = vadd.f32 0.0, %v874
        %876 = vmatmul.bf16.gmra.mxu0 %v713
        %v877 = vpop.f32.mrf.mxu0
        %v878 = vadd.f32 0.0, %v877
        %v879 = vpop.f32.mrf.mxu0
        %v880 = vadd.f32 0.0, %v879
        %881 = vmatmul.bf16.gmra.mxu0 %v716
        %v882 = vpop.f32.mrf.mxu0
        %v883 = vadd.f32 0.0, %v882
        %v884 = vpop.f32.mrf.mxu0
        %v885 = vadd.f32 0.0, %v884
        %886 = vdwg.mxu0
        %v887 = vadd.f32 %v301, %v728
        %v888 = vadd.f32 %v302, %v730
        %v889 = vadd.f32 %v303, %v733
        %v890 = vadd.f32 %v304, %v735
        %v891 = vadd.f32 %v305, %v738
        %v892 = vadd.f32 %v306, %v740
        %v893 = vadd.f32 %v307, %v743
        %v894 = vadd.f32 %v308, %v745
        %v895 = vadd.f32 %v309, %v748
        %v896 = vadd.f32 %v310, %v750
        %v897 = vadd.f32 %v311, %v753
        %v898 = vadd.f32 %v312, %v755
        %v899 = vadd.f32 %v313, %v758
        %v900 = vadd.f32 %v314, %v760
        %v901 = vadd.f32 %v315, %v763
        %v902 = vadd.f32 %v316, %v765
        %v903 = vadd.f32 %v317, %v768
        %v904 = vadd.f32 %v318, %v770
        %v905 = vadd.f32 %v319, %v773
        %v906 = vadd.f32 %v320, %v775
        %v907 = vadd.f32 %v321, %v778
        %v908 = vadd.f32 %v322, %v780
        %v909 = vadd.f32 %v323, %v783
        %v910 = vadd.f32 %v324, %v785
        %v911 = vadd.f32 %v325, %v788
        %v912 = vadd.f32 %v326, %v790
        %v913 = vadd.f32 %v327, %v793
        %v914 = vadd.f32 %v328, %v795
        %v915 = vadd.f32 %v329, %v798
        %v916 = vadd.f32 %v330, %v800
        %v917 = vadd.f32 %v331, %v803
        %v918 = vadd.f32 %v332, %v805
        %v919 = vadd.f32 %v333, %v808
        %v920 = vadd.f32 %v334, %v810
        %v921 = vadd.f32 %v335, %v813
        %v922 = vadd.f32 %v336, %v815
        %v923 = vadd.f32 %v337, %v818
        %v924 = vadd.f32 %v338, %v820
        %v925 = vadd.f32 %v339, %v823
        %v926 = vadd.f32 %v340, %v825
        %v927 = vadd.f32 %v341, %v828
        %v928 = vadd.f32 %v342, %v830
        %v929 = vadd.f32 %v343, %v833
        %v930 = vadd.f32 %v344, %v835
        %v931 = vadd.f32 %v345, %v838
        %v932 = vadd.f32 %v346, %v840
        %v933 = vadd.f32 %v347, %v843
        %v934 = vadd.f32 %v348, %v845
        %v935 = vadd.f32 %v349, %v848
        %v936 = vadd.f32 %v350, %v850
        %v937 = vadd.f32 %v351, %v853
        %v938 = vadd.f32 %v352, %v855
        %v939 = vadd.f32 %v353, %v858
        %v940 = vadd.f32 %v354, %v860
        %v941 = vadd.f32 %v355, %v863
        %v942 = vadd.f32 %v356, %v865
        %v943 = vadd.f32 %v357, %v868
        %v944 = vadd.f32 %v358, %v870
        %v945 = vadd.f32 %v359, %v873
        %v946 = vadd.f32 %v360, %v875
        %v947 = vadd.f32 %v361, %v878
        %v948 = vadd.f32 %v362, %v880
        %v949 = vadd.f32 %v363, %v883
        %v950 = vadd.f32 %v364, %v885
        %951 = vst [vmem:[#allocation2] sm:$0xff] %v887
        %952 = vst [vmem:[#allocation2 + $0x8] sm:$0xff] %v888
        %953 = vst [vmem:[#allocation2 + $0x10] sm:$0xff] %v889
        %954 = vst [vmem:[#allocation2 + $0x18] sm:$0xff] %v890
        %955 = vst [vmem:[#allocation2 + $0x20] sm:$0xff] %v891
        %956 = vst [vmem:[#allocation2 + $0x28] sm:$0xff] %v892
        %957 = vst [vmem:[#allocation2 + $0x30] sm:$0xff] %v893
        %958 = vst [vmem:[#allocation2 + $0x38] sm:$0xff] %v894
        %959 = vst [vmem:[#allocation2 + $0x40] sm:$0xff] %v895
        %960 = vst [vmem:[#allocation2 + $0x48] sm:$0xff] %v896
        %961 = vst [vmem:[#allocation2 + $0x50] sm:$0xff] %v897
        %962 = vst [vmem:[#allocation2 + $0x58] sm:$0xff] %v898
        %963 = vst [vmem:[#allocation2 + $0x60] sm:$0xff] %v899
        %964 = vst [vmem:[#allocation2 + $0x68] sm:$0xff] %v900
        %965 = vst [vmem:[#allocation2 + $0x70] sm:$0xff] %v901
        %966 = vst [vmem:[#allocation2 + $0x78] sm:$0xff] %v902
        %967 = vst [vmem:[#allocation2 + $0x80] sm:$0xff] %v903
        %968 = vst [vmem:[#allocation2 + $0x88] sm:$0xff] %v904
        %969 = vst [vmem:[#allocation2 + $0x90] sm:$0xff] %v905
        %970 = vst [vmem:[#allocation2 + $0x98] sm:$0xff] %v906
        %971 = vst [vmem:[#allocation2 + $0xa0] sm:$0xff] %v907
        %972 = vst [vmem:[#allocation2 + $0xa8] sm:$0xff] %v908
        %973 = vst [vmem:[#allocation2 + $0xb0] sm:$0xff] %v909
        %974 = vst [vmem:[#allocation2 + $0xb8] sm:$0xff] %v910
        %975 = vst [vmem:[#allocation2 + $0xc0] sm:$0xff] %v911
        %976 = vst [vmem:[#allocation2 + $0xc8] sm:$0xff] %v912
        %977 = vst [vmem:[#allocation2 + $0xd0] sm:$0xff] %v913
        %978 = vst [vmem:[#allocation2 + $0xd8] sm:$0xff] %v914
        %979 = vst [vmem:[#allocation2 + $0xe0] sm:$0xff] %v915
        %980 = vst [vmem:[#allocation2 + $0xe8] sm:$0xff] %v916
        %981 = vst [vmem:[#allocation2 + $0xf0] sm:$0xff] %v917
        %982 = vst [vmem:[#allocation2 + $0xf8] sm:$0xff] %v918
        %983 = vst [vmem:[#allocation2 + $0x100] sm:$0xff] %v919
        %984 = vst [vmem:[#allocation2 + $0x108] sm:$0xff] %v920
        %985 = vst [vmem:[#allocation2 + $0x110] sm:$0xff] %v921
        %986 = vst [vmem:[#allocation2 + $0x118] sm:$0xff] %v922
        %987 = vst [vmem:[#allocation2 + $0x120] sm:$0xff] %v923
        %988 = vst [vmem:[#allocation2 + $0x128] sm:$0xff] %v924
        %989 = vst [vmem:[#allocation2 + $0x130] sm:$0xff] %v925
        %990 = vst [vmem:[#allocation2 + $0x138] sm:$0xff] %v926
        %991 = vst [vmem:[#allocation2 + $0x140] sm:$0xff] %v927
        %992 = vst [vmem:[#allocation2 + $0x148] sm:$0xff] %v928
        %993 = vst [vmem:[#allocation2 + $0x150] sm:$0xff] %v929
        %994 = vst [vmem:[#allocation2 + $0x158] sm:$0xff] %v930
        %995 = vst [vmem:[#allocation2 + $0x160] sm:$0xff] %v931
        %996 = vst [vmem:[#allocation2 + $0x168] sm:$0xff] %v932
        %997 = vst [vmem:[#allocation2 + $0x170] sm:$0xff] %v933
        %998 = vst [vmem:[#allocation2 + $0x178] sm:$0xff] %v934
        %999 = vst [vmem:[#allocation2 + $0x180] sm:$0xff] %v935
        %1000 = vst [vmem:[#allocation2 + $0x188] sm:$0xff] %v936
        %1001 = vst [vmem:[#allocation2 + $0x190] sm:$0xff] %v937
        %1002 = vst [vmem:[#allocation2 + $0x198] sm:$0xff] %v938
        %1003 = vst [vmem:[#allocation2 + $0x1a0] sm:$0xff] %v939
        %1004 = vst [vmem:[#allocation2 + $0x1a8] sm:$0xff] %v940
        %1005 = vst [vmem:[#allocation2 + $0x1b0] sm:$0xff] %v941
        %1006 = vst [vmem:[#allocation2 + $0x1b8] sm:$0xff] %v942
        %1007 = vst [vmem:[#allocation2 + $0x1c0] sm:$0xff] %v943
        %1008 = vst [vmem:[#allocation2 + $0x1c8] sm:$0xff] %v944
        %1009 = vst [vmem:[#allocation2 + $0x1d0] sm:$0xff] %v945
        %1010 = vst [vmem:[#allocation2 + $0x1d8] sm:$0xff] %v946
        %1011 = vst [vmem:[#allocation2 + $0x1e0] sm:$0xff] %v947
        %1012 = vst [vmem:[#allocation2 + $0x1e8] sm:$0xff] %v948
        %1013 = vst [vmem:[#allocation2 + $0x1f0] sm:$0xff] %v949
        %1014 = vst [vmem:[#allocation2 + $0x1f8] sm:$0xff] %v950
        // Predicated region
        $region41: #{discriminator_forward.5} parent=31 // pred_check
          %p1015 = pneg %p233
        $region42: #{discriminator_forward.5} parent=31 // pred_check_branch
          %1017 = sbr.rel (%p1015) target = $region44
        $region43: #{discriminator_forward.5} parent=31 // pred_region
          %v1018 = vld [vmem:[#allocation2] sm:$0xff]
          %v1019 = vld [vmem:[#allocation2 + $0x8] sm:$0xff]
          %v1020 = vld [vmem:[#allocation2 + $0x10] sm:$0xff]
          %v1021 = vld [vmem:[#allocation2 + $0x18] sm:$0xff]
          %v1022 = vld [vmem:[#allocation2 + $0x20] sm:$0xff]
          %v1023 = vld [vmem:[#allocation2 + $0x28] sm:$0xff]
          %v1024 = vld [vmem:[#allocation2 + $0x30] sm:$0xff]
          %v1025 = vld [vmem:[#allocation2 + $0x38] sm:$0xff]
          %v1026 = vld [vmem:[#allocation2 + $0x40] sm:$0xff]
          %v1027 = vld [vmem:[#allocation2 + $0x48] sm:$0xff]
          %v1028 = vld [vmem:[#allocation2 + $0x50] sm:$0xff]
          %v1029 = vld [vmem:[#allocation2 + $0x58] sm:$0xff]
          %v1030 = vld [vmem:[#allocation2 + $0x60] sm:$0xff]
          %v1031 = vld [vmem:[#allocation2 + $0x68] sm:$0xff]
          %v1032 = vld [vmem:[#allocation2 + $0x70] sm:$0xff]
          %v1033 = vld [vmem:[#allocation2 + $0x78] sm:$0xff]
          %v1034 = vld [vmem:[#allocation2 + $0x80] sm:$0xff]
          %v1035 = vld [vmem:[#allocation2 + $0x88] sm:$0xff]
          %v1036 = vld [vmem:[#allocation2 + $0x90] sm:$0xff]
          %v1037 = vld [vmem:[#allocation2 + $0x98] sm:$0xff]
          %v1038 = vld [vmem:[#allocation2 + $0xa0] sm:$0xff]
          %v1039 = vld [vmem:[#allocation2 + $0xa8] sm:$0xff]
          %v1040 = vld [vmem:[#allocation2 + $0xb0] sm:$0xff]
          %v1041 = vld [vmem:[#allocation2 + $0xb8] sm:$0xff]
          %v1042 = vld [vmem:[#allocation2 + $0xc0] sm:$0xff]
          %v1043 = vld [vmem:[#allocation2 + $0xc8] sm:$0xff]
          %v1044 = vld [vmem:[#allocation2 + $0xd0] sm:$0xff]
          %v1045 = vld [vmem:[#allocation2 + $0xd8] sm:$0xff]
          %v1046 = vld [vmem:[#allocation2 + $0xe0] sm:$0xff]
          %v1047 = vld [vmem:[#allocation2 + $0xe8] sm:$0xff]
          %v1048 = vld [vmem:[#allocation2 + $0xf0] sm:$0xff]
          %v1049 = vld [vmem:[#allocation2 + $0xf8] sm:$0xff]
          %v1050 = vld [vmem:[#allocation2 + $0x100] sm:$0xff]
          %v1051 = vld [vmem:[#allocation2 + $0x108] sm:$0xff]
          %v1052 = vld [vmem:[#allocation2 + $0x110] sm:$0xff]
          %v1053 = vld [vmem:[#allocation2 + $0x118] sm:$0xff]
          %v1054 = vld [vmem:[#allocation2 + $0x120] sm:$0xff]
          %v1055 = vld [vmem:[#allocation2 + $0x128] sm:$0xff]
          %v1056 = vld [vmem:[#allocation2 + $0x130] sm:$0xff]
          %v1057 = vld [vmem:[#allocation2 + $0x138] sm:$0xff]
          %v1058 = vld [vmem:[#allocation2 + $0x140] sm:$0xff]
          %v1059 = vld [vmem:[#allocation2 + $0x148] sm:$0xff]
          %v1060 = vld [vmem:[#allocation2 + $0x150] sm:$0xff]
          %v1061 = vld [vmem:[#allocation2 + $0x158] sm:$0xff]
          %v1062 = vld [vmem:[#allocation2 + $0x160] sm:$0xff]
          %v1063 = vld [vmem:[#allocation2 + $0x168] sm:$0xff]
          %v1064 = vld [vmem:[#allocation2 + $0x170] sm:$0xff]
          %v1065 = vld [vmem:[#allocation2 + $0x178] sm:$0xff]
          %v1066 = vld [vmem:[#allocation2 + $0x180] sm:$0xff]
          %v1067 = vld [vmem:[#allocation2 + $0x188] sm:$0xff]
          %v1068 = vld [vmem:[#allocation2 + $0x190] sm:$0xff]
          %v1069 = vld [vmem:[#allocation2 + $0x198] sm:$0xff]
          %v1070 = vld [vmem:[#allocation2 + $0x1a0] sm:$0xff]
          %v1071 = vld [vmem:[#allocation2 + $0x1a8] sm:$0xff]
          %v1072 = vld [vmem:[#allocation2 + $0x1b0] sm:$0xff]
          %v1073 = vld [vmem:[#allocation2 + $0x1b8] sm:$0xff]
          %v1074 = vld [vmem:[#allocation2 + $0x1c0] sm:$0xff]
          %v1075 = vld [vmem:[#allocation2 + $0x1c8] sm:$0xff]
          %v1076 = vld [vmem:[#allocation2 + $0x1d0] sm:$0xff]
          %v1077 = vld [vmem:[#allocation2 + $0x1d8] sm:$0xff]
          %v1078 = vld [vmem:[#allocation2 + $0x1e0] sm:$0xff]
          %v1079 = vld [vmem:[#allocation2 + $0x1e8] sm:$0xff]
          %v1080 = vld [vmem:[#allocation2 + $0x1f0] sm:$0xff]
          %v1081 = vld [vmem:[#allocation2 + $0x1f8] sm:$0xff]
          %v1082 = vld [vmem:[%s2] sm:$0x1]
          %v1084 = vperm.slane %v1082, 0
          %v1086 = vadd.f32 %v1018, %v1084
          %v1087 = vadd.f32 %v1019, %v1084
          %v1088 = vadd.f32 %v1020, %v1084
          %v1089 = vadd.f32 %v1021, %v1084
          %v1090 = vadd.f32 %v1022, %v1084
          %v1091 = vadd.f32 %v1023, %v1084
          %v1092 = vadd.f32 %v1024, %v1084
          %v1093 = vadd.f32 %v1025, %v1084
          %v1094 = vadd.f32 %v1026, %v1084
          %v1095 = vadd.f32 %v1027, %v1084
          %v1096 = vadd.f32 %v1028, %v1084
          %v1097 = vadd.f32 %v1029, %v1084
          %v1098 = vadd.f32 %v1030, %v1084
          %v1099 = vadd.f32 %v1031, %v1084
          %v1100 = vadd.f32 %v1032, %v1084
          %v1101 = vadd.f32 %v1033, %v1084
          %v1102 = vadd.f32 %v1034, %v1084
          %v1103 = vadd.f32 %v1035, %v1084
          %v1104 = vadd.f32 %v1036, %v1084
          %v1105 = vadd.f32 %v1037, %v1084
          %v1106 = vadd.f32 %v1038, %v1084
          %v1107 = vadd.f32 %v1039, %v1084
          %v1108 = vadd.f32 %v1040, %v1084
          %v1109 = vadd.f32 %v1041, %v1084
          %v1110 = vadd.f32 %v1042, %v1084
          %v1111 = vadd.f32 %v1043, %v1084
          %v1112 = vadd.f32 %v1044, %v1084
          %v1113 = vadd.f32 %v1045, %v1084
          %v1114 = vadd.f32 %v1046, %v1084
          %v1115 = vadd.f32 %v1047, %v1084
          %v1116 = vadd.f32 %v1048, %v1084
          %v1117 = vadd.f32 %v1049, %v1084
          %v1118 = vadd.f32 %v1050, %v1084
          %v1119 = vadd.f32 %v1051, %v1084
          %v1120 = vadd.f32 %v1052, %v1084
          %v1121 = vadd.f32 %v1053, %v1084
          %v1122 = vadd.f32 %v1054, %v1084
          %v1123 = vadd.f32 %v1055, %v1084
          %v1124 = vadd.f32 %v1056, %v1084
          %v1125 = vadd.f32 %v1057, %v1084
          %v1126 = vadd.f32 %v1058, %v1084
          %v1127 = vadd.f32 %v1059, %v1084
          %v1128 = vadd.f32 %v1060, %v1084
          %v1129 = vadd.f32 %v1061, %v1084
          %v1130 = vadd.f32 %v1062, %v1084
          %v1131 = vadd.f32 %v1063, %v1084
          %v1132 = vadd.f32 %v1064, %v1084
          %v1133 = vadd.f32 %v1065, %v1084
          %v1134 = vadd.f32 %v1066, %v1084
          %v1135 = vadd.f32 %v1067, %v1084
          %v1136 = vadd.f32 %v1068, %v1084
          %v1137 = vadd.f32 %v1069, %v1084
          %v1138 = vadd.f32 %v1070, %v1084
          %v1139 = vadd.f32 %v1071, %v1084
          %v1140 = vadd.f32 %v1072, %v1084
          %v1141 = vadd.f32 %v1073, %v1084
          %v1142 = vadd.f32 %v1074, %v1084
          %v1143 = vadd.f32 %v1075, %v1084
          %v1144 = vadd.f32 %v1076, %v1084
          %v1145 = vadd.f32 %v1077, %v1084
          %v1146 = vadd.f32 %v1078, %v1084
          %v1147 = vadd.f32 %v1079, %v1084
          %v1148 = vadd.f32 %v1080, %v1084
          %v1149 = vadd.f32 %v1081, %v1084
          %vm1150 = vcmp.gt.f32.partialorder %v1086, 0.0
          %vm1151 = vcmp.gt.f32.partialorder %v1087, 0.0
          %vm1152 = vcmp.gt.f32.partialorder %v1088, 0.0
          %vm1153 = vcmp.gt.f32.partialorder %v1089, 0.0
          %vm1154 = vcmp.gt.f32.partialorder %v1090, 0.0
          %vm1155 = vcmp.gt.f32.partialorder %v1091, 0.0
          %vm1156 = vcmp.gt.f32.partialorder %v1092, 0.0
          %vm1157 = vcmp.gt.f32.partialorder %v1093, 0.0
          %vm1158 = vcmp.gt.f32.partialorder %v1094, 0.0
          %vm1159 = vcmp.gt.f32.partialorder %v1095, 0.0
          %vm1160 = vcmp.gt.f32.partialorder %v1096, 0.0
          %vm1161 = vcmp.gt.f32.partialorder %v1097, 0.0
          %vm1162 = vcmp.gt.f32.partialorder %v1098, 0.0
          %vm1163 = vcmp.gt.f32.partialorder %v1099, 0.0
          %vm1164 = vcmp.gt.f32.partialorder %v1100, 0.0
          %vm1165 = vcmp.gt.f32.partialorder %v1101, 0.0
          %vm1166 = vcmp.gt.f32.partialorder %v1102, 0.0
          %vm1167 = vcmp.gt.f32.partialorder %v1103, 0.0
          %vm1168 = vcmp.gt.f32.partialorder %v1104, 0.0
          %vm1169 = vcmp.gt.f32.partialorder %v1105, 0.0
          %vm1170 = vcmp.gt.f32.partialorder %v1106, 0.0
          %vm1171 = vcmp.gt.f32.partialorder %v1107, 0.0
          %vm1172 = vcmp.gt.f32.partialorder %v1108, 0.0
          %vm1173 = vcmp.gt.f32.partialorder %v1109, 0.0
          %vm1174 = vcmp.gt.f32.partialorder %v1110, 0.0
          %vm1175 = vcmp.gt.f32.partialorder %v1111, 0.0
          %vm1176 = vcmp.gt.f32.partialorder %v1112, 0.0
          %vm1177 = vcmp.gt.f32.partialorder %v1113, 0.0
          %vm1178 = vcmp.gt.f32.partialorder %v1114, 0.0
          %vm1179 = vcmp.gt.f32.partialorder %v1115, 0.0
          %vm1180 = vcmp.gt.f32.partialorder %v1116, 0.0
          %vm1181 = vcmp.gt.f32.partialorder %v1117, 0.0
          %vm1182 = vcmp.gt.f32.partialorder %v1118, 0.0
          %vm1183 = vcmp.gt.f32.partialorder %v1119, 0.0
          %vm1184 = vcmp.gt.f32.partialorder %v1120, 0.0
          %vm1185 = vcmp.gt.f32.partialorder %v1121, 0.0
          %vm1186 = vcmp.gt.f32.partialorder %v1122, 0.0
          %vm1187 = vcmp.gt.f32.partialorder %v1123, 0.0
          %vm1188 = vcmp.gt.f32.partialorder %v1124, 0.0
          %vm1189 = vcmp.gt.f32.partialorder %v1125, 0.0
          %vm1190 = vcmp.gt.f32.partialorder %v1126, 0.0
          %vm1191 = vcmp.gt.f32.partialorder %v1127, 0.0
          %vm1192 = vcmp.gt.f32.partialorder %v1128, 0.0
          %vm1193 = vcmp.gt.f32.partialorder %v1129, 0.0
          %vm1194 = vcmp.gt.f32.partialorder %v1130, 0.0
          %vm1195 = vcmp.gt.f32.partialorder %v1131, 0.0
          %vm1196 = vcmp.gt.f32.partialorder %v1132, 0.0
          %vm1197 = vcmp.gt.f32.partialorder %v1133, 0.0
          %vm1198 = vcmp.gt.f32.partialorder %v1134, 0.0
          %vm1199 = vcmp.gt.f32.partialorder %v1135, 0.0
          %vm1200 = vcmp.gt.f32.partialorder %v1136, 0.0
          %vm1201 = vcmp.gt.f32.partialorder %v1137, 0.0
          %vm1202 = vcmp.gt.f32.partialorder %v1138, 0.0
          %vm1203 = vcmp.gt.f32.partialorder %v1139, 0.0
          %vm1204 = vcmp.gt.f32.partialorder %v1140, 0.0
          %vm1205 = vcmp.gt.f32.partialorder %v1141, 0.0
          %vm1206 = vcmp.gt.f32.partialorder %v1142, 0.0
          %vm1207 = vcmp.gt.f32.partialorder %v1143, 0.0
          %vm1208 = vcmp.gt.f32.partialorder %v1144, 0.0
          %vm1209 = vcmp.gt.f32.partialorder %v1145, 0.0
          %vm1210 = vcmp.gt.f32.partialorder %v1146, 0.0
          %vm1211 = vcmp.gt.f32.partialorder %v1147, 0.0
          %vm1212 = vcmp.gt.f32.partialorder %v1148, 0.0
          %vm1213 = vcmp.gt.f32.partialorder %v1149, 0.0
          %v1214 = vmul.f32 %v1086, 0.2
          %v1215 = vmul.f32 %v1087, 0.2
          %v1216 = vmul.f32 %v1088, 0.2
          %v1217 = vmul.f32 %v1089, 0.2
          %v1218 = vmul.f32 %v1090, 0.2
          %v1219 = vmul.f32 %v1091, 0.2
          %v1220 = vmul.f32 %v1092, 0.2
          %v1221 = vmul.f32 %v1093, 0.2
          %v1222 = vmul.f32 %v1094, 0.2
          %v1223 = vmul.f32 %v1095, 0.2
          %v1224 = vmul.f32 %v1096, 0.2
          %v1225 = vmul.f32 %v1097, 0.2
          %v1226 = vmul.f32 %v1098, 0.2
          %v1227 = vmul.f32 %v1099, 0.2
          %v1228 = vmul.f32 %v1100, 0.2
          %v1229 = vmul.f32 %v1101, 0.2
          %v1230 = vmul.f32 %v1102, 0.2
          %v1231 = vmul.f32 %v1103, 0.2
          %v1232 = vmul.f32 %v1104, 0.2
          %v1233 = vmul.f32 %v1105, 0.2
          %v1234 = vmul.f32 %v1106, 0.2
          %v1235 = vmul.f32 %v1107, 0.2
          %v1236 = vmul.f32 %v1108, 0.2
          %v1237 = vmul.f32 %v1109, 0.2
          %v1238 = vmul.f32 %v1110, 0.2
          %v1239 = vmul.f32 %v1111, 0.2
          %v1240 = vmul.f32 %v1112, 0.2
          %v1241 = vmul.f32 %v1113, 0.2
          %v1242 = vmul.f32 %v1114, 0.2
          %v1243 = vmul.f32 %v1115, 0.2
          %v1244 = vmul.f32 %v1116, 0.2
          %v1245 = vmul.f32 %v1117, 0.2
          %v1246 = vmul.f32 %v1118, 0.2
          %v1247 = vmul.f32 %v1119, 0.2
          %v1248 = vmul.f32 %v1120, 0.2
          %v1249 = vmul.f32 %v1121, 0.2
          %v1250 = vmul.f32 %v1122, 0.2
          %v1251 = vmul.f32 %v1123, 0.2
          %v1252 = vmul.f32 %v1124, 0.2
          %v1253 = vmul.f32 %v1125, 0.2
          %v1254 = vmul.f32 %v1126, 0.2
          %v1255 = vmul.f32 %v1127, 0.2
          %v1256 = vmul.f32 %v1128, 0.2
          %v1257 = vmul.f32 %v1129, 0.2
          %v1258 = vmul.f32 %v1130, 0.2
          %v1259 = vmul.f32 %v1131, 0.2
          %v1260 = vmul.f32 %v1132, 0.2
          %v1261 = vmul.f32 %v1133, 0.2
          %v1262 = vmul.f32 %v1134, 0.2
          %v1263 = vmul.f32 %v1135, 0.2
          %v1264 = vmul.f32 %v1136, 0.2
          %v1265 = vmul.f32 %v1137, 0.2
          %v1266 = vmul.f32 %v1138, 0.2
          %v1267 = vmul.f32 %v1139, 0.2
          %v1268 = vmul.f32 %v1140, 0.2
          %v1269 = vmul.f32 %v1141, 0.2
          %v1270 = vmul.f32 %v1142, 0.2
          %v1271 = vmul.f32 %v1143, 0.2
          %v1272 = vmul.f32 %v1144, 0.2
          %v1273 = vmul.f32 %v1145, 0.2
          %v1274 = vmul.f32 %v1146, 0.2
          %v1275 = vmul.f32 %v1147, 0.2
          %v1276 = vmul.f32 %v1148, 0.2
          %v1277 = vmul.f32 %v1149, 0.2
          %v1278 = vsel %vm1150, %v1086, %v1214
          %v1279 = vsel %vm1151, %v1087, %v1215
          %v1280 = vsel %vm1152, %v1088, %v1216
          %v1281 = vsel %vm1153, %v1089, %v1217
          %v1282 = vsel %vm1154, %v1090, %v1218
          %v1283 = vsel %vm1155, %v1091, %v1219
          %v1284 = vsel %vm1156, %v1092, %v1220
          %v1285 = vsel %vm1157, %v1093, %v1221
          %v1286 = vsel %vm1158, %v1094, %v1222
          %v1287 = vsel %vm1159, %v1095, %v1223
          %v1288 = vsel %vm1160, %v1096, %v1224
          %v1289 = vsel %vm1161, %v1097, %v1225
          %v1290 = vsel %vm1162, %v1098, %v1226
          %v1291 = vsel %vm1163, %v1099, %v1227
          %v1292 = vsel %vm1164, %v1100, %v1228
          %v1293 = vsel %vm1165, %v1101, %v1229
          %v1294 = vsel %vm1166, %v1102, %v1230
          %v1295 = vsel %vm1167, %v1103, %v1231
          %v1296 = vsel %vm1168, %v1104, %v1232
          %v1297 = vsel %vm1169, %v1105, %v1233
          %v1298 = vsel %vm1170, %v1106, %v1234
          %v1299 = vsel %vm1171, %v1107, %v1235
          %v1300 = vsel %vm1172, %v1108, %v1236
          %v1301 = vsel %vm1173, %v1109, %v1237
          %v1302 = vsel %vm1174, %v1110, %v1238
          %v1303 = vsel %vm1175, %v1111, %v1239
          %v1304 = vsel %vm1176, %v1112, %v1240
          %v1305 = vsel %vm1177, %v1113, %v1241
          %v1306 = vsel %vm1178, %v1114, %v1242
          %v1307 = vsel %vm1179, %v1115, %v1243
          %v1308 = vsel %vm1180, %v1116, %v1244
          %v1309 = vsel %vm1181, %v1117, %v1245
          %v1310 = vsel %vm1182, %v1118, %v1246
          %v1311 = vsel %vm1183, %v1119, %v1247
          %v1312 = vsel %vm1184, %v1120, %v1248
          %v1313 = vsel %vm1185, %v1121, %v1249
          %v1314 = vsel %vm1186, %v1122, %v1250
          %v1315 = vsel %vm1187, %v1123, %v1251
          %v1316 = vsel %vm1188, %v1124, %v1252
          %v1317 = vsel %vm1189, %v1125, %v1253
          %v1318 = vsel %vm1190, %v1126, %v1254
          %v1319 = vsel %vm1191, %v1127, %v1255
          %v1320 = vsel %vm1192, %v1128, %v1256
          %v1321 = vsel %vm1193, %v1129, %v1257
          %v1322 = vsel %vm1194, %v1130, %v1258
          %v1323 = vsel %vm1195, %v1131, %v1259
          %v1324 = vsel %vm1196, %v1132, %v1260
          %v1325 = vsel %vm1197, %v1133, %v1261
          %v1326 = vsel %vm1198, %v1134, %v1262
          %v1327 = vsel %vm1199, %v1135, %v1263
          %v1328 = vsel %vm1200, %v1136, %v1264
          %v1329 = vsel %vm1201, %v1137, %v1265
          %v1330 = vsel %vm1202, %v1138, %v1266
          %v1331 = vsel %vm1203, %v1139, %v1267
          %v1332 = vsel %vm1204, %v1140, %v1268
          %v1333 = vsel %vm1205, %v1141, %v1269
          %v1334 = vsel %vm1206, %v1142, %v1270
          %v1335 = vsel %vm1207, %v1143, %v1271
          %v1336 = vsel %vm1208, %v1144, %v1272
          %v1337 = vsel %vm1209, %v1145, %v1273
          %v1338 = vsel %vm1210, %v1146, %v1274
          %v1339 = vsel %vm1211, %v1147, %v1275
          %v1340 = vsel %vm1212, %v1148, %v1276
          %v1341 = vsel %vm1213, %v1149, %v1277
          %v1342 = vpack.c.bf16 %v1278, %v1278
          %v1343 = vpack.c.bf16 %v1279, %v1279
          %v1344 = vpack.c.bf16 %v1280, %v1280
          %v1345 = vpack.c.bf16 %v1281, %v1281
          %v1346 = vpack.c.bf16 %v1282, %v1282
          %v1347 = vpack.c.bf16 %v1283, %v1283
          %v1348 = vpack.c.bf16 %v1284, %v1284
          %v1349 = vpack.c.bf16 %v1285, %v1285
          %v1350 = vpack.c.bf16 %v1286, %v1286
          %v1351 = vpack.c.bf16 %v1287, %v1287
          %v1352 = vpack.c.bf16 %v1288, %v1288
          %v1353 = vpack.c.bf16 %v1289, %v1289
          %v1354 = vpack.c.bf16 %v1290, %v1290
          %v1355 = vpack.c.bf16 %v1291, %v1291
          %v1356 = vpack.c.bf16 %v1292, %v1292
          %v1357 = vpack.c.bf16 %v1293, %v1293
          %v1358 = vpack.c.bf16 %v1294, %v1294
          %v1359 = vpack.c.bf16 %v1295, %v1295
          %v1360 = vpack.c.bf16 %v1296, %v1296
          %v1361 = vpack.c.bf16 %v1297, %v1297
          %v1362 = vpack.c.bf16 %v1298, %v1298
          %v1363 = vpack.c.bf16 %v1299, %v1299
          %v1364 = vpack.c.bf16 %v1300, %v1300
          %v1365 = vpack.c.bf16 %v1301, %v1301
          %v1366 = vpack.c.bf16 %v1302, %v1302
          %v1367 = vpack.c.bf16 %v1303, %v1303
          %v1368 = vpack.c.bf16 %v1304, %v1304
          %v1369 = vpack.c.bf16 %v1305, %v1305
          %v1370 = vpack.c.bf16 %v1306, %v1306
          %v1371 = vpack.c.bf16 %v1307, %v1307
          %v1372 = vpack.c.bf16 %v1308, %v1308
          %v1373 = vpack.c.bf16 %v1309, %v1309
          %v1374 = vpack.c.bf16 %v1310, %v1310
          %v1375 = vpack.c.bf16 %v1311, %v1311
          %v1376 = vpack.c.bf16 %v1312, %v1312
          %v1377 = vpack.c.bf16 %v1313, %v1313
          %v1378 = vpack.c.bf16 %v1314, %v1314
          %v1379 = vpack.c.bf16 %v1315, %v1315
          %v1380 = vpack.c.bf16 %v1316, %v1316
          %v1381 = vpack.c.bf16 %v1317, %v1317
          %v1382 = vpack.c.bf16 %v1318, %v1318
          %v1383 = vpack.c.bf16 %v1319, %v1319
          %v1384 = vpack.c.bf16 %v1320, %v1320
          %v1385 = vpack.c.bf16 %v1321, %v1321
          %v1386 = vpack.c.bf16 %v1322, %v1322
          %v1387 = vpack.c.bf16 %v1323, %v1323
          %v1388 = vpack.c.bf16 %v1324, %v1324
          %v1389 = vpack.c.bf16 %v1325, %v1325
          %v1390 = vpack.c.bf16 %v1326, %v1326
          %v1391 = vpack.c.bf16 %v1327, %v1327
          %v1392 = vpack.c.bf16 %v1328, %v1328
          %v1393 = vpack.c.bf16 %v1329, %v1329
          %v1394 = vpack.c.bf16 %v1330, %v1330
          %v1395 = vpack.c.bf16 %v1331, %v1331
          %v1396 = vpack.c.bf16 %v1332, %v1332
          %v1397 = vpack.c.bf16 %v1333, %v1333
          %v1398 = vpack.c.bf16 %v1334, %v1334
          %v1399 = vpack.c.bf16 %v1335, %v1335
          %v1400 = vpack.c.bf16 %v1336, %v1336
          %v1401 = vpack.c.bf16 %v1337, %v1337
          %v1402 = vpack.c.bf16 %v1338, %v1338
          %v1403 = vpack.c.bf16 %v1339, %v1339
          %v1404 = vpack.c.bf16 %v1340, %v1340
          %v1405 = vpack.c.bf16 %v1341, %v1341
          %1406 = vst [vmem:[%s230] sm:$0xf] %v1342
          %1407 = vst [vmem:[%s230 + $0x4] sm:$0xf] %v1343
          %1408 = vst [vmem:[%s230 + $0x8] sm:$0xf] %v1344
          %1409 = vst [vmem:[%s230 + $0xc] sm:$0xf] %v1345
          %1410 = vst [vmem:[%s230 + $0x10] sm:$0xf] %v1346
          %1411 = vst [vmem:[%s230 + $0x14] sm:$0xf] %v1347
          %1412 = vst [vmem:[%s230 + $0x18] sm:$0xf] %v1348
          %1413 = vst [vmem:[%s230 + $0x1c] sm:$0xf] %v1349
          %1414 = vst [vmem:[%s230 + $0x20] sm:$0xf] %v1350
          %1415 = vst [vmem:[%s230 + $0x24] sm:$0xf] %v1351
          %1416 = vst [vmem:[%s230 + $0x28] sm:$0xf] %v1352
          %1417 = vst [vmem:[%s230 + $0x2c] sm:$0xf] %v1353
          %1418 = vst [vmem:[%s230 + $0x30] sm:$0xf] %v1354
          %1419 = vst [vmem:[%s230 + $0x34] sm:$0xf] %v1355
          %1420 = vst [vmem:[%s230 + $0x38] sm:$0xf] %v1356
          %1421 = vst [vmem:[%s230 + $0x3c] sm:$0xf] %v1357
          %1422 = vst [vmem:[%s230 + $0x40] sm:$0xf] %v1358
          %1423 = vst [vmem:[%s230 + $0x44] sm:$0xf] %v1359
          %1424 = vst [vmem:[%s230 + $0x48] sm:$0xf] %v1360
          %1425 = vst [vmem:[%s230 + $0x4c] sm:$0xf] %v1361
          %1426 = vst [vmem:[%s230 + $0x50] sm:$0xf] %v1362
          %1427 = vst [vmem:[%s230 + $0x54] sm:$0xf] %v1363
          %1428 = vst [vmem:[%s230 + $0x58] sm:$0xf] %v1364
          %1429 = vst [vmem:[%s230 + $0x5c] sm:$0xf] %v1365
          %1430 = vst [vmem:[%s230 + $0x60] sm:$0xf] %v1366
          %1431 = vst [vmem:[%s230 + $0x64] sm:$0xf] %v1367
          %1432 = vst [vmem:[%s230 + $0x68] sm:$0xf] %v1368
          %1433 = vst [vmem:[%s230 + $0x6c] sm:$0xf] %v1369
          %1434 = vst [vmem:[%s230 + $0x70] sm:$0xf] %v1370
          %1435 = vst [vmem:[%s230 + $0x74] sm:$0xf] %v1371
          %1436 = vst [vmem:[%s230 + $0x78] sm:$0xf] %v1372
          %1437 = vst [vmem:[%s230 + $0x7c] sm:$0xf] %v1373
          %1438 = vst [vmem:[%s230 + $0x80] sm:$0xf] %v1374
          %1439 = vst [vmem:[%s230 + $0x84] sm:$0xf] %v1375
          %1440 = vst [vmem:[%s230 + $0x88] sm:$0xf] %v1376
          %1441 = vst [vmem:[%s230 + $0x8c] sm:$0xf] %v1377
          %1442 = vst [vmem:[%s230 + $0x90] sm:$0xf] %v1378
          %1443 = vst [vmem:[%s230 + $0x94] sm:$0xf] %v1379
          %1444 = vst [vmem:[%s230 + $0x98] sm:$0xf] %v1380
          %1445 = vst [vmem:[%s230 + $0x9c] sm:$0xf] %v1381
          %1446 = vst [vmem:[%s230 + $0xa0] sm:$0xf] %v1382
          %1447 = vst [vmem:[%s230 + $0xa4] sm:$0xf] %v1383
          %1448 = vst [vmem:[%s230 + $0xa8] sm:$0xf] %v1384
          %1449 = vst [vmem:[%s230 + $0xac] sm:$0xf] %v1385
          %1450 = vst [vmem:[%s230 + $0xb0] sm:$0xf] %v1386
          %1451 = vst [vmem:[%s230 + $0xb4] sm:$0xf] %v1387
          %1452 = vst [vmem:[%s230 + $0xb8] sm:$0xf] %v1388
          %1453 = vst [vmem:[%s230 + $0xbc] sm:$0xf] %v1389
          %1454 = vst [vmem:[%s230 + $0xc0] sm:$0xf] %v1390
          %1455 = vst [vmem:[%s230 + $0xc4] sm:$0xf] %v1391
          %1456 = vst [vmem:[%s230 + $0xc8] sm:$0xf] %v1392
          %1457 = vst [vmem:[%s230 + $0xcc] sm:$0xf] %v1393
          %1458 = vst [vmem:[%s230 + $0xd0] sm:$0xf] %v1394
          %1459 = vst [vmem:[%s230 + $0xd4] sm:$0xf] %v1395
          %1460 = vst [vmem:[%s230 + $0xd8] sm:$0xf] %v1396
          %1461 = vst [vmem:[%s230 + $0xdc] sm:$0xf] %v1397
          %1462 = vst [vmem:[%s230 + $0xe0] sm:$0xf] %v1398
          %1463 = vst [vmem:[%s230 + $0xe4] sm:$0xf] %v1399
          %1464 = vst [vmem:[%s230 + $0xe8] sm:$0xf] %v1400
          %1465 = vst [vmem:[%s230 + $0xec] sm:$0xf] %v1401
          %1466 = vst [vmem:[%s230 + $0xf0] sm:$0xf] %v1402
          %1467 = vst [vmem:[%s230 + $0xf4] sm:$0xf] %v1403
          %1468 = vst [vmem:[%s230 + $0xf8] sm:$0xf] %v1404
          %1469 = vst [vmem:[%s230 + $0xfc] sm:$0xf] %v1405
        $region44: #{discriminator_forward.5} parent=31 // pred_fallthru
          _
        %s1470 = smul.u32 64, %s21
        %p1471 = scmp.lt.s32.totalorder %s1470, 1023
        %s1472 = scalar_select %p1471, %s1470, 1023
        %s1473 = smul.addr %s1472, 4
        %s1474 = scalar_lea.vmem %s3, %s1473
        // Predicated region
        $region45: #{discriminator_forward.5} parent=31 // pred_check
          %p1475 = pneg %p122
        $region46: #{discriminator_forward.5} parent=31 // pred_check_branch
          %1477 = sbr.rel (%p1475) target = $region48
        $region47: #{discriminator_forward.5} parent=31 // pred_region
          %s1478 = smul.u32 64, %s21
        $region48: #{discriminator_forward.5} parent=31 // pred_fallthru
          _
      $region32: #{discriminator_forward.5} parent=5 // pred_fallthru
        _
      %p1479 = scmp.le.s32.totalorder 2, %s12
      // Predicated region
      $region49: #{discriminator_forward.5} parent=5 // pred_check
        %p1480 = pneg %p1479
      $region50: #{discriminator_forward.5} parent=5 // pred_check_branch
        %1482 = sbr.rel (%p1480) target = $region52
      $region51: #{discriminator_forward.5} parent=5 // pred_region
        %s1483 = ssub.s32 %s12, 2
        // Predicated region
        $region53: #{discriminator_forward.5} parent=51 // pred_check
          %p1484 = pneg %p128
        $region54: #{discriminator_forward.5} parent=51 // pred_check_branch
          %1486 = sbr.rel (%p1484) target = $region56
        $region55: #{discriminator_forward.5} parent=51 // pred_region
          %s1487 = smul.u32 64, %s23
          %p1488 = scmp.lt.s32.totalorder %s1487, 1023
          %s1489 = scalar_select %p1488, %s1487, 1023
          %s1490 = smul.addr %s1489, 4
          %s1491 = scalar_lea.vmem %s3, %s1490
        $region56: #{discriminator_forward.5} parent=51 // pred_fallthru
          _
      $region52: #{discriminator_forward.5} parent=5 // pred_fallthru
        _
    $region6: #{discriminator_forward.5} parent=1 // loop_footer
      %s16 = sadd.s32 1, %s12
    $region7: #{discriminator_forward.5} parent=1 // loop_footer_branch
      %11 = sbr.rel target = $region3
    $region8: #{discriminator_forward.5} parent=1 // loop_exit
      _
    %1492 = vsyncpa [#allocation4], 1
    %s1493 = scalar_lea.sflag [#allocation4], 1
    %1494 = vsyncpa %s1493, 1

// kernel: discriminator_forward.6
$region0: #{discriminator_forward.6}
  #allocation0 [shape = 'u32[]', space=smem, size = 0x4, offset = 0x4, fixed_abs, tag = 'smem constant byte address 0x4 - core index']
  #allocation1 [shape = 'u32[72,128]{1,0:T(1,128)}', space=vmem, size = 0x9000, scoped, tag = 'internal scratch']
  #allocation2 [shape = 'f32[1024,128]{1,0:T(8,128)}', space=vmem, size = 0x80000, scoped, tag = 'scratch operand']
  %s0 = inlined_call_operand.vmem [shape: bf16[1024,512], index: 0, kind: input, shape index: {}]
  %s1 = inlined_call_operand.vmem [shape: bf16[512,128], index: 1, kind: input, shape index: {}]
  %s2 = inlined_call_operand.vmem [shape: f32[1,128], index: 2, kind: input, shape index: {}]
  %s3 = inlined_call_operand.vmem [shape: f32[1,128], index: 3, kind: input, shape index: {}]
  %s4 = inlined_call_operand.vmem [shape: bf16[1024,128], index: 4, kind: output, shape index: {}]
  %s5 = sld [smem:[#allocation0]]
  $region34: #{discriminator_forward.6} parent=0
    _
  %s7 = ssub.s32 1, %s5
  %s8 = scalar_select 0, %s7, %s5
  // Predicated region
  $region2: #{discriminator_forward.6} parent=0 // pred_check
    _
  $region3: #{discriminator_forward.6} parent=0 // pred_check_branch
    %10 = sbr.rel (0) target = $region5
  $region4: #{discriminator_forward.6} parent=0 // pred_region
    _
  $region5: #{discriminator_forward.6} parent=0 // pred_fallthru
    _
  // Predicated region
  $region6: #{discriminator_forward.6} parent=0 // pred_check
    _
  $region7: #{discriminator_forward.6} parent=0 // pred_check_branch
    %12 = sbr.rel (0) target = $region9
  $region8: #{discriminator_forward.6} parent=0 // pred_region
    _
  $region9: #{discriminator_forward.6} parent=0 // pred_fallthru
    _
  // Predicated region
  $region10: #{discriminator_forward.6} parent=0 // pred_check
    _
  $region11: #{discriminator_forward.6} parent=0 // pred_check_branch
    %14 = sbr.rel (0) target = $region13
  $region12: #{discriminator_forward.6} parent=0 // pred_region
    _
  $region13: #{discriminator_forward.6} parent=0 // pred_fallthru
    _
  // Predicated region
  $region14: #{discriminator_forward.6} parent=0 // pred_check
    _
  $region15: #{discriminator_forward.6} parent=0 // pred_check_branch
    %16 = sbr.rel (0) target = $region17
  $region16: #{discriminator_forward.6} parent=0 // pred_region
    _
  $region17: #{discriminator_forward.6} parent=0 // pred_fallthru
    _
  %p17 = scmp.eq.s32.totalorder 0, 0
  // Predicated region
  $region18: #{discriminator_forward.6} parent=0 // pred_check
    %p18 = pneg %p17
  $region19: #{discriminator_forward.6} parent=0 // pred_check_branch
    %20 = sbr.rel (%p18) target = $region21
  $region20: #{discriminator_forward.6} parent=0 // pred_region
    %21 = vst [vmem:[#allocation2] sm:$0xff] 0.0
    %22 = vst [vmem:[#allocation2 + $0x8] sm:$0xff] 0.0
    %23 = vst [vmem:[#allocation2 + $0x10] sm:$0xff] 0.0
    %24 = vst [vmem:[#allocation2 + $0x18] sm:$0xff] 0.0
    %25 = vst [vmem:[#allocation2 + $0x20] sm:$0xff] 0.0
    %26 = vst [vmem:[#allocation2 + $0x28] sm:$0xff] 0.0
    %27 = vst [vmem:[#allocation2 + $0x30] sm:$0xff] 0.0
    %28 = vst [vmem:[#allocation2 + $0x38] sm:$0xff] 0.0
    %29 = vst [vmem:[#allocation2 + $0x40] sm:$0xff] 0.0
    %30 = vst [vmem:[#allocation2 + $0x48] sm:$0xff] 0.0
    %31 = vst [vmem:[#allocation2 + $0x50] sm:$0xff] 0.0
    %32 = vst [vmem:[#allocation2 + $0x58] sm:$0xff] 0.0
    %33 = vst [vmem:[#allocation2 + $0x60] sm:$0xff] 0.0
    %34 = vst [vmem:[#allocation2 + $0x68] sm:$0xff] 0.0
    %35 = vst [vmem:[#allocation2 + $0x70] sm:$0xff] 0.0
    %36 = vst [vmem:[#allocation2 + $0x78] sm:$0xff] 0.0
    %37 = vst [vmem:[#allocation2 + $0x80] sm:$0xff] 0.0
    %38 = vst [vmem:[#allocation2 + $0x88] sm:$0xff] 0.0
    %39 = vst [vmem:[#allocation2 + $0x90] sm:$0xff] 0.0
    %40 = vst [vmem:[#allocation2 + $0x98] sm:$0xff] 0.0
    %41 = vst [vmem:[#allocation2 + $0xa0] sm:$0xff] 0.0
    %42 = vst [vmem:[#allocation2 + $0xa8] sm:$0xff] 0.0
    %43 = vst [vmem:[#allocation2 + $0xb0] sm:$0xff] 0.0
    %44 = vst [vmem:[#allocation2 + $0xb8] sm:$0xff] 0.0
    %45 = vst [vmem:[#allocation2 + $0xc0] sm:$0xff] 0.0
    %46 = vst [vmem:[#allocation2 + $0xc8] sm:$0xff] 0.0
    %47 = vst [vmem:[#allocation2 + $0xd0] sm:$0xff] 0.0
    %48 = vst [vmem:[#allocation2 + $0xd8] sm:$0xff] 0.0
    %49 = vst [vmem:[#allocation2 + $0xe0] sm:$0xff] 0.0
    %50 = vst [vmem:[#allocation2 + $0xe8] sm:$0xff] 0.0
    %51 = vst [vmem:[#allocation2 + $0xf0] sm:$0xff] 0.0
    %52 = vst [vmem:[#allocation2 + $0xf8] sm:$0xff] 0.0
    %53 = vst [vmem:[#allocation2 + $0x100] sm:$0xff] 0.0
    %54 = vst [vmem:[#allocation2 + $0x108] sm:$0xff] 0.0
    %55 = vst [vmem:[#allocation2 + $0x110] sm:$0xff] 0.0
    %56 = vst [vmem:[#allocation2 + $0x118] sm:$0xff] 0.0
    %57 = vst [vmem:[#allocation2 + $0x120] sm:$0xff] 0.0
    %58 = vst [vmem:[#allocation2 + $0x128] sm:$0xff] 0.0
    %59 = vst [vmem:[#allocation2 + $0x130] sm:$0xff] 0.0
    %60 = vst [vmem:[#allocation2 + $0x138] sm:$0xff] 0.0
    %61 = vst [vmem:[#allocation2 + $0x140] sm:$0xff] 0.0
    %62 = vst [vmem:[#allocation2 + $0x148] sm:$0xff] 0.0
    %63 = vst [vmem:[#allocation2 + $0x150] sm:$0xff] 0.0
    %64 = vst [vmem:[#allocation2 + $0x158] sm:$0xff] 0.0
    %65 = vst [vmem:[#allocation2 + $0x160] sm:$0xff] 0.0
    %66 = vst [vmem:[#allocation2 + $0x168] sm:$0xff] 0.0
    %67 = vst [vmem:[#allocation2 + $0x170] sm:$0xff] 0.0
    %68 = vst [vmem:[#allocation2 + $0x178] sm:$0xff] 0.0
    %69 = vst [vmem:[#allocation2 + $0x180] sm:$0xff] 0.0
    %70 = vst [vmem:[#allocation2 + $0x188] sm:$0xff] 0.0
    %71 = vst [vmem:[#allocation2 + $0x190] sm:$0xff] 0.0
    %72 = vst [vmem:[#allocation2 + $0x198] sm:$0xff] 0.0
    %73 = vst [vmem:[#allocation2 + $0x1a0] sm:$0xff] 0.0
    %74 = vst [vmem:[#allocation2 + $0x1a8] sm:$0xff] 0.0
    %75 = vst [vmem:[#allocation2 + $0x1b0] sm:$0xff] 0.0
    %76 = vst [vmem:[#allocation2 + $0x1b8] sm:$0xff] 0.0
    %77 = vst [vmem:[#allocation2 + $0x1c0] sm:$0xff] 0.0
    %78 = vst [vmem:[#allocation2 + $0x1c8] sm:$0xff] 0.0
    %79 = vst [vmem:[#allocation2 + $0x1d0] sm:$0xff] 0.0
    %80 = vst [vmem:[#allocation2 + $0x1d8] sm:$0xff] 0.0
    %81 = vst [vmem:[#allocation2 + $0x1e0] sm:$0xff] 0.0
    %82 = vst [vmem:[#allocation2 + $0x1e8] sm:$0xff] 0.0
    %83 = vst [vmem:[#allocation2 + $0x1f0] sm:$0xff] 0.0
    %84 = vst [vmem:[#allocation2 + $0x1f8] sm:$0xff] 0.0
    %85 = vst [vmem:[#allocation2 + $0x200] sm:$0xff] 0.0
    %86 = vst [vmem:[#allocation2 + $0x208] sm:$0xff] 0.0
    %87 = vst [vmem:[#allocation2 + $0x210] sm:$0xff] 0.0
    %88 = vst [vmem:[#allocation2 + $0x218] sm:$0xff] 0.0
    %89 = vst [vmem:[#allocation2 + $0x220] sm:$0xff] 0.0
    %90 = vst [vmem:[#allocation2 + $0x228] sm:$0xff] 0.0
    %91 = vst [vmem:[#allocation2 + $0x230] sm:$0xff] 0.0
    %92 = vst [vmem:[#allocation2 + $0x238] sm:$0xff] 0.0
    %93 = vst [vmem:[#allocation2 + $0x240] sm:$0xff] 0.0
    %94 = vst [vmem:[#allocation2 + $0x248] sm:$0xff] 0.0
    %95 = vst [vmem:[#allocation2 + $0x250] sm:$0xff] 0.0
    %96 = vst [vmem:[#allocation2 + $0x258] sm:$0xff] 0.0
    %97 = vst [vmem:[#allocation2 + $0x260] sm:$0xff] 0.0
    %98 = vst [vmem:[#allocation2 + $0x268] sm:$0xff] 0.0
    %99 = vst [vmem:[#allocation2 + $0x270] sm:$0xff] 0.0
    %100 = vst [vmem:[#allocation2 + $0x278] sm:$0xff] 0.0
    %101 = vst [vmem:[#allocation2 + $0x280] sm:$0xff] 0.0
    %102 = vst [vmem:[#allocation2 + $0x288] sm:$0xff] 0.0
    %103 = vst [vmem:[#allocation2 + $0x290] sm:$0xff] 0.0
    %104 = vst [vmem:[#allocation2 + $0x298] sm:$0xff] 0.0
    %105 = vst [vmem:[#allocation2 + $0x2a0] sm:$0xff] 0.0
    %106 = vst [vmem:[#allocation2 + $0x2a8] sm:$0xff] 0.0
    %107 = vst [vmem:[#allocation2 + $0x2b0] sm:$0xff] 0.0
    %108 = vst [vmem:[#allocation2 + $0x2b8] sm:$0xff] 0.0
    %109 = vst [vmem:[#allocation2 + $0x2c0] sm:$0xff] 0.0
    %110 = vst [vmem:[#allocation2 + $0x2c8] sm:$0xff] 0.0
    %111 = vst [vmem:[#allocation2 + $0x2d0] sm:$0xff] 0.0
    %112 = vst [vmem:[#allocation2 + $0x2d8] sm:$0xff] 0.0
    %113 = vst [vmem:[#allocation2 + $0x2e0] sm:$0xff] 0.0
    %114 = vst [vmem:[#allocation2 + $0x2e8] sm:$0xff] 0.0
    %115 = vst [vmem:[#allocation2 + $0x2f0] sm:$0xff] 0.0
    %116 = vst [vmem:[#allocation2 + $0x2f8] sm:$0xff] 0.0
    %117 = vst [vmem:[#allocation2 + $0x300] sm:$0xff] 0.0
    %118 = vst [vmem:[#allocation2 + $0x308] sm:$0xff] 0.0
    %119 = vst [vmem:[#allocation2 + $0x310] sm:$0xff] 0.0
    %120 = vst [vmem:[#allocation2 + $0x318] sm:$0xff] 0.0
    %121 = vst [vmem:[#allocation2 + $0x320] sm:$0xff] 0.0
    %122 = vst [vmem:[#allocation2 + $0x328] sm:$0xff] 0.0
    %123 = vst [vmem:[#allocation2 + $0x330] sm:$0xff] 0.0
    %124 = vst [vmem:[#allocation2 + $0x338] sm:$0xff] 0.0
    %125 = vst [vmem:[#allocation2 + $0x340] sm:$0xff] 0.0
    %126 = vst [vmem:[#allocation2 + $0x348] sm:$0xff] 0.0
    %127 = vst [vmem:[#allocation2 + $0x350] sm:$0xff] 0.0
    %128 = vst [vmem:[#allocation2 + $0x358] sm:$0xff] 0.0
    %129 = vst [vmem:[#allocation2 + $0x360] sm:$0xff] 0.0
    %130 = vst [vmem:[#allocation2 + $0x368] sm:$0xff] 0.0
    %131 = vst [vmem:[#allocation2 + $0x370] sm:$0xff] 0.0
    %132 = vst [vmem:[#allocation2 + $0x378] sm:$0xff] 0.0
    %133 = vst [vmem:[#allocation2 + $0x380] sm:$0xff] 0.0
    %134 = vst [vmem:[#allocation2 + $0x388] sm:$0xff] 0.0
    %135 = vst [vmem:[#allocation2 + $0x390] sm:$0xff] 0.0
    %136 = vst [vmem:[#allocation2 + $0x398] sm:$0xff] 0.0
    %137 = vst [vmem:[#allocation2 + $0x3a0] sm:$0xff] 0.0
    %138 = vst [vmem:[#allocation2 + $0x3a8] sm:$0xff] 0.0
    %139 = vst [vmem:[#allocation2 + $0x3b0] sm:$0xff] 0.0
    %140 = vst [vmem:[#allocation2 + $0x3b8] sm:$0xff] 0.0
    %141 = vst [vmem:[#allocation2 + $0x3c0] sm:$0xff] 0.0
    %142 = vst [vmem:[#allocation2 + $0x3c8] sm:$0xff] 0.0
    %143 = vst [vmem:[#allocation2 + $0x3d0] sm:$0xff] 0.0
    %144 = vst [vmem:[#allocation2 + $0x3d8] sm:$0xff] 0.0
    %145 = vst [vmem:[#allocation2 + $0x3e0] sm:$0xff] 0.0
    %146 = vst [vmem:[#allocation2 + $0x3e8] sm:$0xff] 0.0
    %147 = vst [vmem:[#allocation2 + $0x3f0] sm:$0xff] 0.0
    %148 = vst [vmem:[#allocation2 + $0x3f8] sm:$0xff] 0.0
  $region21: #{discriminator_forward.6} parent=0 // pred_fallthru
    _
  %v149 = vld [vmem:[#allocation2] sm:$0xff]
  %v150 = vld [vmem:[#allocation2 + $0x8] sm:$0xff]
  %v151 = vld [vmem:[#allocation2 + $0x10] sm:$0xff]
  %v152 = vld [vmem:[#allocation2 + $0x18] sm:$0xff]
  %v153 = vld [vmem:[#allocation2 + $0x20] sm:$0xff]
  %v154 = vld [vmem:[#allocation2 + $0x28] sm:$0xff]
  %v155 = vld [vmem:[#allocation2 + $0x30] sm:$0xff]
  %v156 = vld [vmem:[#allocation2 + $0x38] sm:$0xff]
  %v157 = vld [vmem:[#allocation2 + $0x40] sm:$0xff]
  %v158 = vld [vmem:[#allocation2 + $0x48] sm:$0xff]
  %v159 = vld [vmem:[#allocation2 + $0x50] sm:$0xff]
  %v160 = vld [vmem:[#allocation2 + $0x58] sm:$0xff]
  %v161 = vld [vmem:[#allocation2 + $0x60] sm:$0xff]
  %v162 = vld [vmem:[#allocation2 + $0x68] sm:$0xff]
  %v163 = vld [vmem:[#allocation2 + $0x70] sm:$0xff]
  %v164 = vld [vmem:[#allocation2 + $0x78] sm:$0xff]
  %v165 = vld [vmem:[#allocation2 + $0x80] sm:$0xff]
  %v166 = vld [vmem:[#allocation2 + $0x88] sm:$0xff]
  %v167 = vld [vmem:[#allocation2 + $0x90] sm:$0xff]
  %v168 = vld [vmem:[#allocation2 + $0x98] sm:$0xff]
  %v169 = vld [vmem:[#allocation2 + $0xa0] sm:$0xff]
  %v170 = vld [vmem:[#allocation2 + $0xa8] sm:$0xff]
  %v171 = vld [vmem:[#allocation2 + $0xb0] sm:$0xff]
  %v172 = vld [vmem:[#allocation2 + $0xb8] sm:$0xff]
  %v173 = vld [vmem:[#allocation2 + $0xc0] sm:$0xff]
  %v174 = vld [vmem:[#allocation2 + $0xc8] sm:$0xff]
  %v175 = vld [vmem:[#allocation2 + $0xd0] sm:$0xff]
  %v176 = vld [vmem:[#allocation2 + $0xd8] sm:$0xff]
  %v177 = vld [vmem:[#allocation2 + $0xe0] sm:$0xff]
  %v178 = vld [vmem:[#allocation2 + $0xe8] sm:$0xff]
  %v179 = vld [vmem:[#allocation2 + $0xf0] sm:$0xff]
  %v180 = vld [vmem:[#allocation2 + $0xf8] sm:$0xff]
  %v181 = vld [vmem:[#allocation2 + $0x100] sm:$0xff]
  %v182 = vld [vmem:[#allocation2 + $0x108] sm:$0xff]
  %v183 = vld [vmem:[#allocation2 + $0x110] sm:$0xff]
  %v184 = vld [vmem:[#allocation2 + $0x118] sm:$0xff]
  %v185 = vld [vmem:[#allocation2 + $0x120] sm:$0xff]
  %v186 = vld [vmem:[#allocation2 + $0x128] sm:$0xff]
  %v187 = vld [vmem:[#allocation2 + $0x130] sm:$0xff]
  %v188 = vld [vmem:[#allocation2 + $0x138] sm:$0xff]
  %v189 = vld [vmem:[#allocation2 + $0x140] sm:$0xff]
  %v190 = vld [vmem:[#allocation2 + $0x148] sm:$0xff]
  %v191 = vld [vmem:[#allocation2 + $0x150] sm:$0xff]
  %v192 = vld [vmem:[#allocation2 + $0x158] sm:$0xff]
  %v193 = vld [vmem:[#allocation2 + $0x160] sm:$0xff]
  %v194 = vld [vmem:[#allocation2 + $0x168] sm:$0xff]
  %v195 = vld [vmem:[#allocation2 + $0x170] sm:$0xff]
  %v196 = vld [vmem:[#allocation2 + $0x178] sm:$0xff]
  %v197 = vld [vmem:[#allocation2 + $0x180] sm:$0xff]
  %v198 = vld [vmem:[#allocation2 + $0x188] sm:$0xff]
  %v199 = vld [vmem:[#allocation2 + $0x190] sm:$0xff]
  %v200 = vld [vmem:[#allocation2 + $0x198] sm:$0xff]
  %v201 = vld [vmem:[#allocation2 + $0x1a0] sm:$0xff]
  %v202 = vld [vmem:[#allocation2 + $0x1a8] sm:$0xff]
  %v203 = vld [vmem:[#allocation2 + $0x1b0] sm:$0xff]
  %v204 = vld [vmem:[#allocation2 + $0x1b8] sm:$0xff]
  %v205 = vld [vmem:[#allocation2 + $0x1c0] sm:$0xff]
  %v206 = vld [vmem:[#allocation2 + $0x1c8] sm:$0xff]
  %v207 = vld [vmem:[#allocation2 + $0x1d0] sm:$0xff]
  %v208 = vld [vmem:[#allocation2 + $0x1d8] sm:$0xff]
  %v209 = vld [vmem:[#allocation2 + $0x1e0] sm:$0xff]
  %v210 = vld [vmem:[#allocation2 + $0x1e8] sm:$0xff]
  %v211 = vld [vmem:[#allocation2 + $0x1f0] sm:$0xff]
  %v212 = vld [vmem:[#allocation2 + $0x1f8] sm:$0xff]
  %v213 = vld [vmem:[#allocation2 + $0x200] sm:$0xff]
  %v214 = vld [vmem:[#allocation2 + $0x208] sm:$0xff]
  %v215 = vld [vmem:[#allocation2 + $0x210] sm:$0xff]
  %v216 = vld [vmem:[#allocation2 + $0x218] sm:$0xff]
  %v217 = vld [vmem:[#allocation2 + $0x220] sm:$0xff]
  %v218 = vld [vmem:[#allocation2 + $0x228] sm:$0xff]
  %v219 = vld [vmem:[#allocation2 + $0x230] sm:$0xff]
  %v220 = vld [vmem:[#allocation2 + $0x238] sm:$0xff]
  %v221 = vld [vmem:[#allocation2 + $0x240] sm:$0xff]
  %v222 = vld [vmem:[#allocation2 + $0x248] sm:$0xff]
  %v223 = vld [vmem:[#allocation2 + $0x250] sm:$0xff]
  %v224 = vld [vmem:[#allocation2 + $0x258] sm:$0xff]
  %v225 = vld [vmem:[#allocation2 + $0x260] sm:$0xff]
  %v226 = vld [vmem:[#allocation2 + $0x268] sm:$0xff]
  %v227 = vld [vmem:[#allocation2 + $0x270] sm:$0xff]
  %v228 = vld [vmem:[#allocation2 + $0x278] sm:$0xff]
  %v229 = vld [vmem:[#allocation2 + $0x280] sm:$0xff]
  %v230 = vld [vmem:[#allocation2 + $0x288] sm:$0xff]
  %v231 = vld [vmem:[#allocation2 + $0x290] sm:$0xff]
  %v232 = vld [vmem:[#allocation2 + $0x298] sm:$0xff]
  %v233 = vld [vmem:[#allocation2 + $0x2a0] sm:$0xff]
  %v234 = vld [vmem:[#allocation2 + $0x2a8] sm:$0xff]
  %v235 = vld [vmem:[#allocation2 + $0x2b0] sm:$0xff]
  %v236 = vld [vmem:[#allocation2 + $0x2b8] sm:$0xff]
  %v237 = vld [vmem:[#allocation2 + $0x2c0] sm:$0xff]
  %v238 = vld [vmem:[#allocation2 + $0x2c8] sm:$0xff]
  %v239 = vld [vmem:[#allocation2 + $0x2d0] sm:$0xff]
  %v240 = vld [vmem:[#allocation2 + $0x2d8] sm:$0xff]
  %v241 = vld [vmem:[#allocation2 + $0x2e0] sm:$0xff]
  %v242 = vld [vmem:[#allocation2 + $0x2e8] sm:$0xff]
  %v243 = vld [vmem:[#allocation2 + $0x2f0] sm:$0xff]
  %v244 = vld [vmem:[#allocation2 + $0x2f8] sm:$0xff]
  %v245 = vld [vmem:[#allocation2 + $0x300] sm:$0xff]
  %v246 = vld [vmem:[#allocation2 + $0x308] sm:$0xff]
  %v247 = vld [vmem:[#allocation2 + $0x310] sm:$0xff]
  %v248 = vld [vmem:[#allocation2 + $0x318] sm:$0xff]
  %v249 = vld [vmem:[#allocation2 + $0x320] sm:$0xff]
  %v250 = vld [vmem:[#allocation2 + $0x328] sm:$0xff]
  %v251 = vld [vmem:[#allocation2 + $0x330] sm:$0xff]
  %v252 = vld [vmem:[#allocation2 + $0x338] sm:$0xff]
  %v253 = vld [vmem:[#allocation2 + $0x340] sm:$0xff]
  %v254 = vld [vmem:[#allocation2 + $0x348] sm:$0xff]
  %v255 = vld [vmem:[#allocation2 + $0x350] sm:$0xff]
  %v256 = vld [vmem:[#allocation2 + $0x358] sm:$0xff]
  %v257 = vld [vmem:[#allocation2 + $0x360] sm:$0xff]
  %v258 = vld [vmem:[#allocation2 + $0x368] sm:$0xff]
  %v259 = vld [vmem:[#allocation2 + $0x370] sm:$0xff]
  %v260 = vld [vmem:[#allocation2 + $0x378] sm:$0xff]
  %v261 = vld [vmem:[#allocation2 + $0x380] sm:$0xff]
  %v262 = vld [vmem:[#allocation2 + $0x388] sm:$0xff]
  %v263 = vld [vmem:[#allocation2 + $0x390] sm:$0xff]
  %v264 = vld [vmem:[#allocation2 + $0x398] sm:$0xff]
  %v265 = vld [vmem:[#allocation2 + $0x3a0] sm:$0xff]
  %v266 = vld [vmem:[#allocation2 + $0x3a8] sm:$0xff]
  %v267 = vld [vmem:[#allocation2 + $0x3b0] sm:$0xff]
  %v268 = vld [vmem:[#allocation2 + $0x3b8] sm:$0xff]
  %v269 = vld [vmem:[#allocation2 + $0x3c0] sm:$0xff]
  %v270 = vld [vmem:[#allocation2 + $0x3c8] sm:$0xff]
  %v271 = vld [vmem:[#allocation2 + $0x3d0] sm:$0xff]
  %v272 = vld [vmem:[#allocation2 + $0x3d8] sm:$0xff]
  %v273 = vld [vmem:[#allocation2 + $0x3e0] sm:$0xff]
  %v274 = vld [vmem:[#allocation2 + $0x3e8] sm:$0xff]
  %v275 = vld [vmem:[#allocation2 + $0x3f0] sm:$0xff]
  %v276 = vld [vmem:[#allocation2 + $0x3f8] sm:$0xff]
  %v277 = vld [vmem:[%s0] sm:$0xff]
  %v278 = vld [vmem:[%s0 + $0x8] sm:$0xff]
  %v279 = vld [vmem:[%s0 + $0x10] sm:$0xff]
  %v280 = vld [vmem:[%s0 + $0x18] sm:$0xff]
  %v281 = vld [vmem:[%s0 + $0x20] sm:$0xff]
  %v282 = vld [vmem:[%s0 + $0x28] sm:$0xff]
  %v283 = vld [vmem:[%s0 + $0x30] sm:$0xff]
  %v284 = vld [vmem:[%s0 + $0x38] sm:$0xff]
  %v285 = vld [vmem:[%s0 + $0x40] sm:$0xff]
  %v286 = vld [vmem:[%s0 + $0x48] sm:$0xff]
  %v287 = vld [vmem:[%s0 + $0x50] sm:$0xff]
  %v288 = vld [vmem:[%s0 + $0x58] sm:$0xff]
  %v289 = vld [vmem:[%s0 + $0x60] sm:$0xff]
  %v290 = vld [vmem:[%s0 + $0x68] sm:$0xff]
  %v291 = vld [vmem:[%s0 + $0x70] sm:$0xff]
  %v292 = vld [vmem:[%s0 + $0x78] sm:$0xff]
  %v293 = vld [vmem:[%s0 + $0x80] sm:$0xff]
  %v294 = vld [vmem:[%s0 + $0x88] sm:$0xff]
  %v295 = vld [vmem:[%s0 + $0x90] sm:$0xff]
  %v296 = vld [vmem:[%s0 + $0x98] sm:$0xff]
  %v297 = vld [vmem:[%s0 + $0xa0] sm:$0xff]
  %v298 = vld [vmem:[%s0 + $0xa8] sm:$0xff]
  %v299 = vld [vmem:[%s0 + $0xb0] sm:$0xff]
  %v300 = vld [vmem:[%s0 + $0xb8] sm:$0xff]
  %v301 = vld [vmem:[%s0 + $0xc0] sm:$0xff]
  %v302 = vld [vmem:[%s0 + $0xc8] sm:$0xff]
  %v303 = vld [vmem:[%s0 + $0xd0] sm:$0xff]
  %v304 = vld [vmem:[%s0 + $0xd8] sm:$0xff]
  %v305 = vld [vmem:[%s0 + $0xe0] sm:$0xff]
  %v306 = vld [vmem:[%s0 + $0xe8] sm:$0xff]
  %v307 = vld [vmem:[%s0 + $0xf0] sm:$0xff]
  %v308 = vld [vmem:[%s0 + $0xf8] sm:$0xff]
  %v309 = vld [vmem:[%s0 + $0x100] sm:$0xff]
  %v310 = vld [vmem:[%s0 + $0x108] sm:$0xff]
  %v311 = vld [vmem:[%s0 + $0x110] sm:$0xff]
  %v312 = vld [vmem:[%s0 + $0x118] sm:$0xff]
  %v313 = vld [vmem:[%s0 + $0x120] sm:$0xff]
  %v314 = vld [vmem:[%s0 + $0x128] sm:$0xff]
  %v315 = vld [vmem:[%s0 + $0x130] sm:$0xff]
  %v316 = vld [vmem:[%s0 + $0x138] sm:$0xff]
  %v317 = vld [vmem:[%s0 + $0x140] sm:$0xff]
  %v318 = vld [vmem:[%s0 + $0x148] sm:$0xff]
  %v319 = vld [vmem:[%s0 + $0x150] sm:$0xff]
  %v320 = vld [vmem:[%s0 + $0x158] sm:$0xff]
  %v321 = vld [vmem:[%s0 + $0x160] sm:$0xff]
  %v322 = vld [vmem:[%s0 + $0x168] sm:$0xff]
  %v323 = vld [vmem:[%s0 + $0x170] sm:$0xff]
  %v324 = vld [vmem:[%s0 + $0x178] sm:$0xff]
  %v325 = vld [vmem:[%s0 + $0x180] sm:$0xff]
  %v326 = vld [vmem:[%s0 + $0x188] sm:$0xff]
  %v327 = vld [vmem:[%s0 + $0x190] sm:$0xff]
  %v328 = vld [vmem:[%s0 + $0x198] sm:$0xff]
  %v329 = vld [vmem:[%s0 + $0x1a0] sm:$0xff]
  %v330 = vld [vmem:[%s0 + $0x1a8] sm:$0xff]
  %v331 = vld [vmem:[%s0 + $0x1b0] sm:$0xff]
  %v332 = vld [vmem:[%s0 + $0x1b8] sm:$0xff]
  %v333 = vld [vmem:[%s0 + $0x1c0] sm:$0xff]
  %v334 = vld [vmem:[%s0 + $0x1c8] sm:$0xff]
  %v335 = vld [vmem:[%s0 + $0x1d0] sm:$0xff]
  %v336 = vld [vmem:[%s0 + $0x1d8] sm:$0xff]
  %v337 = vld [vmem:[%s0 + $0x1e0] sm:$0xff]
  %v338 = vld [vmem:[%s0 + $0x1e8] sm:$0xff]
  %v339 = vld [vmem:[%s0 + $0x1f0] sm:$0xff]
  %v340 = vld [vmem:[%s0 + $0x1f8] sm:$0xff]
  %v341 = vld [vmem:[%s0 + $0x200] sm:$0xff]
  %v342 = vld [vmem:[%s0 + $0x208] sm:$0xff]
  %v343 = vld [vmem:[%s0 + $0x210] sm:$0xff]
  %v344 = vld [vmem:[%s0 + $0x218] sm:$0xff]
  %v345 = vld [vmem:[%s0 + $0x220] sm:$0xff]
  %v346 = vld [vmem:[%s0 + $0x228] sm:$0xff]
  %v347 = vld [vmem:[%s0 + $0x230] sm:$0xff]
  %v348 = vld [vmem:[%s0 + $0x238] sm:$0xff]
  %v349 = vld [vmem:[%s0 + $0x240] sm:$0xff]
  %v350 = vld [vmem:[%s0 + $0x248] sm:$0xff]
  %v351 = vld [vmem:[%s0 + $0x250] sm:$0xff]
  %v352 = vld [vmem:[%s0 + $0x258] sm:$0xff]
  %v353 = vld [vmem:[%s0 + $0x260] sm:$0xff]
  %v354 = vld [vmem:[%s0 + $0x268] sm:$0xff]
  %v355 = vld [vmem:[%s0 + $0x270] sm:$0xff]
  %v356 = vld [vmem:[%s0 + $0x278] sm:$0xff]
  %v357 = vld [vmem:[%s0 + $0x280] sm:$0xff]
  %v358 = vld [vmem:[%s0 + $0x288] sm:$0xff]
  %v359 = vld [vmem:[%s0 + $0x290] sm:$0xff]
  %v360 = vld [vmem:[%s0 + $0x298] sm:$0xff]
  %v361 = vld [vmem:[%s0 + $0x2a0] sm:$0xff]
  %v362 = vld [vmem:[%s0 + $0x2a8] sm:$0xff]
  %v363 = vld [vmem:[%s0 + $0x2b0] sm:$0xff]
  %v364 = vld [vmem:[%s0 + $0x2b8] sm:$0xff]
  %v365 = vld [vmem:[%s0 + $0x2c0] sm:$0xff]
  %v366 = vld [vmem:[%s0 + $0x2c8] sm:$0xff]
  %v367 = vld [vmem:[%s0 + $0x2d0] sm:$0xff]
  %v368 = vld [vmem:[%s0 + $0x2d8] sm:$0xff]
  %v369 = vld [vmem:[%s0 + $0x2e0] sm:$0xff]
  %v370 = vld [vmem:[%s0 + $0x2e8] sm:$0xff]
  %v371 = vld [vmem:[%s0 + $0x2f0] sm:$0xff]
  %v372 = vld [vmem:[%s0 + $0x2f8] sm:$0xff]
  %v373 = vld [vmem:[%s0 + $0x300] sm:$0xff]
  %v374 = vld [vmem:[%s0 + $0x308] sm:$0xff]
  %v375 = vld [vmem:[%s0 + $0x310] sm:$0xff]
  %v376 = vld [vmem:[%s0 + $0x318] sm:$0xff]
  %v377 = vld [vmem:[%s0 + $0x320] sm:$0xff]
  %v378 = vld [vmem:[%s0 + $0x328] sm:$0xff]
  %v379 = vld [vmem:[%s0 + $0x330] sm:$0xff]
  %v380 = vld [vmem:[%s0 + $0x338] sm:$0xff]
  %v381 = vld [vmem:[%s0 + $0x340] sm:$0xff]
  %v382 = vld [vmem:[%s0 + $0x348] sm:$0xff]
  %v383 = vld [vmem:[%s0 + $0x350] sm:$0xff]
  %v384 = vld [vmem:[%s0 + $0x358] sm:$0xff]
  %v385 = vld [vmem:[%s0 + $0x360] sm:$0xff]
  %v386 = vld [vmem:[%s0 + $0x368] sm:$0xff]
  %v387 = vld [vmem:[%s0 + $0x370] sm:$0xff]
  %v388 = vld [vmem:[%s0 + $0x378] sm:$0xff]
  %v389 = vld [vmem:[%s0 + $0x380] sm:$0xff]
  %v390 = vld [vmem:[%s0 + $0x388] sm:$0xff]
  %v391 = vld [vmem:[%s0 + $0x390] sm:$0xff]
  %v392 = vld [vmem:[%s0 + $0x398] sm:$0xff]
  %v393 = vld [vmem:[%s0 + $0x3a0] sm:$0xff]
  %v394 = vld [vmem:[%s0 + $0x3a8] sm:$0xff]
  %v395 = vld [vmem:[%s0 + $0x3b0] sm:$0xff]
  %v396 = vld [vmem:[%s0 + $0x3b8] sm:$0xff]
  %v397 = vld [vmem:[%s0 + $0x3c0] sm:$0xff]
  %v398 = vld [vmem:[%s0 + $0x3c8] sm:$0xff]
  %v399 = vld [vmem:[%s0 + $0x3d0] sm:$0xff]
  %v400 = vld [vmem:[%s0 + $0x3d8] sm:$0xff]
  %v401 = vld [vmem:[%s0 + $0x3e0] sm:$0xff]
  %v402 = vld [vmem:[%s0 + $0x3e8] sm:$0xff]
  %v403 = vld [vmem:[%s0 + $0x3f0] sm:$0xff]
  %v404 = vld [vmem:[%s0 + $0x3f8] sm:$0xff]
  %v405 = vld [vmem:[%s0 + $0x400] sm:$0xff]
  %v406 = vld [vmem:[%s0 + $0x408] sm:$0xff]
  %v407 = vld [vmem:[%s0 + $0x410] sm:$0xff]
  %v408 = vld [vmem:[%s0 + $0x418] sm:$0xff]
  %v409 = vld [vmem:[%s0 + $0x420] sm:$0xff]
  %v410 = vld [vmem:[%s0 + $0x428] sm:$0xff]
  %v411 = vld [vmem:[%s0 + $0x430] sm:$0xff]
  %v412 = vld [vmem:[%s0 + $0x438] sm:$0xff]
  %v413 = vld [vmem:[%s0 + $0x440] sm:$0xff]
  %v414 = vld [vmem:[%s0 + $0x448] sm:$0xff]
  %v415 = vld [vmem:[%s0 + $0x450] sm:$0xff]
  %v416 = vld [vmem:[%s0 + $0x458] sm:$0xff]
  %v417 = vld [vmem:[%s0 + $0x460] sm:$0xff]
  %v418 = vld [vmem:[%s0 + $0x468] sm:$0xff]
  %v419 = vld [vmem:[%s0 + $0x470] sm:$0xff]
  %v420 = vld [vmem:[%s0 + $0x478] sm:$0xff]
  %v421 = vld [vmem:[%s0 + $0x480] sm:$0xff]
  %v422 = vld [vmem:[%s0 + $0x488] sm:$0xff]
  %v423 = vld [vmem:[%s0 + $0x490] sm:$0xff]
  %v424 = vld [vmem:[%s0 + $0x498] sm:$0xff]
  %v425 = vld [vmem:[%s0 + $0x4a0] sm:$0xff]
  %v426 = vld [vmem:[%s0 + $0x4a8] sm:$0xff]
  %v427 = vld [vmem:[%s0 + $0x4b0] sm:$0xff]
  %v428 = vld [vmem:[%s0 + $0x4b8] sm:$0xff]
  %v429 = vld [vmem:[%s0 + $0x4c0] sm:$0xff]
  %v430 = vld [vmem:[%s0 + $0x4c8] sm:$0xff]
  %v431 = vld [vmem:[%s0 + $0x4d0] sm:$0xff]
  %v432 = vld [vmem:[%s0 + $0x4d8] sm:$0xff]
  %v433 = vld [vmem:[%s0 + $0x4e0] sm:$0xff]
  %v434 = vld [vmem:[%s0 + $0x4e8] sm:$0xff]
  %v435 = vld [vmem:[%s0 + $0x4f0] sm:$0xff]
  %v436 = vld [vmem:[%s0 + $0x4f8] sm:$0xff]
  %v437 = vld [vmem:[%s0 + $0x500] sm:$0xff]
  %v438 = vld [vmem:[%s0 + $0x508] sm:$0xff]
  %v439 = vld [vmem:[%s0 + $0x510] sm:$0xff]
  %v440 = vld [vmem:[%s0 + $0x518] sm:$0xff]
  %v441 = vld [vmem:[%s0 + $0x520] sm:$0xff]
  %v442 = vld [vmem:[%s0 + $0x528] sm:$0xff]
  %v443 = vld [vmem:[%s0 + $0x530] sm:$0xff]
  %v444 = vld [vmem:[%s0 + $0x538] sm:$0xff]
  %v445 = vld [vmem:[%s0 + $0x540] sm:$0xff]
  %v446 = vld [vmem:[%s0 + $0x548] sm:$0xff]
  %v447 = vld [vmem:[%s0 + $0x550] sm:$0xff]
  %v448 = vld [vmem:[%s0 + $0x558] sm:$0xff]
  %v449 = vld [vmem:[%s0 + $0x560] sm:$0xff]
  %v450 = vld [vmem:[%s0 + $0x568] sm:$0xff]
  %v451 = vld [vmem:[%s0 + $0x570] sm:$0xff]
  %v452 = vld [vmem:[%s0 + $0x578] sm:$0xff]
  %v453 = vld [vmem:[%s0 + $0x580] sm:$0xff]
  %v454 = vld [vmem:[%s0 + $0x588] sm:$0xff]
  %v455 = vld [vmem:[%s0 + $0x590] sm:$0xff]
  %v456 = vld [vmem:[%s0 + $0x598] sm:$0xff]
  %v457 = vld [vmem:[%s0 + $0x5a0] sm:$0xff]
  %v458 = vld [vmem:[%s0 + $0x5a8] sm:$0xff]
  %v459 = vld [vmem:[%s0 + $0x5b0] sm:$0xff]
  %v460 = vld [vmem:[%s0 + $0x5b8] sm:$0xff]
  %v461 = vld [vmem:[%s0 + $0x5c0] sm:$0xff]
  %v462 = vld [vmem:[%s0 + $0x5c8] sm:$0xff]
  %v463 = vld [vmem:[%s0 + $0x5d0] sm:$0xff]
  %v464 = vld [vmem:[%s0 + $0x5d8] sm:$0xff]
  %v465 = vld [vmem:[%s0 + $0x5e0] sm:$0xff]
  %v466 = vld [vmem:[%s0 + $0x5e8] sm:$0xff]
  %v467 = vld [vmem:[%s0 + $0x5f0] sm:$0xff]
  %v468 = vld [vmem:[%s0 + $0x5f8] sm:$0xff]
  %v469 = vld [vmem:[%s0 + $0x600] sm:$0xff]
  %v470 = vld [vmem:[%s0 + $0x608] sm:$0xff]
  %v471 = vld [vmem:[%s0 + $0x610] sm:$0xff]
  %v472 = vld [vmem:[%s0 + $0x618] sm:$0xff]
  %v473 = vld [vmem:[%s0 + $0x620] sm:$0xff]
  %v474 = vld [vmem:[%s0 + $0x628] sm:$0xff]
  %v475 = vld [vmem:[%s0 + $0x630] sm:$0xff]
  %v476 = vld [vmem:[%s0 + $0x638] sm:$0xff]
  %v477 = vld [vmem:[%s0 + $0x640] sm:$0xff]
  %v478 = vld [vmem:[%s0 + $0x648] sm:$0xff]
  %v479 = vld [vmem:[%s0 + $0x650] sm:$0xff]
  %v480 = vld [vmem:[%s0 + $0x658] sm:$0xff]
  %v481 = vld [vmem:[%s0 + $0x660] sm:$0xff]
  %v482 = vld [vmem:[%s0 + $0x668] sm:$0xff]
  %v483 = vld [vmem:[%s0 + $0x670] sm:$0xff]
  %v484 = vld [vmem:[%s0 + $0x678] sm:$0xff]
  %v485 = vld [vmem:[%s0 + $0x680] sm:$0xff]
  %v486 = vld [vmem:[%s0 + $0x688] sm:$0xff]
  %v487 = vld [vmem:[%s0 + $0x690] sm:$0xff]
  %v488 = vld [vmem:[%s0 + $0x698] sm:$0xff]
  %v489 = vld [vmem:[%s0 + $0x6a0] sm:$0xff]
  %v490 = vld [vmem:[%s0 + $0x6a8] sm:$0xff]
  %v491 = vld [vmem:[%s0 + $0x6b0] sm:$0xff]
  %v492 = vld [vmem:[%s0 + $0x6b8] sm:$0xff]
  %v493 = vld [vmem:[%s0 + $0x6c0] sm:$0xff]
  %v494 = vld [vmem:[%s0 + $0x6c8] sm:$0xff]
  %v495 = vld [vmem:[%s0 + $0x6d0] sm:$0xff]
  %v496 = vld [vmem:[%s0 + $0x6d8] sm:$0xff]
  %v497 = vld [vmem:[%s0 + $0x6e0] sm:$0xff]
  %v498 = vld [vmem:[%s0 + $0x6e8] sm:$0xff]
  %v499 = vld [vmem:[%s0 + $0x6f0] sm:$0xff]
  %v500 = vld [vmem:[%s0 + $0x6f8] sm:$0xff]
  %v501 = vld [vmem:[%s0 + $0x700] sm:$0xff]
  %v502 = vld [vmem:[%s0 + $0x708] sm:$0xff]
  %v503 = vld [vmem:[%s0 + $0x710] sm:$0xff]
  %v504 = vld [vmem:[%s0 + $0x718] sm:$0xff]
  %v505 = vld [vmem:[%s0 + $0x720] sm:$0xff]
  %v506 = vld [vmem:[%s0 + $0x728] sm:$0xff]
  %v507 = vld [vmem:[%s0 + $0x730] sm:$0xff]
  %v508 = vld [vmem:[%s0 + $0x738] sm:$0xff]
  %v509 = vld [vmem:[%s0 + $0x740] sm:$0xff]
  %v510 = vld [vmem:[%s0 + $0x748] sm:$0xff]
  %v511 = vld [vmem:[%s0 + $0x750] sm:$0xff]
  %v512 = vld [vmem:[%s0 + $0x758] sm:$0xff]
  %v513 = vld [vmem:[%s0 + $0x760] sm:$0xff]
  %v514 = vld [vmem:[%s0 + $0x768] sm:$0xff]
  %v515 = vld [vmem:[%s0 + $0x770] sm:$0xff]
  %v516 = vld [vmem:[%s0 + $0x778] sm:$0xff]
  %v517 = vld [vmem:[%s0 + $0x780] sm:$0xff]
  %v518 = vld [vmem:[%s0 + $0x788] sm:$0xff]
  %v519 = vld [vmem:[%s0 + $0x790] sm:$0xff]
  %v520 = vld [vmem:[%s0 + $0x798] sm:$0xff]
  %v521 = vld [vmem:[%s0 + $0x7a0] sm:$0xff]
  %v522 = vld [vmem:[%s0 + $0x7a8] sm:$0xff]
  %v523 = vld [vmem:[%s0 + $0x7b0] sm:$0xff]
  %v524 = vld [vmem:[%s0 + $0x7b8] sm:$0xff]
  %v525 = vld [vmem:[%s0 + $0x7c0] sm:$0xff]
  %v526 = vld [vmem:[%s0 + $0x7c8] sm:$0xff]
  %v527 = vld [vmem:[%s0 + $0x7d0] sm:$0xff]
  %v528 = vld [vmem:[%s0 + $0x7d8] sm:$0xff]
  %v529 = vld [vmem:[%s0 + $0x7e0] sm:$0xff]
  %v530 = vld [vmem:[%s0 + $0x7e8] sm:$0xff]
  %v531 = vld [vmem:[%s0 + $0x7f0] sm:$0xff]
  %v532 = vld [vmem:[%s0 + $0x7f8] sm:$0xff]
  %v533 = vld [vmem:[%s1] sm:$0xf]
  %v534 = vld [vmem:[%s1 + $0x4] sm:$0xf]
  %v535 = vld [vmem:[%s1 + $0x8] sm:$0xf]
  %v536 = vld [vmem:[%s1 + $0xc] sm:$0xf]
  %v537 = vld [vmem:[%s1 + $0x10] sm:$0xf]
  %v538 = vld [vmem:[%s1 + $0x14] sm:$0xf]
  %v539 = vld [vmem:[%s1 + $0x18] sm:$0xf]
  %v540 = vld [vmem:[%s1 + $0x1c] sm:$0xf]
  %v541 = vld [vmem:[%s1 + $0x20] sm:$0xf]
  %v542 = vld [vmem:[%s1 + $0x24] sm:$0xf]
  %v543 = vld [vmem:[%s1 + $0x28] sm:$0xf]
  %v544 = vld [vmem:[%s1 + $0x2c] sm:$0xf]
  %v545 = vld [vmem:[%s1 + $0x30] sm:$0xf]
  %v546 = vld [vmem:[%s1 + $0x34] sm:$0xf]
  %v547 = vld [vmem:[%s1 + $0x38] sm:$0xf]
  %v548 = vld [vmem:[%s1 + $0x3c] sm:$0xf]
  %v549 = vld [vmem:[%s1 + $0x40] sm:$0xf]
  %v550 = vld [vmem:[%s1 + $0x44] sm:$0xf]
  %v551 = vld [vmem:[%s1 + $0x48] sm:$0xf]
  %v552 = vld [vmem:[%s1 + $0x4c] sm:$0xf]
  %v553 = vld [vmem:[%s1 + $0x50] sm:$0xf]
  %v554 = vld [vmem:[%s1 + $0x54] sm:$0xf]
  %v555 = vld [vmem:[%s1 + $0x58] sm:$0xf]
  %v556 = vld [vmem:[%s1 + $0x5c] sm:$0xf]
  %v557 = vld [vmem:[%s1 + $0x60] sm:$0xf]
  %v558 = vld [vmem:[%s1 + $0x64] sm:$0xf]
  %v559 = vld [vmem:[%s1 + $0x68] sm:$0xf]
  %v560 = vld [vmem:[%s1 + $0x6c] sm:$0xf]
  %v561 = vld [vmem:[%s1 + $0x70] sm:$0xf]
  %v562 = vld [vmem:[%s1 + $0x74] sm:$0xf]
  %v563 = vld [vmem:[%s1 + $0x78] sm:$0xf]
  %v564 = vld [vmem:[%s1 + $0x7c] sm:$0xf]
  %v565 = vld [vmem:[%s1 + $0x80] sm:$0xf]
  %v566 = vld [vmem:[%s1 + $0x84] sm:$0xf]
  %v567 = vld [vmem:[%s1 + $0x88] sm:$0xf]
  %v568 = vld [vmem:[%s1 + $0x8c] sm:$0xf]
  %v569 = vld [vmem:[%s1 + $0x90] sm:$0xf]
  %v570 = vld [vmem:[%s1 + $0x94] sm:$0xf]
  %v571 = vld [vmem:[%s1 + $0x98] sm:$0xf]
  %v572 = vld [vmem:[%s1 + $0x9c] sm:$0xf]
  %v573 = vld [vmem:[%s1 + $0xa0] sm:$0xf]
  %v574 = vld [vmem:[%s1 + $0xa4] sm:$0xf]
  %v575 = vld [vmem:[%s1 + $0xa8] sm:$0xf]
  %v576 = vld [vmem:[%s1 + $0xac] sm:$0xf]
  %v577 = vld [vmem:[%s1 + $0xb0] sm:$0xf]
  %v578 = vld [vmem:[%s1 + $0xb4] sm:$0xf]
  %v579 = vld [vmem:[%s1 + $0xb8] sm:$0xf]
  %v580 = vld [vmem:[%s1 + $0xbc] sm:$0xf]
  %v581 = vld [vmem:[%s1 + $0xc0] sm:$0xf]
  %v582 = vld [vmem:[%s1 + $0xc4] sm:$0xf]
  %v583 = vld [vmem:[%s1 + $0xc8] sm:$0xf]
  %v584 = vld [vmem:[%s1 + $0xcc] sm:$0xf]
  %v585 = vld [vmem:[%s1 + $0xd0] sm:$0xf]
  %v586 = vld [vmem:[%s1 + $0xd4] sm:$0xf]
  %v587 = vld [vmem:[%s1 + $0xd8] sm:$0xf]
  %v588 = vld [vmem:[%s1 + $0xdc] sm:$0xf]
  %v589 = vld [vmem:[%s1 + $0xe0] sm:$0xf]
  %v590 = vld [vmem:[%s1 + $0xe4] sm:$0xf]
  %v591 = vld [vmem:[%s1 + $0xe8] sm:$0xf]
  %v592 = vld [vmem:[%s1 + $0xec] sm:$0xf]
  %v593 = vld [vmem:[%s1 + $0xf0] sm:$0xf]
  %v594 = vld [vmem:[%s1 + $0xf4] sm:$0xf]
  %v595 = vld [vmem:[%s1 + $0xf8] sm:$0xf]
  %v596 = vld [vmem:[%s1 + $0xfc] sm:$0xf]
  %v853 = vunpack.c.l.b16 %v277
  %v854 = vunpack.c.h.b16 %v277
  %v855 = vunpack.c.l.b16 %v278
  %v856 = vunpack.c.h.b16 %v278
  %v857 = vunpack.c.l.b16 %v279
  %v858 = vunpack.c.h.b16 %v279
  %v859 = vunpack.c.l.b16 %v280
  %v860 = vunpack.c.h.b16 %v280
  %v861 = vunpack.c.l.b16 %v281
  %v862 = vunpack.c.h.b16 %v281
  %v863 = vunpack.c.l.b16 %v282
  %v864 = vunpack.c.h.b16 %v282
  %v865 = vunpack.c.l.b16 %v283
  %v866 = vunpack.c.h.b16 %v283
  %v867 = vunpack.c.l.b16 %v284
  %v868 = vunpack.c.h.b16 %v284
  %v869 = vunpack.c.l.b16 %v285
  %v870 = vunpack.c.h.b16 %v285
  %v871 = vunpack.c.l.b16 %v286
  %v872 = vunpack.c.h.b16 %v286
  %v873 = vunpack.c.l.b16 %v287
  %v874 = vunpack.c.h.b16 %v287
  %v875 = vunpack.c.l.b16 %v288
  %v876 = vunpack.c.h.b16 %v288
  %v877 = vunpack.c.l.b16 %v289
  %v878 = vunpack.c.h.b16 %v289
  %v879 = vunpack.c.l.b16 %v290
  %v880 = vunpack.c.h.b16 %v290
  %v881 = vunpack.c.l.b16 %v291
  %v882 = vunpack.c.h.b16 %v291
  %v883 = vunpack.c.l.b16 %v292
  %v884 = vunpack.c.h.b16 %v292
  %v885 = vunpack.c.l.b16 %v293
  %v886 = vunpack.c.h.b16 %v293
  %v887 = vunpack.c.l.b16 %v294
  %v888 = vunpack.c.h.b16 %v294
  %v889 = vunpack.c.l.b16 %v295
  %v890 = vunpack.c.h.b16 %v295
  %v891 = vunpack.c.l.b16 %v296
  %v892 = vunpack.c.h.b16 %v296
  %v893 = vunpack.c.l.b16 %v297
  %v894 = vunpack.c.h.b16 %v297
  %v895 = vunpack.c.l.b16 %v298
  %v896 = vunpack.c.h.b16 %v298
  %v897 = vunpack.c.l.b16 %v299
  %v898 = vunpack.c.h.b16 %v299
  %v899 = vunpack.c.l.b16 %v300
  %v900 = vunpack.c.h.b16 %v300
  %v901 = vunpack.c.l.b16 %v301
  %v902 = vunpack.c.h.b16 %v301
  %v903 = vunpack.c.l.b16 %v302
  %v904 = vunpack.c.h.b16 %v302
  %v905 = vunpack.c.l.b16 %v303
  %v906 = vunpack.c.h.b16 %v303
  %v907 = vunpack.c.l.b16 %v304
  %v908 = vunpack.c.h.b16 %v304
  %v909 = vunpack.c.l.b16 %v305
  %v910 = vunpack.c.h.b16 %v305
  %v911 = vunpack.c.l.b16 %v306
  %v912 = vunpack.c.h.b16 %v306
  %v913 = vunpack.c.l.b16 %v307
  %v914 = vunpack.c.h.b16 %v307
  %v915 = vunpack.c.l.b16 %v308
  %v916 = vunpack.c.h.b16 %v308
  %v917 = vunpack.c.l.b16 %v309
  %v918 = vunpack.c.h.b16 %v309
  %v919 = vunpack.c.l.b16 %v310
  %v920 = vunpack.c.h.b16 %v310
  %v921 = vunpack.c.l.b16 %v311
  %v922 = vunpack.c.h.b16 %v311
  %v923 = vunpack.c.l.b16 %v312
  %v924 = vunpack.c.h.b16 %v312
  %v925 = vunpack.c.l.b16 %v313
  %v926 = vunpack.c.h.b16 %v313
  %v927 = vunpack.c.l.b16 %v314
  %v928 = vunpack.c.h.b16 %v314
  %v929 = vunpack.c.l.b16 %v315
  %v930 = vunpack.c.h.b16 %v315
  %v931 = vunpack.c.l.b16 %v316
  %v932 = vunpack.c.h.b16 %v316
  %v933 = vunpack.c.l.b16 %v317
  %v934 = vunpack.c.h.b16 %v317
  %v935 = vunpack.c.l.b16 %v318
  %v936 = vunpack.c.h.b16 %v318
  %v937 = vunpack.c.l.b16 %v319
  %v938 = vunpack.c.h.b16 %v319
  %v939 = vunpack.c.l.b16 %v320
  %v940 = vunpack.c.h.b16 %v320
  %v941 = vunpack.c.l.b16 %v321
  %v942 = vunpack.c.h.b16 %v321
  %v943 = vunpack.c.l.b16 %v322
  %v944 = vunpack.c.h.b16 %v322
  %v945 = vunpack.c.l.b16 %v323
  %v946 = vunpack.c.h.b16 %v323
  %v947 = vunpack.c.l.b16 %v324
  %v948 = vunpack.c.h.b16 %v324
  %v949 = vunpack.c.l.b16 %v325
  %v950 = vunpack.c.h.b16 %v325
  %v951 = vunpack.c.l.b16 %v326
  %v952 = vunpack.c.h.b16 %v326
  %v953 = vunpack.c.l.b16 %v327
  %v954 = vunpack.c.h.b16 %v327
  %v955 = vunpack.c.l.b16 %v328
  %v956 = vunpack.c.h.b16 %v328
  %v957 = vunpack.c.l.b16 %v329
  %v958 = vunpack.c.h.b16 %v329
  %v959 = vunpack.c.l.b16 %v330
  %v960 = vunpack.c.h.b16 %v330
  %v961 = vunpack.c.l.b16 %v331
  %v962 = vunpack.c.h.b16 %v331
  %v963 = vunpack.c.l.b16 %v332
  %v964 = vunpack.c.h.b16 %v332
  %v965 = vunpack.c.l.b16 %v333
  %v966 = vunpack.c.h.b16 %v333
  %v967 = vunpack.c.l.b16 %v334
  %v968 = vunpack.c.h.b16 %v334
  %v969 = vunpack.c.l.b16 %v335
  %v970 = vunpack.c.h.b16 %v335
  %v971 = vunpack.c.l.b16 %v336
  %v972 = vunpack.c.h.b16 %v336
  %v973 = vunpack.c.l.b16 %v337
  %v974 = vunpack.c.h.b16 %v337
  %v975 = vunpack.c.l.b16 %v338
  %v976 = vunpack.c.h.b16 %v338
  %v977 = vunpack.c.l.b16 %v339
  %v978 = vunpack.c.h.b16 %v339
  %v979 = vunpack.c.l.b16 %v340
  %v980 = vunpack.c.h.b16 %v340
  %v981 = vunpack.c.l.b16 %v341
  %v982 = vunpack.c.h.b16 %v341
  %v983 = vunpack.c.l.b16 %v342
  %v984 = vunpack.c.h.b16 %v342
  %v985 = vunpack.c.l.b16 %v343
  %v986 = vunpack.c.h.b16 %v343
  %v987 = vunpack.c.l.b16 %v344
  %v988 = vunpack.c.h.b16 %v344
  %v989 = vunpack.c.l.b16 %v345
  %v990 = vunpack.c.h.b16 %v345
  %v991 = vunpack.c.l.b16 %v346
  %v992 = vunpack.c.h.b16 %v346
  %v993 = vunpack.c.l.b16 %v347
  %v994 = vunpack.c.h.b16 %v347
  %v995 = vunpack.c.l.b16 %v348
  %v996 = vunpack.c.h.b16 %v348
  %v997 = vunpack.c.l.b16 %v349
  %v998 = vunpack.c.h.b16 %v349
  %v999 = vunpack.c.l.b16 %v350
  %v1000 = vunpack.c.h.b16 %v350
  %v1001 = vunpack.c.l.b16 %v351
  %v1002 = vunpack.c.h.b16 %v351
  %v1003 = vunpack.c.l.b16 %v352
  %v1004 = vunpack.c.h.b16 %v352
  %v1005 = vunpack.c.l.b16 %v353
  %v1006 = vunpack.c.h.b16 %v353
  %v1007 = vunpack.c.l.b16 %v354
  %v1008 = vunpack.c.h.b16 %v354
  %v1009 = vunpack.c.l.b16 %v355
  %v1010 = vunpack.c.h.b16 %v355
  %v1011 = vunpack.c.l.b16 %v356
  %v1012 = vunpack.c.h.b16 %v356
  %v1013 = vunpack.c.l.b16 %v357
  %v1014 = vunpack.c.h.b16 %v357
  %v1015 = vunpack.c.l.b16 %v358
  %v1016 = vunpack.c.h.b16 %v358
  %v1017 = vunpack.c.l.b16 %v359
  %v1018 = vunpack.c.h.b16 %v359
  %v1019 = vunpack.c.l.b16 %v360
  %v1020 = vunpack.c.h.b16 %v360
  %v1021 = vunpack.c.l.b16 %v361
  %v1022 = vunpack.c.h.b16 %v361
  %v1023 = vunpack.c.l.b16 %v362
  %v1024 = vunpack.c.h.b16 %v362
  %v1025 = vunpack.c.l.b16 %v363
  %v1026 = vunpack.c.h.b16 %v363
  %v1027 = vunpack.c.l.b16 %v364
  %v1028 = vunpack.c.h.b16 %v364
  %v1029 = vunpack.c.l.b16 %v365
  %v1030 = vunpack.c.h.b16 %v365
  %v1031 = vunpack.c.l.b16 %v366
  %v1032 = vunpack.c.h.b16 %v366
  %v1033 = vunpack.c.l.b16 %v367
  %v1034 = vunpack.c.h.b16 %v367
  %v1035 = vunpack.c.l.b16 %v368
  %v1036 = vunpack.c.h.b16 %v368
  %v1037 = vunpack.c.l.b16 %v369
  %v1038 = vunpack.c.h.b16 %v369
  %v1039 = vunpack.c.l.b16 %v370
  %v1040 = vunpack.c.h.b16 %v370
  %v1041 = vunpack.c.l.b16 %v371
  %v1042 = vunpack.c.h.b16 %v371
  %v1043 = vunpack.c.l.b16 %v372
  %v1044 = vunpack.c.h.b16 %v372
  %v1045 = vunpack.c.l.b16 %v373
  %v1046 = vunpack.c.h.b16 %v373
  %v1047 = vunpack.c.l.b16 %v374
  %v1048 = vunpack.c.h.b16 %v374
  %v1049 = vunpack.c.l.b16 %v375
  %v1050 = vunpack.c.h.b16 %v375
  %v1051 = vunpack.c.l.b16 %v376
  %v1052 = vunpack.c.h.b16 %v376
  %v1053 = vunpack.c.l.b16 %v377
  %v1054 = vunpack.c.h.b16 %v377
  %v1055 = vunpack.c.l.b16 %v378
  %v1056 = vunpack.c.h.b16 %v378
  %v1057 = vunpack.c.l.b16 %v379
  %v1058 = vunpack.c.h.b16 %v379
  %v1059 = vunpack.c.l.b16 %v380
  %v1060 = vunpack.c.h.b16 %v380
  %v1061 = vunpack.c.l.b16 %v381
  %v1062 = vunpack.c.h.b16 %v381
  %v1063 = vunpack.c.l.b16 %v382
  %v1064 = vunpack.c.h.b16 %v382
  %v1065 = vunpack.c.l.b16 %v383
  %v1066 = vunpack.c.h.b16 %v383
  %v1067 = vunpack.c.l.b16 %v384
  %v1068 = vunpack.c.h.b16 %v384
  %v1069 = vunpack.c.l.b16 %v385
  %v1070 = vunpack.c.h.b16 %v385
  %v1071 = vunpack.c.l.b16 %v386
  %v1072 = vunpack.c.h.b16 %v386
  %v1073 = vunpack.c.l.b16 %v387
  %v1074 = vunpack.c.h.b16 %v387
  %v1075 = vunpack.c.l.b16 %v388
  %v1076 = vunpack.c.h.b16 %v388
  %v1077 = vunpack.c.l.b16 %v389
  %v1078 = vunpack.c.h.b16 %v389
  %v1079 = vunpack.c.l.b16 %v390
  %v1080 = vunpack.c.h.b16 %v390
  %v1081 = vunpack.c.l.b16 %v391
  %v1082 = vunpack.c.h.b16 %v391
  %v1083 = vunpack.c.l.b16 %v392
  %v1084 = vunpack.c.h.b16 %v392
  %v1085 = vunpack.c.l.b16 %v393
  %v1086 = vunpack.c.h.b16 %v393
  %v1087 = vunpack.c.l.b16 %v394
  %v1088 = vunpack.c.h.b16 %v394
  %v1089 = vunpack.c.l.b16 %v395
  %v1090 = vunpack.c.h.b16 %v395
  %v1091 = vunpack.c.l.b16 %v396
  %v1092 = vunpack.c.h.b16 %v396
  %v1093 = vunpack.c.l.b16 %v397
  %v1094 = vunpack.c.h.b16 %v397
  %v1095 = vunpack.c.l.b16 %v398
  %v1096 = vunpack.c.h.b16 %v398
  %v1097 = vunpack.c.l.b16 %v399
  %v1098 = vunpack.c.h.b16 %v399
  %v1099 = vunpack.c.l.b16 %v400
  %v1100 = vunpack.c.h.b16 %v400
  %v1101 = vunpack.c.l.b16 %v401
  %v1102 = vunpack.c.h.b16 %v401
  %v1103 = vunpack.c.l.b16 %v402
  %v1104 = vunpack.c.h.b16 %v402
  %v1105 = vunpack.c.l.b16 %v403
  %v1106 = vunpack.c.h.b16 %v403
  %v1107 = vunpack.c.l.b16 %v404
  %v1108 = vunpack.c.h.b16 %v404
  %v1109 = vunpack.c.l.b16 %v405
  %v1110 = vunpack.c.h.b16 %v405
  %v1111 = vunpack.c.l.b16 %v406
  %v1112 = vunpack.c.h.b16 %v406
  %v1113 = vunpack.c.l.b16 %v407
  %v1114 = vunpack.c.h.b16 %v407
  %v1115 = vunpack.c.l.b16 %v408
  %v1116 = vunpack.c.h.b16 %v408
  %v1117 = vunpack.c.l.b16 %v409
  %v1118 = vunpack.c.h.b16 %v409
  %v1119 = vunpack.c.l.b16 %v410
  %v1120 = vunpack.c.h.b16 %v410
  %v1121 = vunpack.c.l.b16 %v411
  %v1122 = vunpack.c.h.b16 %v411
  %v1123 = vunpack.c.l.b16 %v412
  %v1124 = vunpack.c.h.b16 %v412
  %v1125 = vunpack.c.l.b16 %v413
  %v1126 = vunpack.c.h.b16 %v413
  %v1127 = vunpack.c.l.b16 %v414
  %v1128 = vunpack.c.h.b16 %v414
  %v1129 = vunpack.c.l.b16 %v415
  %v1130 = vunpack.c.h.b16 %v415
  %v1131 = vunpack.c.l.b16 %v416
  %v1132 = vunpack.c.h.b16 %v416
  %v1133 = vunpack.c.l.b16 %v417
  %v1134 = vunpack.c.h.b16 %v417
  %v1135 = vunpack.c.l.b16 %v418
  %v1136 = vunpack.c.h.b16 %v418
  %v1137 = vunpack.c.l.b16 %v419
  %v1138 = vunpack.c.h.b16 %v419
  %v1139 = vunpack.c.l.b16 %v420
  %v1140 = vunpack.c.h.b16 %v420
  %v1141 = vunpack.c.l.b16 %v421
  %v1142 = vunpack.c.h.b16 %v421
  %v1143 = vunpack.c.l.b16 %v422
  %v1144 = vunpack.c.h.b16 %v422
  %v1145 = vunpack.c.l.b16 %v423
  %v1146 = vunpack.c.h.b16 %v423
  %v1147 = vunpack.c.l.b16 %v424
  %v1148 = vunpack.c.h.b16 %v424
  %v1149 = vunpack.c.l.b16 %v425
  %v1150 = vunpack.c.h.b16 %v425
  %v1151 = vunpack.c.l.b16 %v426
  %v1152 = vunpack.c.h.b16 %v426
  %v1153 = vunpack.c.l.b16 %v427
  %v1154 = vunpack.c.h.b16 %v427
  %v1155 = vunpack.c.l.b16 %v428
  %v1156 = vunpack.c.h.b16 %v428
  %v1157 = vunpack.c.l.b16 %v429
  %v1158 = vunpack.c.h.b16 %v429
  %v1159 = vunpack.c.l.b16 %v430
  %v1160 = vunpack.c.h.b16 %v430
  %v1161 = vunpack.c.l.b16 %v431
  %v1162 = vunpack.c.h.b16 %v431
  %v1163 = vunpack.c.l.b16 %v432
  %v1164 = vunpack.c.h.b16 %v432
  %v1165 = vunpack.c.l.b16 %v433
  %v1166 = vunpack.c.h.b16 %v433
  %v1167 = vunpack.c.l.b16 %v434
  %v1168 = vunpack.c.h.b16 %v434
  %v1169 = vunpack.c.l.b16 %v435
  %v1170 = vunpack.c.h.b16 %v435
  %v1171 = vunpack.c.l.b16 %v436
  %v1172 = vunpack.c.h.b16 %v436
  %v1173 = vunpack.c.l.b16 %v437
  %v1174 = vunpack.c.h.b16 %v437
  %v1175 = vunpack.c.l.b16 %v438
  %v1176 = vunpack.c.h.b16 %v438
  %v1177 = vunpack.c.l.b16 %v439
  %v1178 = vunpack.c.h.b16 %v439
  %v1179 = vunpack.c.l.b16 %v440
  %v1180 = vunpack.c.h.b16 %v440
  %v1181 = vunpack.c.l.b16 %v441
  %v1182 = vunpack.c.h.b16 %v441
  %v1183 = vunpack.c.l.b16 %v442
  %v1184 = vunpack.c.h.b16 %v442
  %v1185 = vunpack.c.l.b16 %v443
  %v1186 = vunpack.c.h.b16 %v443
  %v1187 = vunpack.c.l.b16 %v444
  %v1188 = vunpack.c.h.b16 %v444
  %v1189 = vunpack.c.l.b16 %v445
  %v1190 = vunpack.c.h.b16 %v445
  %v1191 = vunpack.c.l.b16 %v446
  %v1192 = vunpack.c.h.b16 %v446
  %v1193 = vunpack.c.l.b16 %v447
  %v1194 = vunpack.c.h.b16 %v447
  %v1195 = vunpack.c.l.b16 %v448
  %v1196 = vunpack.c.h.b16 %v448
  %v1197 = vunpack.c.l.b16 %v449
  %v1198 = vunpack.c.h.b16 %v449
  %v1199 = vunpack.c.l.b16 %v450
  %v1200 = vunpack.c.h.b16 %v450
  %v1201 = vunpack.c.l.b16 %v451
  %v1202 = vunpack.c.h.b16 %v451
  %v1203 = vunpack.c.l.b16 %v452
  %v1204 = vunpack.c.h.b16 %v452
  %v1205 = vunpack.c.l.b16 %v453
  %v1206 = vunpack.c.h.b16 %v453
  %v1207 = vunpack.c.l.b16 %v454
  %v1208 = vunpack.c.h.b16 %v454
  %v1209 = vunpack.c.l.b16 %v455
  %v1210 = vunpack.c.h.b16 %v455
  %v1211 = vunpack.c.l.b16 %v456
  %v1212 = vunpack.c.h.b16 %v456
  %v1213 = vunpack.c.l.b16 %v457
  %v1214 = vunpack.c.h.b16 %v457
  %v1215 = vunpack.c.l.b16 %v458
  %v1216 = vunpack.c.h.b16 %v458
  %v1217 = vunpack.c.l.b16 %v459
  %v1218 = vunpack.c.h.b16 %v459
  %v1219 = vunpack.c.l.b16 %v460
  %v1220 = vunpack.c.h.b16 %v460
  %v1221 = vunpack.c.l.b16 %v461
  %v1222 = vunpack.c.h.b16 %v461
  %v1223 = vunpack.c.l.b16 %v462
  %v1224 = vunpack.c.h.b16 %v462
  %v1225 = vunpack.c.l.b16 %v463
  %v1226 = vunpack.c.h.b16 %v463
  %v1227 = vunpack.c.l.b16 %v464
  %v1228 = vunpack.c.h.b16 %v464
  %v1229 = vunpack.c.l.b16 %v465
  %v1230 = vunpack.c.h.b16 %v465
  %v1231 = vunpack.c.l.b16 %v466
  %v1232 = vunpack.c.h.b16 %v466
  %v1233 = vunpack.c.l.b16 %v467
  %v1234 = vunpack.c.h.b16 %v467
  %v1235 = vunpack.c.l.b16 %v468
  %v1236 = vunpack.c.h.b16 %v468
  %v1237 = vunpack.c.l.b16 %v469
  %v1238 = vunpack.c.h.b16 %v469
  %v1239 = vunpack.c.l.b16 %v470
  %v1240 = vunpack.c.h.b16 %v470
  %v1241 = vunpack.c.l.b16 %v471
  %v1242 = vunpack.c.h.b16 %v471
  %v1243 = vunpack.c.l.b16 %v472
  %v1244 = vunpack.c.h.b16 %v472
  %v1245 = vunpack.c.l.b16 %v473
  %v1246 = vunpack.c.h.b16 %v473
  %v1247 = vunpack.c.l.b16 %v474
  %v1248 = vunpack.c.h.b16 %v474
  %v1249 = vunpack.c.l.b16 %v475
  %v1250 = vunpack.c.h.b16 %v475
  %v1251 = vunpack.c.l.b16 %v476
  %v1252 = vunpack.c.h.b16 %v476
  %v1253 = vunpack.c.l.b16 %v477
  %v1254 = vunpack.c.h.b16 %v477
  %v1255 = vunpack.c.l.b16 %v478
  %v1256 = vunpack.c.h.b16 %v478
  %v1257 = vunpack.c.l.b16 %v479
  %v1258 = vunpack.c.h.b16 %v479
  %v1259 = vunpack.c.l.b16 %v480
  %v1260 = vunpack.c.h.b16 %v480
  %v1261 = vunpack.c.l.b16 %v481
  %v1262 = vunpack.c.h.b16 %v481
  %v1263 = vunpack.c.l.b16 %v482
  %v1264 = vunpack.c.h.b16 %v482
  %v1265 = vunpack.c.l.b16 %v483
  %v1266 = vunpack.c.h.b16 %v483
  %v1267 = vunpack.c.l.b16 %v484
  %v1268 = vunpack.c.h.b16 %v484
  %v1269 = vunpack.c.l.b16 %v485
  %v1270 = vunpack.c.h.b16 %v485
  %v1271 = vunpack.c.l.b16 %v486
  %v1272 = vunpack.c.h.b16 %v486
  %v1273 = vunpack.c.l.b16 %v487
  %v1274 = vunpack.c.h.b16 %v487
  %v1275 = vunpack.c.l.b16 %v488
  %v1276 = vunpack.c.h.b16 %v488
  %v1277 = vunpack.c.l.b16 %v489
  %v1278 = vunpack.c.h.b16 %v489
  %v1279 = vunpack.c.l.b16 %v490
  %v1280 = vunpack.c.h.b16 %v490
  %v1281 = vunpack.c.l.b16 %v491
  %v1282 = vunpack.c.h.b16 %v491
  %v1283 = vunpack.c.l.b16 %v492
  %v1284 = vunpack.c.h.b16 %v492
  %v1285 = vunpack.c.l.b16 %v493
  %v1286 = vunpack.c.h.b16 %v493
  %v1287 = vunpack.c.l.b16 %v494
  %v1288 = vunpack.c.h.b16 %v494
  %v1289 = vunpack.c.l.b16 %v495
  %v1290 = vunpack.c.h.b16 %v495
  %v1291 = vunpack.c.l.b16 %v496
  %v1292 = vunpack.c.h.b16 %v496
  %v1293 = vunpack.c.l.b16 %v497
  %v1294 = vunpack.c.h.b16 %v497
  %v1295 = vunpack.c.l.b16 %v498
  %v1296 = vunpack.c.h.b16 %v498
  %v1297 = vunpack.c.l.b16 %v499
  %v1298 = vunpack.c.h.b16 %v499
  %v1299 = vunpack.c.l.b16 %v500
  %v1300 = vunpack.c.h.b16 %v500
  %v1301 = vunpack.c.l.b16 %v501
  %v1302 = vunpack.c.h.b16 %v501
  %v1303 = vunpack.c.l.b16 %v502
  %v1304 = vunpack.c.h.b16 %v502
  %v1305 = vunpack.c.l.b16 %v503
  %v1306 = vunpack.c.h.b16 %v503
  %v1307 = vunpack.c.l.b16 %v504
  %v1308 = vunpack.c.h.b16 %v504
  %v1309 = vunpack.c.l.b16 %v505
  %v1310 = vunpack.c.h.b16 %v505
  %v1311 = vunpack.c.l.b16 %v506
  %v1312 = vunpack.c.h.b16 %v506
  %v1313 = vunpack.c.l.b16 %v507
  %v1314 = vunpack.c.h.b16 %v507
  %v1315 = vunpack.c.l.b16 %v508
  %v1316 = vunpack.c.h.b16 %v508
  %v1317 = vunpack.c.l.b16 %v509
  %v1318 = vunpack.c.h.b16 %v509
  %v1319 = vunpack.c.l.b16 %v510
  %v1320 = vunpack.c.h.b16 %v510
  %v1321 = vunpack.c.l.b16 %v511
  %v1322 = vunpack.c.h.b16 %v511
  %v1323 = vunpack.c.l.b16 %v512
  %v1324 = vunpack.c.h.b16 %v512
  %v1325 = vunpack.c.l.b16 %v513
  %v1326 = vunpack.c.h.b16 %v513
  %v1327 = vunpack.c.l.b16 %v514
  %v1328 = vunpack.c.h.b16 %v514
  %v1329 = vunpack.c.l.b16 %v515
  %v1330 = vunpack.c.h.b16 %v515
  %v1331 = vunpack.c.l.b16 %v516
  %v1332 = vunpack.c.h.b16 %v516
  %v1333 = vunpack.c.l.b16 %v517
  %v1334 = vunpack.c.h.b16 %v517
  %v1335 = vunpack.c.l.b16 %v518
  %v1336 = vunpack.c.h.b16 %v518
  %v1337 = vunpack.c.l.b16 %v519
  %v1338 = vunpack.c.h.b16 %v519
  %v1339 = vunpack.c.l.b16 %v520
  %v1340 = vunpack.c.h.b16 %v520
  %v1341 = vunpack.c.l.b16 %v521
  %v1342 = vunpack.c.h.b16 %v521
  %v1343 = vunpack.c.l.b16 %v522
  %v1344 = vunpack.c.h.b16 %v522
  %v1345 = vunpack.c.l.b16 %v523
  %v1346 = vunpack.c.h.b16 %v523
  %v1347 = vunpack.c.l.b16 %v524
  %v1348 = vunpack.c.h.b16 %v524
  %v1349 = vunpack.c.l.b16 %v525
  %v1350 = vunpack.c.h.b16 %v525
  %v1351 = vunpack.c.l.b16 %v526
  %v1352 = vunpack.c.h.b16 %v526
  %v1353 = vunpack.c.l.b16 %v527
  %v1354 = vunpack.c.h.b16 %v527
  %v1355 = vunpack.c.l.b16 %v528
  %v1356 = vunpack.c.h.b16 %v528
  %v1357 = vunpack.c.l.b16 %v529
  %v1358 = vunpack.c.h.b16 %v529
  %v1359 = vunpack.c.l.b16 %v530
  %v1360 = vunpack.c.h.b16 %v530
  %v1361 = vunpack.c.l.b16 %v531
  %v1362 = vunpack.c.h.b16 %v531
  %v1363 = vunpack.c.l.b16 %v532
  %v1364 = vunpack.c.h.b16 %v532
  %v1365 = vpack.c.b16 %v857, %v853
  %v1366 = vpack.c.b16 %v858, %v854
  %v1367 = vpack.c.b16 %v859, %v855
  %v1368 = vpack.c.b16 %v860, %v856
  %v1369 = vpack.c.b16 %v865, %v861
  %v1370 = vpack.c.b16 %v866, %v862
  %v1371 = vpack.c.b16 %v867, %v863
  %v1372 = vpack.c.b16 %v868, %v864
  %v1373 = vpack.c.b16 %v873, %v869
  %v1374 = vpack.c.b16 %v874, %v870
  %v1375 = vpack.c.b16 %v875, %v871
  %v1376 = vpack.c.b16 %v876, %v872
  %v1377 = vpack.c.b16 %v881, %v877
  %v1378 = vpack.c.b16 %v882, %v878
  %v1379 = vpack.c.b16 %v883, %v879
  %v1380 = vpack.c.b16 %v884, %v880
  %v1381 = vpack.c.b16 %v889, %v885
  %v1382 = vpack.c.b16 %v890, %v886
  %v1383 = vpack.c.b16 %v891, %v887
  %v1384 = vpack.c.b16 %v892, %v888
  %v1385 = vpack.c.b16 %v897, %v893
  %v1386 = vpack.c.b16 %v898, %v894
  %v1387 = vpack.c.b16 %v899, %v895
  %v1388 = vpack.c.b16 %v900, %v896
  %v1389 = vpack.c.b16 %v905, %v901
  %v1390 = vpack.c.b16 %v906, %v902
  %v1391 = vpack.c.b16 %v907, %v903
  %v1392 = vpack.c.b16 %v908, %v904
  %v1393 = vpack.c.b16 %v913, %v909
  %v1394 = vpack.c.b16 %v914, %v910
  %v1395 = vpack.c.b16 %v915, %v911
  %v1396 = vpack.c.b16 %v916, %v912
  %v1397 = vpack.c.b16 %v921, %v917
  %v1398 = vpack.c.b16 %v922, %v918
  %v1399 = vpack.c.b16 %v923, %v919
  %v1400 = vpack.c.b16 %v924, %v920
  %v1401 = vpack.c.b16 %v929, %v925
  %v1402 = vpack.c.b16 %v930, %v926
  %v1403 = vpack.c.b16 %v931, %v927
  %v1404 = vpack.c.b16 %v932, %v928
  %v1405 = vpack.c.b16 %v937, %v933
  %v1406 = vpack.c.b16 %v938, %v934
  %v1407 = vpack.c.b16 %v939, %v935
  %v1408 = vpack.c.b16 %v940, %v936
  %v1409 = vpack.c.b16 %v945, %v941
  %v1410 = vpack.c.b16 %v946, %v942
  %v1411 = vpack.c.b16 %v947, %v943
  %v1412 = vpack.c.b16 %v948, %v944
  %v1413 = vpack.c.b16 %v953, %v949
  %v1414 = vpack.c.b16 %v954, %v950
  %v1415 = vpack.c.b16 %v955, %v951
  %v1416 = vpack.c.b16 %v956, %v952
  %v1417 = vpack.c.b16 %v961, %v957
  %v1418 = vpack.c.b16 %v962, %v958
  %v1419 = vpack.c.b16 %v963, %v959
  %v1420 = vpack.c.b16 %v964, %v960
  %v1421 = vpack.c.b16 %v969, %v965
  %v1422 = vpack.c.b16 %v970, %v966
  %v1423 = vpack.c.b16 %v971, %v967
  %v1424 = vpack.c.b16 %v972, %v968
  %v1425 = vpack.c.b16 %v977, %v973
  %v1426 = vpack.c.b16 %v978, %v974
  %v1427 = vpack.c.b16 %v979, %v975
  %v1428 = vpack.c.b16 %v980, %v976
  %v1429 = vpack.c.b16 %v985, %v981
  %v1430 = vpack.c.b16 %v986, %v982
  %v1431 = vpack.c.b16 %v987, %v983
  %v1432 = vpack.c.b16 %v988, %v984
  %v1433 = vpack.c.b16 %v993, %v989
  %v1434 = vpack.c.b16 %v994, %v990
  %v1435 = vpack.c.b16 %v995, %v991
  %v1436 = vpack.c.b16 %v996, %v992
  %v1437 = vpack.c.b16 %v1001, %v997
  %v1438 = vpack.c.b16 %v1002, %v998
  %v1439 = vpack.c.b16 %v1003, %v999
  %v1440 = vpack.c.b16 %v1004, %v1000
  %v1441 = vpack.c.b16 %v1009, %v1005
  %v1442 = vpack.c.b16 %v1010, %v1006
  %v1443 = vpack.c.b16 %v1011, %v1007
  %v1444 = vpack.c.b16 %v1012, %v1008
  %v1445 = vpack.c.b16 %v1017, %v1013
  %v1446 = vpack.c.b16 %v1018, %v1014
  %v1447 = vpack.c.b16 %v1019, %v1015
  %v1448 = vpack.c.b16 %v1020, %v1016
  %v1449 = vpack.c.b16 %v1025, %v1021
  %v1450 = vpack.c.b16 %v1026, %v1022
  %v1451 = vpack.c.b16 %v1027, %v1023
  %v1452 = vpack.c.b16 %v1028, %v1024
  %v1453 = vpack.c.b16 %v1033, %v1029
  %v1454 = vpack.c.b16 %v1034, %v1030
  %v1455 = vpack.c.b16 %v1035, %v1031
  %v1456 = vpack.c.b16 %v1036, %v1032
  %v1457 = vpack.c.b16 %v1041, %v1037
  %v1458 = vpack.c.b16 %v1042, %v1038
  %v1459 = vpack.c.b16 %v1043, %v1039
  %v1460 = vpack.c.b16 %v1044, %v1040
  %v1461 = vpack.c.b16 %v1049, %v1045
  %v1462 = vpack.c.b16 %v1050, %v1046
  %v1463 = vpack.c.b16 %v1051, %v1047
  %v1464 = vpack.c.b16 %v1052, %v1048
  %v1465 = vpack.c.b16 %v1057, %v1053
  %v1466 = vpack.c.b16 %v1058, %v1054
  %v1467 = vpack.c.b16 %v1059, %v1055
  %v1468 = vpack.c.b16 %v1060, %v1056
  %v1469 = vpack.c.b16 %v1065, %v1061
  %v1470 = vpack.c.b16 %v1066, %v1062
  %v1471 = vpack.c.b16 %v1067, %v1063
  %v1472 = vpack.c.b16 %v1068, %v1064
  %v1473 = vpack.c.b16 %v1073, %v1069
  %v1474 = vpack.c.b16 %v1074, %v1070
  %v1475 = vpack.c.b16 %v1075, %v1071
  %v1476 = vpack.c.b16 %v1076, %v1072
  %v1477 = vpack.c.b16 %v1081, %v1077
  %v1478 = vpack.c.b16 %v1082, %v1078
  %v1479 = vpack.c.b16 %v1083, %v1079
  %v1480 = vpack.c.b16 %v1084, %v1080
  %v1481 = vpack.c.b16 %v1089, %v1085
  %v1482 = vpack.c.b16 %v1090, %v1086
  %v1483 = vpack.c.b16 %v1091, %v1087
  %v1484 = vpack.c.b16 %v1092, %v1088
  %v1485 = vpack.c.b16 %v1097, %v1093
  %v1486 = vpack.c.b16 %v1098, %v1094
  %v1487 = vpack.c.b16 %v1099, %v1095
  %v1488 = vpack.c.b16 %v1100, %v1096
  %v1489 = vpack.c.b16 %v1105, %v1101
  %v1490 = vpack.c.b16 %v1106, %v1102
  %v1491 = vpack.c.b16 %v1107, %v1103
  %v1492 = vpack.c.b16 %v1108, %v1104
  %v1493 = vpack.c.b16 %v1113, %v1109
  %v1494 = vpack.c.b16 %v1114, %v1110
  %v1495 = vpack.c.b16 %v1115, %v1111
  %v1496 = vpack.c.b16 %v1116, %v1112
  %v1497 = vpack.c.b16 %v1121, %v1117
  %v1498 = vpack.c.b16 %v1122, %v1118
  %v1499 = vpack.c.b16 %v1123, %v1119
  %v1500 = vpack.c.b16 %v1124, %v1120
  %v1501 = vpack.c.b16 %v1129, %v1125
  %v1502 = vpack.c.b16 %v1130, %v1126
  %v1503 = vpack.c.b16 %v1131, %v1127
  %v1504 = vpack.c.b16 %v1132, %v1128
  %v1505 = vpack.c.b16 %v1137, %v1133
  %v1506 = vpack.c.b16 %v1138, %v1134
  %v1507 = vpack.c.b16 %v1139, %v1135
  %v1508 = vpack.c.b16 %v1140, %v1136
  %v1509 = vpack.c.b16 %v1145, %v1141
  %v1510 = vpack.c.b16 %v1146, %v1142
  %v1511 = vpack.c.b16 %v1147, %v1143
  %v1512 = vpack.c.b16 %v1148, %v1144
  %v1513 = vpack.c.b16 %v1153, %v1149
  %v1514 = vpack.c.b16 %v1154, %v1150
  %v1515 = vpack.c.b16 %v1155, %v1151
  %v1516 = vpack.c.b16 %v1156, %v1152
  %v1517 = vpack.c.b16 %v1161, %v1157
  %v1518 = vpack.c.b16 %v1162, %v1158
  %v1519 = vpack.c.b16 %v1163, %v1159
  %v1520 = vpack.c.b16 %v1164, %v1160
  %v1521 = vpack.c.b16 %v1169, %v1165
  %v1522 = vpack.c.b16 %v1170, %v1166
  %v1523 = vpack.c.b16 %v1171, %v1167
  %v1524 = vpack.c.b16 %v1172, %v1168
  %v1525 = vpack.c.b16 %v1177, %v1173
  %v1526 = vpack.c.b16 %v1178, %v1174
  %v1527 = vpack.c.b16 %v1179, %v1175
  %v1528 = vpack.c.b16 %v1180, %v1176
  %v1529 = vpack.c.b16 %v1185, %v1181
  %v1530 = vpack.c.b16 %v1186, %v1182
  %v1531 = vpack.c.b16 %v1187, %v1183
  %v1532 = vpack.c.b16 %v1188, %v1184
  %v1533 = vpack.c.b16 %v1193, %v1189
  %v1534 = vpack.c.b16 %v1194, %v1190
  %v1535 = vpack.c.b16 %v1195, %v1191
  %v1536 = vpack.c.b16 %v1196, %v1192
  %v1537 = vpack.c.b16 %v1201, %v1197
  %v1538 = vpack.c.b16 %v1202, %v1198
  %v1539 = vpack.c.b16 %v1203, %v1199
  %v1540 = vpack.c.b16 %v1204, %v1200
  %v1541 = vpack.c.b16 %v1209, %v1205
  %v1542 = vpack.c.b16 %v1210, %v1206
  %v1543 = vpack.c.b16 %v1211, %v1207
  %v1544 = vpack.c.b16 %v1212, %v1208
  %v1545 = vpack.c.b16 %v1217, %v1213
  %v1546 = vpack.c.b16 %v1218, %v1214
  %v1547 = vpack.c.b16 %v1219, %v1215
  %v1548 = vpack.c.b16 %v1220, %v1216
  %v1549 = vpack.c.b16 %v1225, %v1221
  %v1550 = vpack.c.b16 %v1226, %v1222
  %v1551 = vpack.c.b16 %v1227, %v1223
  %v1552 = vpack.c.b16 %v1228, %v1224
  %v1553 = vpack.c.b16 %v1233, %v1229
  %v1554 = vpack.c.b16 %v1234, %v1230
  %v1555 = vpack.c.b16 %v1235, %v1231
  %v1556 = vpack.c.b16 %v1236, %v1232
  %v1557 = vpack.c.b16 %v1241, %v1237
  %v1558 = vpack.c.b16 %v1242, %v1238
  %v1559 = vpack.c.b16 %v1243, %v1239
  %v1560 = vpack.c.b16 %v1244, %v1240
  %v1561 = vpack.c.b16 %v1249, %v1245
  %v1562 = vpack.c.b16 %v1250, %v1246
  %v1563 = vpack.c.b16 %v1251, %v1247
  %v1564 = vpack.c.b16 %v1252, %v1248
  %v1565 = vpack.c.b16 %v1257, %v1253
  %v1566 = vpack.c.b16 %v1258, %v1254
  %v1567 = vpack.c.b16 %v1259, %v1255
  %v1568 = vpack.c.b16 %v1260, %v1256
  %v1569 = vpack.c.b16 %v1265, %v1261
  %v1570 = vpack.c.b16 %v1266, %v1262
  %v1571 = vpack.c.b16 %v1267, %v1263
  %v1572 = vpack.c.b16 %v1268, %v1264
  %v1573 = vpack.c.b16 %v1273, %v1269
  %v1574 = vpack.c.b16 %v1274, %v1270
  %v1575 = vpack.c.b16 %v1275, %v1271
  %v1576 = vpack.c.b16 %v1276, %v1272
  %v1577 = vpack.c.b16 %v1281, %v1277
  %v1578 = vpack.c.b16 %v1282, %v1278
  %v1579 = vpack.c.b16 %v1283, %v1279
  %v1580 = vpack.c.b16 %v1284, %v1280
  %v1581 = vpack.c.b16 %v1289, %v1285
  %v1582 = vpack.c.b16 %v1290, %v1286
  %v1583 = vpack.c.b16 %v1291, %v1287
  %v1584 = vpack.c.b16 %v1292, %v1288
  %v1585 = vpack.c.b16 %v1297, %v1293
  %v1586 = vpack.c.b16 %v1298, %v1294
  %v1587 = vpack.c.b16 %v1299, %v1295
  %v1588 = vpack.c.b16 %v1300, %v1296
  %v1589 = vpack.c.b16 %v1305, %v1301
  %v1590 = vpack.c.b16 %v1306, %v1302
  %v1591 = vpack.c.b16 %v1307, %v1303
  %v1592 = vpack.c.b16 %v1308, %v1304
  %v1593 = vpack.c.b16 %v1313, %v1309
  %v1594 = vpack.c.b16 %v1314, %v1310
  %v1595 = vpack.c.b16 %v1315, %v1311
  %v1596 = vpack.c.b16 %v1316, %v1312
  %v1597 = vpack.c.b16 %v1321, %v1317
  %v1598 = vpack.c.b16 %v1322, %v1318
  %v1599 = vpack.c.b16 %v1323, %v1319
  %v1600 = vpack.c.b16 %v1324, %v1320
  %v1601 = vpack.c.b16 %v1329, %v1325
  %v1602 = vpack.c.b16 %v1330, %v1326
  %v1603 = vpack.c.b16 %v1331, %v1327
  %v1604 = vpack.c.b16 %v1332, %v1328
  %v1605 = vpack.c.b16 %v1337, %v1333
  %v1606 = vpack.c.b16 %v1338, %v1334
  %v1607 = vpack.c.b16 %v1339, %v1335
  %v1608 = vpack.c.b16 %v1340, %v1336
  %v1609 = vpack.c.b16 %v1345, %v1341
  %v1610 = vpack.c.b16 %v1346, %v1342
  %v1611 = vpack.c.b16 %v1347, %v1343
  %v1612 = vpack.c.b16 %v1348, %v1344
  %v1613 = vpack.c.b16 %v1353, %v1349
  %v1614 = vpack.c.b16 %v1354, %v1350
  %v1615 = vpack.c.b16 %v1355, %v1351
  %v1616 = vpack.c.b16 %v1356, %v1352
  %v1617 = vpack.c.b16 %v1361, %v1357
  %v1618 = vpack.c.b16 %v1362, %v1358
  %v1619 = vpack.c.b16 %v1363, %v1359
  %v1620 = vpack.c.b16 %v1364, %v1360
  %v1941 = vunpack.c.l.b16 %v533
  %v1942 = vunpack.c.l.b16 %v534
  %v1943 = vunpack.c.l.b16 %v535
  %v1944 = vunpack.c.l.b16 %v536
  %v1945 = vunpack.c.l.b16 %v537
  %v1946 = vunpack.c.l.b16 %v538
  %v1947 = vunpack.c.l.b16 %v539
  %v1948 = vunpack.c.l.b16 %v540
  %v1949 = vunpack.c.l.b16 %v541
  %v1950 = vunpack.c.l.b16 %v542
  %v1951 = vunpack.c.l.b16 %v543
  %v1952 = vunpack.c.l.b16 %v544
  %v1953 = vunpack.c.l.b16 %v545
  %v1954 = vunpack.c.l.b16 %v546
  %v1955 = vunpack.c.l.b16 %v547
  %v1956 = vunpack.c.l.b16 %v548
  %v1957 = vunpack.c.l.b16 %v549
  %v1958 = vunpack.c.l.b16 %v550
  %v1959 = vunpack.c.l.b16 %v551
  %v1960 = vunpack.c.l.b16 %v552
  %v1961 = vunpack.c.l.b16 %v553
  %v1962 = vunpack.c.l.b16 %v554
  %v1963 = vunpack.c.l.b16 %v555
  %v1964 = vunpack.c.l.b16 %v556
  %v1965 = vunpack.c.l.b16 %v557
  %v1966 = vunpack.c.l.b16 %v558
  %v1967 = vunpack.c.l.b16 %v559
  %v1968 = vunpack.c.l.b16 %v560
  %v1969 = vunpack.c.l.b16 %v561
  %v1970 = vunpack.c.l.b16 %v562
  %v1971 = vunpack.c.l.b16 %v563
  %v1972 = vunpack.c.l.b16 %v564
  %v1973 = vunpack.c.l.b16 %v565
  %v1974 = vunpack.c.l.b16 %v566
  %v1975 = vunpack.c.l.b16 %v567
  %v1976 = vunpack.c.l.b16 %v568
  %v1977 = vunpack.c.l.b16 %v569
  %v1978 = vunpack.c.l.b16 %v570
  %v1979 = vunpack.c.l.b16 %v571
  %v1980 = vunpack.c.l.b16 %v572
  %v1981 = vunpack.c.l.b16 %v573
  %v1982 = vunpack.c.l.b16 %v574
  %v1983 = vunpack.c.l.b16 %v575
  %v1984 = vunpack.c.l.b16 %v576
  %v1985 = vunpack.c.l.b16 %v577
  %v1986 = vunpack.c.l.b16 %v578
  %v1987 = vunpack.c.l.b16 %v579
  %v1988 = vunpack.c.l.b16 %v580
  %v1989 = vunpack.c.l.b16 %v581
  %v1990 = vunpack.c.l.b16 %v582
  %v1991 = vunpack.c.l.b16 %v583
  %v1992 = vunpack.c.l.b16 %v584
  %v1993 = vunpack.c.l.b16 %v585
  %v1994 = vunpack.c.l.b16 %v586
  %v1995 = vunpack.c.l.b16 %v587
  %v1996 = vunpack.c.l.b16 %v588
  %v1997 = vunpack.c.l.b16 %v589
  %v1998 = vunpack.c.l.b16 %v590
  %v1999 = vunpack.c.l.b16 %v591
  %v2000 = vunpack.c.l.b16 %v592
  %v2001 = vunpack.c.l.b16 %v593
  %v2002 = vunpack.c.l.b16 %v594
  %v2003 = vunpack.c.l.b16 %v595
  %v2004 = vunpack.c.l.b16 %v596
  %v2005 = vpack.c.b16 %v1942, %v1941
  %v2006 = vpack.c.b16 %v1944, %v1943
  %v2007 = vpack.c.b16 %v1946, %v1945
  %v2008 = vpack.c.b16 %v1948, %v1947
  %v2009 = vpack.c.b16 %v1950, %v1949
  %v2010 = vpack.c.b16 %v1952, %v1951
  %v2011 = vpack.c.b16 %v1954, %v1953
  %v2012 = vpack.c.b16 %v1956, %v1955
  %v2013 = vpack.c.b16 %v1958, %v1957
  %v2014 = vpack.c.b16 %v1960, %v1959
  %v2015 = vpack.c.b16 %v1962, %v1961
  %v2016 = vpack.c.b16 %v1964, %v1963
  %v2017 = vpack.c.b16 %v1966, %v1965
  %v2018 = vpack.c.b16 %v1968, %v1967
  %v2019 = vpack.c.b16 %v1970, %v1969
  %v2020 = vpack.c.b16 %v1972, %v1971
  %v2021 = vpack.c.b16 %v1974, %v1973
  %v2022 = vpack.c.b16 %v1976, %v1975
  %v2023 = vpack.c.b16 %v1978, %v1977
  %v2024 = vpack.c.b16 %v1980, %v1979
  %v2025 = vpack.c.b16 %v1982, %v1981
  %v2026 = vpack.c.b16 %v1984, %v1983
  %v2027 = vpack.c.b16 %v1986, %v1985
  %v2028 = vpack.c.b16 %v1988, %v1987
  %v2029 = vpack.c.b16 %v1990, %v1989
  %v2030 = vpack.c.b16 %v1992, %v1991
  %v2031 = vpack.c.b16 %v1994, %v1993
  %v2032 = vpack.c.b16 %v1996, %v1995
  %v2033 = vpack.c.b16 %v1998, %v1997
  %v2034 = vpack.c.b16 %v2000, %v1999
  %v2035 = vpack.c.b16 %v2002, %v2001
  %v2036 = vpack.c.b16 %v2004, %v2003
  %2069 = vmatpush.bf16.msra.mxu0 %v2012
  %2070 = vmatpush.bf16.msra.mxu0 %v2011
  %2071 = vmatpush.bf16.msra.mxu0 %v2010
  %2072 = vmatpush.bf16.msra.mxu0 %v2009
  %2073 = vmatpush.bf16.msra.mxu0 %v2008
  %2074 = vmatpush.bf16.msra.mxu0 %v2007
  %2075 = vmatpush.bf16.msra.mxu0 %v2006
  %2076 = vmatpush.bf16.msra.mxu0 %v2005
  %2077 = vmatmul.bf16.gmra.mxu0 %v1365
  %v2078 = vpop.f32.mrf.mxu0
  %v2079 = vadd.f32 0.0, %v2078
  %v2080 = vpop.f32.mrf.mxu0
  %v2081 = vadd.f32 0.0, %v2080
  %2082 = vmatmul.bf16.gmra.mxu0 %v1369
  %v2083 = vpop.f32.mrf.mxu0
  %v2084 = vadd.f32 0.0, %v2083
  %v2085 = vpop.f32.mrf.mxu0
  %v2086 = vadd.f32 0.0, %v2085
  %2087 = vmatmul.bf16.gmra.mxu0 %v1373
  %v2088 = vpop.f32.mrf.mxu0
  %v2089 = vadd.f32 0.0, %v2088
  %v2090 = vpop.f32.mrf.mxu0
  %v2091 = vadd.f32 0.0, %v2090
  %2092 = vmatmul.bf16.gmra.mxu0 %v1377
  %v2093 = vpop.f32.mrf.mxu0
  %v2094 = vadd.f32 0.0, %v2093
  %v2095 = vpop.f32.mrf.mxu0
  %v2096 = vadd.f32 0.0, %v2095
  %2097 = vmatmul.bf16.gmra.mxu0 %v1381
  %v2098 = vpop.f32.mrf.mxu0
  %v2099 = vadd.f32 0.0, %v2098
  %v2100 = vpop.f32.mrf.mxu0
  %v2101 = vadd.f32 0.0, %v2100
  %2102 = vmatmul.bf16.gmra.mxu0 %v1385
  %v2103 = vpop.f32.mrf.mxu0
  %v2104 = vadd.f32 0.0, %v2103
  %v2105 = vpop.f32.mrf.mxu0
  %v2106 = vadd.f32 0.0, %v2105
  %2107 = vmatmul.bf16.gmra.mxu0 %v1389
  %v2108 = vpop.f32.mrf.mxu0
  %v2109 = vadd.f32 0.0, %v2108
  %v2110 = vpop.f32.mrf.mxu0
  %v2111 = vadd.f32 0.0, %v2110
  %2112 = vmatmul.bf16.gmra.mxu0 %v1393
  %v2113 = vpop.f32.mrf.mxu0
  %v2114 = vadd.f32 0.0, %v2113
  %v2115 = vpop.f32.mrf.mxu0
  %v2116 = vadd.f32 0.0, %v2115
  %2117 = vmatmul.bf16.gmra.mxu0 %v1397
  %v2118 = vpop.f32.mrf.mxu0
  %v2119 = vadd.f32 0.0, %v2118
  %v2120 = vpop.f32.mrf.mxu0
  %v2121 = vadd.f32 0.0, %v2120
  %2122 = vmatmul.bf16.gmra.mxu0 %v1401
  %v2123 = vpop.f32.mrf.mxu0
  %v2124 = vadd.f32 0.0, %v2123
  %v2125 = vpop.f32.mrf.mxu0
  %v2126 = vadd.f32 0.0, %v2125
  %2127 = vmatmul.bf16.gmra.mxu0 %v1405
  %v2128 = vpop.f32.mrf.mxu0
  %v2129 = vadd.f32 0.0, %v2128
  %v2130 = vpop.f32.mrf.mxu0
  %v2131 = vadd.f32 0.0, %v2130
  %2132 = vmatmul.bf16.gmra.mxu0 %v1409
  %v2133 = vpop.f32.mrf.mxu0
  %v2134 = vadd.f32 0.0, %v2133
  %v2135 = vpop.f32.mrf.mxu0
  %v2136 = vadd.f32 0.0, %v2135
  %2137 = vmatmul.bf16.gmra.mxu0 %v1413
  %v2138 = vpop.f32.mrf.mxu0
  %v2139 = vadd.f32 0.0, %v2138
  %v2140 = vpop.f32.mrf.mxu0
  %v2141 = vadd.f32 0.0, %v2140
  %2142 = vmatmul.bf16.gmra.mxu0 %v1417
  %v2143 = vpop.f32.mrf.mxu0
  %v2144 = vadd.f32 0.0, %v2143
  %v2145 = vpop.f32.mrf.mxu0
  %v2146 = vadd.f32 0.0, %v2145
  %2147 = vmatmul.bf16.gmra.mxu0 %v1421
  %v2148 = vpop.f32.mrf.mxu0
  %v2149 = vadd.f32 0.0, %v2148
  %v2150 = vpop.f32.mrf.mxu0
  %v2151 = vadd.f32 0.0, %v2150
  %2152 = vmatmul.bf16.gmra.mxu0 %v1425
  %v2153 = vpop.f32.mrf.mxu0
  %v2154 = vadd.f32 0.0, %v2153
  %v2155 = vpop.f32.mrf.mxu0
  %v2156 = vadd.f32 0.0, %v2155
  %2157 = vmatmul.bf16.gmra.mxu0 %v1429
  %v2158 = vpop.f32.mrf.mxu0
  %v2159 = vadd.f32 0.0, %v2158
  %v2160 = vpop.f32.mrf.mxu0
  %v2161 = vadd.f32 0.0, %v2160
  %2162 = vmatmul.bf16.gmra.mxu0 %v1433
  %v2163 = vpop.f32.mrf.mxu0
  %v2164 = vadd.f32 0.0, %v2163
  %v2165 = vpop.f32.mrf.mxu0
  %v2166 = vadd.f32 0.0, %v2165
  %2167 = vmatmul.bf16.gmra.mxu0 %v1437
  %v2168 = vpop.f32.mrf.mxu0
  %v2169 = vadd.f32 0.0, %v2168
  %v2170 = vpop.f32.mrf.mxu0
  %v2171 = vadd.f32 0.0, %v2170
  %2172 = vmatmul.bf16.gmra.mxu0 %v1441
  %v2173 = vpop.f32.mrf.mxu0
  %v2174 = vadd.f32 0.0, %v2173
  %v2175 = vpop.f32.mrf.mxu0
  %v2176 = vadd.f32 0.0, %v2175
  %2177 = vmatmul.bf16.gmra.mxu0 %v1445
  %v2178 = vpop.f32.mrf.mxu0
  %v2179 = vadd.f32 0.0, %v2178
  %v2180 = vpop.f32.mrf.mxu0
  %v2181 = vadd.f32 0.0, %v2180
  %2182 = vmatmul.bf16.gmra.mxu0 %v1449
  %v2183 = vpop.f32.mrf.mxu0
  %v2184 = vadd.f32 0.0, %v2183
  %v2185 = vpop.f32.mrf.mxu0
  %v2186 = vadd.f32 0.0, %v2185
  %2187 = vmatmul.bf16.gmra.mxu0 %v1453
  %v2188 = vpop.f32.mrf.mxu0
  %v2189 = vadd.f32 0.0, %v2188
  %v2190 = vpop.f32.mrf.mxu0
  %v2191 = vadd.f32 0.0, %v2190
  %2192 = vmatmul.bf16.gmra.mxu0 %v1457
  %v2193 = vpop.f32.mrf.mxu0
  %v2194 = vadd.f32 0.0, %v2193
  %v2195 = vpop.f32.mrf.mxu0
  %v2196 = vadd.f32 0.0, %v2195
  %2197 = vmatmul.bf16.gmra.mxu0 %v1461
  %v2198 = vpop.f32.mrf.mxu0
  %v2199 = vadd.f32 0.0, %v2198
  %v2200 = vpop.f32.mrf.mxu0
  %v2201 = vadd.f32 0.0, %v2200
  %2202 = vmatmul.bf16.gmra.mxu0 %v1465
  %v2203 = vpop.f32.mrf.mxu0
  %v2204 = vadd.f32 0.0, %v2203
  %v2205 = vpop.f32.mrf.mxu0
  %v2206 = vadd.f32 0.0, %v2205
  %2207 = vmatmul.bf16.gmra.mxu0 %v1469
  %v2208 = vpop.f32.mrf.mxu0
  %v2209 = vadd.f32 0.0, %v2208
  %v2210 = vpop.f32.mrf.mxu0
  %v2211 = vadd.f32 0.0, %v2210
  %2212 = vmatmul.bf16.gmra.mxu0 %v1473
  %v2213 = vpop.f32.mrf.mxu0
  %v2214 = vadd.f32 0.0, %v2213
  %v2215 = vpop.f32.mrf.mxu0
  %v2216 = vadd.f32 0.0, %v2215
  %2217 = vmatmul.bf16.gmra.mxu0 %v1477
  %v2218 = vpop.f32.mrf.mxu0
  %v2219 = vadd.f32 0.0, %v2218
  %v2220 = vpop.f32.mrf.mxu0
  %v2221 = vadd.f32 0.0, %v2220
  %2222 = vmatmul.bf16.gmra.mxu0 %v1481
  %v2223 = vpop.f32.mrf.mxu0
  %v2224 = vadd.f32 0.0, %v2223
  %v2225 = vpop.f32.mrf.mxu0
  %v2226 = vadd.f32 0.0, %v2225
  %2227 = vmatmul.bf16.gmra.mxu0 %v1485
  %v2228 = vpop.f32.mrf.mxu0
  %v2229 = vadd.f32 0.0, %v2228
  %v2230 = vpop.f32.mrf.mxu0
  %v2231 = vadd.f32 0.0, %v2230
  %2232 = vmatmul.bf16.gmra.mxu0 %v1489
  %v2233 = vpop.f32.mrf.mxu0
  %v2234 = vadd.f32 0.0, %v2233
  %v2235 = vpop.f32.mrf.mxu0
  %v2236 = vadd.f32 0.0, %v2235
  %2237 = vmatmul.bf16.gmra.mxu0 %v1493
  %v2238 = vpop.f32.mrf.mxu0
  %v2239 = vadd.f32 0.0, %v2238
  %v2240 = vpop.f32.mrf.mxu0
  %v2241 = vadd.f32 0.0, %v2240
  %2242 = vmatmul.bf16.gmra.mxu0 %v1497
  %v2243 = vpop.f32.mrf.mxu0
  %v2244 = vadd.f32 0.0, %v2243
  %v2245 = vpop.f32.mrf.mxu0
  %v2246 = vadd.f32 0.0, %v2245
  %2247 = vmatmul.bf16.gmra.mxu0 %v1501
  %v2248 = vpop.f32.mrf.mxu0
  %v2249 = vadd.f32 0.0, %v2248
  %v2250 = vpop.f32.mrf.mxu0
  %v2251 = vadd.f32 0.0, %v2250
  %2252 = vmatmul.bf16.gmra.mxu0 %v1505
  %v2253 = vpop.f32.mrf.mxu0
  %v2254 = vadd.f32 0.0, %v2253
  %v2255 = vpop.f32.mrf.mxu0
  %v2256 = vadd.f32 0.0, %v2255
  %2257 = vmatmul.bf16.gmra.mxu0 %v1509
  %v2258 = vpop.f32.mrf.mxu0
  %v2259 = vadd.f32 0.0, %v2258
  %v2260 = vpop.f32.mrf.mxu0
  %v2261 = vadd.f32 0.0, %v2260
  %2262 = vmatmul.bf16.gmra.mxu0 %v1513
  %v2263 = vpop.f32.mrf.mxu0
  %v2264 = vadd.f32 0.0, %v2263
  %v2265 = vpop.f32.mrf.mxu0
  %v2266 = vadd.f32 0.0, %v2265
  %2267 = vmatmul.bf16.gmra.mxu0 %v1517
  %v2268 = vpop.f32.mrf.mxu0
  %v2269 = vadd.f32 0.0, %v2268
  %v2270 = vpop.f32.mrf.mxu0
  %v2271 = vadd.f32 0.0, %v2270
  %2272 = vmatmul.bf16.gmra.mxu0 %v1521
  %v2273 = vpop.f32.mrf.mxu0
  %v2274 = vadd.f32 0.0, %v2273
  %v2275 = vpop.f32.mrf.mxu0
  %v2276 = vadd.f32 0.0, %v2275
  %2277 = vmatmul.bf16.gmra.mxu0 %v1525
  %v2278 = vpop.f32.mrf.mxu0
  %v2279 = vadd.f32 0.0, %v2278
  %v2280 = vpop.f32.mrf.mxu0
  %v2281 = vadd.f32 0.0, %v2280
  %2282 = vmatmul.bf16.gmra.mxu0 %v1529
  %v2283 = vpop.f32.mrf.mxu0
  %v2284 = vadd.f32 0.0, %v2283
  %v2285 = vpop.f32.mrf.mxu0
  %v2286 = vadd.f32 0.0, %v2285
  %2287 = vmatmul.bf16.gmra.mxu0 %v1533
  %v2288 = vpop.f32.mrf.mxu0
  %v2289 = vadd.f32 0.0, %v2288
  %v2290 = vpop.f32.mrf.mxu0
  %v2291 = vadd.f32 0.0, %v2290
  %2292 = vmatmul.bf16.gmra.mxu0 %v1537
  %v2293 = vpop.f32.mrf.mxu0
  %v2294 = vadd.f32 0.0, %v2293
  %v2295 = vpop.f32.mrf.mxu0
  %v2296 = vadd.f32 0.0, %v2295
  %2297 = vmatmul.bf16.gmra.mxu0 %v1541
  %v2298 = vpop.f32.mrf.mxu0
  %v2299 = vadd.f32 0.0, %v2298
  %v2300 = vpop.f32.mrf.mxu0
  %v2301 = vadd.f32 0.0, %v2300
  %2302 = vmatmul.bf16.gmra.mxu0 %v1545
  %v2303 = vpop.f32.mrf.mxu0
  %v2304 = vadd.f32 0.0, %v2303
  %v2305 = vpop.f32.mrf.mxu0
  %v2306 = vadd.f32 0.0, %v2305
  %2307 = vmatmul.bf16.gmra.mxu0 %v1549
  %v2308 = vpop.f32.mrf.mxu0
  %v2309 = vadd.f32 0.0, %v2308
  %v2310 = vpop.f32.mrf.mxu0
  %v2311 = vadd.f32 0.0, %v2310
  %2312 = vmatmul.bf16.gmra.mxu0 %v1553
  %v2313 = vpop.f32.mrf.mxu0
  %v2314 = vadd.f32 0.0, %v2313
  %v2315 = vpop.f32.mrf.mxu0
  %v2316 = vadd.f32 0.0, %v2315
  %2317 = vmatmul.bf16.gmra.mxu0 %v1557
  %v2318 = vpop.f32.mrf.mxu0
  %v2319 = vadd.f32 0.0, %v2318
  %v2320 = vpop.f32.mrf.mxu0
  %v2321 = vadd.f32 0.0, %v2320
  %2322 = vmatmul.bf16.gmra.mxu0 %v1561
  %v2323 = vpop.f32.mrf.mxu0
  %v2324 = vadd.f32 0.0, %v2323
  %v2325 = vpop.f32.mrf.mxu0
  %v2326 = vadd.f32 0.0, %v2325
  %2327 = vmatmul.bf16.gmra.mxu0 %v1565
  %v2328 = vpop.f32.mrf.mxu0
  %v2329 = vadd.f32 0.0, %v2328
  %v2330 = vpop.f32.mrf.mxu0
  %v2331 = vadd.f32 0.0, %v2330
  %2332 = vmatmul.bf16.gmra.mxu0 %v1569
  %v2333 = vpop.f32.mrf.mxu0
  %v2334 = vadd.f32 0.0, %v2333
  %v2335 = vpop.f32.mrf.mxu0
  %v2336 = vadd.f32 0.0, %v2335
  %2337 = vmatmul.bf16.gmra.mxu0 %v1573
  %v2338 = vpop.f32.mrf.mxu0
  %v2339 = vadd.f32 0.0, %v2338
  %v2340 = vpop.f32.mrf.mxu0
  %v2341 = vadd.f32 0.0, %v2340
  %2342 = vmatmul.bf16.gmra.mxu0 %v1577
  %v2343 = vpop.f32.mrf.mxu0
  %v2344 = vadd.f32 0.0, %v2343
  %v2345 = vpop.f32.mrf.mxu0
  %v2346 = vadd.f32 0.0, %v2345
  %2347 = vmatmul.bf16.gmra.mxu0 %v1581
  %v2348 = vpop.f32.mrf.mxu0
  %v2349 = vadd.f32 0.0, %v2348
  %v2350 = vpop.f32.mrf.mxu0
  %v2351 = vadd.f32 0.0, %v2350
  %2352 = vmatmul.bf16.gmra.mxu0 %v1585
  %v2353 = vpop.f32.mrf.mxu0
  %v2354 = vadd.f32 0.0, %v2353
  %v2355 = vpop.f32.mrf.mxu0
  %v2356 = vadd.f32 0.0, %v2355
  %2357 = vmatmul.bf16.gmra.mxu0 %v1589
  %v2358 = vpop.f32.mrf.mxu0
  %v2359 = vadd.f32 0.0, %v2358
  %v2360 = vpop.f32.mrf.mxu0
  %v2361 = vadd.f32 0.0, %v2360
  %2362 = vmatmul.bf16.gmra.mxu0 %v1593
  %v2363 = vpop.f32.mrf.mxu0
  %v2364 = vadd.f32 0.0, %v2363
  %v2365 = vpop.f32.mrf.mxu0
  %v2366 = vadd.f32 0.0, %v2365
  %2367 = vmatmul.bf16.gmra.mxu0 %v1597
  %v2368 = vpop.f32.mrf.mxu0
  %v2369 = vadd.f32 0.0, %v2368
  %v2370 = vpop.f32.mrf.mxu0
  %v2371 = vadd.f32 0.0, %v2370
  %2372 = vmatmul.bf16.gmra.mxu0 %v1601
  %v2373 = vpop.f32.mrf.mxu0
  %v2374 = vadd.f32 0.0, %v2373
  %v2375 = vpop.f32.mrf.mxu0
  %v2376 = vadd.f32 0.0, %v2375
  %2377 = vmatmul.bf16.gmra.mxu0 %v1605
  %v2378 = vpop.f32.mrf.mxu0
  %v2379 = vadd.f32 0.0, %v2378
  %v2380 = vpop.f32.mrf.mxu0
  %v2381 = vadd.f32 0.0, %v2380
  %2382 = vmatmul.bf16.gmra.mxu0 %v1609
  %v2383 = vpop.f32.mrf.mxu0
  %v2384 = vadd.f32 0.0, %v2383
  %v2385 = vpop.f32.mrf.mxu0
  %v2386 = vadd.f32 0.0, %v2385
  %2387 = vmatmul.bf16.gmra.mxu0 %v1613
  %v2388 = vpop.f32.mrf.mxu0
  %v2389 = vadd.f32 0.0, %v2388
  %v2390 = vpop.f32.mrf.mxu0
  %v2391 = vadd.f32 0.0, %v2390
  %2392 = vmatmul.bf16.gmra.mxu0 %v1617
  %v2393 = vpop.f32.mrf.mxu0
  %v2394 = vadd.f32 0.0, %v2393
  %v2395 = vpop.f32.mrf.mxu0
  %v2396 = vadd.f32 0.0, %v2395
  %2397 = vdwg.mxu0
  %2398 = vmatpush.bf16.msra.mxu0 %v2020
  %2399 = vmatpush.bf16.msra.mxu0 %v2019
  %2400 = vmatpush.bf16.msra.mxu0 %v2018
  %2401 = vmatpush.bf16.msra.mxu0 %v2017
  %2402 = vmatpush.bf16.msra.mxu0 %v2016
  %2403 = vmatpush.bf16.msra.mxu0 %v2015
  %2404 = vmatpush.bf16.msra.mxu0 %v2014
  %2405 = vmatpush.bf16.msra.mxu0 %v2013
  %2406 = vmatmul.bf16.gmra.mxu0 %v1366
  %v2407 = vpop.f32.mrf.mxu0
  %v2408 = vadd.f32 %v2079, %v2407
  %v2409 = vpop.f32.mrf.mxu0
  %v2410 = vadd.f32 %v2081, %v2409
  %2411 = vmatmul.bf16.gmra.mxu0 %v1370
  %v2412 = vpop.f32.mrf.mxu0
  %v2413 = vadd.f32 %v2084, %v2412
  %v2414 = vpop.f32.mrf.mxu0
  %v2415 = vadd.f32 %v2086, %v2414
  %2416 = vmatmul.bf16.gmra.mxu0 %v1374
  %v2417 = vpop.f32.mrf.mxu0
  %v2418 = vadd.f32 %v2089, %v2417
  %v2419 = vpop.f32.mrf.mxu0
  %v2420 = vadd.f32 %v2091, %v2419
  %2421 = vmatmul.bf16.gmra.mxu0 %v1378
  %v2422 = vpop.f32.mrf.mxu0
  %v2423 = vadd.f32 %v2094, %v2422
  %v2424 = vpop.f32.mrf.mxu0
  %v2425 = vadd.f32 %v2096, %v2424
  %2426 = vmatmul.bf16.gmra.mxu0 %v1382
  %v2427 = vpop.f32.mrf.mxu0
  %v2428 = vadd.f32 %v2099, %v2427
  %v2429 = vpop.f32.mrf.mxu0
  %v2430 = vadd.f32 %v2101, %v2429
  %2431 = vmatmul.bf16.gmra.mxu0 %v1386
  %v2432 = vpop.f32.mrf.mxu0
  %v2433 = vadd.f32 %v2104, %v2432
  %v2434 = vpop.f32.mrf.mxu0
  %v2435 = vadd.f32 %v2106, %v2434
  %2436 = vmatmul.bf16.gmra.mxu0 %v1390
  %v2437 = vpop.f32.mrf.mxu0
  %v2438 = vadd.f32 %v2109, %v2437
  %v2439 = vpop.f32.mrf.mxu0
  %v2440 = vadd.f32 %v2111, %v2439
  %2441 = vmatmul.bf16.gmra.mxu0 %v1394
  %v2442 = vpop.f32.mrf.mxu0
  %v2443 = vadd.f32 %v2114, %v2442
  %v2444 = vpop.f32.mrf.mxu0
  %v2445 = vadd.f32 %v2116, %v2444
  %2446 = vmatmul.bf16.gmra.mxu0 %v1398
  %v2447 = vpop.f32.mrf.mxu0
  %v2448 = vadd.f32 %v2119, %v2447
  %v2449 = vpop.f32.mrf.mxu0
  %v2450 = vadd.f32 %v2121, %v2449
  %2451 = vmatmul.bf16.gmra.mxu0 %v1402
  %v2452 = vpop.f32.mrf.mxu0
  %v2453 = vadd.f32 %v2124, %v2452
  %v2454 = vpop.f32.mrf.mxu0
  %v2455 = vadd.f32 %v2126, %v2454
  %2456 = vmatmul.bf16.gmra.mxu0 %v1406
  %v2457 = vpop.f32.mrf.mxu0
  %v2458 = vadd.f32 %v2129, %v2457
  %v2459 = vpop.f32.mrf.mxu0
  %v2460 = vadd.f32 %v2131, %v2459
  %2461 = vmatmul.bf16.gmra.mxu0 %v1410
  %v2462 = vpop.f32.mrf.mxu0
  %v2463 = vadd.f32 %v2134, %v2462
  %v2464 = vpop.f32.mrf.mxu0
  %v2465 = vadd.f32 %v2136, %v2464
  %2466 = vmatmul.bf16.gmra.mxu0 %v1414
  %v2467 = vpop.f32.mrf.mxu0
  %v2468 = vadd.f32 %v2139, %v2467
  %v2469 = vpop.f32.mrf.mxu0
  %v2470 = vadd.f32 %v2141, %v2469
  %2471 = vmatmul.bf16.gmra.mxu0 %v1418
  %v2472 = vpop.f32.mrf.mxu0
  %v2473 = vadd.f32 %v2144, %v2472
  %v2474 = vpop.f32.mrf.mxu0
  %v2475 = vadd.f32 %v2146, %v2474
  %2476 = vmatmul.bf16.gmra.mxu0 %v1422
  %v2477 = vpop.f32.mrf.mxu0
  %v2478 = vadd.f32 %v2149, %v2477
  %v2479 = vpop.f32.mrf.mxu0
  %v2480 = vadd.f32 %v2151, %v2479
  %2481 = vmatmul.bf16.gmra.mxu0 %v1426
  %v2482 = vpop.f32.mrf.mxu0
  %v2483 = vadd.f32 %v2154, %v2482
  %v2484 = vpop.f32.mrf.mxu0
  %v2485 = vadd.f32 %v2156, %v2484
  %2486 = vmatmul.bf16.gmra.mxu0 %v1430
  %v2487 = vpop.f32.mrf.mxu0
  %v2488 = vadd.f32 %v2159, %v2487
  %v2489 = vpop.f32.mrf.mxu0
  %v2490 = vadd.f32 %v2161, %v2489
  %2491 = vmatmul.bf16.gmra.mxu0 %v1434
  %v2492 = vpop.f32.mrf.mxu0
  %v2493 = vadd.f32 %v2164, %v2492
  %v2494 = vpop.f32.mrf.mxu0
  %v2495 = vadd.f32 %v2166, %v2494
  %2496 = vmatmul.bf16.gmra.mxu0 %v1438
  %v2497 = vpop.f32.mrf.mxu0
  %v2498 = vadd.f32 %v2169, %v2497
  %v2499 = vpop.f32.mrf.mxu0
  %v2500 = vadd.f32 %v2171, %v2499
  %2501 = vmatmul.bf16.gmra.mxu0 %v1442
  %v2502 = vpop.f32.mrf.mxu0
  %v2503 = vadd.f32 %v2174, %v2502
  %v2504 = vpop.f32.mrf.mxu0
  %v2505 = vadd.f32 %v2176, %v2504
  %2506 = vmatmul.bf16.gmra.mxu0 %v1446
  %v2507 = vpop.f32.mrf.mxu0
  %v2508 = vadd.f32 %v2179, %v2507
  %v2509 = vpop.f32.mrf.mxu0
  %v2510 = vadd.f32 %v2181, %v2509
  %2511 = vmatmul.bf16.gmra.mxu0 %v1450
  %v2512 = vpop.f32.mrf.mxu0
  %v2513 = vadd.f32 %v2184, %v2512
  %v2514 = vpop.f32.mrf.mxu0
  %v2515 = vadd.f32 %v2186, %v2514
  %2516 = vmatmul.bf16.gmra.mxu0 %v1454
  %v2517 = vpop.f32.mrf.mxu0
  %v2518 = vadd.f32 %v2189, %v2517
  %v2519 = vpop.f32.mrf.mxu0
  %v2520 = vadd.f32 %v2191, %v2519
  %2521 = vmatmul.bf16.gmra.mxu0 %v1458
  %v2522 = vpop.f32.mrf.mxu0
  %v2523 = vadd.f32 %v2194, %v2522
  %v2524 = vpop.f32.mrf.mxu0
  %v2525 = vadd.f32 %v2196, %v2524
  %2526 = vmatmul.bf16.gmra.mxu0 %v1462
  %v2527 = vpop.f32.mrf.mxu0
  %v2528 = vadd.f32 %v2199, %v2527
  %v2529 = vpop.f32.mrf.mxu0
  %v2530 = vadd.f32 %v2201, %v2529
  %2531 = vmatmul.bf16.gmra.mxu0 %v1466
  %v2532 = vpop.f32.mrf.mxu0
  %v2533 = vadd.f32 %v2204, %v2532
  %v2534 = vpop.f32.mrf.mxu0
  %v2535 = vadd.f32 %v2206, %v2534
  %2536 = vmatmul.bf16.gmra.mxu0 %v1470
  %v2537 = vpop.f32.mrf.mxu0
  %v2538 = vadd.f32 %v2209, %v2537
  %v2539 = vpop.f32.mrf.mxu0
  %v2540 = vadd.f32 %v2211, %v2539
  %2541 = vmatmul.bf16.gmra.mxu0 %v1474
  %v2542 = vpop.f32.mrf.mxu0
  %v2543 = vadd.f32 %v2214, %v2542
  %v2544 = vpop.f32.mrf.mxu0
  %v2545 = vadd.f32 %v2216, %v2544
  %2546 = vmatmul.bf16.gmra.mxu0 %v1478
  %v2547 = vpop.f32.mrf.mxu0
  %v2548 = vadd.f32 %v2219, %v2547
  %v2549 = vpop.f32.mrf.mxu0
  %v2550 = vadd.f32 %v2221, %v2549
  %2551 = vmatmul.bf16.gmra.mxu0 %v1482
  %v2552 = vpop.f32.mrf.mxu0
  %v2553 = vadd.f32 %v2224, %v2552
  %v2554 = vpop.f32.mrf.mxu0
  %v2555 = vadd.f32 %v2226, %v2554
  %2556 = vmatmul.bf16.gmra.mxu0 %v1486
  %v2557 = vpop.f32.mrf.mxu0
  %v2558 = vadd.f32 %v2229, %v2557
  %v2559 = vpop.f32.mrf.mxu0
  %v2560 = vadd.f32 %v2231, %v2559
  %2561 = vmatmul.bf16.gmra.mxu0 %v1490
  %v2562 = vpop.f32.mrf.mxu0
  %v2563 = vadd.f32 %v2234, %v2562
  %v2564 = vpop.f32.mrf.mxu0
  %v2565 = vadd.f32 %v2236, %v2564
  %2566 = vmatmul.bf16.gmra.mxu0 %v1494
  %v2567 = vpop.f32.mrf.mxu0
  %v2568 = vadd.f32 %v2239, %v2567
  %v2569 = vpop.f32.mrf.mxu0
  %v2570 = vadd.f32 %v2241, %v2569
  %2571 = vmatmul.bf16.gmra.mxu0 %v1498
  %v2572 = vpop.f32.mrf.mxu0
  %v2573 = vadd.f32 %v2244, %v2572
  %v2574 = vpop.f32.mrf.mxu0
  %v2575 = vadd.f32 %v2246, %v2574
  %2576 = vmatmul.bf16.gmra.mxu0 %v1502
  %v2577 = vpop.f32.mrf.mxu0
  %v2578 = vadd.f32 %v2249, %v2577
  %v2579 = vpop.f32.mrf.mxu0
  %v2580 = vadd.f32 %v2251, %v2579
  %2581 = vmatmul.bf16.gmra.mxu0 %v1506
  %v2582 = vpop.f32.mrf.mxu0
  %v2583 = vadd.f32 %v2254, %v2582
  %v2584 = vpop.f32.mrf.mxu0
  %v2585 = vadd.f32 %v2256, %v2584
  %2586 = vmatmul.bf16.gmra.mxu0 %v1510
  %v2587 = vpop.f32.mrf.mxu0
  %v2588 = vadd.f32 %v2259, %v2587
  %v2589 = vpop.f32.mrf.mxu0
  %v2590 = vadd.f32 %v2261, %v2589
  %2591 = vmatmul.bf16.gmra.mxu0 %v1514
  %v2592 = vpop.f32.mrf.mxu0
  %v2593 = vadd.f32 %v2264, %v2592
  %v2594 = vpop.f32.mrf.mxu0
  %v2595 = vadd.f32 %v2266, %v2594
  %2596 = vmatmul.bf16.gmra.mxu0 %v1518
  %v2597 = vpop.f32.mrf.mxu0
  %v2598 = vadd.f32 %v2269, %v2597
  %v2599 = vpop.f32.mrf.mxu0
  %v2600 = vadd.f32 %v2271, %v2599
  %2601 = vmatmul.bf16.gmra.mxu0 %v1522
  %v2602 = vpop.f32.mrf.mxu0
  %v2603 = vadd.f32 %v2274, %v2602
  %v2604 = vpop.f32.mrf.mxu0
  %v2605 = vadd.f32 %v2276, %v2604
  %2606 = vmatmul.bf16.gmra.mxu0 %v1526
  %v2607 = vpop.f32.mrf.mxu0
  %v2608 = vadd.f32 %v2279, %v2607
  %v2609 = vpop.f32.mrf.mxu0
  %v2610 = vadd.f32 %v2281, %v2609
  %2611 = vmatmul.bf16.gmra.mxu0 %v1530
  %v2612 = vpop.f32.mrf.mxu0
  %v2613 = vadd.f32 %v2284, %v2612
  %v2614 = vpop.f32.mrf.mxu0
  %v2615 = vadd.f32 %v2286, %v2614
  %2616 = vmatmul.bf16.gmra.mxu0 %v1534
  %v2617 = vpop.f32.mrf.mxu0
  %v2618 = vadd.f32 %v2289, %v2617
  %v2619 = vpop.f32.mrf.mxu0
  %v2620 = vadd.f32 %v2291, %v2619
  %2621 = vmatmul.bf16.gmra.mxu0 %v1538
  %v2622 = vpop.f32.mrf.mxu0
  %v2623 = vadd.f32 %v2294, %v2622
  %v2624 = vpop.f32.mrf.mxu0
  %v2625 = vadd.f32 %v2296, %v2624
  %2626 = vmatmul.bf16.gmra.mxu0 %v1542
  %v2627 = vpop.f32.mrf.mxu0
  %v2628 = vadd.f32 %v2299, %v2627
  %v2629 = vpop.f32.mrf.mxu0
  %v2630 = vadd.f32 %v2301, %v2629
  %2631 = vmatmul.bf16.gmra.mxu0 %v1546
  %v2632 = vpop.f32.mrf.mxu0
  %v2633 = vadd.f32 %v2304, %v2632
  %v2634 = vpop.f32.mrf.mxu0
  %v2635 = vadd.f32 %v2306, %v2634
  %2636 = vmatmul.bf16.gmra.mxu0 %v1550
  %v2637 = vpop.f32.mrf.mxu0
  %v2638 = vadd.f32 %v2309, %v2637
  %v2639 = vpop.f32.mrf.mxu0
  %v2640 = vadd.f32 %v2311, %v2639
  %2641 = vmatmul.bf16.gmra.mxu0 %v1554
  %v2642 = vpop.f32.mrf.mxu0
  %v2643 = vadd.f32 %v2314, %v2642
  %v2644 = vpop.f32.mrf.mxu0
  %v2645 = vadd.f32 %v2316, %v2644
  %2646 = vmatmul.bf16.gmra.mxu0 %v1558
  %v2647 = vpop.f32.mrf.mxu0
  %v2648 = vadd.f32 %v2319, %v2647
  %v2649 = vpop.f32.mrf.mxu0
  %v2650 = vadd.f32 %v2321, %v2649
  %2651 = vmatmul.bf16.gmra.mxu0 %v1562
  %v2652 = vpop.f32.mrf.mxu0
  %v2653 = vadd.f32 %v2324, %v2652
  %v2654 = vpop.f32.mrf.mxu0
  %v2655 = vadd.f32 %v2326, %v2654
  %2656 = vmatmul.bf16.gmra.mxu0 %v1566
  %v2657 = vpop.f32.mrf.mxu0
  %v2658 = vadd.f32 %v2329, %v2657
  %v2659 = vpop.f32.mrf.mxu0
  %v2660 = vadd.f32 %v2331, %v2659
  %2661 = vmatmul.bf16.gmra.mxu0 %v1570
  %v2662 = vpop.f32.mrf.mxu0
  %v2663 = vadd.f32 %v2334, %v2662
  %v2664 = vpop.f32.mrf.mxu0
  %v2665 = vadd.f32 %v2336, %v2664
  %2666 = vmatmul.bf16.gmra.mxu0 %v1574
  %v2667 = vpop.f32.mrf.mxu0
  %v2668 = vadd.f32 %v2339, %v2667
  %v2669 = vpop.f32.mrf.mxu0
  %v2670 = vadd.f32 %v2341, %v2669
  %2671 = vmatmul.bf16.gmra.mxu0 %v1578
  %v2672 = vpop.f32.mrf.mxu0
  %v2673 = vadd.f32 %v2344, %v2672
  %v2674 = vpop.f32.mrf.mxu0
  %v2675 = vadd.f32 %v2346, %v2674
  %2676 = vmatmul.bf16.gmra.mxu0 %v1582
  %v2677 = vpop.f32.mrf.mxu0
  %v2678 = vadd.f32 %v2349, %v2677
  %v2679 = vpop.f32.mrf.mxu0
  %v2680 = vadd.f32 %v2351, %v2679
  %2681 = vmatmul.bf16.gmra.mxu0 %v1586
  %v2682 = vpop.f32.mrf.mxu0
  %v2683 = vadd.f32 %v2354, %v2682
  %v2684 = vpop.f32.mrf.mxu0
  %v2685 = vadd.f32 %v2356, %v2684
  %2686 = vmatmul.bf16.gmra.mxu0 %v1590
  %v2687 = vpop.f32.mrf.mxu0
  %v2688 = vadd.f32 %v2359, %v2687
  %v2689 = vpop.f32.mrf.mxu0
  %v2690 = vadd.f32 %v2361, %v2689
  %2691 = vmatmul.bf16.gmra.mxu0 %v1594
  %v2692 = vpop.f32.mrf.mxu0
  %v2693 = vadd.f32 %v2364, %v2692
  %v2694 = vpop.f32.mrf.mxu0
  %v2695 = vadd.f32 %v2366, %v2694
  %2696 = vmatmul.bf16.gmra.mxu0 %v1598
  %v2697 = vpop.f32.mrf.mxu0
  %v2698 = vadd.f32 %v2369, %v2697
  %v2699 = vpop.f32.mrf.mxu0
  %v2700 = vadd.f32 %v2371, %v2699
  %2701 = vmatmul.bf16.gmra.mxu0 %v1602
  %v2702 = vpop.f32.mrf.mxu0
  %v2703 = vadd.f32 %v2374, %v2702
  %v2704 = vpop.f32.mrf.mxu0
  %v2705 = vadd.f32 %v2376, %v2704
  %2706 = vmatmul.bf16.gmra.mxu0 %v1606
  %v2707 = vpop.f32.mrf.mxu0
  %v2708 = vadd.f32 %v2379, %v2707
  %v2709 = vpop.f32.mrf.mxu0
  %v2710 = vadd.f32 %v2381, %v2709
  %2711 = vmatmul.bf16.gmra.mxu0 %v1610
  %v2712 = vpop.f32.mrf.mxu0
  %v2713 = vadd.f32 %v2384, %v2712
  %v2714 = vpop.f32.mrf.mxu0
  %v2715 = vadd.f32 %v2386, %v2714
  %2716 = vmatmul.bf16.gmra.mxu0 %v1614
  %v2717 = vpop.f32.mrf.mxu0
  %v2718 = vadd.f32 %v2389, %v2717
  %v2719 = vpop.f32.mrf.mxu0
  %v2720 = vadd.f32 %v2391, %v2719
  %2721 = vmatmul.bf16.gmra.mxu0 %v1618
  %v2722 = vpop.f32.mrf.mxu0
  %v2723 = vadd.f32 %v2394, %v2722
  %v2724 = vpop.f32.mrf.mxu0
  %v2725 = vadd.f32 %v2396, %v2724
  %2726 = vdwg.mxu0
  %2727 = vmatpush.bf16.msra.mxu0 %v2028
  %2728 = vmatpush.bf16.msra.mxu0 %v2027
  %2729 = vmatpush.bf16.msra.mxu0 %v2026
  %2730 = vmatpush.bf16.msra.mxu0 %v2025
  %2731 = vmatpush.bf16.msra.mxu0 %v2024
  %2732 = vmatpush.bf16.msra.mxu0 %v2023
  %2733 = vmatpush.bf16.msra.mxu0 %v2022
  %2734 = vmatpush.bf16.msra.mxu0 %v2021
  %2735 = vmatmul.bf16.gmra.mxu0 %v1367
  %v2736 = vpop.f32.mrf.mxu0
  %v2737 = vadd.f32 %v2408, %v2736
  %v2738 = vpop.f32.mrf.mxu0
  %v2739 = vadd.f32 %v2410, %v2738
  %2740 = vmatmul.bf16.gmra.mxu0 %v1371
  %v2741 = vpop.f32.mrf.mxu0
  %v2742 = vadd.f32 %v2413, %v2741
  %v2743 = vpop.f32.mrf.mxu0
  %v2744 = vadd.f32 %v2415, %v2743
  %2745 = vmatmul.bf16.gmra.mxu0 %v1375
  %v2746 = vpop.f32.mrf.mxu0
  %v2747 = vadd.f32 %v2418, %v2746
  %v2748 = vpop.f32.mrf.mxu0
  %v2749 = vadd.f32 %v2420, %v2748
  %2750 = vmatmul.bf16.gmra.mxu0 %v1379
  %v2751 = vpop.f32.mrf.mxu0
  %v2752 = vadd.f32 %v2423, %v2751
  %v2753 = vpop.f32.mrf.mxu0
  %v2754 = vadd.f32 %v2425, %v2753
  %2755 = vmatmul.bf16.gmra.mxu0 %v1383
  %v2756 = vpop.f32.mrf.mxu0
  %v2757 = vadd.f32 %v2428, %v2756
  %v2758 = vpop.f32.mrf.mxu0
  %v2759 = vadd.f32 %v2430, %v2758
  %2760 = vmatmul.bf16.gmra.mxu0 %v1387
  %v2761 = vpop.f32.mrf.mxu0
  %v2762 = vadd.f32 %v2433, %v2761
  %v2763 = vpop.f32.mrf.mxu0
  %v2764 = vadd.f32 %v2435, %v2763
  %2765 = vmatmul.bf16.gmra.mxu0 %v1391
  %v2766 = vpop.f32.mrf.mxu0
  %v2767 = vadd.f32 %v2438, %v2766
  %v2768 = vpop.f32.mrf.mxu0
  %v2769 = vadd.f32 %v2440, %v2768
  %2770 = vmatmul.bf16.gmra.mxu0 %v1395
  %v2771 = vpop.f32.mrf.mxu0
  %v2772 = vadd.f32 %v2443, %v2771
  %v2773 = vpop.f32.mrf.mxu0
  %v2774 = vadd.f32 %v2445, %v2773
  %2775 = vmatmul.bf16.gmra.mxu0 %v1399
  %v2776 = vpop.f32.mrf.mxu0
  %v2777 = vadd.f32 %v2448, %v2776
  %v2778 = vpop.f32.mrf.mxu0
  %v2779 = vadd.f32 %v2450, %v2778
  %2780 = vmatmul.bf16.gmra.mxu0 %v1403
  %v2781 = vpop.f32.mrf.mxu0
  %v2782 = vadd.f32 %v2453, %v2781
  %v2783 = vpop.f32.mrf.mxu0
  %v2784 = vadd.f32 %v2455, %v2783
  %2785 = vmatmul.bf16.gmra.mxu0 %v1407
  %v2786 = vpop.f32.mrf.mxu0
  %v2787 = vadd.f32 %v2458, %v2786
  %v2788 = vpop.f32.mrf.mxu0
  %v2789 = vadd.f32 %v2460, %v2788
  %2790 = vmatmul.bf16.gmra.mxu0 %v1411
  %v2791 = vpop.f32.mrf.mxu0
  %v2792 = vadd.f32 %v2463, %v2791
  %v2793 = vpop.f32.mrf.mxu0
  %v2794 = vadd.f32 %v2465, %v2793
  %2795 = vmatmul.bf16.gmra.mxu0 %v1415
  %v2796 = vpop.f32.mrf.mxu0
  %v2797 = vadd.f32 %v2468, %v2796
  %v2798 = vpop.f32.mrf.mxu0
  %v2799 = vadd.f32 %v2470, %v2798
  %2800 = vmatmul.bf16.gmra.mxu0 %v1419
  %v2801 = vpop.f32.mrf.mxu0
  %v2802 = vadd.f32 %v2473, %v2801
  %v2803 = vpop.f32.mrf.mxu0
  %v2804 = vadd.f32 %v2475, %v2803
  %2805 = vmatmul.bf16.gmra.mxu0 %v1423
  %v2806 = vpop.f32.mrf.mxu0
  %v2807 = vadd.f32 %v2478, %v2806
  %v2808 = vpop.f32.mrf.mxu0
  %v2809 = vadd.f32 %v2480, %v2808
  %2810 = vmatmul.bf16.gmra.mxu0 %v1427
  %v2811 = vpop.f32.mrf.mxu0
  %v2812 = vadd.f32 %v2483, %v2811
  %v2813 = vpop.f32.mrf.mxu0
  %v2814 = vadd.f32 %v2485, %v2813
  %2815 = vmatmul.bf16.gmra.mxu0 %v1431
  %v2816 = vpop.f32.mrf.mxu0
  %v2817 = vadd.f32 %v2488, %v2816
  %v2818 = vpop.f32.mrf.mxu0
  %v2819 = vadd.f32 %v2490, %v2818
  %2820 = vmatmul.bf16.gmra.mxu0 %v1435
  %v2821 = vpop.f32.mrf.mxu0
  %v2822 = vadd.f32 %v2493, %v2821
  %v2823 = vpop.f32.mrf.mxu0
  %v2824 = vadd.f32 %v2495, %v2823
  %2825 = vmatmul.bf16.gmra.mxu0 %v1439
  %v2826 = vpop.f32.mrf.mxu0
  %v2827 = vadd.f32 %v2498, %v2826
  %v2828 = vpop.f32.mrf.mxu0
  %v2829 = vadd.f32 %v2500, %v2828
  %2830 = vmatmul.bf16.gmra.mxu0 %v1443
  %v2831 = vpop.f32.mrf.mxu0
  %v2832 = vadd.f32 %v2503, %v2831
  %v2833 = vpop.f32.mrf.mxu0
  %v2834 = vadd.f32 %v2505, %v2833
  %2835 = vmatmul.bf16.gmra.mxu0 %v1447
  %v2836 = vpop.f32.mrf.mxu0
  %v2837 = vadd.f32 %v2508, %v2836
  %v2838 = vpop.f32.mrf.mxu0
  %v2839 = vadd.f32 %v2510, %v2838
  %2840 = vmatmul.bf16.gmra.mxu0 %v1451
  %v2841 = vpop.f32.mrf.mxu0
  %v2842 = vadd.f32 %v2513, %v2841
  %v2843 = vpop.f32.mrf.mxu0
  %v2844 = vadd.f32 %v2515, %v2843
  %2845 = vmatmul.bf16.gmra.mxu0 %v1455
  %v2846 = vpop.f32.mrf.mxu0
  %v2847 = vadd.f32 %v2518, %v2846
  %v2848 = vpop.f32.mrf.mxu0
  %v2849 = vadd.f32 %v2520, %v2848
  %2850 = vmatmul.bf16.gmra.mxu0 %v1459
  %v2851 = vpop.f32.mrf.mxu0
  %v2852 = vadd.f32 %v2523, %v2851
  %v2853 = vpop.f32.mrf.mxu0
  %v2854 = vadd.f32 %v2525, %v2853
  %2855 = vmatmul.bf16.gmra.mxu0 %v1463
  %v2856 = vpop.f32.mrf.mxu0
  %v2857 = vadd.f32 %v2528, %v2856
  %v2858 = vpop.f32.mrf.mxu0
  %v2859 = vadd.f32 %v2530, %v2858
  %2860 = vmatmul.bf16.gmra.mxu0 %v1467
  %v2861 = vpop.f32.mrf.mxu0
  %v2862 = vadd.f32 %v2533, %v2861
  %v2863 = vpop.f32.mrf.mxu0
  %v2864 = vadd.f32 %v2535, %v2863
  %2865 = vmatmul.bf16.gmra.mxu0 %v1471
  %v2866 = vpop.f32.mrf.mxu0
  %v2867 = vadd.f32 %v2538, %v2866
  %v2868 = vpop.f32.mrf.mxu0
  %v2869 = vadd.f32 %v2540, %v2868
  %2870 = vmatmul.bf16.gmra.mxu0 %v1475
  %v2871 = vpop.f32.mrf.mxu0
  %v2872 = vadd.f32 %v2543, %v2871
  %v2873 = vpop.f32.mrf.mxu0
  %v2874 = vadd.f32 %v2545, %v2873
  %2875 = vmatmul.bf16.gmra.mxu0 %v1479
  %v2876 = vpop.f32.mrf.mxu0
  %v2877 = vadd.f32 %v2548, %v2876
  %v2878 = vpop.f32.mrf.mxu0
  %v2879 = vadd.f32 %v2550, %v2878
  %2880 = vmatmul.bf16.gmra.mxu0 %v1483
  %v2881 = vpop.f32.mrf.mxu0
  %v2882 = vadd.f32 %v2553, %v2881
  %v2883 = vpop.f32.mrf.mxu0
  %v2884 = vadd.f32 %v2555, %v2883
  %2885 = vmatmul.bf16.gmra.mxu0 %v1487
  %v2886 = vpop.f32.mrf.mxu0
  %v2887 = vadd.f32 %v2558, %v2886
  %v2888 = vpop.f32.mrf.mxu0
  %v2889 = vadd.f32 %v2560, %v2888
  %2890 = vmatmul.bf16.gmra.mxu0 %v1491
  %v2891 = vpop.f32.mrf.mxu0
  %v2892 = vadd.f32 %v2563, %v2891
  %v2893 = vpop.f32.mrf.mxu0
  %v2894 = vadd.f32 %v2565, %v2893
  %2895 = vmatmul.bf16.gmra.mxu0 %v1495
  %v2896 = vpop.f32.mrf.mxu0
  %v2897 = vadd.f32 %v2568, %v2896
  %v2898 = vpop.f32.mrf.mxu0
  %v2899 = vadd.f32 %v2570, %v2898
  %2900 = vmatmul.bf16.gmra.mxu0 %v1499
  %v2901 = vpop.f32.mrf.mxu0
  %v2902 = vadd.f32 %v2573, %v2901
  %v2903 = vpop.f32.mrf.mxu0
  %v2904 = vadd.f32 %v2575, %v2903
  %2905 = vmatmul.bf16.gmra.mxu0 %v1503
  %v2906 = vpop.f32.mrf.mxu0
  %v2907 = vadd.f32 %v2578, %v2906
  %v2908 = vpop.f32.mrf.mxu0
  %v2909 = vadd.f32 %v2580, %v2908
  %2910 = vmatmul.bf16.gmra.mxu0 %v1507
  %v2911 = vpop.f32.mrf.mxu0
  %v2912 = vadd.f32 %v2583, %v2911
  %v2913 = vpop.f32.mrf.mxu0
  %v2914 = vadd.f32 %v2585, %v2913
  %2915 = vmatmul.bf16.gmra.mxu0 %v1511
  %v2916 = vpop.f32.mrf.mxu0
  %v2917 = vadd.f32 %v2588, %v2916
  %v2918 = vpop.f32.mrf.mxu0
  %v2919 = vadd.f32 %v2590, %v2918
  %2920 = vmatmul.bf16.gmra.mxu0 %v1515
  %v2921 = vpop.f32.mrf.mxu0
  %v2922 = vadd.f32 %v2593, %v2921
  %v2923 = vpop.f32.mrf.mxu0
  %v2924 = vadd.f32 %v2595, %v2923
  %2925 = vmatmul.bf16.gmra.mxu0 %v1519
  %v2926 = vpop.f32.mrf.mxu0
  %v2927 = vadd.f32 %v2598, %v2926
  %v2928 = vpop.f32.mrf.mxu0
  %v2929 = vadd.f32 %v2600, %v2928
  %2930 = vmatmul.bf16.gmra.mxu0 %v1523
  %v2931 = vpop.f32.mrf.mxu0
  %v2932 = vadd.f32 %v2603, %v2931
  %v2933 = vpop.f32.mrf.mxu0
  %v2934 = vadd.f32 %v2605, %v2933
  %2935 = vmatmul.bf16.gmra.mxu0 %v1527
  %v2936 = vpop.f32.mrf.mxu0
  %v2937 = vadd.f32 %v2608, %v2936
  %v2938 = vpop.f32.mrf.mxu0
  %v2939 = vadd.f32 %v2610, %v2938
  %2940 = vmatmul.bf16.gmra.mxu0 %v1531
  %v2941 = vpop.f32.mrf.mxu0
  %v2942 = vadd.f32 %v2613, %v2941
  %v2943 = vpop.f32.mrf.mxu0
  %v2944 = vadd.f32 %v2615, %v2943
  %2945 = vmatmul.bf16.gmra.mxu0 %v1535
  %v2946 = vpop.f32.mrf.mxu0
  %v2947 = vadd.f32 %v2618, %v2946
  %v2948 = vpop.f32.mrf.mxu0
  %v2949 = vadd.f32 %v2620, %v2948
  %2950 = vmatmul.bf16.gmra.mxu0 %v1539
  %v2951 = vpop.f32.mrf.mxu0
  %v2952 = vadd.f32 %v2623, %v2951
  %v2953 = vpop.f32.mrf.mxu0
  %v2954 = vadd.f32 %v2625, %v2953
  %2955 = vmatmul.bf16.gmra.mxu0 %v1543
  %v2956 = vpop.f32.mrf.mxu0
  %v2957 = vadd.f32 %v2628, %v2956
  %v2958 = vpop.f32.mrf.mxu0
  %v2959 = vadd.f32 %v2630, %v2958
  %2960 = vmatmul.bf16.gmra.mxu0 %v1547
  %v2961 = vpop.f32.mrf.mxu0
  %v2962 = vadd.f32 %v2633, %v2961
  %v2963 = vpop.f32.mrf.mxu0
  %v2964 = vadd.f32 %v2635, %v2963
  %2965 = vmatmul.bf16.gmra.mxu0 %v1551
  %v2966 = vpop.f32.mrf.mxu0
  %v2967 = vadd.f32 %v2638, %v2966
  %v2968 = vpop.f32.mrf.mxu0
  %v2969 = vadd.f32 %v2640, %v2968
  %2970 = vmatmul.bf16.gmra.mxu0 %v1555
  %v2971 = vpop.f32.mrf.mxu0
  %v2972 = vadd.f32 %v2643, %v2971
  %v2973 = vpop.f32.mrf.mxu0
  %v2974 = vadd.f32 %v2645, %v2973
  %2975 = vmatmul.bf16.gmra.mxu0 %v1559
  %v2976 = vpop.f32.mrf.mxu0
  %v2977 = vadd.f32 %v2648, %v2976
  %v2978 = vpop.f32.mrf.mxu0
  %v2979 = vadd.f32 %v2650, %v2978
  %2980 = vmatmul.bf16.gmra.mxu0 %v1563
  %v2981 = vpop.f32.mrf.mxu0
  %v2982 = vadd.f32 %v2653, %v2981
  %v2983 = vpop.f32.mrf.mxu0
  %v2984 = vadd.f32 %v2655, %v2983
  %2985 = vmatmul.bf16.gmra.mxu0 %v1567
  %v2986 = vpop.f32.mrf.mxu0
  %v2987 = vadd.f32 %v2658, %v2986
  %v2988 = vpop.f32.mrf.mxu0
  %v2989 = vadd.f32 %v2660, %v2988
  %2990 = vmatmul.bf16.gmra.mxu0 %v1571
  %v2991 = vpop.f32.mrf.mxu0
  %v2992 = vadd.f32 %v2663, %v2991
  %v2993 = vpop.f32.mrf.mxu0
  %v2994 = vadd.f32 %v2665, %v2993
  %2995 = vmatmul.bf16.gmra.mxu0 %v1575
  %v2996 = vpop.f32.mrf.mxu0
  %v2997 = vadd.f32 %v2668, %v2996
  %v2998 = vpop.f32.mrf.mxu0
  %v2999 = vadd.f32 %v2670, %v2998
  %3000 = vmatmul.bf16.gmra.mxu0 %v1579
  %v3001 = vpop.f32.mrf.mxu0
  %v3002 = vadd.f32 %v2673, %v3001
  %v3003 = vpop.f32.mrf.mxu0
  %v3004 = vadd.f32 %v2675, %v3003
  %3005 = vmatmul.bf16.gmra.mxu0 %v1583
  %v3006 = vpop.f32.mrf.mxu0
  %v3007 = vadd.f32 %v2678, %v3006
  %v3008 = vpop.f32.mrf.mxu0
  %v3009 = vadd.f32 %v2680, %v3008
  %3010 = vmatmul.bf16.gmra.mxu0 %v1587
  %v3011 = vpop.f32.mrf.mxu0
  %v3012 = vadd.f32 %v2683, %v3011
  %v3013 = vpop.f32.mrf.mxu0
  %v3014 = vadd.f32 %v2685, %v3013
  %3015 = vmatmul.bf16.gmra.mxu0 %v1591
  %v3016 = vpop.f32.mrf.mxu0
  %v3017 = vadd.f32 %v2688, %v3016
  %v3018 = vpop.f32.mrf.mxu0
  %v3019 = vadd.f32 %v2690, %v3018
  %3020 = vmatmul.bf16.gmra.mxu0 %v1595
  %v3021 = vpop.f32.mrf.mxu0
  %v3022 = vadd.f32 %v2693, %v3021
  %v3023 = vpop.f32.mrf.mxu0
  %v3024 = vadd.f32 %v2695, %v3023
  %3025 = vmatmul.bf16.gmra.mxu0 %v1599
  %v3026 = vpop.f32.mrf.mxu0
  %v3027 = vadd.f32 %v2698, %v3026
  %v3028 = vpop.f32.mrf.mxu0
  %v3029 = vadd.f32 %v2700, %v3028
  %3030 = vmatmul.bf16.gmra.mxu0 %v1603
  %v3031 = vpop.f32.mrf.mxu0
  %v3032 = vadd.f32 %v2703, %v3031
  %v3033 = vpop.f32.mrf.mxu0
  %v3034 = vadd.f32 %v2705, %v3033
  %3035 = vmatmul.bf16.gmra.mxu0 %v1607
  %v3036 = vpop.f32.mrf.mxu0
  %v3037 = vadd.f32 %v2708, %v3036
  %v3038 = vpop.f32.mrf.mxu0
  %v3039 = vadd.f32 %v2710, %v3038
  %3040 = vmatmul.bf16.gmra.mxu0 %v1611
  %v3041 = vpop.f32.mrf.mxu0
  %v3042 = vadd.f32 %v2713, %v3041
  %v3043 = vpop.f32.mrf.mxu0
  %v3044 = vadd.f32 %v2715, %v3043
  %3045 = vmatmul.bf16.gmra.mxu0 %v1615
  %v3046 = vpop.f32.mrf.mxu0
  %v3047 = vadd.f32 %v2718, %v3046
  %v3048 = vpop.f32.mrf.mxu0
  %v3049 = vadd.f32 %v2720, %v3048
  %3050 = vmatmul.bf16.gmra.mxu0 %v1619
  %v3051 = vpop.f32.mrf.mxu0
  %v3052 = vadd.f32 %v2723, %v3051
  %v3053 = vpop.f32.mrf.mxu0
  %v3054 = vadd.f32 %v2725, %v3053
  %3055 = vdwg.mxu0
  %3056 = vmatpush.bf16.msra.mxu0 %v2036
  %3057 = vmatpush.bf16.msra.mxu0 %v2035
  %3058 = vmatpush.bf16.msra.mxu0 %v2034
  %3059 = vmatpush.bf16.msra.mxu0 %v2033
  %3060 = vmatpush.bf16.msra.mxu0 %v2032
  %3061 = vmatpush.bf16.msra.mxu0 %v2031
  %3062 = vmatpush.bf16.msra.mxu0 %v2030
  %3063 = vmatpush.bf16.msra.mxu0 %v2029
  %3064 = vmatmul.bf16.gmra.mxu0 %v1368
  %v3065 = vpop.f32.mrf.mxu0
  %v3066 = vadd.f32 %v2737, %v3065
  %v3067 = vpop.f32.mrf.mxu0
  %v3068 = vadd.f32 %v2739, %v3067
  %3069 = vmatmul.bf16.gmra.mxu0 %v1372
  %v3070 = vpop.f32.mrf.mxu0
  %v3071 = vadd.f32 %v2742, %v3070
  %v3072 = vpop.f32.mrf.mxu0
  %v3073 = vadd.f32 %v2744, %v3072
  %3074 = vmatmul.bf16.gmra.mxu0 %v1376
  %v3075 = vpop.f32.mrf.mxu0
  %v3076 = vadd.f32 %v2747, %v3075
  %v3077 = vpop.f32.mrf.mxu0
  %v3078 = vadd.f32 %v2749, %v3077
  %3079 = vmatmul.bf16.gmra.mxu0 %v1380
  %v3080 = vpop.f32.mrf.mxu0
  %v3081 = vadd.f32 %v2752, %v3080
  %v3082 = vpop.f32.mrf.mxu0
  %v3083 = vadd.f32 %v2754, %v3082
  %3084 = vmatmul.bf16.gmra.mxu0 %v1384
  %v3085 = vpop.f32.mrf.mxu0
  %v3086 = vadd.f32 %v2757, %v3085
  %v3087 = vpop.f32.mrf.mxu0
  %v3088 = vadd.f32 %v2759, %v3087
  %3089 = vmatmul.bf16.gmra.mxu0 %v1388
  %v3090 = vpop.f32.mrf.mxu0
  %v3091 = vadd.f32 %v2762, %v3090
  %v3092 = vpop.f32.mrf.mxu0
  %v3093 = vadd.f32 %v2764, %v3092
  %3094 = vmatmul.bf16.gmra.mxu0 %v1392
  %v3095 = vpop.f32.mrf.mxu0
  %v3096 = vadd.f32 %v2767, %v3095
  %v3097 = vpop.f32.mrf.mxu0
  %v3098 = vadd.f32 %v2769, %v3097
  %3099 = vmatmul.bf16.gmra.mxu0 %v1396
  %v3100 = vpop.f32.mrf.mxu0
  %v3101 = vadd.f32 %v2772, %v3100
  %v3102 = vpop.f32.mrf.mxu0
  %v3103 = vadd.f32 %v2774, %v3102
  %3104 = vmatmul.bf16.gmra.mxu0 %v1400
  %v3105 = vpop.f32.mrf.mxu0
  %v3106 = vadd.f32 %v2777, %v3105
  %v3107 = vpop.f32.mrf.mxu0
  %v3108 = vadd.f32 %v2779, %v3107
  %3109 = vmatmul.bf16.gmra.mxu0 %v1404
  %v3110 = vpop.f32.mrf.mxu0
  %v3111 = vadd.f32 %v2782, %v3110
  %v3112 = vpop.f32.mrf.mxu0
  %v3113 = vadd.f32 %v2784, %v3112
  %3114 = vmatmul.bf16.gmra.mxu0 %v1408
  %v3115 = vpop.f32.mrf.mxu0
  %v3116 = vadd.f32 %v2787, %v3115
  %v3117 = vpop.f32.mrf.mxu0
  %v3118 = vadd.f32 %v2789, %v3117
  %3119 = vmatmul.bf16.gmra.mxu0 %v1412
  %v3120 = vpop.f32.mrf.mxu0
  %v3121 = vadd.f32 %v2792, %v3120
  %v3122 = vpop.f32.mrf.mxu0
  %v3123 = vadd.f32 %v2794, %v3122
  %3124 = vmatmul.bf16.gmra.mxu0 %v1416
  %v3125 = vpop.f32.mrf.mxu0
  %v3126 = vadd.f32 %v2797, %v3125
  %v3127 = vpop.f32.mrf.mxu0
  %v3128 = vadd.f32 %v2799, %v3127
  %3129 = vmatmul.bf16.gmra.mxu0 %v1420
  %v3130 = vpop.f32.mrf.mxu0
  %v3131 = vadd.f32 %v2802, %v3130
  %v3132 = vpop.f32.mrf.mxu0
  %v3133 = vadd.f32 %v2804, %v3132
  %3134 = vmatmul.bf16.gmra.mxu0 %v1424
  %v3135 = vpop.f32.mrf.mxu0
  %v3136 = vadd.f32 %v2807, %v3135
  %v3137 = vpop.f32.mrf.mxu0
  %v3138 = vadd.f32 %v2809, %v3137
  %3139 = vmatmul.bf16.gmra.mxu0 %v1428
  %v3140 = vpop.f32.mrf.mxu0
  %v3141 = vadd.f32 %v2812, %v3140
  %v3142 = vpop.f32.mrf.mxu0
  %v3143 = vadd.f32 %v2814, %v3142
  %3144 = vmatmul.bf16.gmra.mxu0 %v1432
  %v3145 = vpop.f32.mrf.mxu0
  %v3146 = vadd.f32 %v2817, %v3145
  %v3147 = vpop.f32.mrf.mxu0
  %v3148 = vadd.f32 %v2819, %v3147
  %3149 = vmatmul.bf16.gmra.mxu0 %v1436
  %v3150 = vpop.f32.mrf.mxu0
  %v3151 = vadd.f32 %v2822, %v3150
  %v3152 = vpop.f32.mrf.mxu0
  %v3153 = vadd.f32 %v2824, %v3152
  %3154 = vmatmul.bf16.gmra.mxu0 %v1440
  %v3155 = vpop.f32.mrf.mxu0
  %v3156 = vadd.f32 %v2827, %v3155
  %v3157 = vpop.f32.mrf.mxu0
  %v3158 = vadd.f32 %v2829, %v3157
  %3159 = vmatmul.bf16.gmra.mxu0 %v1444
  %v3160 = vpop.f32.mrf.mxu0
  %v3161 = vadd.f32 %v2832, %v3160
  %v3162 = vpop.f32.mrf.mxu0
  %v3163 = vadd.f32 %v2834, %v3162
  %3164 = vmatmul.bf16.gmra.mxu0 %v1448
  %v3165 = vpop.f32.mrf.mxu0
  %v3166 = vadd.f32 %v2837, %v3165
  %v3167 = vpop.f32.mrf.mxu0
  %v3168 = vadd.f32 %v2839, %v3167
  %3169 = vmatmul.bf16.gmra.mxu0 %v1452
  %v3170 = vpop.f32.mrf.mxu0
  %v3171 = vadd.f32 %v2842, %v3170
  %v3172 = vpop.f32.mrf.mxu0
  %v3173 = vadd.f32 %v2844, %v3172
  %3174 = vmatmul.bf16.gmra.mxu0 %v1456
  %v3175 = vpop.f32.mrf.mxu0
  %v3176 = vadd.f32 %v2847, %v3175
  %v3177 = vpop.f32.mrf.mxu0
  %v3178 = vadd.f32 %v2849, %v3177
  %3179 = vmatmul.bf16.gmra.mxu0 %v1460
  %v3180 = vpop.f32.mrf.mxu0
  %v3181 = vadd.f32 %v2852, %v3180
  %v3182 = vpop.f32.mrf.mxu0
  %v3183 = vadd.f32 %v2854, %v3182
  %3184 = vmatmul.bf16.gmra.mxu0 %v1464
  %v3185 = vpop.f32.mrf.mxu0
  %v3186 = vadd.f32 %v2857, %v3185
  %v3187 = vpop.f32.mrf.mxu0
  %v3188 = vadd.f32 %v2859, %v3187
  %3189 = vmatmul.bf16.gmra.mxu0 %v1468
  %v3190 = vpop.f32.mrf.mxu0
  %v3191 = vadd.f32 %v2862, %v3190
  %v3192 = vpop.f32.mrf.mxu0
  %v3193 = vadd.f32 %v2864, %v3192
  %3194 = vmatmul.bf16.gmra.mxu0 %v1472
  %v3195 = vpop.f32.mrf.mxu0
  %v3196 = vadd.f32 %v2867, %v3195
  %v3197 = vpop.f32.mrf.mxu0
  %v3198 = vadd.f32 %v2869, %v3197
  %3199 = vmatmul.bf16.gmra.mxu0 %v1476
  %v3200 = vpop.f32.mrf.mxu0
  %v3201 = vadd.f32 %v2872, %v3200
  %v3202 = vpop.f32.mrf.mxu0
  %v3203 = vadd.f32 %v2874, %v3202
  %3204 = vmatmul.bf16.gmra.mxu0 %v1480
  %v3205 = vpop.f32.mrf.mxu0
  %v3206 = vadd.f32 %v2877, %v3205
  %v3207 = vpop.f32.mrf.mxu0
  %v3208 = vadd.f32 %v2879, %v3207
  %3209 = vmatmul.bf16.gmra.mxu0 %v1484
  %v3210 = vpop.f32.mrf.mxu0
  %v3211 = vadd.f32 %v2882, %v3210
  %v3212 = vpop.f32.mrf.mxu0
  %v3213 = vadd.f32 %v2884, %v3212
  %3214 = vmatmul.bf16.gmra.mxu0 %v1488
  %v3215 = vpop.f32.mrf.mxu0
  %v3216 = vadd.f32 %v2887, %v3215
  %v3217 = vpop.f32.mrf.mxu0
  %v3218 = vadd.f32 %v2889, %v3217
  %3219 = vmatmul.bf16.gmra.mxu0 %v1492
  %v3220 = vpop.f32.mrf.mxu0
  %v3221 = vadd.f32 %v2892, %v3220
  %v3222 = vpop.f32.mrf.mxu0
  %v3223 = vadd.f32 %v2894, %v3222
  %3224 = vmatmul.bf16.gmra.mxu0 %v1496
  %v3225 = vpop.f32.mrf.mxu0
  %v3226 = vadd.f32 %v2897, %v3225
  %v3227 = vpop.f32.mrf.mxu0
  %v3228 = vadd.f32 %v2899, %v3227
  %3229 = vmatmul.bf16.gmra.mxu0 %v1500
  %v3230 = vpop.f32.mrf.mxu0
  %v3231 = vadd.f32 %v2902, %v3230
  %v3232 = vpop.f32.mrf.mxu0
  %v3233 = vadd.f32 %v2904, %v3232
  %3234 = vmatmul.bf16.gmra.mxu0 %v1504
  %v3235 = vpop.f32.mrf.mxu0
  %v3236 = vadd.f32 %v2907, %v3235
  %v3237 = vpop.f32.mrf.mxu0
  %v3238 = vadd.f32 %v2909, %v3237
  %3239 = vmatmul.bf16.gmra.mxu0 %v1508
  %v3240 = vpop.f32.mrf.mxu0
  %v3241 = vadd.f32 %v2912, %v3240
  %v3242 = vpop.f32.mrf.mxu0
  %v3243 = vadd.f32 %v2914, %v3242
  %3244 = vmatmul.bf16.gmra.mxu0 %v1512
  %v3245 = vpop.f32.mrf.mxu0
  %v3246 = vadd.f32 %v2917, %v3245
  %v3247 = vpop.f32.mrf.mxu0
  %v3248 = vadd.f32 %v2919, %v3247
  %3249 = vmatmul.bf16.gmra.mxu0 %v1516
  %v3250 = vpop.f32.mrf.mxu0
  %v3251 = vadd.f32 %v2922, %v3250
  %v3252 = vpop.f32.mrf.mxu0
  %v3253 = vadd.f32 %v2924, %v3252
  %3254 = vmatmul.bf16.gmra.mxu0 %v1520
  %v3255 = vpop.f32.mrf.mxu0
  %v3256 = vadd.f32 %v2927, %v3255
  %v3257 = vpop.f32.mrf.mxu0
  %v3258 = vadd.f32 %v2929, %v3257
  %3259 = vmatmul.bf16.gmra.mxu0 %v1524
  %v3260 = vpop.f32.mrf.mxu0
  %v3261 = vadd.f32 %v2932, %v3260
  %v3262 = vpop.f32.mrf.mxu0
  %v3263 = vadd.f32 %v2934, %v3262
  %3264 = vmatmul.bf16.gmra.mxu0 %v1528
  %v3265 = vpop.f32.mrf.mxu0
  %v3266 = vadd.f32 %v2937, %v3265
  %v3267 = vpop.f32.mrf.mxu0
  %v3268 = vadd.f32 %v2939, %v3267
  %3269 = vmatmul.bf16.gmra.mxu0 %v1532
  %v3270 = vpop.f32.mrf.mxu0
  %v3271 = vadd.f32 %v2942, %v3270
  %v3272 = vpop.f32.mrf.mxu0
  %v3273 = vadd.f32 %v2944, %v3272
  %3274 = vmatmul.bf16.gmra.mxu0 %v1536
  %v3275 = vpop.f32.mrf.mxu0
  %v3276 = vadd.f32 %v2947, %v3275
  %v3277 = vpop.f32.mrf.mxu0
  %v3278 = vadd.f32 %v2949, %v3277
  %3279 = vmatmul.bf16.gmra.mxu0 %v1540
  %v3280 = vpop.f32.mrf.mxu0
  %v3281 = vadd.f32 %v2952, %v3280
  %v3282 = vpop.f32.mrf.mxu0
  %v3283 = vadd.f32 %v2954, %v3282
  %3284 = vmatmul.bf16.gmra.mxu0 %v1544
  %v3285 = vpop.f32.mrf.mxu0
  %v3286 = vadd.f32 %v2957, %v3285
  %v3287 = vpop.f32.mrf.mxu0
  %v3288 = vadd.f32 %v2959, %v3287
  %3289 = vmatmul.bf16.gmra.mxu0 %v1548
  %v3290 = vpop.f32.mrf.mxu0
  %v3291 = vadd.f32 %v2962, %v3290
  %v3292 = vpop.f32.mrf.mxu0
  %v3293 = vadd.f32 %v2964, %v3292
  %3294 = vmatmul.bf16.gmra.mxu0 %v1552
  %v3295 = vpop.f32.mrf.mxu0
  %v3296 = vadd.f32 %v2967, %v3295
  %v3297 = vpop.f32.mrf.mxu0
  %v3298 = vadd.f32 %v2969, %v3297
  %3299 = vmatmul.bf16.gmra.mxu0 %v1556
  %v3300 = vpop.f32.mrf.mxu0
  %v3301 = vadd.f32 %v2972, %v3300
  %v3302 = vpop.f32.mrf.mxu0
  %v3303 = vadd.f32 %v2974, %v3302
  %3304 = vmatmul.bf16.gmra.mxu0 %v1560
  %v3305 = vpop.f32.mrf.mxu0
  %v3306 = vadd.f32 %v2977, %v3305
  %v3307 = vpop.f32.mrf.mxu0
  %v3308 = vadd.f32 %v2979, %v3307
  %3309 = vmatmul.bf16.gmra.mxu0 %v1564
  %v3310 = vpop.f32.mrf.mxu0
  %v3311 = vadd.f32 %v2982, %v3310
  %v3312 = vpop.f32.mrf.mxu0
  %v3313 = vadd.f32 %v2984, %v3312
  %3314 = vmatmul.bf16.gmra.mxu0 %v1568
  %v3315 = vpop.f32.mrf.mxu0
  %v3316 = vadd.f32 %v2987, %v3315
  %v3317 = vpop.f32.mrf.mxu0
  %v3318 = vadd.f32 %v2989, %v3317
  %3319 = vmatmul.bf16.gmra.mxu0 %v1572
  %v3320 = vpop.f32.mrf.mxu0
  %v3321 = vadd.f32 %v2992, %v3320
  %v3322 = vpop.f32.mrf.mxu0
  %v3323 = vadd.f32 %v2994, %v3322
  %3324 = vmatmul.bf16.gmra.mxu0 %v1576
  %v3325 = vpop.f32.mrf.mxu0
  %v3326 = vadd.f32 %v2997, %v3325
  %v3327 = vpop.f32.mrf.mxu0
  %v3328 = vadd.f32 %v2999, %v3327
  %3329 = vmatmul.bf16.gmra.mxu0 %v1580
  %v3330 = vpop.f32.mrf.mxu0
  %v3331 = vadd.f32 %v3002, %v3330
  %v3332 = vpop.f32.mrf.mxu0
  %v3333 = vadd.f32 %v3004, %v3332
  %3334 = vmatmul.bf16.gmra.mxu0 %v1584
  %v3335 = vpop.f32.mrf.mxu0
  %v3336 = vadd.f32 %v3007, %v3335
  %v3337 = vpop.f32.mrf.mxu0
  %v3338 = vadd.f32 %v3009, %v3337
  %3339 = vmatmul.bf16.gmra.mxu0 %v1588
  %v3340 = vpop.f32.mrf.mxu0
  %v3341 = vadd.f32 %v3012, %v3340
  %v3342 = vpop.f32.mrf.mxu0
  %v3343 = vadd.f32 %v3014, %v3342
  %3344 = vmatmul.bf16.gmra.mxu0 %v1592
  %v3345 = vpop.f32.mrf.mxu0
  %v3346 = vadd.f32 %v3017, %v3345
  %v3347 = vpop.f32.mrf.mxu0
  %v3348 = vadd.f32 %v3019, %v3347
  %3349 = vmatmul.bf16.gmra.mxu0 %v1596
  %v3350 = vpop.f32.mrf.mxu0
  %v3351 = vadd.f32 %v3022, %v3350
  %v3352 = vpop.f32.mrf.mxu0
  %v3353 = vadd.f32 %v3024, %v3352
  %3354 = vmatmul.bf16.gmra.mxu0 %v1600
  %v3355 = vpop.f32.mrf.mxu0
  %v3356 = vadd.f32 %v3027, %v3355
  %v3357 = vpop.f32.mrf.mxu0
  %v3358 = vadd.f32 %v3029, %v3357
  %3359 = vmatmul.bf16.gmra.mxu0 %v1604
  %v3360 = vpop.f32.mrf.mxu0
  %v3361 = vadd.f32 %v3032, %v3360
  %v3362 = vpop.f32.mrf.mxu0
  %v3363 = vadd.f32 %v3034, %v3362
  %3364 = vmatmul.bf16.gmra.mxu0 %v1608
  %v3365 = vpop.f32.mrf.mxu0
  %v3366 = vadd.f32 %v3037, %v3365
  %v3367 = vpop.f32.mrf.mxu0
  %v3368 = vadd.f32 %v3039, %v3367
  %3369 = vmatmul.bf16.gmra.mxu0 %v1612
  %v3370 = vpop.f32.mrf.mxu0
  %v3371 = vadd.f32 %v3042, %v3370
  %v3372 = vpop.f32.mrf.mxu0
  %v3373 = vadd.f32 %v3044, %v3372
  %3374 = vmatmul.bf16.gmra.mxu0 %v1616
  %v3375 = vpop.f32.mrf.mxu0
  %v3376 = vadd.f32 %v3047, %v3375
  %v3377 = vpop.f32.mrf.mxu0
  %v3378 = vadd.f32 %v3049, %v3377
  %3379 = vmatmul.bf16.gmra.mxu0 %v1620
  %v3380 = vpop.f32.mrf.mxu0
  %v3381 = vadd.f32 %v3052, %v3380
  %v3382 = vpop.f32.mrf.mxu0
  %v3383 = vadd.f32 %v3054, %v3382
  %3384 = vdwg.mxu0
  %v3385 = vadd.f32 %v149, %v3066
  %v3386 = vadd.f32 %v150, %v3068
  %v3387 = vadd.f32 %v151, %v3071
  %v3388 = vadd.f32 %v152, %v3073
  %v3389 = vadd.f32 %v153, %v3076
  %v3390 = vadd.f32 %v154, %v3078
  %v3391 = vadd.f32 %v155, %v3081
  %v3392 = vadd.f32 %v156, %v3083
  %v3393 = vadd.f32 %v157, %v3086
  %v3394 = vadd.f32 %v158, %v3088
  %v3395 = vadd.f32 %v159, %v3091
  %v3396 = vadd.f32 %v160, %v3093
  %v3397 = vadd.f32 %v161, %v3096
  %v3398 = vadd.f32 %v162, %v3098
  %v3399 = vadd.f32 %v163, %v3101
  %v3400 = vadd.f32 %v164, %v3103
  %v3401 = vadd.f32 %v165, %v3106
  %v3402 = vadd.f32 %v166, %v3108
  %v3403 = vadd.f32 %v167, %v3111
  %v3404 = vadd.f32 %v168, %v3113
  %v3405 = vadd.f32 %v169, %v3116
  %v3406 = vadd.f32 %v170, %v3118
  %v3407 = vadd.f32 %v171, %v3121
  %v3408 = vadd.f32 %v172, %v3123
  %v3409 = vadd.f32 %v173, %v3126
  %v3410 = vadd.f32 %v174, %v3128
  %v3411 = vadd.f32 %v175, %v3131
  %v3412 = vadd.f32 %v176, %v3133
  %v3413 = vadd.f32 %v177, %v3136
  %v3414 = vadd.f32 %v178, %v3138
  %v3415 = vadd.f32 %v179, %v3141
  %v3416 = vadd.f32 %v180, %v3143
  %v3417 = vadd.f32 %v181, %v3146
  %v3418 = vadd.f32 %v182, %v3148
  %v3419 = vadd.f32 %v183, %v3151
  %v3420 = vadd.f32 %v184, %v3153
  %v3421 = vadd.f32 %v185, %v3156
  %v3422 = vadd.f32 %v186, %v3158
  %v3423 = vadd.f32 %v187, %v3161
  %v3424 = vadd.f32 %v188, %v3163
  %v3425 = vadd.f32 %v189, %v3166
  %v3426 = vadd.f32 %v190, %v3168
  %v3427 = vadd.f32 %v191, %v3171
  %v3428 = vadd.f32 %v192, %v3173
  %v3429 = vadd.f32 %v193, %v3176
  %v3430 = vadd.f32 %v194, %v3178
  %v3431 = vadd.f32 %v195, %v3181
  %v3432 = vadd.f32 %v196, %v3183
  %v3433 = vadd.f32 %v197, %v3186
  %v3434 = vadd.f32 %v198, %v3188
  %v3435 = vadd.f32 %v199, %v3191
  %v3436 = vadd.f32 %v200, %v3193
  %v3437 = vadd.f32 %v201, %v3196
  %v3438 = vadd.f32 %v202, %v3198
  %v3439 = vadd.f32 %v203, %v3201
  %v3440 = vadd.f32 %v204, %v3203
  %v3441 = vadd.f32 %v205, %v3206
  %v3442 = vadd.f32 %v206, %v3208
  %v3443 = vadd.f32 %v207, %v3211
  %v3444 = vadd.f32 %v208, %v3213
  %v3445 = vadd.f32 %v209, %v3216
  %v3446 = vadd.f32 %v210, %v3218
  %v3447 = vadd.f32 %v211, %v3221
  %v3448 = vadd.f32 %v212, %v3223
  %v3449 = vadd.f32 %v213, %v3226
  %v3450 = vadd.f32 %v214, %v3228
  %v3451 = vadd.f32 %v215, %v3231
  %v3452 = vadd.f32 %v216, %v3233
  %v3453 = vadd.f32 %v217, %v3236
  %v3454 = vadd.f32 %v218, %v3238
  %v3455 = vadd.f32 %v219, %v3241
  %v3456 = vadd.f32 %v220, %v3243
  %v3457 = vadd.f32 %v221, %v3246
  %v3458 = vadd.f32 %v222, %v3248
  %v3459 = vadd.f32 %v223, %v3251
  %v3460 = vadd.f32 %v224, %v3253
  %v3461 = vadd.f32 %v225, %v3256
  %v3462 = vadd.f32 %v226, %v3258
  %v3463 = vadd.f32 %v227, %v3261
  %v3464 = vadd.f32 %v228, %v3263
  %v3465 = vadd.f32 %v229, %v3266
  %v3466 = vadd.f32 %v230, %v3268
  %v3467 = vadd.f32 %v231, %v3271
  %v3468 = vadd.f32 %v232, %v3273
  %v3469 = vadd.f32 %v233, %v3276
  %v3470 = vadd.f32 %v234, %v3278
  %v3471 = vadd.f32 %v235, %v3281
  %v3472 = vadd.f32 %v236, %v3283
  %v3473 = vadd.f32 %v237, %v3286
  %v3474 = vadd.f32 %v238, %v3288
  %v3475 = vadd.f32 %v239, %v3291
  %v3476 = vadd.f32 %v240, %v3293
  %v3477 = vadd.f32 %v241, %v3296
  %v3478 = vadd.f32 %v242, %v3298
  %v3479 = vadd.f32 %v243, %v3301
  %v3480 = vadd.f32 %v244, %v3303
  %v3481 = vadd.f32 %v245, %v3306
  %v3482 = vadd.f32 %v246, %v3308
  %v3483 = vadd.f32 %v247, %v3311
  %v3484 = vadd.f32 %v248, %v3313
  %v3485 = vadd.f32 %v249, %v3316
  %v3486 = vadd.f32 %v250, %v3318
  %v3487 = vadd.f32 %v251, %v3321
  %v3488 = vadd.f32 %v252, %v3323
  %v3489 = vadd.f32 %v253, %v3326
  %v3490 = vadd.f32 %v254, %v3328
  %v3491 = vadd.f32 %v255, %v3331
  %v3492 = vadd.f32 %v256, %v3333
  %v3493 = vadd.f32 %v257, %v3336
  %v3494 = vadd.f32 %v258, %v3338
  %v3495 = vadd.f32 %v259, %v3341
  %v3496 = vadd.f32 %v260, %v3343
  %v3497 = vadd.f32 %v261, %v3346
  %v3498 = vadd.f32 %v262, %v3348
  %v3499 = vadd.f32 %v263, %v3351
  %v3500 = vadd.f32 %v264, %v3353
  %v3501 = vadd.f32 %v265, %v3356
  %v3502 = vadd.f32 %v266, %v3358
  %v3503 = vadd.f32 %v267, %v3361
  %v3504 = vadd.f32 %v268, %v3363
  %v3505 = vadd.f32 %v269, %v3366
  %v3506 = vadd.f32 %v270, %v3368
  %v3507 = vadd.f32 %v271, %v3371
  %v3508 = vadd.f32 %v272, %v3373
  %v3509 = vadd.f32 %v273, %v3376
  %v3510 = vadd.f32 %v274, %v3378
  %v3511 = vadd.f32 %v275, %v3381
  %v3512 = vadd.f32 %v276, %v3383
  %3513 = vst [vmem:[#allocation2] sm:$0xff] %v3385
  %3514 = vst [vmem:[#allocation2 + $0x8] sm:$0xff] %v3386
  %3515 = vst [vmem:[#allocation2 + $0x10] sm:$0xff] %v3387
  %3516 = vst [vmem:[#allocation2 + $0x18] sm:$0xff] %v3388
  %3517 = vst [vmem:[#allocation2 + $0x20] sm:$0xff] %v3389
  %3518 = vst [vmem:[#allocation2 + $0x28] sm:$0xff] %v3390
  %3519 = vst [vmem:[#allocation2 + $0x30] sm:$0xff] %v3391
  %3520 = vst [vmem:[#allocation2 + $0x38] sm:$0xff] %v3392
  %3521 = vst [vmem:[#allocation2 + $0x40] sm:$0xff] %v3393
  %3522 = vst [vmem:[#allocation2 + $0x48] sm:$0xff] %v3394
  %3523 = vst [vmem:[#allocation2 + $0x50] sm:$0xff] %v3395
  %3524 = vst [vmem:[#allocation2 + $0x58] sm:$0xff] %v3396
  %3525 = vst [vmem:[#allocation2 + $0x60] sm:$0xff] %v3397
  %3526 = vst [vmem:[#allocation2 + $0x68] sm:$0xff] %v3398
  %3527 = vst [vmem:[#allocation2 + $0x70] sm:$0xff] %v3399
  %3528 = vst [vmem:[#allocation2 + $0x78] sm:$0xff] %v3400
  %3529 = vst [vmem:[#allocation2 + $0x80] sm:$0xff] %v3401
  %3530 = vst [vmem:[#allocation2 + $0x88] sm:$0xff] %v3402
  %3531 = vst [vmem:[#allocation2 + $0x90] sm:$0xff] %v3403
  %3532 = vst [vmem:[#allocation2 + $0x98] sm:$0xff] %v3404
  %3533 = vst [vmem:[#allocation2 + $0xa0] sm:$0xff] %v3405
  %3534 = vst [vmem:[#allocation2 + $0xa8] sm:$0xff] %v3406
  %3535 = vst [vmem:[#allocation2 + $0xb0] sm:$0xff] %v3407
  %3536 = vst [vmem:[#allocation2 + $0xb8] sm:$0xff] %v3408
  %3537 = vst [vmem:[#allocation2 + $0xc0] sm:$0xff] %v3409
  %3538 = vst [vmem:[#allocation2 + $0xc8] sm:$0xff] %v3410
  %3539 = vst [vmem:[#allocation2 + $0xd0] sm:$0xff] %v3411
  %3540 = vst [vmem:[#allocation2 + $0xd8] sm:$0xff] %v3412
  %3541 = vst [vmem:[#allocation2 + $0xe0] sm:$0xff] %v3413
  %3542 = vst [vmem:[#allocation2 + $0xe8] sm:$0xff] %v3414
  %3543 = vst [vmem:[#allocation2 + $0xf0] sm:$0xff] %v3415
  %3544 = vst [vmem:[#allocation2 + $0xf8] sm:$0xff] %v3416
  %3545 = vst [vmem:[#allocation2 + $0x100] sm:$0xff] %v3417
  %3546 = vst [vmem:[#allocation2 + $0x108] sm:$0xff] %v3418
  %3547 = vst [vmem:[#allocation2 + $0x110] sm:$0xff] %v3419
  %3548 = vst [vmem:[#allocation2 + $0x118] sm:$0xff] %v3420
  %3549 = vst [vmem:[#allocation2 + $0x120] sm:$0xff] %v3421
  %3550 = vst [vmem:[#allocation2 + $0x128] sm:$0xff] %v3422
  %3551 = vst [vmem:[#allocation2 + $0x130] sm:$0xff] %v3423
  %3552 = vst [vmem:[#allocation2 + $0x138] sm:$0xff] %v3424
  %3553 = vst [vmem:[#allocation2 + $0x140] sm:$0xff] %v3425
  %3554 = vst [vmem:[#allocation2 + $0x148] sm:$0xff] %v3426
  %3555 = vst [vmem:[#allocation2 + $0x150] sm:$0xff] %v3427
  %3556 = vst [vmem:[#allocation2 + $0x158] sm:$0xff] %v3428
  %3557 = vst [vmem:[#allocation2 + $0x160] sm:$0xff] %v3429
  %3558 = vst [vmem:[#allocation2 + $0x168] sm:$0xff] %v3430
  %3559 = vst [vmem:[#allocation2 + $0x170] sm:$0xff] %v3431
  %3560 = vst [vmem:[#allocation2 + $0x178] sm:$0xff] %v3432
  %3561 = vst [vmem:[#allocation2 + $0x180] sm:$0xff] %v3433
  %3562 = vst [vmem:[#allocation2 + $0x188] sm:$0xff] %v3434
  %3563 = vst [vmem:[#allocation2 + $0x190] sm:$0xff] %v3435
  %3564 = vst [vmem:[#allocation2 + $0x198] sm:$0xff] %v3436
  %3565 = vst [vmem:[#allocation2 + $0x1a0] sm:$0xff] %v3437
  %3566 = vst [vmem:[#allocation2 + $0x1a8] sm:$0xff] %v3438
  %3567 = vst [vmem:[#allocation2 + $0x1b0] sm:$0xff] %v3439
  %3568 = vst [vmem:[#allocation2 + $0x1b8] sm:$0xff] %v3440
  %3569 = vst [vmem:[#allocation2 + $0x1c0] sm:$0xff] %v3441
  %3570 = vst [vmem:[#allocation2 + $0x1c8] sm:$0xff] %v3442
  %3571 = vst [vmem:[#allocation2 + $0x1d0] sm:$0xff] %v3443
  %3572 = vst [vmem:[#allocation2 + $0x1d8] sm:$0xff] %v3444
  %3573 = vst [vmem:[#allocation2 + $0x1e0] sm:$0xff] %v3445
  %3574 = vst [vmem:[#allocation2 + $0x1e8] sm:$0xff] %v3446
  %3575 = vst [vmem:[#allocation2 + $0x1f0] sm:$0xff] %v3447
  %3576 = vst [vmem:[#allocation2 + $0x1f8] sm:$0xff] %v3448
  %3577 = vst [vmem:[#allocation2 + $0x200] sm:$0xff] %v3449
  %3578 = vst [vmem:[#allocation2 + $0x208] sm:$0xff] %v3450
  %3579 = vst [vmem:[#allocation2 + $0x210] sm:$0xff] %v3451
  %3580 = vst [vmem:[#allocation2 + $0x218] sm:$0xff] %v3452
  %3581 = vst [vmem:[#allocation2 + $0x220] sm:$0xff] %v3453
  %3582 = vst [vmem:[#allocation2 + $0x228] sm:$0xff] %v3454
  %3583 = vst [vmem:[#allocation2 + $0x230] sm:$0xff] %v3455
  %3584 = vst [vmem:[#allocation2 + $0x238] sm:$0xff] %v3456
  %3585 = vst [vmem:[#allocation2 + $0x240] sm:$0xff] %v3457
  %3586 = vst [vmem:[#allocation2 + $0x248] sm:$0xff] %v3458
  %3587 = vst [vmem:[#allocation2 + $0x250] sm:$0xff] %v3459
  %3588 = vst [vmem:[#allocation2 + $0x258] sm:$0xff] %v3460
  %3589 = vst [vmem:[#allocation2 + $0x260] sm:$0xff] %v3461
  %3590 = vst [vmem:[#allocation2 + $0x268] sm:$0xff] %v3462
  %3591 = vst [vmem:[#allocation2 + $0x270] sm:$0xff] %v3463
  %3592 = vst [vmem:[#allocation2 + $0x278] sm:$0xff] %v3464
  %3593 = vst [vmem:[#allocation2 + $0x280] sm:$0xff] %v3465
  %3594 = vst [vmem:[#allocation2 + $0x288] sm:$0xff] %v3466
  %3595 = vst [vmem:[#allocation2 + $0x290] sm:$0xff] %v3467
  %3596 = vst [vmem:[#allocation2 + $0x298] sm:$0xff] %v3468
  %3597 = vst [vmem:[#allocation2 + $0x2a0] sm:$0xff] %v3469
  %3598 = vst [vmem:[#allocation2 + $0x2a8] sm:$0xff] %v3470
  %3599 = vst [vmem:[#allocation2 + $0x2b0] sm:$0xff] %v3471
  %3600 = vst [vmem:[#allocation2 + $0x2b8] sm:$0xff] %v3472
  %3601 = vst [vmem:[#allocation2 + $0x2c0] sm:$0xff] %v3473
  %3602 = vst [vmem:[#allocation2 + $0x2c8] sm:$0xff] %v3474
  %3603 = vst [vmem:[#allocation2 + $0x2d0] sm:$0xff] %v3475
  %3604 = vst [vmem:[#allocation2 + $0x2d8] sm:$0xff] %v3476
  %3605 = vst [vmem:[#allocation2 + $0x2e0] sm:$0xff] %v3477
  %3606 = vst [vmem:[#allocation2 + $0x2e8] sm:$0xff] %v3478
  %3607 = vst [vmem:[#allocation2 + $0x2f0] sm:$0xff] %v3479
  %3608 = vst [vmem:[#allocation2 + $0x2f8] sm:$0xff] %v3480
  %3609 = vst [vmem:[#allocation2 + $0x300] sm:$0xff] %v3481
  %3610 = vst [vmem:[#allocation2 + $0x308] sm:$0xff] %v3482
  %3611 = vst [vmem:[#allocation2 + $0x310] sm:$0xff] %v3483
  %3612 = vst [vmem:[#allocation2 + $0x318] sm:$0xff] %v3484
  %3613 = vst [vmem:[#allocation2 + $0x320] sm:$0xff] %v3485
  %3614 = vst [vmem:[#allocation2 + $0x328] sm:$0xff] %v3486
  %3615 = vst [vmem:[#allocation2 + $0x330] sm:$0xff] %v3487
  %3616 = vst [vmem:[#allocation2 + $0x338] sm:$0xff] %v3488
  %3617 = vst [vmem:[#allocation2 + $0x340] sm:$0xff] %v3489
  %3618 = vst [vmem:[#allocation2 + $0x348] sm:$0xff] %v3490
  %3619 = vst [vmem:[#allocation2 + $0x350] sm:$0xff] %v3491
  %3620 = vst [vmem:[#allocation2 + $0x358] sm:$0xff] %v3492
  %3621 = vst [vmem:[#allocation2 + $0x360] sm:$0xff] %v3493
  %3622 = vst [vmem:[#allocation2 + $0x368] sm:$0xff] %v3494
  %3623 = vst [vmem:[#allocation2 + $0x370] sm:$0xff] %v3495
  %3624 = vst [vmem:[#allocation2 + $0x378] sm:$0xff] %v3496
  %3625 = vst [vmem:[#allocation2 + $0x380] sm:$0xff] %v3497
  %3626 = vst [vmem:[#allocation2 + $0x388] sm:$0xff] %v3498
  %3627 = vst [vmem:[#allocation2 + $0x390] sm:$0xff] %v3499
  %3628 = vst [vmem:[#allocation2 + $0x398] sm:$0xff] %v3500
  %3629 = vst [vmem:[#allocation2 + $0x3a0] sm:$0xff] %v3501
  %3630 = vst [vmem:[#allocation2 + $0x3a8] sm:$0xff] %v3502
  %3631 = vst [vmem:[#allocation2 + $0x3b0] sm:$0xff] %v3503
  %3632 = vst [vmem:[#allocation2 + $0x3b8] sm:$0xff] %v3504
  %3633 = vst [vmem:[#allocation2 + $0x3c0] sm:$0xff] %v3505
  %3634 = vst [vmem:[#allocation2 + $0x3c8] sm:$0xff] %v3506
  %3635 = vst [vmem:[#allocation2 + $0x3d0] sm:$0xff] %v3507
  %3636 = vst [vmem:[#allocation2 + $0x3d8] sm:$0xff] %v3508
  %3637 = vst [vmem:[#allocation2 + $0x3e0] sm:$0xff] %v3509
  %3638 = vst [vmem:[#allocation2 + $0x3e8] sm:$0xff] %v3510
  %3639 = vst [vmem:[#allocation2 + $0x3f0] sm:$0xff] %v3511
  %3640 = vst [vmem:[#allocation2 + $0x3f8] sm:$0xff] %v3512
  // Predicated region
  $region22: #{discriminator_forward.6} parent=0 // pred_check
    %p3641 = pneg %p17
  $region23: #{discriminator_forward.6} parent=0 // pred_check_branch
    %3643 = sbr.rel (%p3641) target = $region25
  $region24: #{discriminator_forward.6} parent=0 // pred_region
    %v3644 = vld [vmem:[#allocation2] sm:$0xff]
    %v3645 = vld [vmem:[#allocation2 + $0x8] sm:$0xff]
    %v3646 = vld [vmem:[#allocation2 + $0x10] sm:$0xff]
    %v3647 = vld [vmem:[#allocation2 + $0x18] sm:$0xff]
    %v3648 = vld [vmem:[#allocation2 + $0x20] sm:$0xff]
    %v3649 = vld [vmem:[#allocation2 + $0x28] sm:$0xff]
    %v3650 = vld [vmem:[#allocation2 + $0x30] sm:$0xff]
    %v3651 = vld [vmem:[#allocation2 + $0x38] sm:$0xff]
    %v3652 = vld [vmem:[#allocation2 + $0x40] sm:$0xff]
    %v3653 = vld [vmem:[#allocation2 + $0x48] sm:$0xff]
    %v3654 = vld [vmem:[#allocation2 + $0x50] sm:$0xff]
    %v3655 = vld [vmem:[#allocation2 + $0x58] sm:$0xff]
    %v3656 = vld [vmem:[#allocation2 + $0x60] sm:$0xff]
    %v3657 = vld [vmem:[#allocation2 + $0x68] sm:$0xff]
    %v3658 = vld [vmem:[#allocation2 + $0x70] sm:$0xff]
    %v3659 = vld [vmem:[#allocation2 + $0x78] sm:$0xff]
    %v3660 = vld [vmem:[#allocation2 + $0x80] sm:$0xff]
    %v3661 = vld [vmem:[#allocation2 + $0x88] sm:$0xff]
    %v3662 = vld [vmem:[#allocation2 + $0x90] sm:$0xff]
    %v3663 = vld [vmem:[#allocation2 + $0x98] sm:$0xff]
    %v3664 = vld [vmem:[#allocation2 + $0xa0] sm:$0xff]
    %v3665 = vld [vmem:[#allocation2 + $0xa8] sm:$0xff]
    %v3666 = vld [vmem:[#allocation2 + $0xb0] sm:$0xff]
    %v3667 = vld [vmem:[#allocation2 + $0xb8] sm:$0xff]
    %v3668 = vld [vmem:[#allocation2 + $0xc0] sm:$0xff]
    %v3669 = vld [vmem:[#allocation2 + $0xc8] sm:$0xff]
    %v3670 = vld [vmem:[#allocation2 + $0xd0] sm:$0xff]
    %v3671 = vld [vmem:[#allocation2 + $0xd8] sm:$0xff]
    %v3672 = vld [vmem:[#allocation2 + $0xe0] sm:$0xff]
    %v3673 = vld [vmem:[#allocation2 + $0xe8] sm:$0xff]
    %v3674 = vld [vmem:[#allocation2 + $0xf0] sm:$0xff]
    %v3675 = vld [vmem:[#allocation2 + $0xf8] sm:$0xff]
    %v3676 = vld [vmem:[#allocation2 + $0x100] sm:$0xff]
    %v3677 = vld [vmem:[#allocation2 + $0x108] sm:$0xff]
    %v3678 = vld [vmem:[#allocation2 + $0x110] sm:$0xff]
    %v3679 = vld [vmem:[#allocation2 + $0x118] sm:$0xff]
    %v3680 = vld [vmem:[#allocation2 + $0x120] sm:$0xff]
    %v3681 = vld [vmem:[#allocation2 + $0x128] sm:$0xff]
    %v3682 = vld [vmem:[#allocation2 + $0x130] sm:$0xff]
    %v3683 = vld [vmem:[#allocation2 + $0x138] sm:$0xff]
    %v3684 = vld [vmem:[#allocation2 + $0x140] sm:$0xff]
    %v3685 = vld [vmem:[#allocation2 + $0x148] sm:$0xff]
    %v3686 = vld [vmem:[#allocation2 + $0x150] sm:$0xff]
    %v3687 = vld [vmem:[#allocation2 + $0x158] sm:$0xff]
    %v3688 = vld [vmem:[#allocation2 + $0x160] sm:$0xff]
    %v3689 = vld [vmem:[#allocation2 + $0x168] sm:$0xff]
    %v3690 = vld [vmem:[#allocation2 + $0x170] sm:$0xff]
    %v3691 = vld [vmem:[#allocation2 + $0x178] sm:$0xff]
    %v3692 = vld [vmem:[#allocation2 + $0x180] sm:$0xff]
    %v3693 = vld [vmem:[#allocation2 + $0x188] sm:$0xff]
    %v3694 = vld [vmem:[#allocation2 + $0x190] sm:$0xff]
    %v3695 = vld [vmem:[#allocation2 + $0x198] sm:$0xff]
    %v3696 = vld [vmem:[#allocation2 + $0x1a0] sm:$0xff]
    %v3697 = vld [vmem:[#allocation2 + $0x1a8] sm:$0xff]
    %v3698 = vld [vmem:[#allocation2 + $0x1b0] sm:$0xff]
    %v3699 = vld [vmem:[#allocation2 + $0x1b8] sm:$0xff]
    %v3700 = vld [vmem:[#allocation2 + $0x1c0] sm:$0xff]
    %v3701 = vld [vmem:[#allocation2 + $0x1c8] sm:$0xff]
    %v3702 = vld [vmem:[#allocation2 + $0x1d0] sm:$0xff]
    %v3703 = vld [vmem:[#allocation2 + $0x1d8] sm:$0xff]
    %v3704 = vld [vmem:[#allocation2 + $0x1e0] sm:$0xff]
    %v3705 = vld [vmem:[#allocation2 + $0x1e8] sm:$0xff]
    %v3706 = vld [vmem:[#allocation2 + $0x1f0] sm:$0xff]
    %v3707 = vld [vmem:[#allocation2 + $0x1f8] sm:$0xff]
    %v3708 = vld [vmem:[#allocation2 + $0x200] sm:$0xff]
    %v3709 = vld [vmem:[#allocation2 + $0x208] sm:$0xff]
    %v3710 = vld [vmem:[#allocation2 + $0x210] sm:$0xff]
    %v3711 = vld [vmem:[#allocation2 + $0x218] sm:$0xff]
    %v3712 = vld [vmem:[#allocation2 + $0x220] sm:$0xff]
    %v3713 = vld [vmem:[#allocation2 + $0x228] sm:$0xff]
    %v3714 = vld [vmem:[#allocation2 + $0x230] sm:$0xff]
    %v3715 = vld [vmem:[#allocation2 + $0x238] sm:$0xff]
    %v3716 = vld [vmem:[#allocation2 + $0x240] sm:$0xff]
    %v3717 = vld [vmem:[#allocation2 + $0x248] sm:$0xff]
    %v3718 = vld [vmem:[#allocation2 + $0x250] sm:$0xff]
    %v3719 = vld [vmem:[#allocation2 + $0x258] sm:$0xff]
    %v3720 = vld [vmem:[#allocation2 + $0x260] sm:$0xff]
    %v3721 = vld [vmem:[#allocation2 + $0x268] sm:$0xff]
    %v3722 = vld [vmem:[#allocation2 + $0x270] sm:$0xff]
    %v3723 = vld [vmem:[#allocation2 + $0x278] sm:$0xff]
    %v3724 = vld [vmem:[#allocation2 + $0x280] sm:$0xff]
    %v3725 = vld [vmem:[#allocation2 + $0x288] sm:$0xff]
    %v3726 = vld [vmem:[#allocation2 + $0x290] sm:$0xff]
    %v3727 = vld [vmem:[#allocation2 + $0x298] sm:$0xff]
    %v3728 = vld [vmem:[#allocation2 + $0x2a0] sm:$0xff]
    %v3729 = vld [vmem:[#allocation2 + $0x2a8] sm:$0xff]
    %v3730 = vld [vmem:[#allocation2 + $0x2b0] sm:$0xff]
    %v3731 = vld [vmem:[#allocation2 + $0x2b8] sm:$0xff]
    %v3732 = vld [vmem:[#allocation2 + $0x2c0] sm:$0xff]
    %v3733 = vld [vmem:[#allocation2 + $0x2c8] sm:$0xff]
    %v3734 = vld [vmem:[#allocation2 + $0x2d0] sm:$0xff]
    %v3735 = vld [vmem:[#allocation2 + $0x2d8] sm:$0xff]
    %v3736 = vld [vmem:[#allocation2 + $0x2e0] sm:$0xff]
    %v3737 = vld [vmem:[#allocation2 + $0x2e8] sm:$0xff]
    %v3738 = vld [vmem:[#allocation2 + $0x2f0] sm:$0xff]
    %v3739 = vld [vmem:[#allocation2 + $0x2f8] sm:$0xff]
    %v3740 = vld [vmem:[#allocation2 + $0x300] sm:$0xff]
    %v3741 = vld [vmem:[#allocation2 + $0x308] sm:$0xff]
    %v3742 = vld [vmem:[#allocation2 + $0x310] sm:$0xff]
    %v3743 = vld [vmem:[#allocation2 + $0x318] sm:$0xff]
    %v3744 = vld [vmem:[#allocation2 + $0x320] sm:$0xff]
    %v3745 = vld [vmem:[#allocation2 + $0x328] sm:$0xff]
    %v3746 = vld [vmem:[#allocation2 + $0x330] sm:$0xff]
    %v3747 = vld [vmem:[#allocation2 + $0x338] sm:$0xff]
    %v3748 = vld [vmem:[#allocation2 + $0x340] sm:$0xff]
    %v3749 = vld [vmem:[#allocation2 + $0x348] sm:$0xff]
    %v3750 = vld [vmem:[#allocation2 + $0x350] sm:$0xff]
    %v3751 = vld [vmem:[#allocation2 + $0x358] sm:$0xff]
    %v3752 = vld [vmem:[#allocation2 + $0x360] sm:$0xff]
    %v3753 = vld [vmem:[#allocation2 + $0x368] sm:$0xff]
    %v3754 = vld [vmem:[#allocation2 + $0x370] sm:$0xff]
    %v3755 = vld [vmem:[#allocation2 + $0x378] sm:$0xff]
    %v3756 = vld [vmem:[#allocation2 + $0x380] sm:$0xff]
    %v3757 = vld [vmem:[#allocation2 + $0x388] sm:$0xff]
    %v3758 = vld [vmem:[#allocation2 + $0x390] sm:$0xff]
    %v3759 = vld [vmem:[#allocation2 + $0x398] sm:$0xff]
    %v3760 = vld [vmem:[#allocation2 + $0x3a0] sm:$0xff]
    %v3761 = vld [vmem:[#allocation2 + $0x3a8] sm:$0xff]
    %v3762 = vld [vmem:[#allocation2 + $0x3b0] sm:$0xff]
    %v3763 = vld [vmem:[#allocation2 + $0x3b8] sm:$0xff]
    %v3764 = vld [vmem:[#allocation2 + $0x3c0] sm:$0xff]
    %v3765 = vld [vmem:[#allocation2 + $0x3c8] sm:$0xff]
    %v3766 = vld [vmem:[#allocation2 + $0x3d0] sm:$0xff]
    %v3767 = vld [vmem:[#allocation2 + $0x3d8] sm:$0xff]
    %v3768 = vld [vmem:[#allocation2 + $0x3e0] sm:$0xff]
    %v3769 = vld [vmem:[#allocation2 + $0x3e8] sm:$0xff]
    %v3770 = vld [vmem:[#allocation2 + $0x3f0] sm:$0xff]
    %v3771 = vld [vmem:[#allocation2 + $0x3f8] sm:$0xff]
    %v3772 = vadd.f32 %v3644, %v3645
    %v3773 = vadd.f32 %v3772, %v3646
    %v3774 = vadd.f32 %v3773, %v3647
    %v3775 = vadd.f32 %v3774, %v3648
    %v3776 = vadd.f32 %v3775, %v3649
    %v3777 = vadd.f32 %v3776, %v3650
    %v3778 = vadd.f32 %v3777, %v3651
    %v3779 = vadd.f32 %v3778, %v3652
    %v3780 = vadd.f32 %v3779, %v3653
    %v3781 = vadd.f32 %v3780, %v3654
    %v3782 = vadd.f32 %v3781, %v3655
    %v3783 = vadd.f32 %v3782, %v3656
    %v3784 = vadd.f32 %v3783, %v3657
    %v3785 = vadd.f32 %v3784, %v3658
    %v3786 = vadd.f32 %v3785, %v3659
    %v3787 = vadd.f32 %v3786, %v3660
    %v3788 = vadd.f32 %v3787, %v3661
    %v3789 = vadd.f32 %v3788, %v3662
    %v3790 = vadd.f32 %v3789, %v3663
    %v3791 = vadd.f32 %v3790, %v3664
    %v3792 = vadd.f32 %v3791, %v3665
    %v3793 = vadd.f32 %v3792, %v3666
    %v3794 = vadd.f32 %v3793, %v3667
    %v3795 = vadd.f32 %v3794, %v3668
    %v3796 = vadd.f32 %v3795, %v3669
    %v3797 = vadd.f32 %v3796, %v3670
    %v3798 = vadd.f32 %v3797, %v3671
    %v3799 = vadd.f32 %v3798, %v3672
    %v3800 = vadd.f32 %v3799, %v3673
    %v3801 = vadd.f32 %v3800, %v3674
    %v3802 = vadd.f32 %v3801, %v3675
    %v3803 = vadd.f32 %v3802, %v3676
    %v3804 = vadd.f32 %v3803, %v3677
    %v3805 = vadd.f32 %v3804, %v3678
    %v3806 = vadd.f32 %v3805, %v3679
    %v3807 = vadd.f32 %v3806, %v3680
    %v3808 = vadd.f32 %v3807, %v3681
    %v3809 = vadd.f32 %v3808, %v3682
    %v3810 = vadd.f32 %v3809, %v3683
    %v3811 = vadd.f32 %v3810, %v3684
    %v3812 = vadd.f32 %v3811, %v3685
    %v3813 = vadd.f32 %v3812, %v3686
    %v3814 = vadd.f32 %v3813, %v3687
    %v3815 = vadd.f32 %v3814, %v3688
    %v3816 = vadd.f32 %v3815, %v3689
    %v3817 = vadd.f32 %v3816, %v3690
    %v3818 = vadd.f32 %v3817, %v3691
    %v3819 = vadd.f32 %v3818, %v3692
    %v3820 = vadd.f32 %v3819, %v3693
    %v3821 = vadd.f32 %v3820, %v3694
    %v3822 = vadd.f32 %v3821, %v3695
    %v3823 = vadd.f32 %v3822, %v3696
    %v3824 = vadd.f32 %v3823, %v3697
    %v3825 = vadd.f32 %v3824, %v3698
    %v3826 = vadd.f32 %v3825, %v3699
    %v3827 = vadd.f32 %v3826, %v3700
    %v3828 = vadd.f32 %v3827, %v3701
    %v3829 = vadd.f32 %v3828, %v3702
    %v3830 = vadd.f32 %v3829, %v3703
    %v3831 = vadd.f32 %v3830, %v3704
    %v3832 = vadd.f32 %v3831, %v3705
    %v3833 = vadd.f32 %v3832, %v3706
    %v3834 = vadd.f32 %v3833, %v3707
    %v3835 = vadd.f32 %v3834, %v3708
    %v3836 = vadd.f32 %v3835, %v3709
    %v3837 = vadd.f32 %v3836, %v3710
    %v3838 = vadd.f32 %v3837, %v3711
    %v3839 = vadd.f32 %v3838, %v3712
    %v3840 = vadd.f32 %v3839, %v3713
    %v3841 = vadd.f32 %v3840, %v3714
    %v3842 = vadd.f32 %v3841, %v3715
    %v3843 = vadd.f32 %v3842, %v3716
    %v3844 = vadd.f32 %v3843, %v3717
    %v3845 = vadd.f32 %v3844, %v3718
    %v3846 = vadd.f32 %v3845, %v3719
    %v3847 = vadd.f32 %v3846, %v3720
    %v3848 = vadd.f32 %v3847, %v3721
    %v3849 = vadd.f32 %v3848, %v3722
    %v3850 = vadd.f32 %v3849, %v3723
    %v3851 = vadd.f32 %v3850, %v3724
    %v3852 = vadd.f32 %v3851, %v3725
    %v3853 = vadd.f32 %v3852, %v3726
    %v3854 = vadd.f32 %v3853, %v3727
    %v3855 = vadd.f32 %v3854, %v3728
    %v3856 = vadd.f32 %v3855, %v3729
    %v3857 = vadd.f32 %v3856, %v3730
    %v3858 = vadd.f32 %v3857, %v3731
    %v3859 = vadd.f32 %v3858, %v3732
    %v3860 = vadd.f32 %v3859, %v3733
    %v3861 = vadd.f32 %v3860, %v3734
    %v3862 = vadd.f32 %v3861, %v3735
    %v3863 = vadd.f32 %v3862, %v3736
    %v3864 = vadd.f32 %v3863, %v3737
    %v3865 = vadd.f32 %v3864, %v3738
    %v3866 = vadd.f32 %v3865, %v3739
    %v3867 = vadd.f32 %v3866, %v3740
    %v3868 = vadd.f32 %v3867, %v3741
    %v3869 = vadd.f32 %v3868, %v3742
    %v3870 = vadd.f32 %v3869, %v3743
    %v3871 = vadd.f32 %v3870, %v3744
    %v3872 = vadd.f32 %v3871, %v3745
    %v3873 = vadd.f32 %v3872, %v3746
    %v3874 = vadd.f32 %v3873, %v3747
    %v3875 = vadd.f32 %v3874, %v3748
    %v3876 = vadd.f32 %v3875, %v3749
    %v3877 = vadd.f32 %v3876, %v3750
    %v3878 = vadd.f32 %v3877, %v3751
    %v3879 = vadd.f32 %v3878, %v3752
    %v3880 = vadd.f32 %v3879, %v3753
    %v3881 = vadd.f32 %v3880, %v3754
    %v3882 = vadd.f32 %v3881, %v3755
    %v3883 = vadd.f32 %v3882, %v3756
    %v3884 = vadd.f32 %v3883, %v3757
    %v3885 = vadd.f32 %v3884, %v3758
    %v3886 = vadd.f32 %v3885, %v3759
    %v3887 = vadd.f32 %v3886, %v3760
    %v3888 = vadd.f32 %v3887, %v3761
    %v3889 = vadd.f32 %v3888, %v3762
    %v3890 = vadd.f32 %v3889, %v3763
    %v3891 = vadd.f32 %v3890, %v3764
    %v3892 = vadd.f32 %v3891, %v3765
    %v3893 = vadd.f32 %v3892, %v3766
    %v3894 = vadd.f32 %v3893, %v3767
    %v3895 = vadd.f32 %v3894, %v3768
    %v3896 = vadd.f32 %v3895, %v3769
    %v3897 = vadd.f32 %v3896, %v3770
    %v3898 = vadd.f32 %v3897, %v3771
    %v3899 = vrot.slane %v3898, 4
    %v3900 = vadd.f32 %v3898, %v3899
    %v3901 = vrot.slane %v3900, 2
    %v3902 = vadd.f32 %v3900, %v3901
    %v3903 = vrot.slane %v3902, 1
    %v3904 = vadd.f32 %v3902, %v3903
    %v3905 = vmul.f32 %v3904, 0.0009765625
    %v3906 = vmul.f32 %v3644, %v3644
    %v3907 = vmul.f32 %v3645, %v3645
    %v3908 = vmul.f32 %v3646, %v3646
    %v3909 = vmul.f32 %v3647, %v3647
    %v3910 = vmul.f32 %v3648, %v3648
    %v3911 = vmul.f32 %v3649, %v3649
    %v3912 = vmul.f32 %v3650, %v3650
    %v3913 = vmul.f32 %v3651, %v3651
    %v3914 = vmul.f32 %v3652, %v3652
    %v3915 = vmul.f32 %v3653, %v3653
    %v3916 = vmul.f32 %v3654, %v3654
    %v3917 = vmul.f32 %v3655, %v3655
    %v3918 = vmul.f32 %v3656, %v3656
    %v3919 = vmul.f32 %v3657, %v3657
    %v3920 = vmul.f32 %v3658, %v3658
    %v3921 = vmul.f32 %v3659, %v3659
    %v3922 = vmul.f32 %v3660, %v3660
    %v3923 = vmul.f32 %v3661, %v3661
    %v3924 = vmul.f32 %v3662, %v3662
    %v3925 = vmul.f32 %v3663, %v3663
    %v3926 = vmul.f32 %v3664, %v3664
    %v3927 = vmul.f32 %v3665, %v3665
    %v3928 = vmul.f32 %v3666, %v3666
    %v3929 = vmul.f32 %v3667, %v3667
    %v3930 = vmul.f32 %v3668, %v3668
    %v3931 = vmul.f32 %v3669, %v3669
    %v3932 = vmul.f32 %v3670, %v3670
    %v3933 = vmul.f32 %v3671, %v3671
    %v3934 = vmul.f32 %v3672, %v3672
    %v3935 = vmul.f32 %v3673, %v3673
    %v3936 = vmul.f32 %v3674, %v3674
    %v3937 = vmul.f32 %v3675, %v3675
    %v3938 = vmul.f32 %v3676, %v3676
    %v3939 = vmul.f32 %v3677, %v3677
    %v3940 = vmul.f32 %v3678, %v3678
    %v3941 = vmul.f32 %v3679, %v3679
    %v3942 = vmul.f32 %v3680, %v3680
    %v3943 = vmul.f32 %v3681, %v3681
    %v3944 = vmul.f32 %v3682, %v3682
    %v3945 = vmul.f32 %v3683, %v3683
    %v3946 = vmul.f32 %v3684, %v3684
    %v3947 = vmul.f32 %v3685, %v3685
    %v3948 = vmul.f32 %v3686, %v3686
    %v3949 = vmul.f32 %v3687, %v3687
    %v3950 = vmul.f32 %v3688, %v3688
    %v3951 = vmul.f32 %v3689, %v3689
    %v3952 = vmul.f32 %v3690, %v3690
    %v3953 = vmul.f32 %v3691, %v3691
    %v3954 = vmul.f32 %v3692, %v3692
    %v3955 = vmul.f32 %v3693, %v3693
    %v3956 = vmul.f32 %v3694, %v3694
    %v3957 = vmul.f32 %v3695, %v3695
    %v3958 = vmul.f32 %v3696, %v3696
    %v3959 = vmul.f32 %v3697, %v3697
    %v3960 = vmul.f32 %v3698, %v3698
    %v3961 = vmul.f32 %v3699, %v3699
    %v3962 = vmul.f32 %v3700, %v3700
    %v3963 = vmul.f32 %v3701, %v3701
    %v3964 = vmul.f32 %v3702, %v3702
    %v3965 = vmul.f32 %v3703, %v3703
    %v3966 = vmul.f32 %v3704, %v3704
    %v3967 = vmul.f32 %v3705, %v3705
    %v3968 = vmul.f32 %v3706, %v3706
    %v3969 = vmul.f32 %v3707, %v3707
    %v3970 = vmul.f32 %v3708, %v3708
    %v3971 = vmul.f32 %v3709, %v3709
    %v3972 = vmul.f32 %v3710, %v3710
    %v3973 = vmul.f32 %v3711, %v3711
    %v3974 = vmul.f32 %v3712, %v3712
    %v3975 = vmul.f32 %v3713, %v3713
    %v3976 = vmul.f32 %v3714, %v3714
    %v3977 = vmul.f32 %v3715, %v3715
    %v3978 = vmul.f32 %v3716, %v3716
    %v3979 = vmul.f32 %v3717, %v3717
    %v3980 = vmul.f32 %v3718, %v3718
    %v3981 = vmul.f32 %v3719, %v3719
    %v3982 = vmul.f32 %v3720, %v3720
    %v3983 = vmul.f32 %v3721, %v3721
    %v3984 = vmul.f32 %v3722, %v3722
    %v3985 = vmul.f32 %v3723, %v3723
    %v3986 = vmul.f32 %v3724, %v3724
    %v3987 = vmul.f32 %v3725, %v3725
    %v3988 = vmul.f32 %v3726, %v3726
    %v3989 = vmul.f32 %v3727, %v3727
    %v3990 = vmul.f32 %v3728, %v3728
    %v3991 = vmul.f32 %v3729, %v3729
    %v3992 = vmul.f32 %v3730, %v3730
    %v3993 = vmul.f32 %v3731, %v3731
    %v3994 = vmul.f32 %v3732, %v3732
    %v3995 = vmul.f32 %v3733, %v3733
    %v3996 = vmul.f32 %v3734, %v3734
    %v3997 = vmul.f32 %v3735, %v3735
    %v3998 = vmul.f32 %v3736, %v3736
    %v3999 = vmul.f32 %v3737, %v3737
    %v4000 = vmul.f32 %v3738, %v3738
    %v4001 = vmul.f32 %v3739, %v3739
    %v4002 = vmul.f32 %v3740, %v3740
    %v4003 = vmul.f32 %v3741, %v3741
    %v4004 = vmul.f32 %v3742, %v3742
    %v4005 = vmul.f32 %v3743, %v3743
    %v4006 = vmul.f32 %v3744, %v3744
    %v4007 = vmul.f32 %v3745, %v3745
    %v4008 = vmul.f32 %v3746, %v3746
    %v4009 = vmul.f32 %v3747, %v3747
    %v4010 = vmul.f32 %v3748, %v3748
    %v4011 = vmul.f32 %v3749, %v3749
    %v4012 = vmul.f32 %v3750, %v3750
    %v4013 = vmul.f32 %v3751, %v3751
    %v4014 = vmul.f32 %v3752, %v3752
    %v4015 = vmul.f32 %v3753, %v3753
    %v4016 = vmul.f32 %v3754, %v3754
    %v4017 = vmul.f32 %v3755, %v3755
    %v4018 = vmul.f32 %v3756, %v3756
    %v4019 = vmul.f32 %v3757, %v3757
    %v4020 = vmul.f32 %v3758, %v3758
    %v4021 = vmul.f32 %v3759, %v3759
    %v4022 = vmul.f32 %v3760, %v3760
    %v4023 = vmul.f32 %v3761, %v3761
    %v4024 = vmul.f32 %v3762, %v3762
    %v4025 = vmul.f32 %v3763, %v3763
    %v4026 = vmul.f32 %v3764, %v3764
    %v4027 = vmul.f32 %v3765, %v3765
    %v4028 = vmul.f32 %v3766, %v3766
    %v4029 = vmul.f32 %v3767, %v3767
    %v4030 = vmul.f32 %v3768, %v3768
    %v4031 = vmul.f32 %v3769, %v3769
    %v4032 = vmul.f32 %v3770, %v3770
    %v4033 = vmul.f32 %v3771, %v3771
    %v4034 = vadd.f32 %v3906, %v3907
    %v4035 = vadd.f32 %v4034, %v3908
    %v4036 = vadd.f32 %v4035, %v3909
    %v4037 = vadd.f32 %v4036, %v3910
    %v4038 = vadd.f32 %v4037, %v3911
    %v4039 = vadd.f32 %v4038, %v3912
    %v4040 = vadd.f32 %v4039, %v3913
    %v4041 = vadd.f32 %v4040, %v3914
    %v4042 = vadd.f32 %v4041, %v3915
    %v4043 = vadd.f32 %v4042, %v3916
    %v4044 = vadd.f32 %v4043, %v3917
    %v4045 = vadd.f32 %v4044, %v3918
    %v4046 = vadd.f32 %v4045, %v3919
    %v4047 = vadd.f32 %v4046, %v3920
    %v4048 = vadd.f32 %v4047, %v3921
    %v4049 = vadd.f32 %v4048, %v3922
    %v4050 = vadd.f32 %v4049, %v3923
    %v4051 = vadd.f32 %v4050, %v3924
    %v4052 = vadd.f32 %v4051, %v3925
    %v4053 = vadd.f32 %v4052, %v3926
    %v4054 = vadd.f32 %v4053, %v3927
    %v4055 = vadd.f32 %v4054, %v3928
    %v4056 = vadd.f32 %v4055, %v3929
    %v4057 = vadd.f32 %v4056, %v3930
    %v4058 = vadd.f32 %v4057, %v3931
    %v4059 = vadd.f32 %v4058, %v3932
    %v4060 = vadd.f32 %v4059, %v3933
    %v4061 = vadd.f32 %v4060, %v3934
    %v4062 = vadd.f32 %v4061, %v3935
    %v4063 = vadd.f32 %v4062, %v3936
    %v4064 = vadd.f32 %v4063, %v3937
    %v4065 = vadd.f32 %v4064, %v3938
    %v4066 = vadd.f32 %v4065, %v3939
    %v4067 = vadd.f32 %v4066, %v3940
    %v4068 = vadd.f32 %v4067, %v3941
    %v4069 = vadd.f32 %v4068, %v3942
    %v4070 = vadd.f32 %v4069, %v3943
    %v4071 = vadd.f32 %v4070, %v3944
    %v4072 = vadd.f32 %v4071, %v3945
    %v4073 = vadd.f32 %v4072, %v3946
    %v4074 = vadd.f32 %v4073, %v3947
    %v4075 = vadd.f32 %v4074, %v3948
    %v4076 = vadd.f32 %v4075, %v3949
    %v4077 = vadd.f32 %v4076, %v3950
    %v4078 = vadd.f32 %v4077, %v3951
    %v4079 = vadd.f32 %v4078, %v3952
    %v4080 = vadd.f32 %v4079, %v3953
    %v4081 = vadd.f32 %v4080, %v3954
    %v4082 = vadd.f32 %v4081, %v3955
    %v4083 = vadd.f32 %v4082, %v3956
    %v4084 = vadd.f32 %v4083, %v3957
    %v4085 = vadd.f32 %v4084, %v3958
    %v4086 = vadd.f32 %v4085, %v3959
    %v4087 = vadd.f32 %v4086, %v3960
    %v4088 = vadd.f32 %v4087, %v3961
    %v4089 = vadd.f32 %v4088, %v3962
    %v4090 = vadd.f32 %v4089, %v3963
    %v4091 = vadd.f32 %v4090, %v3964
    %v4092 = vadd.f32 %v4091, %v3965
    %v4093 = vadd.f32 %v4092, %v3966
    %v4094 = vadd.f32 %v4093, %v3967
    %v4095 = vadd.f32 %v4094, %v3968
    %v4096 = vadd.f32 %v4095, %v3969
    %v4097 = vadd.f32 %v4096, %v3970
    %v4098 = vadd.f32 %v4097, %v3971
    %v4099 = vadd.f32 %v4098, %v3972
    %v4100 = vadd.f32 %v4099, %v3973
    %v4101 = vadd.f32 %v4100, %v3974
    %v4102 = vadd.f32 %v4101, %v3975
    %v4103 = vadd.f32 %v4102, %v3976
    %v4104 = vadd.f32 %v4103, %v3977
    %v4105 = vadd.f32 %v4104, %v3978
    %v4106 = vadd.f32 %v4105, %v3979
    %v4107 = vadd.f32 %v4106, %v3980
    %v4108 = vadd.f32 %v4107, %v3981
    %v4109 = vadd.f32 %v4108, %v3982
    %v4110 = vadd.f32 %v4109, %v3983
    %v4111 = vadd.f32 %v4110, %v3984
    %v4112 = vadd.f32 %v4111, %v3985
    %v4113 = vadd.f32 %v4112, %v3986
    %v4114 = vadd.f32 %v4113, %v3987
    %v4115 = vadd.f32 %v4114, %v3988
    %v4116 = vadd.f32 %v4115, %v3989
    %v4117 = vadd.f32 %v4116, %v3990
    %v4118 = vadd.f32 %v4117, %v3991
    %v4119 = vadd.f32 %v4118, %v3992
    %v4120 = vadd.f32 %v4119, %v3993
    %v4121 = vadd.f32 %v4120, %v3994
    %v4122 = vadd.f32 %v4121, %v3995
    %v4123 = vadd.f32 %v4122, %v3996
    %v4124 = vadd.f32 %v4123, %v3997
    %v4125 = vadd.f32 %v4124, %v3998
    %v4126 = vadd.f32 %v4125, %v3999
    %v4127 = vadd.f32 %v4126, %v4000
    %v4128 = vadd.f32 %v4127, %v4001
    %v4129 = vadd.f32 %v4128, %v4002
    %v4130 = vadd.f32 %v4129, %v4003
    %v4131 = vadd.f32 %v4130, %v4004
    %v4132 = vadd.f32 %v4131, %v4005
    %v4133 = vadd.f32 %v4132, %v4006
    %v4134 = vadd.f32 %v4133, %v4007
    %v4135 = vadd.f32 %v4134, %v4008
    %v4136 = vadd.f32 %v4135, %v4009
    %v4137 = vadd.f32 %v4136, %v4010
    %v4138 = vadd.f32 %v4137, %v4011
    %v4139 = vadd.f32 %v4138, %v4012
    %v4140 = vadd.f32 %v4139, %v4013
    %v4141 = vadd.f32 %v4140, %v4014
    %v4142 = vadd.f32 %v4141, %v4015
    %v4143 = vadd.f32 %v4142, %v4016
    %v4144 = vadd.f32 %v4143, %v4017
    %v4145 = vadd.f32 %v4144, %v4018
    %v4146 = vadd.f32 %v4145, %v4019
    %v4147 = vadd.f32 %v4146, %v4020
    %v4148 = vadd.f32 %v4147, %v4021
    %v4149 = vadd.f32 %v4148, %v4022
    %v4150 = vadd.f32 %v4149, %v4023
    %v4151 = vadd.f32 %v4150, %v4024
    %v4152 = vadd.f32 %v4151, %v4025
    %v4153 = vadd.f32 %v4152, %v4026
    %v4154 = vadd.f32 %v4153, %v4027
    %v4155 = vadd.f32 %v4154, %v4028
    %v4156 = vadd.f32 %v4155, %v4029
    %v4157 = vadd.f32 %v4156, %v4030
    %v4158 = vadd.f32 %v4157, %v4031
    %v4159 = vadd.f32 %v4158, %v4032
    %v4160 = vadd.f32 %v4159, %v4033
    %v4161 = vrot.slane %v4160, 4
    %v4162 = vadd.f32 %v4160, %v4161
    %v4163 = vrot.slane %v4162, 2
    %v4164 = vadd.f32 %v4162, %v4163
    %v4165 = vrot.slane %v4164, 1
    %v4166 = vadd.f32 %v4164, %v4165
    %v4167 = vmul.f32 %v4166, 0.0009765625
    %v4168 = vmul.f32 %v3905, %v3905
    %v4169 = vsub.f32 %v4167, %v4168
    %v4170 = vmax.f32 %v4169, 0.0
    %v4171 = vsub.f32 %v3644, %v3905
    %v4172 = vsub.f32 %v3645, %v3905
    %v4173 = vsub.f32 %v3646, %v3905
    %v4174 = vsub.f32 %v3647, %v3905
    %v4175 = vsub.f32 %v3648, %v3905
    %v4176 = vsub.f32 %v3649, %v3905
    %v4177 = vsub.f32 %v3650, %v3905
    %v4178 = vsub.f32 %v3651, %v3905
    %v4179 = vsub.f32 %v3652, %v3905
    %v4180 = vsub.f32 %v3653, %v3905
    %v4181 = vsub.f32 %v3654, %v3905
    %v4182 = vsub.f32 %v3655, %v3905
    %v4183 = vsub.f32 %v3656, %v3905
    %v4184 = vsub.f32 %v3657, %v3905
    %v4185 = vsub.f32 %v3658, %v3905
    %v4186 = vsub.f32 %v3659, %v3905
    %v4187 = vsub.f32 %v3660, %v3905
    %v4188 = vsub.f32 %v3661, %v3905
    %v4189 = vsub.f32 %v3662, %v3905
    %v4190 = vsub.f32 %v3663, %v3905
    %v4191 = vsub.f32 %v3664, %v3905
    %v4192 = vsub.f32 %v3665, %v3905
    %v4193 = vsub.f32 %v3666, %v3905
    %v4194 = vsub.f32 %v3667, %v3905
    %v4195 = vsub.f32 %v3668, %v3905
    %v4196 = vsub.f32 %v3669, %v3905
    %v4197 = vsub.f32 %v3670, %v3905
    %v4198 = vsub.f32 %v3671, %v3905
    %v4199 = vsub.f32 %v3672, %v3905
    %v4200 = vsub.f32 %v3673, %v3905
    %v4201 = vsub.f32 %v3674, %v3905
    %v4202 = vsub.f32 %v3675, %v3905
    %v4203 = vsub.f32 %v3676, %v3905
    %v4204 = vsub.f32 %v3677, %v3905
    %v4205 = vsub.f32 %v3678, %v3905
    %v4206 = vsub.f32 %v3679, %v3905
    %v4207 = vsub.f32 %v3680, %v3905
    %v4208 = vsub.f32 %v3681, %v3905
    %v4209 = vsub.f32 %v3682, %v3905
    %v4210 = vsub.f32 %v3683, %v3905
    %v4211 = vsub.f32 %v3684, %v3905
    %v4212 = vsub.f32 %v3685, %v3905
    %v4213 = vsub.f32 %v3686, %v3905
    %v4214 = vsub.f32 %v3687, %v3905
    %v4215 = vsub.f32 %v3688, %v3905
    %v4216 = vsub.f32 %v3689, %v3905
    %v4217 = vsub.f32 %v3690, %v3905
    %v4218 = vsub.f32 %v3691, %v3905
    %v4219 = vsub.f32 %v3692, %v3905
    %v4220 = vsub.f32 %v3693, %v3905
    %v4221 = vsub.f32 %v3694, %v3905
    %v4222 = vsub.f32 %v3695, %v3905
    %v4223 = vsub.f32 %v3696, %v3905
    %v4224 = vsub.f32 %v3697, %v3905
    %v4225 = vsub.f32 %v3698, %v3905
    %v4226 = vsub.f32 %v3699, %v3905
    %v4227 = vsub.f32 %v3700, %v3905
    %v4228 = vsub.f32 %v3701, %v3905
    %v4229 = vsub.f32 %v3702, %v3905
    %v4230 = vsub.f32 %v3703, %v3905
    %v4231 = vsub.f32 %v3704, %v3905
    %v4232 = vsub.f32 %v3705, %v3905
    %v4233 = vsub.f32 %v3706, %v3905
    %v4234 = vsub.f32 %v3707, %v3905
    %v4235 = vsub.f32 %v3708, %v3905
    %v4236 = vsub.f32 %v3709, %v3905
    %v4237 = vsub.f32 %v3710, %v3905
    %v4238 = vsub.f32 %v3711, %v3905
    %v4239 = vsub.f32 %v3712, %v3905
    %v4240 = vsub.f32 %v3713, %v3905
    %v4241 = vsub.f32 %v3714, %v3905
    %v4242 = vsub.f32 %v3715, %v3905
    %v4243 = vsub.f32 %v3716, %v3905
    %v4244 = vsub.f32 %v3717, %v3905
    %v4245 = vsub.f32 %v3718, %v3905
    %v4246 = vsub.f32 %v3719, %v3905
    %v4247 = vsub.f32 %v3720, %v3905
    %v4248 = vsub.f32 %v3721, %v3905
    %v4249 = vsub.f32 %v3722, %v3905
    %v4250 = vsub.f32 %v3723, %v3905
    %v4251 = vsub.f32 %v3724, %v3905
    %v4252 = vsub.f32 %v3725, %v3905
    %v4253 = vsub.f32 %v3726, %v3905
    %v4254 = vsub.f32 %v3727, %v3905
    %v4255 = vsub.f32 %v3728, %v3905
    %v4256 = vsub.f32 %v3729, %v3905
    %v4257 = vsub.f32 %v3730, %v3905
    %v4258 = vsub.f32 %v3731, %v3905
    %v4259 = vsub.f32 %v3732, %v3905
    %v4260 = vsub.f32 %v3733, %v3905
    %v4261 = vsub.f32 %v3734, %v3905
    %v4262 = vsub.f32 %v3735, %v3905
    %v4263 = vsub.f32 %v3736, %v3905
    %v4264 = vsub.f32 %v3737, %v3905
    %v4265 = vsub.f32 %v3738, %v3905
    %v4266 = vsub.f32 %v3739, %v3905
    %v4267 = vsub.f32 %v3740, %v3905
    %v4268 = vsub.f32 %v3741, %v3905
    %v4269 = vsub.f32 %v3742, %v3905
    %v4270 = vsub.f32 %v3743, %v3905
    %v4271 = vsub.f32 %v3744, %v3905
    %v4272 = vsub.f32 %v3745, %v3905
    %v4273 = vsub.f32 %v3746, %v3905
    %v4274 = vsub.f32 %v3747, %v3905
    %v4275 = vsub.f32 %v3748, %v3905
    %v4276 = vsub.f32 %v3749, %v3905
    %v4277 = vsub.f32 %v3750, %v3905
    %v4278 = vsub.f32 %v3751, %v3905
    %v4279 = vsub.f32 %v3752, %v3905
    %v4280 = vsub.f32 %v3753, %v3905
    %v4281 = vsub.f32 %v3754, %v3905
    %v4282 = vsub.f32 %v3755, %v3905
    %v4283 = vsub.f32 %v3756, %v3905
    %v4284 = vsub.f32 %v3757, %v3905
    %v4285 = vsub.f32 %v3758, %v3905
    %v4286 = vsub.f32 %v3759, %v3905
    %v4287 = vsub.f32 %v3760, %v3905
    %v4288 = vsub.f32 %v3761, %v3905
    %v4289 = vsub.f32 %v3762, %v3905
    %v4290 = vsub.f32 %v3763, %v3905
    %v4291 = vsub.f32 %v3764, %v3905
    %v4292 = vsub.f32 %v3765, %v3905
    %v4293 = vsub.f32 %v3766, %v3905
    %v4294 = vsub.f32 %v3767, %v3905
    %v4295 = vsub.f32 %v3768, %v3905
    %v4296 = vsub.f32 %v3769, %v3905
    %v4297 = vsub.f32 %v3770, %v3905
    %v4298 = vsub.f32 %v3771, %v3905
    %v4299 = vadd.f32 %v4170, 1e-05
    %v4300 = vrsqrt.pop %v4299
    %v4301 = vmul.f32 %v4300, %v4299
    %v4302 = vmul.f32 %v4301, %v4300
    %v4303 = vmul.f32 0.5, %v4302
    %v4304 = vsub.f32 1.5, %v4303
    %v4305 = vmul.f32 %v4300, %v4304
    %vm4306 = vweird.f32 %v4299
    %vm4307 = vweird.f32 %v4300
    %vm4308 = vmor %vm4306, %vm4307
    %v4309 = vsel %vm4308, %v4300, %v4305
    %v4310 = vmul.f32 %v4171, %v4309
    %v4311 = vmul.f32 %v4172, %v4309
    %v4312 = vmul.f32 %v4173, %v4309
    %v4313 = vmul.f32 %v4174, %v4309
    %v4314 = vmul.f32 %v4175, %v4309
    %v4315 = vmul.f32 %v4176, %v4309
    %v4316 = vmul.f32 %v4177, %v4309
    %v4317 = vmul.f32 %v4178, %v4309
    %v4318 = vmul.f32 %v4179, %v4309
    %v4319 = vmul.f32 %v4180, %v4309
    %v4320 = vmul.f32 %v4181, %v4309
    %v4321 = vmul.f32 %v4182, %v4309
    %v4322 = vmul.f32 %v4183, %v4309
    %v4323 = vmul.f32 %v4184, %v4309
    %v4324 = vmul.f32 %v4185, %v4309
    %v4325 = vmul.f32 %v4186, %v4309
    %v4326 = vmul.f32 %v4187, %v4309
    %v4327 = vmul.f32 %v4188, %v4309
    %v4328 = vmul.f32 %v4189, %v4309
    %v4329 = vmul.f32 %v4190, %v4309
    %v4330 = vmul.f32 %v4191, %v4309
    %v4331 = vmul.f32 %v4192, %v4309
    %v4332 = vmul.f32 %v4193, %v4309
    %v4333 = vmul.f32 %v4194, %v4309
    %v4334 = vmul.f32 %v4195, %v4309
    %v4335 = vmul.f32 %v4196, %v4309
    %v4336 = vmul.f32 %v4197, %v4309
    %v4337 = vmul.f32 %v4198, %v4309
    %v4338 = vmul.f32 %v4199, %v4309
    %v4339 = vmul.f32 %v4200, %v4309
    %v4340 = vmul.f32 %v4201, %v4309
    %v4341 = vmul.f32 %v4202, %v4309
    %v4342 = vmul.f32 %v4203, %v4309
    %v4343 = vmul.f32 %v4204, %v4309
    %v4344 = vmul.f32 %v4205, %v4309
    %v4345 = vmul.f32 %v4206, %v4309
    %v4346 = vmul.f32 %v4207, %v4309
    %v4347 = vmul.f32 %v4208, %v4309
    %v4348 = vmul.f32 %v4209, %v4309
    %v4349 = vmul.f32 %v4210, %v4309
    %v4350 = vmul.f32 %v4211, %v4309
    %v4351 = vmul.f32 %v4212, %v4309
    %v4352 = vmul.f32 %v4213, %v4309
    %v4353 = vmul.f32 %v4214, %v4309
    %v4354 = vmul.f32 %v4215, %v4309
    %v4355 = vmul.f32 %v4216, %v4309
    %v4356 = vmul.f32 %v4217, %v4309
    %v4357 = vmul.f32 %v4218, %v4309
    %v4358 = vmul.f32 %v4219, %v4309
    %v4359 = vmul.f32 %v4220, %v4309
    %v4360 = vmul.f32 %v4221, %v4309
    %v4361 = vmul.f32 %v4222, %v4309
    %v4362 = vmul.f32 %v4223, %v4309
    %v4363 = vmul.f32 %v4224, %v4309
    %v4364 = vmul.f32 %v4225, %v4309
    %v4365 = vmul.f32 %v4226, %v4309
    %v4366 = vmul.f32 %v4227, %v4309
    %v4367 = vmul.f32 %v4228, %v4309
    %v4368 = vmul.f32 %v4229, %v4309
    %v4369 = vmul.f32 %v4230, %v4309
    %v4370 = vmul.f32 %v4231, %v4309
    %v4371 = vmul.f32 %v4232, %v4309
    %v4372 = vmul.f32 %v4233, %v4309
    %v4373 = vmul.f32 %v4234, %v4309
    %v4374 = vmul.f32 %v4235, %v4309
    %v4375 = vmul.f32 %v4236, %v4309
    %v4376 = vmul.f32 %v4237, %v4309
    %v4377 = vmul.f32 %v4238, %v4309
    %v4378 = vmul.f32 %v4239, %v4309
    %v4379 = vmul.f32 %v4240, %v4309
    %v4380 = vmul.f32 %v4241, %v4309
    %v4381 = vmul.f32 %v4242, %v4309
    %v4382 = vmul.f32 %v4243, %v4309
    %v4383 = vmul.f32 %v4244, %v4309
    %v4384 = vmul.f32 %v4245, %v4309
    %v4385 = vmul.f32 %v4246, %v4309
    %v4386 = vmul.f32 %v4247, %v4309
    %v4387 = vmul.f32 %v4248, %v4309
    %v4388 = vmul.f32 %v4249, %v4309
    %v4389 = vmul.f32 %v4250, %v4309
    %v4390 = vmul.f32 %v4251, %v4309
    %v4391 = vmul.f32 %v4252, %v4309
    %v4392 = vmul.f32 %v4253, %v4309
    %v4393 = vmul.f32 %v4254, %v4309
    %v4394 = vmul.f32 %v4255, %v4309
    %v4395 = vmul.f32 %v4256, %v4309
    %v4396 = vmul.f32 %v4257, %v4309
    %v4397 = vmul.f32 %v4258, %v4309
    %v4398 = vmul.f32 %v4259, %v4309
    %v4399 = vmul.f32 %v4260, %v4309
    %v4400 = vmul.f32 %v4261, %v4309
    %v4401 = vmul.f32 %v4262, %v4309
    %v4402 = vmul.f32 %v4263, %v4309
    %v4403 = vmul.f32 %v4264, %v4309
    %v4404 = vmul.f32 %v4265, %v4309
    %v4405 = vmul.f32 %v4266, %v4309
    %v4406 = vmul.f32 %v4267, %v4309
    %v4407 = vmul.f32 %v4268, %v4309
    %v4408 = vmul.f32 %v4269, %v4309
    %v4409 = vmul.f32 %v4270, %v4309
    %v4410 = vmul.f32 %v4271, %v4309
    %v4411 = vmul.f32 %v4272, %v4309
    %v4412 = vmul.f32 %v4273, %v4309
    %v4413 = vmul.f32 %v4274, %v4309
    %v4414 = vmul.f32 %v4275, %v4309
    %v4415 = vmul.f32 %v4276, %v4309
    %v4416 = vmul.f32 %v4277, %v4309
    %v4417 = vmul.f32 %v4278, %v4309
    %v4418 = vmul.f32 %v4279, %v4309
    %v4419 = vmul.f32 %v4280, %v4309
    %v4420 = vmul.f32 %v4281, %v4309
    %v4421 = vmul.f32 %v4282, %v4309
    %v4422 = vmul.f32 %v4283, %v4309
    %v4423 = vmul.f32 %v4284, %v4309
    %v4424 = vmul.f32 %v4285, %v4309
    %v4425 = vmul.f32 %v4286, %v4309
    %v4426 = vmul.f32 %v4287, %v4309
    %v4427 = vmul.f32 %v4288, %v4309
    %v4428 = vmul.f32 %v4289, %v4309
    %v4429 = vmul.f32 %v4290, %v4309
    %v4430 = vmul.f32 %v4291, %v4309
    %v4431 = vmul.f32 %v4292, %v4309
    %v4432 = vmul.f32 %v4293, %v4309
    %v4433 = vmul.f32 %v4294, %v4309
    %v4434 = vmul.f32 %v4295, %v4309
    %v4435 = vmul.f32 %v4296, %v4309
    %v4436 = vmul.f32 %v4297, %v4309
    %v4437 = vmul.f32 %v4298, %v4309
    %v4438 = vld [vmem:[%s2] sm:$0x1]
    %v4440 = vperm.slane %v4438, 0
    %v4442 = vmul.f32 %v4310, %v4440
    %v4443 = vmul.f32 %v4311, %v4440
    %v4444 = vmul.f32 %v4312, %v4440
    %v4445 = vmul.f32 %v4313, %v4440
    %v4446 = vmul.f32 %v4314, %v4440
    %v4447 = vmul.f32 %v4315, %v4440
    %v4448 = vmul.f32 %v4316, %v4440
    %v4449 = vmul.f32 %v4317, %v4440
    %v4450 = vmul.f32 %v4318, %v4440
    %v4451 = vmul.f32 %v4319, %v4440
    %v4452 = vmul.f32 %v4320, %v4440
    %v4453 = vmul.f32 %v4321, %v4440
    %v4454 = vmul.f32 %v4322, %v4440
    %v4455 = vmul.f32 %v4323, %v4440
    %v4456 = vmul.f32 %v4324, %v4440
    %v4457 = vmul.f32 %v4325, %v4440
    %v4458 = vmul.f32 %v4326, %v4440
    %v4459 = vmul.f32 %v4327, %v4440
    %v4460 = vmul.f32 %v4328, %v4440
    %v4461 = vmul.f32 %v4329, %v4440
    %v4462 = vmul.f32 %v4330, %v4440
    %v4463 = vmul.f32 %v4331, %v4440
    %v4464 = vmul.f32 %v4332, %v4440
    %v4465 = vmul.f32 %v4333, %v4440
    %v4466 = vmul.f32 %v4334, %v4440
    %v4467 = vmul.f32 %v4335, %v4440
    %v4468 = vmul.f32 %v4336, %v4440
    %v4469 = vmul.f32 %v4337, %v4440
    %v4470 = vmul.f32 %v4338, %v4440
    %v4471 = vmul.f32 %v4339, %v4440
    %v4472 = vmul.f32 %v4340, %v4440
    %v4473 = vmul.f32 %v4341, %v4440
    %v4474 = vmul.f32 %v4342, %v4440
    %v4475 = vmul.f32 %v4343, %v4440
    %v4476 = vmul.f32 %v4344, %v4440
    %v4477 = vmul.f32 %v4345, %v4440
    %v4478 = vmul.f32 %v4346, %v4440
    %v4479 = vmul.f32 %v4347, %v4440
    %v4480 = vmul.f32 %v4348, %v4440
    %v4481 = vmul.f32 %v4349, %v4440
    %v4482 = vmul.f32 %v4350, %v4440
    %v4483 = vmul.f32 %v4351, %v4440
    %v4484 = vmul.f32 %v4352, %v4440
    %v4485 = vmul.f32 %v4353, %v4440
    %v4486 = vmul.f32 %v4354, %v4440
    %v4487 = vmul.f32 %v4355, %v4440
    %v4488 = vmul.f32 %v4356, %v4440
    %v4489 = vmul.f32 %v4357, %v4440
    %v4490 = vmul.f32 %v4358, %v4440
    %v4491 = vmul.f32 %v4359, %v4440
    %v4492 = vmul.f32 %v4360, %v4440
    %v4493 = vmul.f32 %v4361, %v4440
    %v4494 = vmul.f32 %v4362, %v4440
    %v4495 = vmul.f32 %v4363, %v4440
    %v4496 = vmul.f32 %v4364, %v4440
    %v4497 = vmul.f32 %v4365, %v4440
    %v4498 = vmul.f32 %v4366, %v4440
    %v4499 = vmul.f32 %v4367, %v4440
    %v4500 = vmul.f32 %v4368, %v4440
    %v4501 = vmul.f32 %v4369, %v4440
    %v4502 = vmul.f32 %v4370, %v4440
    %v4503 = vmul.f32 %v4371, %v4440
    %v4504 = vmul.f32 %v4372, %v4440
    %v4505 = vmul.f32 %v4373, %v4440
    %v4506 = vmul.f32 %v4374, %v4440
    %v4507 = vmul.f32 %v4375, %v4440
    %v4508 = vmul.f32 %v4376, %v4440
    %v4509 = vmul.f32 %v4377, %v4440
    %v4510 = vmul.f32 %v4378, %v4440
    %v4511 = vmul.f32 %v4379, %v4440
    %v4512 = vmul.f32 %v4380, %v4440
    %v4513 = vmul.f32 %v4381, %v4440
    %v4514 = vmul.f32 %v4382, %v4440
    %v4515 = vmul.f32 %v4383, %v4440
    %v4516 = vmul.f32 %v4384, %v4440
    %v4517 = vmul.f32 %v4385, %v4440
    %v4518 = vmul.f32 %v4386, %v4440
    %v4519 = vmul.f32 %v4387, %v4440
    %v4520 = vmul.f32 %v4388, %v4440
    %v4521 = vmul.f32 %v4389, %v4440
    %v4522 = vmul.f32 %v4390, %v4440
    %v4523 = vmul.f32 %v4391, %v4440
    %v4524 = vmul.f32 %v4392, %v4440
    %v4525 = vmul.f32 %v4393, %v4440
    %v4526 = vmul.f32 %v4394, %v4440
    %v4527 = vmul.f32 %v4395, %v4440
    %v4528 = vmul.f32 %v4396, %v4440
    %v4529 = vmul.f32 %v4397, %v4440
    %v4530 = vmul.f32 %v4398, %v4440
    %v4531 = vmul.f32 %v4399, %v4440
    %v4532 = vmul.f32 %v4400, %v4440
    %v4533 = vmul.f32 %v4401, %v4440
    %v4534 = vmul.f32 %v4402, %v4440
    %v4535 = vmul.f32 %v4403, %v4440
    %v4536 = vmul.f32 %v4404, %v4440
    %v4537 = vmul.f32 %v4405, %v4440
    %v4538 = vmul.f32 %v4406, %v4440
    %v4539 = vmul.f32 %v4407, %v4440
    %v4540 = vmul.f32 %v4408, %v4440
    %v4541 = vmul.f32 %v4409, %v4440
    %v4542 = vmul.f32 %v4410, %v4440
    %v4543 = vmul.f32 %v4411, %v4440
    %v4544 = vmul.f32 %v4412, %v4440
    %v4545 = vmul.f32 %v4413, %v4440
    %v4546 = vmul.f32 %v4414, %v4440
    %v4547 = vmul.f32 %v4415, %v4440
    %v4548 = vmul.f32 %v4416, %v4440
    %v4549 = vmul.f32 %v4417, %v4440
    %v4550 = vmul.f32 %v4418, %v4440
    %v4551 = vmul.f32 %v4419, %v4440
    %v4552 = vmul.f32 %v4420, %v4440
    %v4553 = vmul.f32 %v4421, %v4440
    %v4554 = vmul.f32 %v4422, %v4440
    %v4555 = vmul.f32 %v4423, %v4440
    %v4556 = vmul.f32 %v4424, %v4440
    %v4557 = vmul.f32 %v4425, %v4440
    %v4558 = vmul.f32 %v4426, %v4440
    %v4559 = vmul.f32 %v4427, %v4440
    %v4560 = vmul.f32 %v4428, %v4440
    %v4561 = vmul.f32 %v4429, %v4440
    %v4562 = vmul.f32 %v4430, %v4440
    %v4563 = vmul.f32 %v4431, %v4440
    %v4564 = vmul.f32 %v4432, %v4440
    %v4565 = vmul.f32 %v4433, %v4440
    %v4566 = vmul.f32 %v4434, %v4440
    %v4567 = vmul.f32 %v4435, %v4440
    %v4568 = vmul.f32 %v4436, %v4440
    %v4569 = vmul.f32 %v4437, %v4440
    %v4570 = vld [vmem:[%s3] sm:$0x1]
    %v4572 = vperm.slane %v4570, 0
    %v4574 = vadd.f32 %v4442, %v4572
    %v4575 = vadd.f32 %v4443, %v4572
    %v4576 = vadd.f32 %v4444, %v4572
    %v4577 = vadd.f32 %v4445, %v4572
    %v4578 = vadd.f32 %v4446, %v4572
    %v4579 = vadd.f32 %v4447, %v4572
    %v4580 = vadd.f32 %v4448, %v4572
    %v4581 = vadd.f32 %v4449, %v4572
    %v4582 = vadd.f32 %v4450, %v4572
    %v4583 = vadd.f32 %v4451, %v4572
    %v4584 = vadd.f32 %v4452, %v4572
    %v4585 = vadd.f32 %v4453, %v4572
    %v4586 = vadd.f32 %v4454, %v4572
    %v4587 = vadd.f32 %v4455, %v4572
    %v4588 = vadd.f32 %v4456, %v4572
    %v4589 = vadd.f32 %v4457, %v4572
    %v4590 = vadd.f32 %v4458, %v4572
    %v4591 = vadd.f32 %v4459, %v4572
    %v4592 = vadd.f32 %v4460, %v4572
    %v4593 = vadd.f32 %v4461, %v4572
    %v4594 = vadd.f32 %v4462, %v4572
    %v4595 = vadd.f32 %v4463, %v4572
    %v4596 = vadd.f32 %v4464, %v4572
    %v4597 = vadd.f32 %v4465, %v4572
    %v4598 = vadd.f32 %v4466, %v4572
    %v4599 = vadd.f32 %v4467, %v4572
    %v4600 = vadd.f32 %v4468, %v4572
    %v4601 = vadd.f32 %v4469, %v4572
    %v4602 = vadd.f32 %v4470, %v4572
    %v4603 = vadd.f32 %v4471, %v4572
    %v4604 = vadd.f32 %v4472, %v4572
    %v4605 = vadd.f32 %v4473, %v4572
    %v4606 = vadd.f32 %v4474, %v4572
    %v4607 = vadd.f32 %v4475, %v4572
    %v4608 = vadd.f32 %v4476, %v4572
    %v4609 = vadd.f32 %v4477, %v4572
    %v4610 = vadd.f32 %v4478, %v4572
    %v4611 = vadd.f32 %v4479, %v4572
    %v4612 = vadd.f32 %v4480, %v4572
    %v4613 = vadd.f32 %v4481, %v4572
    %v4614 = vadd.f32 %v4482, %v4572
    %v4615 = vadd.f32 %v4483, %v4572
    %v4616 = vadd.f32 %v4484, %v4572
    %v4617 = vadd.f32 %v4485, %v4572
    %v4618 = vadd.f32 %v4486, %v4572
    %v4619 = vadd.f32 %v4487, %v4572
    %v4620 = vadd.f32 %v4488, %v4572
    %v4621 = vadd.f32 %v4489, %v4572
    %v4622 = vadd.f32 %v4490, %v4572
    %v4623 = vadd.f32 %v4491, %v4572
    %v4624 = vadd.f32 %v4492, %v4572
    %v4625 = vadd.f32 %v4493, %v4572
    %v4626 = vadd.f32 %v4494, %v4572
    %v4627 = vadd.f32 %v4495, %v4572
    %v4628 = vadd.f32 %v4496, %v4572
    %v4629 = vadd.f32 %v4497, %v4572
    %v4630 = vadd.f32 %v4498, %v4572
    %v4631 = vadd.f32 %v4499, %v4572
    %v4632 = vadd.f32 %v4500, %v4572
    %v4633 = vadd.f32 %v4501, %v4572
    %v4634 = vadd.f32 %v4502, %v4572
    %v4635 = vadd.f32 %v4503, %v4572
    %v4636 = vadd.f32 %v4504, %v4572
    %v4637 = vadd.f32 %v4505, %v4572
    %v4638 = vadd.f32 %v4506, %v4572
    %v4639 = vadd.f32 %v4507, %v4572
    %v4640 = vadd.f32 %v4508, %v4572
    %v4641 = vadd.f32 %v4509, %v4572
    %v4642 = vadd.f32 %v4510, %v4572
    %v4643 = vadd.f32 %v4511, %v4572
    %v4644 = vadd.f32 %v4512, %v4572
    %v4645 = vadd.f32 %v4513, %v4572
    %v4646 = vadd.f32 %v4514, %v4572
    %v4647 = vadd.f32 %v4515, %v4572
    %v4648 = vadd.f32 %v4516, %v4572
    %v4649 = vadd.f32 %v4517, %v4572
    %v4650 = vadd.f32 %v4518, %v4572
    %v4651 = vadd.f32 %v4519, %v4572
    %v4652 = vadd.f32 %v4520, %v4572
    %v4653 = vadd.f32 %v4521, %v4572
    %v4654 = vadd.f32 %v4522, %v4572
    %v4655 = vadd.f32 %v4523, %v4572
    %v4656 = vadd.f32 %v4524, %v4572
    %v4657 = vadd.f32 %v4525, %v4572
    %v4658 = vadd.f32 %v4526, %v4572
    %v4659 = vadd.f32 %v4527, %v4572
    %v4660 = vadd.f32 %v4528, %v4572
    %v4661 = vadd.f32 %v4529, %v4572
    %v4662 = vadd.f32 %v4530, %v4572
    %v4663 = vadd.f32 %v4531, %v4572
    %v4664 = vadd.f32 %v4532, %v4572
    %v4665 = vadd.f32 %v4533, %v4572
    %v4666 = vadd.f32 %v4534, %v4572
    %v4667 = vadd.f32 %v4535, %v4572
    %v4668 = vadd.f32 %v4536, %v4572
    %v4669 = vadd.f32 %v4537, %v4572
    %v4670 = vadd.f32 %v4538, %v4572
    %v4671 = vadd.f32 %v4539, %v4572
    %v4672 = vadd.f32 %v4540, %v4572
    %v4673 = vadd.f32 %v4541, %v4572
    %v4674 = vadd.f32 %v4542, %v4572
    %v4675 = vadd.f32 %v4543, %v4572
    %v4676 = vadd.f32 %v4544, %v4572
    %v4677 = vadd.f32 %v4545, %v4572
    %v4678 = vadd.f32 %v4546, %v4572
    %v4679 = vadd.f32 %v4547, %v4572
    %v4680 = vadd.f32 %v4548, %v4572
    %v4681 = vadd.f32 %v4549, %v4572
    %v4682 = vadd.f32 %v4550, %v4572
    %v4683 = vadd.f32 %v4551, %v4572
    %v4684 = vadd.f32 %v4552, %v4572
    %v4685 = vadd.f32 %v4553, %v4572
    %v4686 = vadd.f32 %v4554, %v4572
    %v4687 = vadd.f32 %v4555, %v4572
    %v4688 = vadd.f32 %v4556, %v4572
    %v4689 = vadd.f32 %v4557, %v4572
    %v4690 = vadd.f32 %v4558, %v4572
    %v4691 = vadd.f32 %v4559, %v4572
    %v4692 = vadd.f32 %v4560, %v4572
    %v4693 = vadd.f32 %v4561, %v4572
    %v4694 = vadd.f32 %v4562, %v4572
    %v4695 = vadd.f32 %v4563, %v4572
    %v4696 = vadd.f32 %v4564, %v4572
    %v4697 = vadd.f32 %v4565, %v4572
    %v4698 = vadd.f32 %v4566, %v4572
    %v4699 = vadd.f32 %v4567, %v4572
    %v4700 = vadd.f32 %v4568, %v4572
    %v4701 = vadd.f32 %v4569, %v4572
    %vm4702 = vcmp.gt.f32.partialorder %v4574, 0.0
    %vm4703 = vcmp.gt.f32.partialorder %v4575, 0.0
    %vm4704 = vcmp.gt.f32.partialorder %v4576, 0.0
    %vm4705 = vcmp.gt.f32.partialorder %v4577, 0.0
    %vm4706 = vcmp.gt.f32.partialorder %v4578, 0.0
    %vm4707 = vcmp.gt.f32.partialorder %v4579, 0.0
    %vm4708 = vcmp.gt.f32.partialorder %v4580, 0.0
    %vm4709 = vcmp.gt.f32.partialorder %v4581, 0.0
    %vm4710 = vcmp.gt.f32.partialorder %v4582, 0.0
    %vm4711 = vcmp.gt.f32.partialorder %v4583, 0.0
    %vm4712 = vcmp.gt.f32.partialorder %v4584, 0.0
    %vm4713 = vcmp.gt.f32.partialorder %v4585, 0.0
    %vm4714 = vcmp.gt.f32.partialorder %v4586, 0.0
    %vm4715 = vcmp.gt.f32.partialorder %v4587, 0.0
    %vm4716 = vcmp.gt.f32.partialorder %v4588, 0.0
    %vm4717 = vcmp.gt.f32.partialorder %v4589, 0.0
    %vm4718 = vcmp.gt.f32.partialorder %v4590, 0.0
    %vm4719 = vcmp.gt.f32.partialorder %v4591, 0.0
    %vm4720 = vcmp.gt.f32.partialorder %v4592, 0.0
    %vm4721 = vcmp.gt.f32.partialorder %v4593, 0.0
    %vm4722 = vcmp.gt.f32.partialorder %v4594, 0.0
    %vm4723 = vcmp.gt.f32.partialorder %v4595, 0.0
    %vm4724 = vcmp.gt.f32.partialorder %v4596, 0.0
    %vm4725 = vcmp.gt.f32.partialorder %v4597, 0.0
    %vm4726 = vcmp.gt.f32.partialorder %v4598, 0.0
    %vm4727 = vcmp.gt.f32.partialorder %v4599, 0.0
    %vm4728 = vcmp.gt.f32.partialorder %v4600, 0.0
    %vm4729 = vcmp.gt.f32.partialorder %v4601, 0.0
    %vm4730 = vcmp.gt.f32.partialorder %v4602, 0.0
    %vm4731 = vcmp.gt.f32.partialorder %v4603, 0.0
    %vm4732 = vcmp.gt.f32.partialorder %v4604, 0.0
    %vm4733 = vcmp.gt.f32.partialorder %v4605, 0.0
    %vm4734 = vcmp.gt.f32.partialorder %v4606, 0.0
    %vm4735 = vcmp.gt.f32.partialorder %v4607, 0.0
    %vm4736 = vcmp.gt.f32.partialorder %v4608, 0.0
    %vm4737 = vcmp.gt.f32.partialorder %v4609, 0.0
    %vm4738 = vcmp.gt.f32.partialorder %v4610, 0.0
    %vm4739 = vcmp.gt.f32.partialorder %v4611, 0.0
    %vm4740 = vcmp.gt.f32.partialorder %v4612, 0.0
    %vm4741 = vcmp.gt.f32.partialorder %v4613, 0.0
    %vm4742 = vcmp.gt.f32.partialorder %v4614, 0.0
    %vm4743 = vcmp.gt.f32.partialorder %v4615, 0.0
    %vm4744 = vcmp.gt.f32.partialorder %v4616, 0.0
    %vm4745 = vcmp.gt.f32.partialorder %v4617, 0.0
    %vm4746 = vcmp.gt.f32.partialorder %v4618, 0.0
    %vm4747 = vcmp.gt.f32.partialorder %v4619, 0.0
    %vm4748 = vcmp.gt.f32.partialorder %v4620, 0.0
    %vm4749 = vcmp.gt.f32.partialorder %v4621, 0.0
    %vm4750 = vcmp.gt.f32.partialorder %v4622, 0.0
    %vm4751 = vcmp.gt.f32.partialorder %v4623, 0.0
    %vm4752 = vcmp.gt.f32.partialorder %v4624, 0.0
    %vm4753 = vcmp.gt.f32.partialorder %v4625, 0.0
    %vm4754 = vcmp.gt.f32.partialorder %v4626, 0.0
    %vm4755 = vcmp.gt.f32.partialorder %v4627, 0.0
    %vm4756 = vcmp.gt.f32.partialorder %v4628, 0.0
    %vm4757 = vcmp.gt.f32.partialorder %v4629, 0.0
    %vm4758 = vcmp.gt.f32.partialorder %v4630, 0.0
    %vm4759 = vcmp.gt.f32.partialorder %v4631, 0.0
    %vm4760 = vcmp.gt.f32.partialorder %v4632, 0.0
    %vm4761 = vcmp.gt.f32.partialorder %v4633, 0.0
    %vm4762 = vcmp.gt.f32.partialorder %v4634, 0.0
    %vm4763 = vcmp.gt.f32.partialorder %v4635, 0.0
    %vm4764 = vcmp.gt.f32.partialorder %v4636, 0.0
    %vm4765 = vcmp.gt.f32.partialorder %v4637, 0.0
    %vm4766 = vcmp.gt.f32.partialorder %v4638, 0.0
    %vm4767 = vcmp.gt.f32.partialorder %v4639, 0.0
    %vm4768 = vcmp.gt.f32.partialorder %v4640, 0.0
    %vm4769 = vcmp.gt.f32.partialorder %v4641, 0.0
    %vm4770 = vcmp.gt.f32.partialorder %v4642, 0.0
    %vm4771 = vcmp.gt.f32.partialorder %v4643, 0.0
    %vm4772 = vcmp.gt.f32.partialorder %v4644, 0.0
    %vm4773 = vcmp.gt.f32.partialorder %v4645, 0.0
    %vm4774 = vcmp.gt.f32.partialorder %v4646, 0.0
    %vm4775 = vcmp.gt.f32.partialorder %v4647, 0.0
    %vm4776 = vcmp.gt.f32.partialorder %v4648, 0.0
    %vm4777 = vcmp.gt.f32.partialorder %v4649, 0.0
    %vm4778 = vcmp.gt.f32.partialorder %v4650, 0.0
    %vm4779 = vcmp.gt.f32.partialorder %v4651, 0.0
    %vm4780 = vcmp.gt.f32.partialorder %v4652, 0.0
    %vm4781 = vcmp.gt.f32.partialorder %v4653, 0.0
    %vm4782 = vcmp.gt.f32.partialorder %v4654, 0.0
    %vm4783 = vcmp.gt.f32.partialorder %v4655, 0.0
    %vm4784 = vcmp.gt.f32.partialorder %v4656, 0.0
    %vm4785 = vcmp.gt.f32.partialorder %v4657, 0.0
    %vm4786 = vcmp.gt.f32.partialorder %v4658, 0.0
    %vm4787 = vcmp.gt.f32.partialorder %v4659, 0.0
    %vm4788 = vcmp.gt.f32.partialorder %v4660, 0.0
    %vm4789 = vcmp.gt.f32.partialorder %v4661, 0.0
    %vm4790 = vcmp.gt.f32.partialorder %v4662, 0.0
    %vm4791 = vcmp.gt.f32.partialorder %v4663, 0.0
    %vm4792 = vcmp.gt.f32.partialorder %v4664, 0.0
    %vm4793 = vcmp.gt.f32.partialorder %v4665, 0.0
    %vm4794 = vcmp.gt.f32.partialorder %v4666, 0.0
    %vm4795 = vcmp.gt.f32.partialorder %v4667, 0.0
    %vm4796 = vcmp.gt.f32.partialorder %v4668, 0.0
    %vm4797 = vcmp.gt.f32.partialorder %v4669, 0.0
    %vm4798 = vcmp.gt.f32.partialorder %v4670, 0.0
    %vm4799 = vcmp.gt.f32.partialorder %v4671, 0.0
    %vm4800 = vcmp.gt.f32.partialorder %v4672, 0.0
    %vm4801 = vcmp.gt.f32.partialorder %v4673, 0.0
    %vm4802 = vcmp.gt.f32.partialorder %v4674, 0.0
    %vm4803 = vcmp.gt.f32.partialorder %v4675, 0.0
    %vm4804 = vcmp.gt.f32.partialorder %v4676, 0.0
    %vm4805 = vcmp.gt.f32.partialorder %v4677, 0.0
    %vm4806 = vcmp.gt.f32.partialorder %v4678, 0.0
    %vm4807 = vcmp.gt.f32.partialorder %v4679, 0.0
    %vm4808 = vcmp.gt.f32.partialorder %v4680, 0.0
    %vm4809 = vcmp.gt.f32.partialorder %v4681, 0.0
    %vm4810 = vcmp.gt.f32.partialorder %v4682, 0.0
    %vm4811 = vcmp.gt.f32.partialorder %v4683, 0.0
    %vm4812 = vcmp.gt.f32.partialorder %v4684, 0.0
    %vm4813 = vcmp.gt.f32.partialorder %v4685, 0.0
    %vm4814 = vcmp.gt.f32.partialorder %v4686, 0.0
    %vm4815 = vcmp.gt.f32.partialorder %v4687, 0.0
    %vm4816 = vcmp.gt.f32.partialorder %v4688, 0.0
    %vm4817 = vcmp.gt.f32.partialorder %v4689, 0.0
    %vm4818 = vcmp.gt.f32.partialorder %v4690, 0.0
    %vm4819 = vcmp.gt.f32.partialorder %v4691, 0.0
    %vm4820 = vcmp.gt.f32.partialorder %v4692, 0.0
    %vm4821 = vcmp.gt.f32.partialorder %v4693, 0.0
    %vm4822 = vcmp.gt.f32.partialorder %v4694, 0.0
    %vm4823 = vcmp.gt.f32.partialorder %v4695, 0.0
    %vm4824 = vcmp.gt.f32.partialorder %v4696, 0.0
    %vm4825 = vcmp.gt.f32.partialorder %v4697, 0.0
    %vm4826 = vcmp.gt.f32.partialorder %v4698, 0.0
    %vm4827 = vcmp.gt.f32.partialorder %v4699, 0.0
    %vm4828 = vcmp.gt.f32.partialorder %v4700, 0.0
    %vm4829 = vcmp.gt.f32.partialorder %v4701, 0.0
    %v4830 = vmul.f32 %v4574, 0.2
    %v4831 = vmul.f32 %v4575, 0.2
    %v4832 = vmul.f32 %v4576, 0.2
    %v4833 = vmul.f32 %v4577, 0.2
    %v4834 = vmul.f32 %v4578, 0.2
    %v4835 = vmul.f32 %v4579, 0.2
    %v4836 = vmul.f32 %v4580, 0.2
    %v4837 = vmul.f32 %v4581, 0.2
    %v4838 = vmul.f32 %v4582, 0.2
    %v4839 = vmul.f32 %v4583, 0.2
    %v4840 = vmul.f32 %v4584, 0.2
    %v4841 = vmul.f32 %v4585, 0.2
    %v4842 = vmul.f32 %v4586, 0.2
    %v4843 = vmul.f32 %v4587, 0.2
    %v4844 = vmul.f32 %v4588, 0.2
    %v4845 = vmul.f32 %v4589, 0.2
    %v4846 = vmul.f32 %v4590, 0.2
    %v4847 = vmul.f32 %v4591, 0.2
    %v4848 = vmul.f32 %v4592, 0.2
    %v4849 = vmul.f32 %v4593, 0.2
    %v4850 = vmul.f32 %v4594, 0.2
    %v4851 = vmul.f32 %v4595, 0.2
    %v4852 = vmul.f32 %v4596, 0.2
    %v4853 = vmul.f32 %v4597, 0.2
    %v4854 = vmul.f32 %v4598, 0.2
    %v4855 = vmul.f32 %v4599, 0.2
    %v4856 = vmul.f32 %v4600, 0.2
    %v4857 = vmul.f32 %v4601, 0.2
    %v4858 = vmul.f32 %v4602, 0.2
    %v4859 = vmul.f32 %v4603, 0.2
    %v4860 = vmul.f32 %v4604, 0.2
    %v4861 = vmul.f32 %v4605, 0.2
    %v4862 = vmul.f32 %v4606, 0.2
    %v4863 = vmul.f32 %v4607, 0.2
    %v4864 = vmul.f32 %v4608, 0.2
    %v4865 = vmul.f32 %v4609, 0.2
    %v4866 = vmul.f32 %v4610, 0.2
    %v4867 = vmul.f32 %v4611, 0.2
    %v4868 = vmul.f32 %v4612, 0.2
    %v4869 = vmul.f32 %v4613, 0.2
    %v4870 = vmul.f32 %v4614, 0.2
    %v4871 = vmul.f32 %v4615, 0.2
    %v4872 = vmul.f32 %v4616, 0.2
    %v4873 = vmul.f32 %v4617, 0.2
    %v4874 = vmul.f32 %v4618, 0.2
    %v4875 = vmul.f32 %v4619, 0.2
    %v4876 = vmul.f32 %v4620, 0.2
    %v4877 = vmul.f32 %v4621, 0.2
    %v4878 = vmul.f32 %v4622, 0.2
    %v4879 = vmul.f32 %v4623, 0.2
    %v4880 = vmul.f32 %v4624, 0.2
    %v4881 = vmul.f32 %v4625, 0.2
    %v4882 = vmul.f32 %v4626, 0.2
    %v4883 = vmul.f32 %v4627, 0.2
    %v4884 = vmul.f32 %v4628, 0.2
    %v4885 = vmul.f32 %v4629, 0.2
    %v4886 = vmul.f32 %v4630, 0.2
    %v4887 = vmul.f32 %v4631, 0.2
    %v4888 = vmul.f32 %v4632, 0.2
    %v4889 = vmul.f32 %v4633, 0.2
    %v4890 = vmul.f32 %v4634, 0.2
    %v4891 = vmul.f32 %v4635, 0.2
    %v4892 = vmul.f32 %v4636, 0.2
    %v4893 = vmul.f32 %v4637, 0.2
    %v4894 = vmul.f32 %v4638, 0.2
    %v4895 = vmul.f32 %v4639, 0.2
    %v4896 = vmul.f32 %v4640, 0.2
    %v4897 = vmul.f32 %v4641, 0.2
    %v4898 = vmul.f32 %v4642, 0.2
    %v4899 = vmul.f32 %v4643, 0.2
    %v4900 = vmul.f32 %v4644, 0.2
    %v4901 = vmul.f32 %v4645, 0.2
    %v4902 = vmul.f32 %v4646, 0.2
    %v4903 = vmul.f32 %v4647, 0.2
    %v4904 = vmul.f32 %v4648, 0.2
    %v4905 = vmul.f32 %v4649, 0.2
    %v4906 = vmul.f32 %v4650, 0.2
    %v4907 = vmul.f32 %v4651, 0.2
    %v4908 = vmul.f32 %v4652, 0.2
    %v4909 = vmul.f32 %v4653, 0.2
    %v4910 = vmul.f32 %v4654, 0.2
    %v4911 = vmul.f32 %v4655, 0.2
    %v4912 = vmul.f32 %v4656, 0.2
    %v4913 = vmul.f32 %v4657, 0.2
    %v4914 = vmul.f32 %v4658, 0.2
    %v4915 = vmul.f32 %v4659, 0.2
    %v4916 = vmul.f32 %v4660, 0.2
    %v4917 = vmul.f32 %v4661, 0.2
    %v4918 = vmul.f32 %v4662, 0.2
    %v4919 = vmul.f32 %v4663, 0.2
    %v4920 = vmul.f32 %v4664, 0.2
    %v4921 = vmul.f32 %v4665, 0.2
    %v4922 = vmul.f32 %v4666, 0.2
    %v4923 = vmul.f32 %v4667, 0.2
    %v4924 = vmul.f32 %v4668, 0.2
    %v4925 = vmul.f32 %v4669, 0.2
    %v4926 = vmul.f32 %v4670, 0.2
    %v4927 = vmul.f32 %v4671, 0.2
    %v4928 = vmul.f32 %v4672, 0.2
    %v4929 = vmul.f32 %v4673, 0.2
    %v4930 = vmul.f32 %v4674, 0.2
    %v4931 = vmul.f32 %v4675, 0.2
    %v4932 = vmul.f32 %v4676, 0.2
    %v4933 = vmul.f32 %v4677, 0.2
    %v4934 = vmul.f32 %v4678, 0.2
    %v4935 = vmul.f32 %v4679, 0.2
    %v4936 = vmul.f32 %v4680, 0.2
    %v4937 = vmul.f32 %v4681, 0.2
    %v4938 = vmul.f32 %v4682, 0.2
    %v4939 = vmul.f32 %v4683, 0.2
    %v4940 = vmul.f32 %v4684, 0.2
    %v4941 = vmul.f32 %v4685, 0.2
    %v4942 = vmul.f32 %v4686, 0.2
    %v4943 = vmul.f32 %v4687, 0.2
    %v4944 = vmul.f32 %v4688, 0.2
    %v4945 = vmul.f32 %v4689, 0.2
    %v4946 = vmul.f32 %v4690, 0.2
    %v4947 = vmul.f32 %v4691, 0.2
    %v4948 = vmul.f32 %v4692, 0.2
    %v4949 = vmul.f32 %v4693, 0.2
    %v4950 = vmul.f32 %v4694, 0.2
    %v4951 = vmul.f32 %v4695, 0.2
    %v4952 = vmul.f32 %v4696, 0.2
    %v4953 = vmul.f32 %v4697, 0.2
    %v4954 = vmul.f32 %v4698, 0.2
    %v4955 = vmul.f32 %v4699, 0.2
    %v4956 = vmul.f32 %v4700, 0.2
    %v4957 = vmul.f32 %v4701, 0.2
    %v4958 = vsel %vm4702, %v4574, %v4830
    %v4959 = vsel %vm4703, %v4575, %v4831
    %v4960 = vsel %vm4704, %v4576, %v4832
    %v4961 = vsel %vm4705, %v4577, %v4833
    %v4962 = vsel %vm4706, %v4578, %v4834
    %v4963 = vsel %vm4707, %v4579, %v4835
    %v4964 = vsel %vm4708, %v4580, %v4836
    %v4965 = vsel %vm4709, %v4581, %v4837
    %v4966 = vsel %vm4710, %v4582, %v4838
    %v4967 = vsel %vm4711, %v4583, %v4839
    %v4968 = vsel %vm4712, %v4584, %v4840
    %v4969 = vsel %vm4713, %v4585, %v4841
    %v4970 = vsel %vm4714, %v4586, %v4842
    %v4971 = vsel %vm4715, %v4587, %v4843
    %v4972 = vsel %vm4716, %v4588, %v4844
    %v4973 = vsel %vm4717, %v4589, %v4845
    %v4974 = vsel %vm4718, %v4590, %v4846
    %v4975 = vsel %vm4719, %v4591, %v4847
    %v4976 = vsel %vm4720, %v4592, %v4848
    %v4977 = vsel %vm4721, %v4593, %v4849
    %v4978 = vsel %vm4722, %v4594, %v4850
    %v4979 = vsel %vm4723, %v4595, %v4851
    %v4980 = vsel %vm4724, %v4596, %v4852
    %v4981 = vsel %vm4725, %v4597, %v4853
    %v4982 = vsel %vm4726, %v4598, %v4854
    %v4983 = vsel %vm4727, %v4599, %v4855
    %v4984 = vsel %vm4728, %v4600, %v4856
    %v4985 = vsel %vm4729, %v4601, %v4857
    %v4986 = vsel %vm4730, %v4602, %v4858
    %v4987 = vsel %vm4731, %v4603, %v4859
    %v4988 = vsel %vm4732, %v4604, %v4860
    %v4989 = vsel %vm4733, %v4605, %v4861
    %v4990 = vsel %vm4734, %v4606, %v4862
    %v4991 = vsel %vm4735, %v4607, %v4863
    %v4992 = vsel %vm4736, %v4608, %v4864
    %v4993 = vsel %vm4737, %v4609, %v4865
    %v4994 = vsel %vm4738, %v4610, %v4866
    %v4995 = vsel %vm4739, %v4611, %v4867
    %v4996 = vsel %vm4740, %v4612, %v4868
    %v4997 = vsel %vm4741, %v4613, %v4869
    %v4998 = vsel %vm4742, %v4614, %v4870
    %v4999 = vsel %vm4743, %v4615, %v4871
    %v5000 = vsel %vm4744, %v4616, %v4872
    %v5001 = vsel %vm4745, %v4617, %v4873
    %v5002 = vsel %vm4746, %v4618, %v4874
    %v5003 = vsel %vm4747, %v4619, %v4875
    %v5004 = vsel %vm4748, %v4620, %v4876
    %v5005 = vsel %vm4749, %v4621, %v4877
    %v5006 = vsel %vm4750, %v4622, %v4878
    %v5007 = vsel %vm4751, %v4623, %v4879
    %v5008 = vsel %vm4752, %v4624, %v4880
    %v5009 = vsel %vm4753, %v4625, %v4881
    %v5010 = vsel %vm4754, %v4626, %v4882
    %v5011 = vsel %vm4755, %v4627, %v4883
    %v5012 = vsel %vm4756, %v4628, %v4884
    %v5013 = vsel %vm4757, %v4629, %v4885
    %v5014 = vsel %vm4758, %v4630, %v4886
    %v5015 = vsel %vm4759, %v4631, %v4887
    %v5016 = vsel %vm4760, %v4632, %v4888
    %v5017 = vsel %vm4761, %v4633, %v4889
    %v5018 = vsel %vm4762, %v4634, %v4890
    %v5019 = vsel %vm4763, %v4635, %v4891
    %v5020 = vsel %vm4764, %v4636, %v4892
    %v5021 = vsel %vm4765, %v4637, %v4893
    %v5022 = vsel %vm4766, %v4638, %v4894
    %v5023 = vsel %vm4767, %v4639, %v4895
    %v5024 = vsel %vm4768, %v4640, %v4896
    %v5025 = vsel %vm4769, %v4641, %v4897
    %v5026 = vsel %vm4770, %v4642, %v4898
    %v5027 = vsel %vm4771, %v4643, %v4899
    %v5028 = vsel %vm4772, %v4644, %v4900
    %v5029 = vsel %vm4773, %v4645, %v4901
    %v5030 = vsel %vm4774, %v4646, %v4902
    %v5031 = vsel %vm4775, %v4647, %v4903
    %v5032 = vsel %vm4776, %v4648, %v4904
    %v5033 = vsel %vm4777, %v4649, %v4905
    %v5034 = vsel %vm4778, %v4650, %v4906
    %v5035 = vsel %vm4779, %v4651, %v4907
    %v5036 = vsel %vm4780, %v4652, %v4908
    %v5037 = vsel %vm4781, %v4653, %v4909
    %v5038 = vsel %vm4782, %v4654, %v4910
    %v5039 = vsel %vm4783, %v4655, %v4911
    %v5040 = vsel %vm4784, %v4656, %v4912
    %v5041 = vsel %vm4785, %v4657, %v4913
    %v5042 = vsel %vm4786, %v4658, %v4914
    %v5043 = vsel %vm4787, %v4659, %v4915
    %v5044 = vsel %vm4788, %v4660, %v4916
    %v5045 = vsel %vm4789, %v4661, %v4917
    %v5046 = vsel %vm4790, %v4662, %v4918
    %v5047 = vsel %vm4791, %v4663, %v4919
    %v5048 = vsel %vm4792, %v4664, %v4920
    %v5049 = vsel %vm4793, %v4665, %v4921
    %v5050 = vsel %vm4794, %v4666, %v4922
    %v5051 = vsel %vm4795, %v4667, %v4923
    %v5052 = vsel %vm4796, %v4668, %v4924
    %v5053 = vsel %vm4797, %v4669, %v4925
    %v5054 = vsel %vm4798, %v4670, %v4926
    %v5055 = vsel %vm4799, %v4671, %v4927
    %v5056 = vsel %vm4800, %v4672, %v4928
    %v5057 = vsel %vm4801, %v4673, %v4929
    %v5058 = vsel %vm4802, %v4674, %v4930
    %v5059 = vsel %vm4803, %v4675, %v4931
    %v5060 = vsel %vm4804, %v4676, %v4932
    %v5061 = vsel %vm4805, %v4677, %v4933
    %v5062 = vsel %vm4806, %v4678, %v4934
    %v5063 = vsel %vm4807, %v4679, %v4935
    %v5064 = vsel %vm4808, %v4680, %v4936
    %v5065 = vsel %vm4809, %v4681, %v4937
    %v5066 = vsel %vm4810, %v4682, %v4938
    %v5067 = vsel %vm4811, %v4683, %v4939
    %v5068 = vsel %vm4812, %v4684, %v4940
    %v5069 = vsel %vm4813, %v4685, %v4941
    %v5070 = vsel %vm4814, %v4686, %v4942
    %v5071 = vsel %vm4815, %v4687, %v4943
    %v5072 = vsel %vm4816, %v4688, %v4944
    %v5073 = vsel %vm4817, %v4689, %v4945
    %v5074 = vsel %vm4818, %v4690, %v4946
    %v5075 = vsel %vm4819, %v4691, %v4947
    %v5076 = vsel %vm4820, %v4692, %v4948
    %v5077 = vsel %vm4821, %v4693, %v4949
    %v5078 = vsel %vm4822, %v4694, %v4950
    %v5079 = vsel %vm4823, %v4695, %v4951
    %v5080 = vsel %vm4824, %v4696, %v4952
    %v5081 = vsel %vm4825, %v4697, %v4953
    %v5082 = vsel %vm4826, %v4698, %v4954
    %v5083 = vsel %vm4827, %v4699, %v4955
    %v5084 = vsel %vm4828, %v4700, %v4956
    %v5085 = vsel %vm4829, %v4701, %v4957
    %v5086 = vpack.c.bf16 %v4958, %v4958
    %v5087 = vpack.c.bf16 %v4959, %v4959
    %v5088 = vpack.c.bf16 %v4960, %v4960
    %v5089 = vpack.c.bf16 %v4961, %v4961
    %v5090 = vpack.c.bf16 %v4962, %v4962
    %v5091 = vpack.c.bf16 %v4963, %v4963
    %v5092 = vpack.c.bf16 %v4964, %v4964
    %v5093 = vpack.c.bf16 %v4965, %v4965
    %v5094 = vpack.c.bf16 %v4966, %v4966
    %v5095 = vpack.c.bf16 %v4967, %v4967
    %v5096 = vpack.c.bf16 %v4968, %v4968
    %v5097 = vpack.c.bf16 %v4969, %v4969
    %v5098 = vpack.c.bf16 %v4970, %v4970
    %v5099 = vpack.c.bf16 %v4971, %v4971
    %v5100 = vpack.c.bf16 %v4972, %v4972
    %v5101 = vpack.c.bf16 %v4973, %v4973
    %v5102 = vpack.c.bf16 %v4974, %v4974
    %v5103 = vpack.c.bf16 %v4975, %v4975
    %v5104 = vpack.c.bf16 %v4976, %v4976
    %v5105 = vpack.c.bf16 %v4977, %v4977
    %v5106 = vpack.c.bf16 %v4978, %v4978
    %v5107 = vpack.c.bf16 %v4979, %v4979
    %v5108 = vpack.c.bf16 %v4980, %v4980
    %v5109 = vpack.c.bf16 %v4981, %v4981
    %v5110 = vpack.c.bf16 %v4982, %v4982
    %v5111 = vpack.c.bf16 %v4983, %v4983
    %v5112 = vpack.c.bf16 %v4984, %v4984
    %v5113 = vpack.c.bf16 %v4985, %v4985
    %v5114 = vpack.c.bf16 %v4986, %v4986
    %v5115 = vpack.c.bf16 %v4987, %v4987
    %v5116 = vpack.c.bf16 %v4988, %v4988
    %v5117 = vpack.c.bf16 %v4989, %v4989
    %v5118 = vpack.c.bf16 %v4990, %v4990
    %v5119 = vpack.c.bf16 %v4991, %v4991
    %v5120 = vpack.c.bf16 %v4992, %v4992
    %v5121 = vpack.c.bf16 %v4993, %v4993
    %v5122 = vpack.c.bf16 %v4994, %v4994
    %v5123 = vpack.c.bf16 %v4995, %v4995
    %v5124 = vpack.c.bf16 %v4996, %v4996
    %v5125 = vpack.c.bf16 %v4997, %v4997
    %v5126 = vpack.c.bf16 %v4998, %v4998
    %v5127 = vpack.c.bf16 %v4999, %v4999
    %v5128 = vpack.c.bf16 %v5000, %v5000
    %v5129 = vpack.c.bf16 %v5001, %v5001
    %v5130 = vpack.c.bf16 %v5002, %v5002
    %v5131 = vpack.c.bf16 %v5003, %v5003
    %v5132 = vpack.c.bf16 %v5004, %v5004
    %v5133 = vpack.c.bf16 %v5005, %v5005
    %v5134 = vpack.c.bf16 %v5006, %v5006
    %v5135 = vpack.c.bf16 %v5007, %v5007
    %v5136 = vpack.c.bf16 %v5008, %v5008
    %v5137 = vpack.c.bf16 %v5009, %v5009
    %v5138 = vpack.c.bf16 %v5010, %v5010
    %v5139 = vpack.c.bf16 %v5011, %v5011
    %v5140 = vpack.c.bf16 %v5012, %v5012
    %v5141 = vpack.c.bf16 %v5013, %v5013
    %v5142 = vpack.c.bf16 %v5014, %v5014
    %v5143 = vpack.c.bf16 %v5015, %v5015
    %v5144 = vpack.c.bf16 %v5016, %v5016
    %v5145 = vpack.c.bf16 %v5017, %v5017
    %v5146 = vpack.c.bf16 %v5018, %v5018
    %v5147 = vpack.c.bf16 %v5019, %v5019
    %v5148 = vpack.c.bf16 %v5020, %v5020
    %v5149 = vpack.c.bf16 %v5021, %v5021
    %v5150 = vpack.c.bf16 %v5022, %v5022
    %v5151 = vpack.c.bf16 %v5023, %v5023
    %v5152 = vpack.c.bf16 %v5024, %v5024
    %v5153 = vpack.c.bf16 %v5025, %v5025
    %v5154 = vpack.c.bf16 %v5026, %v5026
    %v5155 = vpack.c.bf16 %v5027, %v5027
    %v5156 = vpack.c.bf16 %v5028, %v5028
    %v5157 = vpack.c.bf16 %v5029, %v5029
    %v5158 = vpack.c.bf16 %v5030, %v5030
    %v5159 = vpack.c.bf16 %v5031, %v5031
    %v5160 = vpack.c.bf16 %v5032, %v5032
    %v5161 = vpack.c.bf16 %v5033, %v5033
    %v5162 = vpack.c.bf16 %v5034, %v5034
    %v5163 = vpack.c.bf16 %v5035, %v5035
    %v5164 = vpack.c.bf16 %v5036, %v5036
    %v5165 = vpack.c.bf16 %v5037, %v5037
    %v5166 = vpack.c.bf16 %v5038, %v5038
    %v5167 = vpack.c.bf16 %v5039, %v5039
    %v5168 = vpack.c.bf16 %v5040, %v5040
    %v5169 = vpack.c.bf16 %v5041, %v5041
    %v5170 = vpack.c.bf16 %v5042, %v5042
    %v5171 = vpack.c.bf16 %v5043, %v5043
    %v5172 = vpack.c.bf16 %v5044, %v5044
    %v5173 = vpack.c.bf16 %v5045, %v5045
    %v5174 = vpack.c.bf16 %v5046, %v5046
    %v5175 = vpack.c.bf16 %v5047, %v5047
    %v5176 = vpack.c.bf16 %v5048, %v5048
    %v5177 = vpack.c.bf16 %v5049, %v5049
    %v5178 = vpack.c.bf16 %v5050, %v5050
    %v5179 = vpack.c.bf16 %v5051, %v5051
    %v5180 = vpack.c.bf16 %v5052, %v5052
    %v5181 = vpack.c.bf16 %v5053, %v5053
    %v5182 = vpack.c.bf16 %v5054, %v5054
    %v5183 = vpack.c.bf16 %v5055, %v5055
    %v5184 = vpack.c.bf16 %v5056, %v5056
    %v5185 = vpack.c.bf16 %v5057, %v5057
    %v5186 = vpack.c.bf16 %v5058, %v5058
    %v5187 = vpack.c.bf16 %v5059, %v5059
    %v5188 = vpack.c.bf16 %v5060, %v5060
    %v5189 = vpack.c.bf16 %v5061, %v5061
    %v5190 = vpack.c.bf16 %v5062, %v5062
    %v5191 = vpack.c.bf16 %v5063, %v5063
    %v5192 = vpack.c.bf16 %v5064, %v5064
    %v5193 = vpack.c.bf16 %v5065, %v5065
    %v5194 = vpack.c.bf16 %v5066, %v5066
    %v5195 = vpack.c.bf16 %v5067, %v5067
    %v5196 = vpack.c.bf16 %v5068, %v5068
    %v5197 = vpack.c.bf16 %v5069, %v5069
    %v5198 = vpack.c.bf16 %v5070, %v5070
    %v5199 = vpack.c.bf16 %v5071, %v5071
    %v5200 = vpack.c.bf16 %v5072, %v5072
    %v5201 = vpack.c.bf16 %v5073, %v5073
    %v5202 = vpack.c.bf16 %v5074, %v5074
    %v5203 = vpack.c.bf16 %v5075, %v5075
    %v5204 = vpack.c.bf16 %v5076, %v5076
    %v5205 = vpack.c.bf16 %v5077, %v5077
    %v5206 = vpack.c.bf16 %v5078, %v5078
    %v5207 = vpack.c.bf16 %v5079, %v5079
    %v5208 = vpack.c.bf16 %v5080, %v5080
    %v5209 = vpack.c.bf16 %v5081, %v5081
    %v5210 = vpack.c.bf16 %v5082, %v5082
    %v5211 = vpack.c.bf16 %v5083, %v5083
    %v5212 = vpack.c.bf16 %v5084, %v5084
    %v5213 = vpack.c.bf16 %v5085, %v5085
    %5214 = vst [vmem:[%s4] sm:$0xf] %v5086
    %5215 = vst [vmem:[%s4 + $0x4] sm:$0xf] %v5087
    %5216 = vst [vmem:[%s4 + $0x8] sm:$0xf] %v5088
    %5217 = vst [vmem:[%s4 + $0xc] sm:$0xf] %v5089
    %5218 = vst [vmem:[%s4 + $0x10] sm:$0xf] %v5090
    %5219 = vst [vmem:[%s4 + $0x14] sm:$0xf] %v5091
    %5220 = vst [vmem:[%s4 + $0x18] sm:$0xf] %v5092
    %5221 = vst [vmem:[%s4 + $0x1c] sm:$0xf] %v5093
    %5222 = vst [vmem:[%s4 + $0x20] sm:$0xf] %v5094
    %5223 = vst [vmem:[%s4 + $0x24] sm:$0xf] %v5095
    %5224 = vst [vmem:[%s4 + $0x28] sm:$0xf] %v5096
    %5225 = vst [vmem:[%s4 + $0x2c] sm:$0xf] %v5097
    %5226 = vst [vmem:[%s4 + $0x30] sm:$0xf] %v5098
    %5227 = vst [vmem:[%s4 + $0x34] sm:$0xf] %v5099
    %5228 = vst [vmem:[%s4 + $0x38] sm:$0xf] %v5100
    %5229 = vst [vmem:[%s4 + $0x3c] sm:$0xf] %v5101
    %5230 = vst [vmem:[%s4 + $0x40] sm:$0xf] %v5102
    %5231 = vst [vmem:[%s4 + $0x44] sm:$0xf] %v5103
    %5232 = vst [vmem:[%s4 + $0x48] sm:$0xf] %v5104
    %5233 = vst [vmem:[%s4 + $0x4c] sm:$0xf] %v5105
    %5234 = vst [vmem:[%s4 + $0x50] sm:$0xf] %v5106
    %5235 = vst [vmem:[%s4 + $0x54] sm:$0xf] %v5107
    %5236 = vst [vmem:[%s4 + $0x58] sm:$0xf] %v5108
    %5237 = vst [vmem:[%s4 + $0x5c] sm:$0xf] %v5109
    %5238 = vst [vmem:[%s4 + $0x60] sm:$0xf] %v5110
    %5239 = vst [vmem:[%s4 + $0x64] sm:$0xf] %v5111
    %5240 = vst [vmem:[%s4 + $0x68] sm:$0xf] %v5112
    %5241 = vst [vmem:[%s4 + $0x6c] sm:$0xf] %v5113
    %5242 = vst [vmem:[%s4 + $0x70] sm:$0xf] %v5114
    %5243 = vst [vmem:[%s4 + $0x74] sm:$0xf] %v5115
    %5244 = vst [vmem:[%s4 + $0x78] sm:$0xf] %v5116
    %5245 = vst [vmem:[%s4 + $0x7c] sm:$0xf] %v5117
    %5246 = vst [vmem:[%s4 + $0x80] sm:$0xf] %v5118
    %5247 = vst [vmem:[%s4 + $0x84] sm:$0xf] %v5119
    %5248 = vst [vmem:[%s4 + $0x88] sm:$0xf] %v5120
    %5249 = vst [vmem:[%s4 + $0x8c] sm:$0xf] %v5121
    %5250 = vst [vmem:[%s4 + $0x90] sm:$0xf] %v5122
    %5251 = vst [vmem:[%s4 + $0x94] sm:$0xf] %v5123
    %5252 = vst [vmem:[%s4 + $0x98] sm:$0xf] %v5124
    %5253 = vst [vmem:[%s4 + $0x9c] sm:$0xf] %v5125
    %5254 = vst [vmem:[%s4 + $0xa0] sm:$0xf] %v5126
    %5255 = vst [vmem:[%s4 + $0xa4] sm:$0xf] %v5127
    %5256 = vst [vmem:[%s4 + $0xa8] sm:$0xf] %v5128
    %5257 = vst [vmem:[%s4 + $0xac] sm:$0xf] %v5129
    %5258 = vst [vmem:[%s4 + $0xb0] sm:$0xf] %v5130
    %5259 = vst [vmem:[%s4 + $0xb4] sm:$0xf] %v5131
    %5260 = vst [vmem:[%s4 + $0xb8] sm:$0xf] %v5132
    %5261 = vst [vmem:[%s4 + $0xbc] sm:$0xf] %v5133
    %5262 = vst [vmem:[%s4 + $0xc0] sm:$0xf] %v5134
    %5263 = vst [vmem:[%s4 + $0xc4] sm:$0xf] %v5135
    %5264 = vst [vmem:[%s4 + $0xc8] sm:$0xf] %v5136
    %5265 = vst [vmem:[%s4 + $0xcc] sm:$0xf] %v5137
    %5266 = vst [vmem:[%s4 + $0xd0] sm:$0xf] %v5138
    %5267 = vst [vmem:[%s4 + $0xd4] sm:$0xf] %v5139
    %5268 = vst [vmem:[%s4 + $0xd8] sm:$0xf] %v5140
    %5269 = vst [vmem:[%s4 + $0xdc] sm:$0xf] %v5141
    %5270 = vst [vmem:[%s4 + $0xe0] sm:$0xf] %v5142
    %5271 = vst [vmem:[%s4 + $0xe4] sm:$0xf] %v5143
    %5272 = vst [vmem:[%s4 + $0xe8] sm:$0xf] %v5144
    %5273 = vst [vmem:[%s4 + $0xec] sm:$0xf] %v5145
    %5274 = vst [vmem:[%s4 + $0xf0] sm:$0xf] %v5146
    %5275 = vst [vmem:[%s4 + $0xf4] sm:$0xf] %v5147
    %5276 = vst [vmem:[%s4 + $0xf8] sm:$0xf] %v5148
    %5277 = vst [vmem:[%s4 + $0xfc] sm:$0xf] %v5149
    %5278 = vst [vmem:[%s4 + $0x100] sm:$0xf] %v5150
    %5279 = vst [vmem:[%s4 + $0x104] sm:$0xf] %v5151
    %5280 = vst [vmem:[%s4 + $0x108] sm:$0xf] %v5152
    %5281 = vst [vmem:[%s4 + $0x10c] sm:$0xf] %v5153
    %5282 = vst [vmem:[%s4 + $0x110] sm:$0xf] %v5154
    %5283 = vst [vmem:[%s4 + $0x114] sm:$0xf] %v5155
    %5284 = vst [vmem:[%s4 + $0x118] sm:$0xf] %v5156
    %5285 = vst [vmem:[%s4 + $0x11c] sm:$0xf] %v5157
    %5286 = vst [vmem:[%s4 + $0x120] sm:$0xf] %v5158
    %5287 = vst [vmem:[%s4 + $0x124] sm:$0xf] %v5159
    %5288 = vst [vmem:[%s4 + $0x128] sm:$0xf] %v5160
    %5289 = vst [vmem:[%s4 + $0x12c] sm:$0xf] %v5161
    %5290 = vst [vmem:[%s4 + $0x130] sm:$0xf] %v5162
    %5291 = vst [vmem:[%s4 + $0x134] sm:$0xf] %v5163
    %5292 = vst [vmem:[%s4 + $0x138] sm:$0xf] %v5164
    %5293 = vst [vmem:[%s4 + $0x13c] sm:$0xf] %v5165
    %5294 = vst [vmem:[%s4 + $0x140] sm:$0xf] %v5166
    %5295 = vst [vmem:[%s4 + $0x144] sm:$0xf] %v5167
    %5296 = vst [vmem:[%s4 + $0x148] sm:$0xf] %v5168
    %5297 = vst [vmem:[%s4 + $0x14c] sm:$0xf] %v5169
    %5298 = vst [vmem:[%s4 + $0x150] sm:$0xf] %v5170
    %5299 = vst [vmem:[%s4 + $0x154] sm:$0xf] %v5171
    %5300 = vst [vmem:[%s4 + $0x158] sm:$0xf] %v5172
    %5301 = vst [vmem:[%s4 + $0x15c] sm:$0xf] %v5173
    %5302 = vst [vmem:[%s4 + $0x160] sm:$0xf] %v5174
    %5303 = vst [vmem:[%s4 + $0x164] sm:$0xf] %v5175
    %5304 = vst [vmem:[%s4 + $0x168] sm:$0xf] %v5176
    %5305 = vst [vmem:[%s4 + $0x16c] sm:$0xf] %v5177
    %5306 = vst [vmem:[%s4 + $0x170] sm:$0xf] %v5178
    %5307 = vst [vmem:[%s4 + $0x174] sm:$0xf] %v5179
    %5308 = vst [vmem:[%s4 + $0x178] sm:$0xf] %v5180
    %5309 = vst [vmem:[%s4 + $0x17c] sm:$0xf] %v5181
    %5310 = vst [vmem:[%s4 + $0x180] sm:$0xf] %v5182
    %5311 = vst [vmem:[%s4 + $0x184] sm:$0xf] %v5183
    %5312 = vst [vmem:[%s4 + $0x188] sm:$0xf] %v5184
    %5313 = vst [vmem:[%s4 + $0x18c] sm:$0xf] %v5185
    %5314 = vst [vmem:[%s4 + $0x190] sm:$0xf] %v5186
    %5315 = vst [vmem:[%s4 + $0x194] sm:$0xf] %v5187
    %5316 = vst [vmem:[%s4 + $0x198] sm:$0xf] %v5188
    %5317 = vst [vmem:[%s4 + $0x19c] sm:$0xf] %v5189
    %5318 = vst [vmem:[%s4 + $0x1a0] sm:$0xf] %v5190
    %5319 = vst [vmem:[%s4 + $0x1a4] sm:$0xf] %v5191
    %5320 = vst [vmem:[%s4 + $0x1a8] sm:$0xf] %v5192
    %5321 = vst [vmem:[%s4 + $0x1ac] sm:$0xf] %v5193
    %5322 = vst [vmem:[%s4 + $0x1b0] sm:$0xf] %v5194
    %5323 = vst [vmem:[%s4 + $0x1b4] sm:$0xf] %v5195
    %5324 = vst [vmem:[%s4 + $0x1b8] sm:$0xf] %v5196
    %5325 = vst [vmem:[%s4 + $0x1bc] sm:$0xf] %v5197
    %5326 = vst [vmem:[%s4 + $0x1c0] sm:$0xf] %v5198
    %5327 = vst [vmem:[%s4 + $0x1c4] sm:$0xf] %v5199
    %5328 = vst [vmem:[%s4 + $0x1c8] sm:$0xf] %v5200
    %5329 = vst [vmem:[%s4 + $0x1cc] sm:$0xf] %v5201
    %5330 = vst [vmem:[%s4 + $0x1d0] sm:$0xf] %v5202
    %5331 = vst [vmem:[%s4 + $0x1d4] sm:$0xf] %v5203
    %5332 = vst [vmem:[%s4 + $0x1d8] sm:$0xf] %v5204
    %5333 = vst [vmem:[%s4 + $0x1dc] sm:$0xf] %v5205
    %5334 = vst [vmem:[%s4 + $0x1e0] sm:$0xf] %v5206
    %5335 = vst [vmem:[%s4 + $0x1e4] sm:$0xf] %v5207
    %5336 = vst [vmem:[%s4 + $0x1e8] sm:$0xf] %v5208
    %5337 = vst [vmem:[%s4 + $0x1ec] sm:$0xf] %v5209
    %5338 = vst [vmem:[%s4 + $0x1f0] sm:$0xf] %v5210
    %5339 = vst [vmem:[%s4 + $0x1f4] sm:$0xf] %v5211
    %5340 = vst [vmem:[%s4 + $0x1f8] sm:$0xf] %v5212
    %5341 = vst [vmem:[%s4 + $0x1fc] sm:$0xf] %v5213
  $region25: #{discriminator_forward.6} parent=0 // pred_fallthru
    _
  // Predicated region
  $region26: #{discriminator_forward.6} parent=0 // pred_check
    _
  $region27: #{discriminator_forward.6} parent=0 // pred_check_branch
    %5343 = sbr.rel (0) target = $region29
  $region28: #{discriminator_forward.6} parent=0 // pred_region
    _
  $region29: #{discriminator_forward.6} parent=0 // pred_fallthru
    _
  // Predicated region
  $region30: #{discriminator_forward.6} parent=0 // pred_check
    _
  $region31: #{discriminator_forward.6} parent=0 // pred_check_branch
    %5345 = sbr.rel (0) target = $region33
  $region32: #{discriminator_forward.6} parent=0 // pred_region
    _
  $region33: #{discriminator_forward.6} parent=0 // pred_fallthru
    _

// kernel: discriminator_forward.7
$region0: #{discriminator_forward.7}
  #allocation0 [shape = 'u32[]', space=smem, size = 0x4, offset = 0x4, fixed_abs, tag = 'smem constant byte address 0x4 - core index']
  #allocation1 [shape = 'u32[72,128]{1,0:T(1,128)}', space=vmem, size = 0x9000, scoped, tag = 'internal scratch']
  #allocation2 [shape = 'f32[128,128]{1,0:T(8,128)}', space=vmem, size = 0x10000, scoped, tag = 'scratch operand']
  %s0 = inlined_call_operand.vmem [shape: bf16[128,1024], index: 0, kind: input, shape index: {}]
  %s1 = inlined_call_operand.vmem [shape: bf16[1024,128], index: 1, kind: input, shape index: {}]
  %s2 = inlined_call_operand.vmem [shape: f32[1,128], index: 2, kind: input, shape index: {}]
  %s3 = inlined_call_operand.vmem [shape: f32[1,128], index: 3, kind: input, shape index: {}]
  %s4 = inlined_call_operand.vmem [shape: bf16[128,128], index: 4, kind: output, shape index: {}]
  %s5 = sld [smem:[#allocation0]]
  $region34: #{discriminator_forward.7} parent=0
    _
  %s7 = ssub.s32 1, %s5
  %s8 = scalar_select 0, %s7, %s5
  // Predicated region
  $region2: #{discriminator_forward.7} parent=0 // pred_check
    _
  $region3: #{discriminator_forward.7} parent=0 // pred_check_branch
    %10 = sbr.rel (0) target = $region5
  $region4: #{discriminator_forward.7} parent=0 // pred_region
    _
  $region5: #{discriminator_forward.7} parent=0 // pred_fallthru
    _
  // Predicated region
  $region6: #{discriminator_forward.7} parent=0 // pred_check
    _
  $region7: #{discriminator_forward.7} parent=0 // pred_check_branch
    %12 = sbr.rel (0) target = $region9
  $region8: #{discriminator_forward.7} parent=0 // pred_region
    _
  $region9: #{discriminator_forward.7} parent=0 // pred_fallthru
    _
  // Predicated region
  $region10: #{discriminator_forward.7} parent=0 // pred_check
    _
  $region11: #{discriminator_forward.7} parent=0 // pred_check_branch
    %14 = sbr.rel (0) target = $region13
  $region12: #{discriminator_forward.7} parent=0 // pred_region
    _
  $region13: #{discriminator_forward.7} parent=0 // pred_fallthru
    _
  // Predicated region
  $region14: #{discriminator_forward.7} parent=0 // pred_check
    _
  $region15: #{discriminator_forward.7} parent=0 // pred_check_branch
    %16 = sbr.rel (0) target = $region17
  $region16: #{discriminator_forward.7} parent=0 // pred_region
    _
  $region17: #{discriminator_forward.7} parent=0 // pred_fallthru
    _
  %p17 = scmp.eq.s32.totalorder 0, 0
  // Predicated region
  $region18: #{discriminator_forward.7} parent=0 // pred_check
    %p18 = pneg %p17
  $region19: #{discriminator_forward.7} parent=0 // pred_check_branch
    %20 = sbr.rel (%p18) target = $region21
  $region20: #{discriminator_forward.7} parent=0 // pred_region
    %21 = vst [vmem:[#allocation2] sm:$0xff] 0.0
    %22 = vst [vmem:[#allocation2 + $0x8] sm:$0xff] 0.0
    %23 = vst [vmem:[#allocation2 + $0x10] sm:$0xff] 0.0
    %24 = vst [vmem:[#allocation2 + $0x18] sm:$0xff] 0.0
    %25 = vst [vmem:[#allocation2 + $0x20] sm:$0xff] 0.0
    %26 = vst [vmem:[#allocation2 + $0x28] sm:$0xff] 0.0
    %27 = vst [vmem:[#allocation2 + $0x30] sm:$0xff] 0.0
    %28 = vst [vmem:[#allocation2 + $0x38] sm:$0xff] 0.0
    %29 = vst [vmem:[#allocation2 + $0x40] sm:$0xff] 0.0
    %30 = vst [vmem:[#allocation2 + $0x48] sm:$0xff] 0.0
    %31 = vst [vmem:[#allocation2 + $0x50] sm:$0xff] 0.0
    %32 = vst [vmem:[#allocation2 + $0x58] sm:$0xff] 0.0
    %33 = vst [vmem:[#allocation2 + $0x60] sm:$0xff] 0.0
    %34 = vst [vmem:[#allocation2 + $0x68] sm:$0xff] 0.0
    %35 = vst [vmem:[#allocation2 + $0x70] sm:$0xff] 0.0
    %36 = vst [vmem:[#allocation2 + $0x78] sm:$0xff] 0.0
  $region21: #{discriminator_forward.7} parent=0 // pred_fallthru
    _
  %v37 = vld [vmem:[#allocation2] sm:$0xff]
  %v38 = vld [vmem:[#allocation2 + $0x8] sm:$0xff]
  %v39 = vld [vmem:[#allocation2 + $0x10] sm:$0xff]
  %v40 = vld [vmem:[#allocation2 + $0x18] sm:$0xff]
  %v41 = vld [vmem:[#allocation2 + $0x20] sm:$0xff]
  %v42 = vld [vmem:[#allocation2 + $0x28] sm:$0xff]
  %v43 = vld [vmem:[#allocation2 + $0x30] sm:$0xff]
  %v44 = vld [vmem:[#allocation2 + $0x38] sm:$0xff]
  %v45 = vld [vmem:[#allocation2 + $0x40] sm:$0xff]
  %v46 = vld [vmem:[#allocation2 + $0x48] sm:$0xff]
  %v47 = vld [vmem:[#allocation2 + $0x50] sm:$0xff]
  %v48 = vld [vmem:[#allocation2 + $0x58] sm:$0xff]
  %v49 = vld [vmem:[#allocation2 + $0x60] sm:$0xff]
  %v50 = vld [vmem:[#allocation2 + $0x68] sm:$0xff]
  %v51 = vld [vmem:[#allocation2 + $0x70] sm:$0xff]
  %v52 = vld [vmem:[#allocation2 + $0x78] sm:$0xff]
  %v53 = vld [vmem:[%s0] sm:$0xff]
  %v54 = vld [vmem:[%s0 + $0x8] sm:$0xff]
  %v55 = vld [vmem:[%s0 + $0x10] sm:$0xff]
  %v56 = vld [vmem:[%s0 + $0x18] sm:$0xff]
  %v57 = vld [vmem:[%s0 + $0x20] sm:$0xff]
  %v58 = vld [vmem:[%s0 + $0x28] sm:$0xff]
  %v59 = vld [vmem:[%s0 + $0x30] sm:$0xff]
  %v60 = vld [vmem:[%s0 + $0x38] sm:$0xff]
  %v61 = vld [vmem:[%s0 + $0x40] sm:$0xff]
  %v62 = vld [vmem:[%s0 + $0x48] sm:$0xff]
  %v63 = vld [vmem:[%s0 + $0x50] sm:$0xff]
  %v64 = vld [vmem:[%s0 + $0x58] sm:$0xff]
  %v65 = vld [vmem:[%s0 + $0x60] sm:$0xff]
  %v66 = vld [vmem:[%s0 + $0x68] sm:$0xff]
  %v67 = vld [vmem:[%s0 + $0x70] sm:$0xff]
  %v68 = vld [vmem:[%s0 + $0x78] sm:$0xff]
  %v69 = vld [vmem:[%s0 + $0x80] sm:$0xff]
  %v70 = vld [vmem:[%s0 + $0x88] sm:$0xff]
  %v71 = vld [vmem:[%s0 + $0x90] sm:$0xff]
  %v72 = vld [vmem:[%s0 + $0x98] sm:$0xff]
  %v73 = vld [vmem:[%s0 + $0xa0] sm:$0xff]
  %v74 = vld [vmem:[%s0 + $0xa8] sm:$0xff]
  %v75 = vld [vmem:[%s0 + $0xb0] sm:$0xff]
  %v76 = vld [vmem:[%s0 + $0xb8] sm:$0xff]
  %v77 = vld [vmem:[%s0 + $0xc0] sm:$0xff]
  %v78 = vld [vmem:[%s0 + $0xc8] sm:$0xff]
  %v79 = vld [vmem:[%s0 + $0xd0] sm:$0xff]
  %v80 = vld [vmem:[%s0 + $0xd8] sm:$0xff]
  %v81 = vld [vmem:[%s0 + $0xe0] sm:$0xff]
  %v82 = vld [vmem:[%s0 + $0xe8] sm:$0xff]
  %v83 = vld [vmem:[%s0 + $0xf0] sm:$0xff]
  %v84 = vld [vmem:[%s0 + $0xf8] sm:$0xff]
  %v85 = vld [vmem:[%s0 + $0x100] sm:$0xff]
  %v86 = vld [vmem:[%s0 + $0x108] sm:$0xff]
  %v87 = vld [vmem:[%s0 + $0x110] sm:$0xff]
  %v88 = vld [vmem:[%s0 + $0x118] sm:$0xff]
  %v89 = vld [vmem:[%s0 + $0x120] sm:$0xff]
  %v90 = vld [vmem:[%s0 + $0x128] sm:$0xff]
  %v91 = vld [vmem:[%s0 + $0x130] sm:$0xff]
  %v92 = vld [vmem:[%s0 + $0x138] sm:$0xff]
  %v93 = vld [vmem:[%s0 + $0x140] sm:$0xff]
  %v94 = vld [vmem:[%s0 + $0x148] sm:$0xff]
  %v95 = vld [vmem:[%s0 + $0x150] sm:$0xff]
  %v96 = vld [vmem:[%s0 + $0x158] sm:$0xff]
  %v97 = vld [vmem:[%s0 + $0x160] sm:$0xff]
  %v98 = vld [vmem:[%s0 + $0x168] sm:$0xff]
  %v99 = vld [vmem:[%s0 + $0x170] sm:$0xff]
  %v100 = vld [vmem:[%s0 + $0x178] sm:$0xff]
  %v101 = vld [vmem:[%s0 + $0x180] sm:$0xff]
  %v102 = vld [vmem:[%s0 + $0x188] sm:$0xff]
  %v103 = vld [vmem:[%s0 + $0x190] sm:$0xff]
  %v104 = vld [vmem:[%s0 + $0x198] sm:$0xff]
  %v105 = vld [vmem:[%s0 + $0x1a0] sm:$0xff]
  %v106 = vld [vmem:[%s0 + $0x1a8] sm:$0xff]
  %v107 = vld [vmem:[%s0 + $0x1b0] sm:$0xff]
  %v108 = vld [vmem:[%s0 + $0x1b8] sm:$0xff]
  %v109 = vld [vmem:[%s0 + $0x1c0] sm:$0xff]
  %v110 = vld [vmem:[%s0 + $0x1c8] sm:$0xff]
  %v111 = vld [vmem:[%s0 + $0x1d0] sm:$0xff]
  %v112 = vld [vmem:[%s0 + $0x1d8] sm:$0xff]
  %v113 = vld [vmem:[%s0 + $0x1e0] sm:$0xff]
  %v114 = vld [vmem:[%s0 + $0x1e8] sm:$0xff]
  %v115 = vld [vmem:[%s0 + $0x1f0] sm:$0xff]
  %v116 = vld [vmem:[%s0 + $0x1f8] sm:$0xff]
  %v117 = vld [vmem:[%s1] sm:$0xf]
  %v118 = vld [vmem:[%s1 + $0x4] sm:$0xf]
  %v119 = vld [vmem:[%s1 + $0x8] sm:$0xf]
  %v120 = vld [vmem:[%s1 + $0xc] sm:$0xf]
  %v121 = vld [vmem:[%s1 + $0x10] sm:$0xf]
  %v122 = vld [vmem:[%s1 + $0x14] sm:$0xf]
  %v123 = vld [vmem:[%s1 + $0x18] sm:$0xf]
  %v124 = vld [vmem:[%s1 + $0x1c] sm:$0xf]
  %v125 = vld [vmem:[%s1 + $0x20] sm:$0xf]
  %v126 = vld [vmem:[%s1 + $0x24] sm:$0xf]
  %v127 = vld [vmem:[%s1 + $0x28] sm:$0xf]
  %v128 = vld [vmem:[%s1 + $0x2c] sm:$0xf]
  %v129 = vld [vmem:[%s1 + $0x30] sm:$0xf]
  %v130 = vld [vmem:[%s1 + $0x34] sm:$0xf]
  %v131 = vld [vmem:[%s1 + $0x38] sm:$0xf]
  %v132 = vld [vmem:[%s1 + $0x3c] sm:$0xf]
  %v133 = vld [vmem:[%s1 + $0x40] sm:$0xf]
  %v134 = vld [vmem:[%s1 + $0x44] sm:$0xf]
  %v135 = vld [vmem:[%s1 + $0x48] sm:$0xf]
  %v136 = vld [vmem:[%s1 + $0x4c] sm:$0xf]
  %v137 = vld [vmem:[%s1 + $0x50] sm:$0xf]
  %v138 = vld [vmem:[%s1 + $0x54] sm:$0xf]
  %v139 = vld [vmem:[%s1 + $0x58] sm:$0xf]
  %v140 = vld [vmem:[%s1 + $0x5c] sm:$0xf]
  %v141 = vld [vmem:[%s1 + $0x60] sm:$0xf]
  %v142 = vld [vmem:[%s1 + $0x64] sm:$0xf]
  %v143 = vld [vmem:[%s1 + $0x68] sm:$0xf]
  %v144 = vld [vmem:[%s1 + $0x6c] sm:$0xf]
  %v145 = vld [vmem:[%s1 + $0x70] sm:$0xf]
  %v146 = vld [vmem:[%s1 + $0x74] sm:$0xf]
  %v147 = vld [vmem:[%s1 + $0x78] sm:$0xf]
  %v148 = vld [vmem:[%s1 + $0x7c] sm:$0xf]
  %v149 = vld [vmem:[%s1 + $0x80] sm:$0xf]
  %v150 = vld [vmem:[%s1 + $0x84] sm:$0xf]
  %v151 = vld [vmem:[%s1 + $0x88] sm:$0xf]
  %v152 = vld [vmem:[%s1 + $0x8c] sm:$0xf]
  %v153 = vld [vmem:[%s1 + $0x90] sm:$0xf]
  %v154 = vld [vmem:[%s1 + $0x94] sm:$0xf]
  %v155 = vld [vmem:[%s1 + $0x98] sm:$0xf]
  %v156 = vld [vmem:[%s1 + $0x9c] sm:$0xf]
  %v157 = vld [vmem:[%s1 + $0xa0] sm:$0xf]
  %v158 = vld [vmem:[%s1 + $0xa4] sm:$0xf]
  %v159 = vld [vmem:[%s1 + $0xa8] sm:$0xf]
  %v160 = vld [vmem:[%s1 + $0xac] sm:$0xf]
  %v161 = vld [vmem:[%s1 + $0xb0] sm:$0xf]
  %v162 = vld [vmem:[%s1 + $0xb4] sm:$0xf]
  %v163 = vld [vmem:[%s1 + $0xb8] sm:$0xf]
  %v164 = vld [vmem:[%s1 + $0xbc] sm:$0xf]
  %v165 = vld [vmem:[%s1 + $0xc0] sm:$0xf]
  %v166 = vld [vmem:[%s1 + $0xc4] sm:$0xf]
  %v167 = vld [vmem:[%s1 + $0xc8] sm:$0xf]
  %v168 = vld [vmem:[%s1 + $0xcc] sm:$0xf]
  %v169 = vld [vmem:[%s1 + $0xd0] sm:$0xf]
  %v170 = vld [vmem:[%s1 + $0xd4] sm:$0xf]
  %v171 = vld [vmem:[%s1 + $0xd8] sm:$0xf]
  %v172 = vld [vmem:[%s1 + $0xdc] sm:$0xf]
  %v173 = vld [vmem:[%s1 + $0xe0] sm:$0xf]
  %v174 = vld [vmem:[%s1 + $0xe4] sm:$0xf]
  %v175 = vld [vmem:[%s1 + $0xe8] sm:$0xf]
  %v176 = vld [vmem:[%s1 + $0xec] sm:$0xf]
  %v177 = vld [vmem:[%s1 + $0xf0] sm:$0xf]
  %v178 = vld [vmem:[%s1 + $0xf4] sm:$0xf]
  %v179 = vld [vmem:[%s1 + $0xf8] sm:$0xf]
  %v180 = vld [vmem:[%s1 + $0xfc] sm:$0xf]
  %v181 = vld [vmem:[%s1 + $0x100] sm:$0xf]
  %v182 = vld [vmem:[%s1 + $0x104] sm:$0xf]
  %v183 = vld [vmem:[%s1 + $0x108] sm:$0xf]
  %v184 = vld [vmem:[%s1 + $0x10c] sm:$0xf]
  %v185 = vld [vmem:[%s1 + $0x110] sm:$0xf]
  %v186 = vld [vmem:[%s1 + $0x114] sm:$0xf]
  %v187 = vld [vmem:[%s1 + $0x118] sm:$0xf]
  %v188 = vld [vmem:[%s1 + $0x11c] sm:$0xf]
  %v189 = vld [vmem:[%s1 + $0x120] sm:$0xf]
  %v190 = vld [vmem:[%s1 + $0x124] sm:$0xf]
  %v191 = vld [vmem:[%s1 + $0x128] sm:$0xf]
  %v192 = vld [vmem:[%s1 + $0x12c] sm:$0xf]
  %v193 = vld [vmem:[%s1 + $0x130] sm:$0xf]
  %v194 = vld [vmem:[%s1 + $0x134] sm:$0xf]
  %v195 = vld [vmem:[%s1 + $0x138] sm:$0xf]
  %v196 = vld [vmem:[%s1 + $0x13c] sm:$0xf]
  %v197 = vld [vmem:[%s1 + $0x140] sm:$0xf]
  %v198 = vld [vmem:[%s1 + $0x144] sm:$0xf]
  %v199 = vld [vmem:[%s1 + $0x148] sm:$0xf]
  %v200 = vld [vmem:[%s1 + $0x14c] sm:$0xf]
  %v201 = vld [vmem:[%s1 + $0x150] sm:$0xf]
  %v202 = vld [vmem:[%s1 + $0x154] sm:$0xf]
  %v203 = vld [vmem:[%s1 + $0x158] sm:$0xf]
  %v204 = vld [vmem:[%s1 + $0x15c] sm:$0xf]
  %v205 = vld [vmem:[%s1 + $0x160] sm:$0xf]
  %v206 = vld [vmem:[%s1 + $0x164] sm:$0xf]
  %v207 = vld [vmem:[%s1 + $0x168] sm:$0xf]
  %v208 = vld [vmem:[%s1 + $0x16c] sm:$0xf]
  %v209 = vld [vmem:[%s1 + $0x170] sm:$0xf]
  %v210 = vld [vmem:[%s1 + $0x174] sm:$0xf]
  %v211 = vld [vmem:[%s1 + $0x178] sm:$0xf]
  %v212 = vld [vmem:[%s1 + $0x17c] sm:$0xf]
  %v213 = vld [vmem:[%s1 + $0x180] sm:$0xf]
  %v214 = vld [vmem:[%s1 + $0x184] sm:$0xf]
  %v215 = vld [vmem:[%s1 + $0x188] sm:$0xf]
  %v216 = vld [vmem:[%s1 + $0x18c] sm:$0xf]
  %v217 = vld [vmem:[%s1 + $0x190] sm:$0xf]
  %v218 = vld [vmem:[%s1 + $0x194] sm:$0xf]
  %v219 = vld [vmem:[%s1 + $0x198] sm:$0xf]
  %v220 = vld [vmem:[%s1 + $0x19c] sm:$0xf]
  %v221 = vld [vmem:[%s1 + $0x1a0] sm:$0xf]
  %v222 = vld [vmem:[%s1 + $0x1a4] sm:$0xf]
  %v223 = vld [vmem:[%s1 + $0x1a8] sm:$0xf]
  %v224 = vld [vmem:[%s1 + $0x1ac] sm:$0xf]
  %v225 = vld [vmem:[%s1 + $0x1b0] sm:$0xf]
  %v226 = vld [vmem:[%s1 + $0x1b4] sm:$0xf]
  %v227 = vld [vmem:[%s1 + $0x1b8] sm:$0xf]
  %v228 = vld [vmem:[%s1 + $0x1bc] sm:$0xf]
  %v229 = vld [vmem:[%s1 + $0x1c0] sm:$0xf]
  %v230 = vld [vmem:[%s1 + $0x1c4] sm:$0xf]
  %v231 = vld [vmem:[%s1 + $0x1c8] sm:$0xf]
  %v232 = vld [vmem:[%s1 + $0x1cc] sm:$0xf]
  %v233 = vld [vmem:[%s1 + $0x1d0] sm:$0xf]
  %v234 = vld [vmem:[%s1 + $0x1d4] sm:$0xf]
  %v235 = vld [vmem:[%s1 + $0x1d8] sm:$0xf]
  %v236 = vld [vmem:[%s1 + $0x1dc] sm:$0xf]
  %v237 = vld [vmem:[%s1 + $0x1e0] sm:$0xf]
  %v238 = vld [vmem:[%s1 + $0x1e4] sm:$0xf]
  %v239 = vld [vmem:[%s1 + $0x1e8] sm:$0xf]
  %v240 = vld [vmem:[%s1 + $0x1ec] sm:$0xf]
  %v241 = vld [vmem:[%s1 + $0x1f0] sm:$0xf]
  %v242 = vld [vmem:[%s1 + $0x1f4] sm:$0xf]
  %v243 = vld [vmem:[%s1 + $0x1f8] sm:$0xf]
  %v244 = vld [vmem:[%s1 + $0x1fc] sm:$0xf]
  %v309 = vunpack.c.l.b16 %v53
  %v310 = vunpack.c.h.b16 %v53
  %v311 = vunpack.c.l.b16 %v54
  %v312 = vunpack.c.h.b16 %v54
  %v313 = vunpack.c.l.b16 %v55
  %v314 = vunpack.c.h.b16 %v55
  %v315 = vunpack.c.l.b16 %v56
  %v316 = vunpack.c.h.b16 %v56
  %v317 = vunpack.c.l.b16 %v57
  %v318 = vunpack.c.h.b16 %v57
  %v319 = vunpack.c.l.b16 %v58
  %v320 = vunpack.c.h.b16 %v58
  %v321 = vunpack.c.l.b16 %v59
  %v322 = vunpack.c.h.b16 %v59
  %v323 = vunpack.c.l.b16 %v60
  %v324 = vunpack.c.h.b16 %v60
  %v325 = vunpack.c.l.b16 %v61
  %v326 = vunpack.c.h.b16 %v61
  %v327 = vunpack.c.l.b16 %v62
  %v328 = vunpack.c.h.b16 %v62
  %v329 = vunpack.c.l.b16 %v63
  %v330 = vunpack.c.h.b16 %v63
  %v331 = vunpack.c.l.b16 %v64
  %v332 = vunpack.c.h.b16 %v64
  %v333 = vunpack.c.l.b16 %v65
  %v334 = vunpack.c.h.b16 %v65
  %v335 = vunpack.c.l.b16 %v66
  %v336 = vunpack.c.h.b16 %v66
  %v337 = vunpack.c.l.b16 %v67
  %v338 = vunpack.c.h.b16 %v67
  %v339 = vunpack.c.l.b16 %v68
  %v340 = vunpack.c.h.b16 %v68
  %v341 = vunpack.c.l.b16 %v69
  %v342 = vunpack.c.h.b16 %v69
  %v343 = vunpack.c.l.b16 %v70
  %v344 = vunpack.c.h.b16 %v70
  %v345 = vunpack.c.l.b16 %v71
  %v346 = vunpack.c.h.b16 %v71
  %v347 = vunpack.c.l.b16 %v72
  %v348 = vunpack.c.h.b16 %v72
  %v349 = vunpack.c.l.b16 %v73
  %v350 = vunpack.c.h.b16 %v73
  %v351 = vunpack.c.l.b16 %v74
  %v352 = vunpack.c.h.b16 %v74
  %v353 = vunpack.c.l.b16 %v75
  %v354 = vunpack.c.h.b16 %v75
  %v355 = vunpack.c.l.b16 %v76
  %v356 = vunpack.c.h.b16 %v76
  %v357 = vunpack.c.l.b16 %v77
  %v358 = vunpack.c.h.b16 %v77
  %v359 = vunpack.c.l.b16 %v78
  %v360 = vunpack.c.h.b16 %v78
  %v361 = vunpack.c.l.b16 %v79
  %v362 = vunpack.c.h.b16 %v79
  %v363 = vunpack.c.l.b16 %v80
  %v364 = vunpack.c.h.b16 %v80
  %v365 = vunpack.c.l.b16 %v81
  %v366 = vunpack.c.h.b16 %v81
  %v367 = vunpack.c.l.b16 %v82
  %v368 = vunpack.c.h.b16 %v82
  %v369 = vunpack.c.l.b16 %v83
  %v370 = vunpack.c.h.b16 %v83
  %v371 = vunpack.c.l.b16 %v84
  %v372 = vunpack.c.h.b16 %v84
  %v373 = vunpack.c.l.b16 %v85
  %v374 = vunpack.c.h.b16 %v85
  %v375 = vunpack.c.l.b16 %v86
  %v376 = vunpack.c.h.b16 %v86
  %v377 = vunpack.c.l.b16 %v87
  %v378 = vunpack.c.h.b16 %v87
  %v379 = vunpack.c.l.b16 %v88
  %v380 = vunpack.c.h.b16 %v88
  %v381 = vunpack.c.l.b16 %v89
  %v382 = vunpack.c.h.b16 %v89
  %v383 = vunpack.c.l.b16 %v90
  %v384 = vunpack.c.h.b16 %v90
  %v385 = vunpack.c.l.b16 %v91
  %v386 = vunpack.c.h.b16 %v91
  %v387 = vunpack.c.l.b16 %v92
  %v388 = vunpack.c.h.b16 %v92
  %v389 = vunpack.c.l.b16 %v93
  %v390 = vunpack.c.h.b16 %v93
  %v391 = vunpack.c.l.b16 %v94
  %v392 = vunpack.c.h.b16 %v94
  %v393 = vunpack.c.l.b16 %v95
  %v394 = vunpack.c.h.b16 %v95
  %v395 = vunpack.c.l.b16 %v96
  %v396 = vunpack.c.h.b16 %v96
  %v397 = vunpack.c.l.b16 %v97
  %v398 = vunpack.c.h.b16 %v97
  %v399 = vunpack.c.l.b16 %v98
  %v400 = vunpack.c.h.b16 %v98
  %v401 = vunpack.c.l.b16 %v99
  %v402 = vunpack.c.h.b16 %v99
  %v403 = vunpack.c.l.b16 %v100
  %v404 = vunpack.c.h.b16 %v100
  %v405 = vunpack.c.l.b16 %v101
  %v406 = vunpack.c.h.b16 %v101
  %v407 = vunpack.c.l.b16 %v102
  %v408 = vunpack.c.h.b16 %v102
  %v409 = vunpack.c.l.b16 %v103
  %v410 = vunpack.c.h.b16 %v103
  %v411 = vunpack.c.l.b16 %v104
  %v412 = vunpack.c.h.b16 %v104
  %v413 = vunpack.c.l.b16 %v105
  %v414 = vunpack.c.h.b16 %v105
  %v415 = vunpack.c.l.b16 %v106
  %v416 = vunpack.c.h.b16 %v106
  %v417 = vunpack.c.l.b16 %v107
  %v418 = vunpack.c.h.b16 %v107
  %v419 = vunpack.c.l.b16 %v108
  %v420 = vunpack.c.h.b16 %v108
  %v421 = vunpack.c.l.b16 %v109
  %v422 = vunpack.c.h.b16 %v109
  %v423 = vunpack.c.l.b16 %v110
  %v424 = vunpack.c.h.b16 %v110
  %v425 = vunpack.c.l.b16 %v111
  %v426 = vunpack.c.h.b16 %v111
  %v427 = vunpack.c.l.b16 %v112
  %v428 = vunpack.c.h.b16 %v112
  %v429 = vunpack.c.l.b16 %v113
  %v430 = vunpack.c.h.b16 %v113
  %v431 = vunpack.c.l.b16 %v114
  %v432 = vunpack.c.h.b16 %v114
  %v433 = vunpack.c.l.b16 %v115
  %v434 = vunpack.c.h.b16 %v115
  %v435 = vunpack.c.l.b16 %v116
  %v436 = vunpack.c.h.b16 %v116
  %v437 = vpack.c.b16 %v317, %v309
  %v438 = vpack.c.b16 %v318, %v310
  %v439 = vpack.c.b16 %v319, %v311
  %v440 = vpack.c.b16 %v320, %v312
  %v441 = vpack.c.b16 %v321, %v313
  %v442 = vpack.c.b16 %v322, %v314
  %v443 = vpack.c.b16 %v323, %v315
  %v444 = vpack.c.b16 %v324, %v316
  %v445 = vpack.c.b16 %v333, %v325
  %v446 = vpack.c.b16 %v334, %v326
  %v447 = vpack.c.b16 %v335, %v327
  %v448 = vpack.c.b16 %v336, %v328
  %v449 = vpack.c.b16 %v337, %v329
  %v450 = vpack.c.b16 %v338, %v330
  %v451 = vpack.c.b16 %v339, %v331
  %v452 = vpack.c.b16 %v340, %v332
  %v453 = vpack.c.b16 %v349, %v341
  %v454 = vpack.c.b16 %v350, %v342
  %v455 = vpack.c.b16 %v351, %v343
  %v456 = vpack.c.b16 %v352, %v344
  %v457 = vpack.c.b16 %v353, %v345
  %v458 = vpack.c.b16 %v354, %v346
  %v459 = vpack.c.b16 %v355, %v347
  %v460 = vpack.c.b16 %v356, %v348
  %v461 = vpack.c.b16 %v365, %v357
  %v462 = vpack.c.b16 %v366, %v358
  %v463 = vpack.c.b16 %v367, %v359
  %v464 = vpack.c.b16 %v368, %v360
  %v465 = vpack.c.b16 %v369, %v361
  %v466 = vpack.c.b16 %v370, %v362
  %v467 = vpack.c.b16 %v371, %v363
  %v468 = vpack.c.b16 %v372, %v364
  %v469 = vpack.c.b16 %v381, %v373
  %v470 = vpack.c.b16 %v382, %v374
  %v471 = vpack.c.b16 %v383, %v375
  %v472 = vpack.c.b16 %v384, %v376
  %v473 = vpack.c.b16 %v385, %v377
  %v474 = vpack.c.b16 %v386, %v378
  %v475 = vpack.c.b16 %v387, %v379
  %v476 = vpack.c.b16 %v388, %v380
  %v477 = vpack.c.b16 %v397, %v389
  %v478 = vpack.c.b16 %v398, %v390
  %v479 = vpack.c.b16 %v399, %v391
  %v480 = vpack.c.b16 %v400, %v392
  %v481 = vpack.c.b16 %v401, %v393
  %v482 = vpack.c.b16 %v402, %v394
  %v483 = vpack.c.b16 %v403, %v395
  %v484 = vpack.c.b16 %v404, %v396
  %v485 = vpack.c.b16 %v413, %v405
  %v486 = vpack.c.b16 %v414, %v406
  %v487 = vpack.c.b16 %v415, %v407
  %v488 = vpack.c.b16 %v416, %v408
  %v489 = vpack.c.b16 %v417, %v409
  %v490 = vpack.c.b16 %v418, %v410
  %v491 = vpack.c.b16 %v419, %v411
  %v492 = vpack.c.b16 %v420, %v412
  %v493 = vpack.c.b16 %v429, %v421
  %v494 = vpack.c.b16 %v430, %v422
  %v495 = vpack.c.b16 %v431, %v423
  %v496 = vpack.c.b16 %v432, %v424
  %v497 = vpack.c.b16 %v433, %v425
  %v498 = vpack.c.b16 %v434, %v426
  %v499 = vpack.c.b16 %v435, %v427
  %v500 = vpack.c.b16 %v436, %v428
  %v693 = vunpack.c.l.b16 %v117
  %v694 = vunpack.c.l.b16 %v118
  %v695 = vunpack.c.l.b16 %v119
  %v696 = vunpack.c.l.b16 %v120
  %v697 = vunpack.c.l.b16 %v121
  %v698 = vunpack.c.l.b16 %v122
  %v699 = vunpack.c.l.b16 %v123
  %v700 = vunpack.c.l.b16 %v124
  %v701 = vunpack.c.l.b16 %v125
  %v702 = vunpack.c.l.b16 %v126
  %v703 = vunpack.c.l.b16 %v127
  %v704 = vunpack.c.l.b16 %v128
  %v705 = vunpack.c.l.b16 %v129
  %v706 = vunpack.c.l.b16 %v130
  %v707 = vunpack.c.l.b16 %v131
  %v708 = vunpack.c.l.b16 %v132
  %v709 = vunpack.c.l.b16 %v133
  %v710 = vunpack.c.l.b16 %v134
  %v711 = vunpack.c.l.b16 %v135
  %v712 = vunpack.c.l.b16 %v136
  %v713 = vunpack.c.l.b16 %v137
  %v714 = vunpack.c.l.b16 %v138
  %v715 = vunpack.c.l.b16 %v139
  %v716 = vunpack.c.l.b16 %v140
  %v717 = vunpack.c.l.b16 %v141
  %v718 = vunpack.c.l.b16 %v142
  %v719 = vunpack.c.l.b16 %v143
  %v720 = vunpack.c.l.b16 %v144
  %v721 = vunpack.c.l.b16 %v145
  %v722 = vunpack.c.l.b16 %v146
  %v723 = vunpack.c.l.b16 %v147
  %v724 = vunpack.c.l.b16 %v148
  %v725 = vunpack.c.l.b16 %v149
  %v726 = vunpack.c.l.b16 %v150
  %v727 = vunpack.c.l.b16 %v151
  %v728 = vunpack.c.l.b16 %v152
  %v729 = vunpack.c.l.b16 %v153
  %v730 = vunpack.c.l.b16 %v154
  %v731 = vunpack.c.l.b16 %v155
  %v732 = vunpack.c.l.b16 %v156
  %v733 = vunpack.c.l.b16 %v157
  %v734 = vunpack.c.l.b16 %v158
  %v735 = vunpack.c.l.b16 %v159
  %v736 = vunpack.c.l.b16 %v160
  %v737 = vunpack.c.l.b16 %v161
  %v738 = vunpack.c.l.b16 %v162
  %v739 = vunpack.c.l.b16 %v163
  %v740 = vunpack.c.l.b16 %v164
  %v741 = vunpack.c.l.b16 %v165
  %v742 = vunpack.c.l.b16 %v166
  %v743 = vunpack.c.l.b16 %v167
  %v744 = vunpack.c.l.b16 %v168
  %v745 = vunpack.c.l.b16 %v169
  %v746 = vunpack.c.l.b16 %v170
  %v747 = vunpack.c.l.b16 %v171
  %v748 = vunpack.c.l.b16 %v172
  %v749 = vunpack.c.l.b16 %v173
  %v750 = vunpack.c.l.b16 %v174
  %v751 = vunpack.c.l.b16 %v175
  %v752 = vunpack.c.l.b16 %v176
  %v753 = vunpack.c.l.b16 %v177
  %v754 = vunpack.c.l.b16 %v178
  %v755 = vunpack.c.l.b16 %v179
  %v756 = vunpack.c.l.b16 %v180
  %v757 = vunpack.c.l.b16 %v181
  %v758 = vunpack.c.l.b16 %v182
  %v759 = vunpack.c.l.b16 %v183
  %v760 = vunpack.c.l.b16 %v184
  %v761 = vunpack.c.l.b16 %v185
  %v762 = vunpack.c.l.b16 %v186
  %v763 = vunpack.c.l.b16 %v187
  %v764 = vunpack.c.l.b16 %v188
  %v765 = vunpack.c.l.b16 %v189
  %v766 = vunpack.c.l.b16 %v190
  %v767 = vunpack.c.l.b16 %v191
  %v768 = vunpack.c.l.b16 %v192
  %v769 = vunpack.c.l.b16 %v193
  %v770 = vunpack.c.l.b16 %v194
  %v771 = vunpack.c.l.b16 %v195
  %v772 = vunpack.c.l.b16 %v196
  %v773 = vunpack.c.l.b16 %v197
  %v774 = vunpack.c.l.b16 %v198
  %v775 = vunpack.c.l.b16 %v199
  %v776 = vunpack.c.l.b16 %v200
  %v777 = vunpack.c.l.b16 %v201
  %v778 = vunpack.c.l.b16 %v202
  %v779 = vunpack.c.l.b16 %v203
  %v780 = vunpack.c.l.b16 %v204
  %v781 = vunpack.c.l.b16 %v205
  %v782 = vunpack.c.l.b16 %v206
  %v783 = vunpack.c.l.b16 %v207
  %v784 = vunpack.c.l.b16 %v208
  %v785 = vunpack.c.l.b16 %v209
  %v786 = vunpack.c.l.b16 %v210
  %v787 = vunpack.c.l.b16 %v211
  %v788 = vunpack.c.l.b16 %v212
  %v789 = vunpack.c.l.b16 %v213
  %v790 = vunpack.c.l.b16 %v214
  %v791 = vunpack.c.l.b16 %v215
  %v792 = vunpack.c.l.b16 %v216
  %v793 = vunpack.c.l.b16 %v217
  %v794 = vunpack.c.l.b16 %v218
  %v795 = vunpack.c.l.b16 %v219
  %v796 = vunpack.c.l.b16 %v220
  %v797 = vunpack.c.l.b16 %v221
  %v798 = vunpack.c.l.b16 %v222
  %v799 = vunpack.c.l.b16 %v223
  %v800 = vunpack.c.l.b16 %v224
  %v801 = vunpack.c.l.b16 %v225
  %v802 = vunpack.c.l.b16 %v226
  %v803 = vunpack.c.l.b16 %v227
  %v804 = vunpack.c.l.b16 %v228
  %v805 = vunpack.c.l.b16 %v229
  %v806 = vunpack.c.l.b16 %v230
  %v807 = vunpack.c.l.b16 %v231
  %v808 = vunpack.c.l.b16 %v232
  %v809 = vunpack.c.l.b16 %v233
  %v810 = vunpack.c.l.b16 %v234
  %v811 = vunpack.c.l.b16 %v235
  %v812 = vunpack.c.l.b16 %v236
  %v813 = vunpack.c.l.b16 %v237
  %v814 = vunpack.c.l.b16 %v238
  %v815 = vunpack.c.l.b16 %v239
  %v816 = vunpack.c.l.b16 %v240
  %v817 = vunpack.c.l.b16 %v241
  %v818 = vunpack.c.l.b16 %v242
  %v819 = vunpack.c.l.b16 %v243
  %v820 = vunpack.c.l.b16 %v244
  %v821 = vpack.c.b16 %v694, %v693
  %v822 = vpack.c.b16 %v696, %v695
  %v823 = vpack.c.b16 %v698, %v697
  %v824 = vpack.c.b16 %v700, %v699
  %v825 = vpack.c.b16 %v702, %v701
  %v826 = vpack.c.b16 %v704, %v703
  %v827 = vpack.c.b16 %v706, %v705
  %v828 = vpack.c.b16 %v708, %v707
  %v829 = vpack.c.b16 %v710, %v709
  %v830 = vpack.c.b16 %v712, %v711
  %v831 = vpack.c.b16 %v714, %v713
  %v832 = vpack.c.b16 %v716, %v715
  %v833 = vpack.c.b16 %v718, %v717
  %v834 = vpack.c.b16 %v720, %v719
  %v835 = vpack.c.b16 %v722, %v721
  %v836 = vpack.c.b16 %v724, %v723
  %v837 = vpack.c.b16 %v726, %v725
  %v838 = vpack.c.b16 %v728, %v727
  %v839 = vpack.c.b16 %v730, %v729
  %v840 = vpack.c.b16 %v732, %v731
  %v841 = vpack.c.b16 %v734, %v733
  %v842 = vpack.c.b16 %v736, %v735
  %v843 = vpack.c.b16 %v738, %v737
  %v844 = vpack.c.b16 %v740, %v739
  %v845 = vpack.c.b16 %v742, %v741
  %v846 = vpack.c.b16 %v744, %v743
  %v847 = vpack.c.b16 %v746, %v745
  %v848 = vpack.c.b16 %v748, %v747
  %v849 = vpack.c.b16 %v750, %v749
  %v850 = vpack.c.b16 %v752, %v751
  %v851 = vpack.c.b16 %v754, %v753
  %v852 = vpack.c.b16 %v756, %v755
  %v853 = vpack.c.b16 %v758, %v757
  %v854 = vpack.c.b16 %v760, %v759
  %v855 = vpack.c.b16 %v762, %v761
  %v856 = vpack.c.b16 %v764, %v763
  %v857 = vpack.c.b16 %v766, %v765
  %v858 = vpack.c.b16 %v768, %v767
  %v859 = vpack.c.b16 %v770, %v769
  %v860 = vpack.c.b16 %v772, %v771
  %v861 = vpack.c.b16 %v774, %v773
  %v862 = vpack.c.b16 %v776, %v775
  %v863 = vpack.c.b16 %v778, %v777
  %v864 = vpack.c.b16 %v780, %v779
  %v865 = vpack.c.b16 %v782, %v781
  %v866 = vpack.c.b16 %v784, %v783
  %v867 = vpack.c.b16 %v786, %v785
  %v868 = vpack.c.b16 %v788, %v787
  %v869 = vpack.c.b16 %v790, %v789
  %v870 = vpack.c.b16 %v792, %v791
  %v871 = vpack.c.b16 %v794, %v793
  %v872 = vpack.c.b16 %v796, %v795
  %v873 = vpack.c.b16 %v798, %v797
  %v874 = vpack.c.b16 %v800, %v799
  %v875 = vpack.c.b16 %v802, %v801
  %v876 = vpack.c.b16 %v804, %v803
  %v877 = vpack.c.b16 %v806, %v805
  %v878 = vpack.c.b16 %v808, %v807
  %v879 = vpack.c.b16 %v810, %v809
  %v880 = vpack.c.b16 %v812, %v811
  %v881 = vpack.c.b16 %v814, %v813
  %v882 = vpack.c.b16 %v816, %v815
  %v883 = vpack.c.b16 %v818, %v817
  %v884 = vpack.c.b16 %v820, %v819
  %949 = vmatpush.bf16.msra.mxu0 %v828
  %950 = vmatpush.bf16.msra.mxu0 %v827
  %951 = vmatpush.bf16.msra.mxu0 %v826
  %952 = vmatpush.bf16.msra.mxu0 %v825
  %953 = vmatpush.bf16.msra.mxu0 %v824
  %954 = vmatpush.bf16.msra.mxu0 %v823
  %955 = vmatpush.bf16.msra.mxu0 %v822
  %956 = vmatpush.bf16.msra.mxu0 %v821
  %957 = vmatmul.bf16.gmra.mxu0 %v437
  %v958 = vpop.f32.mrf.mxu0
  %v959 = vadd.f32 0.0, %v958
  %v960 = vpop.f32.mrf.mxu0
  %v961 = vadd.f32 0.0, %v960
  %962 = vmatmul.bf16.gmra.mxu0 %v445
  %v963 = vpop.f32.mrf.mxu0
  %v964 = vadd.f32 0.0, %v963
  %v965 = vpop.f32.mrf.mxu0
  %v966 = vadd.f32 0.0, %v965
  %967 = vmatmul.bf16.gmra.mxu0 %v453
  %v968 = vpop.f32.mrf.mxu0
  %v969 = vadd.f32 0.0, %v968
  %v970 = vpop.f32.mrf.mxu0
  %v971 = vadd.f32 0.0, %v970
  %972 = vmatmul.bf16.gmra.mxu0 %v461
  %v973 = vpop.f32.mrf.mxu0
  %v974 = vadd.f32 0.0, %v973
  %v975 = vpop.f32.mrf.mxu0
  %v976 = vadd.f32 0.0, %v975
  %977 = vmatmul.bf16.gmra.mxu0 %v469
  %v978 = vpop.f32.mrf.mxu0
  %v979 = vadd.f32 0.0, %v978
  %v980 = vpop.f32.mrf.mxu0
  %v981 = vadd.f32 0.0, %v980
  %982 = vmatmul.bf16.gmra.mxu0 %v477
  %v983 = vpop.f32.mrf.mxu0
  %v984 = vadd.f32 0.0, %v983
  %v985 = vpop.f32.mrf.mxu0
  %v986 = vadd.f32 0.0, %v985
  %987 = vmatmul.bf16.gmra.mxu0 %v485
  %v988 = vpop.f32.mrf.mxu0
  %v989 = vadd.f32 0.0, %v988
  %v990 = vpop.f32.mrf.mxu0
  %v991 = vadd.f32 0.0, %v990
  %992 = vmatmul.bf16.gmra.mxu0 %v493
  %v993 = vpop.f32.mrf.mxu0
  %v994 = vadd.f32 0.0, %v993
  %v995 = vpop.f32.mrf.mxu0
  %v996 = vadd.f32 0.0, %v995
  %997 = vdwg.mxu0
  %998 = vmatpush.bf16.msra.mxu0 %v836
  %999 = vmatpush.bf16.msra.mxu0 %v835
  %1000 = vmatpush.bf16.msra.mxu0 %v834
  %1001 = vmatpush.bf16.msra.mxu0 %v833
  %1002 = vmatpush.bf16.msra.mxu0 %v832
  %1003 = vmatpush.bf16.msra.mxu0 %v831
  %1004 = vmatpush.bf16.msra.mxu0 %v830
  %1005 = vmatpush.bf16.msra.mxu0 %v829
  %1006 = vmatmul.bf16.gmra.mxu0 %v438
  %v1007 = vpop.f32.mrf.mxu0
  %v1008 = vadd.f32 %v959, %v1007
  %v1009 = vpop.f32.mrf.mxu0
  %v1010 = vadd.f32 %v961, %v1009
  %1011 = vmatmul.bf16.gmra.mxu0 %v446
  %v1012 = vpop.f32.mrf.mxu0
  %v1013 = vadd.f32 %v964, %v1012
  %v1014 = vpop.f32.mrf.mxu0
  %v1015 = vadd.f32 %v966, %v1014
  %1016 = vmatmul.bf16.gmra.mxu0 %v454
  %v1017 = vpop.f32.mrf.mxu0
  %v1018 = vadd.f32 %v969, %v1017
  %v1019 = vpop.f32.mrf.mxu0
  %v1020 = vadd.f32 %v971, %v1019
  %1021 = vmatmul.bf16.gmra.mxu0 %v462
  %v1022 = vpop.f32.mrf.mxu0
  %v1023 = vadd.f32 %v974, %v1022
  %v1024 = vpop.f32.mrf.mxu0
  %v1025 = vadd.f32 %v976, %v1024
  %1026 = vmatmul.bf16.gmra.mxu0 %v470
  %v1027 = vpop.f32.mrf.mxu0
  %v1028 = vadd.f32 %v979, %v1027
  %v1029 = vpop.f32.mrf.mxu0
  %v1030 = vadd.f32 %v981, %v1029
  %1031 = vmatmul.bf16.gmra.mxu0 %v478
  %v1032 = vpop.f32.mrf.mxu0
  %v1033 = vadd.f32 %v984, %v1032
  %v1034 = vpop.f32.mrf.mxu0
  %v1035 = vadd.f32 %v986, %v1034
  %1036 = vmatmul.bf16.gmra.mxu0 %v486
  %v1037 = vpop.f32.mrf.mxu0
  %v1038 = vadd.f32 %v989, %v1037
  %v1039 = vpop.f32.mrf.mxu0
  %v1040 = vadd.f32 %v991, %v1039
  %1041 = vmatmul.bf16.gmra.mxu0 %v494
  %v1042 = vpop.f32.mrf.mxu0
  %v1043 = vadd.f32 %v994, %v1042
  %v1044 = vpop.f32.mrf.mxu0
  %v1045 = vadd.f32 %v996, %v1044
  %1046 = vdwg.mxu0
  %1047 = vmatpush.bf16.msra.mxu0 %v844
  %1048 = vmatpush.bf16.msra.mxu0 %v843
  %1049 = vmatpush.bf16.msra.mxu0 %v842
  %1050 = vmatpush.bf16.msra.mxu0 %v841
  %1051 = vmatpush.bf16.msra.mxu0 %v840
  %1052 = vmatpush.bf16.msra.mxu0 %v839
  %1053 = vmatpush.bf16.msra.mxu0 %v838
  %1054 = vmatpush.bf16.msra.mxu0 %v837
  %1055 = vmatmul.bf16.gmra.mxu0 %v439
  %v1056 = vpop.f32.mrf.mxu0
  %v1057 = vadd.f32 %v1008, %v1056
  %v1058 = vpop.f32.mrf.mxu0
  %v1059 = vadd.f32 %v1010, %v1058
  %1060 = vmatmul.bf16.gmra.mxu0 %v447
  %v1061 = vpop.f32.mrf.mxu0
  %v1062 = vadd.f32 %v1013, %v1061
  %v1063 = vpop.f32.mrf.mxu0
  %v1064 = vadd.f32 %v1015, %v1063
  %1065 = vmatmul.bf16.gmra.mxu0 %v455
  %v1066 = vpop.f32.mrf.mxu0
  %v1067 = vadd.f32 %v1018, %v1066
  %v1068 = vpop.f32.mrf.mxu0
  %v1069 = vadd.f32 %v1020, %v1068
  %1070 = vmatmul.bf16.gmra.mxu0 %v463
  %v1071 = vpop.f32.mrf.mxu0
  %v1072 = vadd.f32 %v1023, %v1071
  %v1073 = vpop.f32.mrf.mxu0
  %v1074 = vadd.f32 %v1025, %v1073
  %1075 = vmatmul.bf16.gmra.mxu0 %v471
  %v1076 = vpop.f32.mrf.mxu0
  %v1077 = vadd.f32 %v1028, %v1076
  %v1078 = vpop.f32.mrf.mxu0
  %v1079 = vadd.f32 %v1030, %v1078
  %1080 = vmatmul.bf16.gmra.mxu0 %v479
  %v1081 = vpop.f32.mrf.mxu0
  %v1082 = vadd.f32 %v1033, %v1081
  %v1083 = vpop.f32.mrf.mxu0
  %v1084 = vadd.f32 %v1035, %v1083
  %1085 = vmatmul.bf16.gmra.mxu0 %v487
  %v1086 = vpop.f32.mrf.mxu0
  %v1087 = vadd.f32 %v1038, %v1086
  %v1088 = vpop.f32.mrf.mxu0
  %v1089 = vadd.f32 %v1040, %v1088
  %1090 = vmatmul.bf16.gmra.mxu0 %v495
  %v1091 = vpop.f32.mrf.mxu0
  %v1092 = vadd.f32 %v1043, %v1091
  %v1093 = vpop.f32.mrf.mxu0
  %v1094 = vadd.f32 %v1045, %v1093
  %1095 = vdwg.mxu0
  %1096 = vmatpush.bf16.msra.mxu0 %v852
  %1097 = vmatpush.bf16.msra.mxu0 %v851
  %1098 = vmatpush.bf16.msra.mxu0 %v850
  %1099 = vmatpush.bf16.msra.mxu0 %v849
  %1100 = vmatpush.bf16.msra.mxu0 %v848
  %1101 = vmatpush.bf16.msra.mxu0 %v847
  %1102 = vmatpush.bf16.msra.mxu0 %v846
  %1103 = vmatpush.bf16.msra.mxu0 %v845
  %1104 = vmatmul.bf16.gmra.mxu0 %v440
  %v1105 = vpop.f32.mrf.mxu0
  %v1106 = vadd.f32 %v1057, %v1105
  %v1107 = vpop.f32.mrf.mxu0
  %v1108 = vadd.f32 %v1059, %v1107
  %1109 = vmatmul.bf16.gmra.mxu0 %v448
  %v1110 = vpop.f32.mrf.mxu0
  %v1111 = vadd.f32 %v1062, %v1110
  %v1112 = vpop.f32.mrf.mxu0
  %v1113 = vadd.f32 %v1064, %v1112
  %1114 = vmatmul.bf16.gmra.mxu0 %v456
  %v1115 = vpop.f32.mrf.mxu0
  %v1116 = vadd.f32 %v1067, %v1115
  %v1117 = vpop.f32.mrf.mxu0
  %v1118 = vadd.f32 %v1069, %v1117
  %1119 = vmatmul.bf16.gmra.mxu0 %v464
  %v1120 = vpop.f32.mrf.mxu0
  %v1121 = vadd.f32 %v1072, %v1120
  %v1122 = vpop.f32.mrf.mxu0
  %v1123 = vadd.f32 %v1074, %v1122
  %1124 = vmatmul.bf16.gmra.mxu0 %v472
  %v1125 = vpop.f32.mrf.mxu0
  %v1126 = vadd.f32 %v1077, %v1125
  %v1127 = vpop.f32.mrf.mxu0
  %v1128 = vadd.f32 %v1079, %v1127
  %1129 = vmatmul.bf16.gmra.mxu0 %v480
  %v1130 = vpop.f32.mrf.mxu0
  %v1131 = vadd.f32 %v1082, %v1130
  %v1132 = vpop.f32.mrf.mxu0
  %v1133 = vadd.f32 %v1084, %v1132
  %1134 = vmatmul.bf16.gmra.mxu0 %v488
  %v1135 = vpop.f32.mrf.mxu0
  %v1136 = vadd.f32 %v1087, %v1135
  %v1137 = vpop.f32.mrf.mxu0
  %v1138 = vadd.f32 %v1089, %v1137
  %1139 = vmatmul.bf16.gmra.mxu0 %v496
  %v1140 = vpop.f32.mrf.mxu0
  %v1141 = vadd.f32 %v1092, %v1140
  %v1142 = vpop.f32.mrf.mxu0
  %v1143 = vadd.f32 %v1094, %v1142
  %1144 = vdwg.mxu0
  %1145 = vmatpush.bf16.msra.mxu0 %v860
  %1146 = vmatpush.bf16.msra.mxu0 %v859
  %1147 = vmatpush.bf16.msra.mxu0 %v858
  %1148 = vmatpush.bf16.msra.mxu0 %v857
  %1149 = vmatpush.bf16.msra.mxu0 %v856
  %1150 = vmatpush.bf16.msra.mxu0 %v855
  %1151 = vmatpush.bf16.msra.mxu0 %v854
  %1152 = vmatpush.bf16.msra.mxu0 %v853
  %1153 = vmatmul.bf16.gmra.mxu0 %v441
  %v1154 = vpop.f32.mrf.mxu0
  %v1155 = vadd.f32 %v1106, %v1154
  %v1156 = vpop.f32.mrf.mxu0
  %v1157 = vadd.f32 %v1108, %v1156
  %1158 = vmatmul.bf16.gmra.mxu0 %v449
  %v1159 = vpop.f32.mrf.mxu0
  %v1160 = vadd.f32 %v1111, %v1159
  %v1161 = vpop.f32.mrf.mxu0
  %v1162 = vadd.f32 %v1113, %v1161
  %1163 = vmatmul.bf16.gmra.mxu0 %v457
  %v1164 = vpop.f32.mrf.mxu0
  %v1165 = vadd.f32 %v1116, %v1164
  %v1166 = vpop.f32.mrf.mxu0
  %v1167 = vadd.f32 %v1118, %v1166
  %1168 = vmatmul.bf16.gmra.mxu0 %v465
  %v1169 = vpop.f32.mrf.mxu0
  %v1170 = vadd.f32 %v1121, %v1169
  %v1171 = vpop.f32.mrf.mxu0
  %v1172 = vadd.f32 %v1123, %v1171
  %1173 = vmatmul.bf16.gmra.mxu0 %v473
  %v1174 = vpop.f32.mrf.mxu0
  %v1175 = vadd.f32 %v1126, %v1174
  %v1176 = vpop.f32.mrf.mxu0
  %v1177 = vadd.f32 %v1128, %v1176
  %1178 = vmatmul.bf16.gmra.mxu0 %v481
  %v1179 = vpop.f32.mrf.mxu0
  %v1180 = vadd.f32 %v1131, %v1179
  %v1181 = vpop.f32.mrf.mxu0
  %v1182 = vadd.f32 %v1133, %v1181
  %1183 = vmatmul.bf16.gmra.mxu0 %v489
  %v1184 = vpop.f32.mrf.mxu0
  %v1185 = vadd.f32 %v1136, %v1184
  %v1186 = vpop.f32.mrf.mxu0
  %v1187 = vadd.f32 %v1138, %v1186
  %1188 = vmatmul.bf16.gmra.mxu0 %v497
  %v1189 = vpop.f32.mrf.mxu0
  %v1190 = vadd.f32 %v1141, %v1189
  %v1191 = vpop.f32.mrf.mxu0
  %v1192 = vadd.f32 %v1143, %v1191
  %1193 = vdwg.mxu0
  %1194 = vmatpush.bf16.msra.mxu0 %v868
  %1195 = vmatpush.bf16.msra.mxu0 %v867
  %1196 = vmatpush.bf16.msra.mxu0 %v866
  %1197 = vmatpush.bf16.msra.mxu0 %v865
  %1198 = vmatpush.bf16.msra.mxu0 %v864
  %1199 = vmatpush.bf16.msra.mxu0 %v863
  %1200 = vmatpush.bf16.msra.mxu0 %v862
  %1201 = vmatpush.bf16.msra.mxu0 %v861
  %1202 = vmatmul.bf16.gmra.mxu0 %v442
  %v1203 = vpop.f32.mrf.mxu0
  %v1204 = vadd.f32 %v1155, %v1203
  %v1205 = vpop.f32.mrf.mxu0
  %v1206 = vadd.f32 %v1157, %v1205
  %1207 = vmatmul.bf16.gmra.mxu0 %v450
  %v1208 = vpop.f32.mrf.mxu0
  %v1209 = vadd.f32 %v1160, %v1208
  %v1210 = vpop.f32.mrf.mxu0
  %v1211 = vadd.f32 %v1162, %v1210
  %1212 = vmatmul.bf16.gmra.mxu0 %v458
  %v1213 = vpop.f32.mrf.mxu0
  %v1214 = vadd.f32 %v1165, %v1213
  %v1215 = vpop.f32.mrf.mxu0
  %v1216 = vadd.f32 %v1167, %v1215
  %1217 = vmatmul.bf16.gmra.mxu0 %v466
  %v1218 = vpop.f32.mrf.mxu0
  %v1219 = vadd.f32 %v1170, %v1218
  %v1220 = vpop.f32.mrf.mxu0
  %v1221 = vadd.f32 %v1172, %v1220
  %1222 = vmatmul.bf16.gmra.mxu0 %v474
  %v1223 = vpop.f32.mrf.mxu0
  %v1224 = vadd.f32 %v1175, %v1223
  %v1225 = vpop.f32.mrf.mxu0
  %v1226 = vadd.f32 %v1177, %v1225
  %1227 = vmatmul.bf16.gmra.mxu0 %v482
  %v1228 = vpop.f32.mrf.mxu0
  %v1229 = vadd.f32 %v1180, %v1228
  %v1230 = vpop.f32.mrf.mxu0
  %v1231 = vadd.f32 %v1182, %v1230
  %1232 = vmatmul.bf16.gmra.mxu0 %v490
  %v1233 = vpop.f32.mrf.mxu0
  %v1234 = vadd.f32 %v1185, %v1233
  %v1235 = vpop.f32.mrf.mxu0
  %v1236 = vadd.f32 %v1187, %v1235
  %1237 = vmatmul.bf16.gmra.mxu0 %v498
  %v1238 = vpop.f32.mrf.mxu0
  %v1239 = vadd.f32 %v1190, %v1238
  %v1240 = vpop.f32.mrf.mxu0
  %v1241 = vadd.f32 %v1192, %v1240
  %1242 = vdwg.mxu0
  %1243 = vmatpush.bf16.msra.mxu0 %v876
  %1244 = vmatpush.bf16.msra.mxu0 %v875
  %1245 = vmatpush.bf16.msra.mxu0 %v874
  %1246 = vmatpush.bf16.msra.mxu0 %v873
  %1247 = vmatpush.bf16.msra.mxu0 %v872
  %1248 = vmatpush.bf16.msra.mxu0 %v871
  %1249 = vmatpush.bf16.msra.mxu0 %v870
  %1250 = vmatpush.bf16.msra.mxu0 %v869
  %1251 = vmatmul.bf16.gmra.mxu0 %v443
  %v1252 = vpop.f32.mrf.mxu0
  %v1253 = vadd.f32 %v1204, %v1252
  %v1254 = vpop.f32.mrf.mxu0
  %v1255 = vadd.f32 %v1206, %v1254
  %1256 = vmatmul.bf16.gmra.mxu0 %v451
  %v1257 = vpop.f32.mrf.mxu0
  %v1258 = vadd.f32 %v1209, %v1257
  %v1259 = vpop.f32.mrf.mxu0
  %v1260 = vadd.f32 %v1211, %v1259
  %1261 = vmatmul.bf16.gmra.mxu0 %v459
  %v1262 = vpop.f32.mrf.mxu0
  %v1263 = vadd.f32 %v1214, %v1262
  %v1264 = vpop.f32.mrf.mxu0
  %v1265 = vadd.f32 %v1216, %v1264
  %1266 = vmatmul.bf16.gmra.mxu0 %v467
  %v1267 = vpop.f32.mrf.mxu0
  %v1268 = vadd.f32 %v1219, %v1267
  %v1269 = vpop.f32.mrf.mxu0
  %v1270 = vadd.f32 %v1221, %v1269
  %1271 = vmatmul.bf16.gmra.mxu0 %v475
  %v1272 = vpop.f32.mrf.mxu0
  %v1273 = vadd.f32 %v1224, %v1272
  %v1274 = vpop.f32.mrf.mxu0
  %v1275 = vadd.f32 %v1226, %v1274
  %1276 = vmatmul.bf16.gmra.mxu0 %v483
  %v1277 = vpop.f32.mrf.mxu0
  %v1278 = vadd.f32 %v1229, %v1277
  %v1279 = vpop.f32.mrf.mxu0
  %v1280 = vadd.f32 %v1231, %v1279
  %1281 = vmatmul.bf16.gmra.mxu0 %v491
  %v1282 = vpop.f32.mrf.mxu0
  %v1283 = vadd.f32 %v1234, %v1282
  %v1284 = vpop.f32.mrf.mxu0
  %v1285 = vadd.f32 %v1236, %v1284
  %1286 = vmatmul.bf16.gmra.mxu0 %v499
  %v1287 = vpop.f32.mrf.mxu0
  %v1288 = vadd.f32 %v1239, %v1287
  %v1289 = vpop.f32.mrf.mxu0
  %v1290 = vadd.f32 %v1241, %v1289
  %1291 = vdwg.mxu0
  %1292 = vmatpush.bf16.msra.mxu0 %v884
  %1293 = vmatpush.bf16.msra.mxu0 %v883
  %1294 = vmatpush.bf16.msra.mxu0 %v882
  %1295 = vmatpush.bf16.msra.mxu0 %v881
  %1296 = vmatpush.bf16.msra.mxu0 %v880
  %1297 = vmatpush.bf16.msra.mxu0 %v879
  %1298 = vmatpush.bf16.msra.mxu0 %v878
  %1299 = vmatpush.bf16.msra.mxu0 %v877
  %1300 = vmatmul.bf16.gmra.mxu0 %v444
  %v1301 = vpop.f32.mrf.mxu0
  %v1302 = vadd.f32 %v1253, %v1301
  %v1303 = vpop.f32.mrf.mxu0
  %v1304 = vadd.f32 %v1255, %v1303
  %1305 = vmatmul.bf16.gmra.mxu0 %v452
  %v1306 = vpop.f32.mrf.mxu0
  %v1307 = vadd.f32 %v1258, %v1306
  %v1308 = vpop.f32.mrf.mxu0
  %v1309 = vadd.f32 %v1260, %v1308
  %1310 = vmatmul.bf16.gmra.mxu0 %v460
  %v1311 = vpop.f32.mrf.mxu0
  %v1312 = vadd.f32 %v1263, %v1311
  %v1313 = vpop.f32.mrf.mxu0
  %v1314 = vadd.f32 %v1265, %v1313
  %1315 = vmatmul.bf16.gmra.mxu0 %v468
  %v1316 = vpop.f32.mrf.mxu0
  %v1317 = vadd.f32 %v1268, %v1316
  %v1318 = vpop.f32.mrf.mxu0
  %v1319 = vadd.f32 %v1270, %v1318
  %1320 = vmatmul.bf16.gmra.mxu0 %v476
  %v1321 = vpop.f32.mrf.mxu0
  %v1322 = vadd.f32 %v1273, %v1321
  %v1323 = vpop.f32.mrf.mxu0
  %v1324 = vadd.f32 %v1275, %v1323
  %1325 = vmatmul.bf16.gmra.mxu0 %v484
  %v1326 = vpop.f32.mrf.mxu0
  %v1327 = vadd.f32 %v1278, %v1326
  %v1328 = vpop.f32.mrf.mxu0
  %v1329 = vadd.f32 %v1280, %v1328
  %1330 = vmatmul.bf16.gmra.mxu0 %v492
  %v1331 = vpop.f32.mrf.mxu0
  %v1332 = vadd.f32 %v1283, %v1331
  %v1333 = vpop.f32.mrf.mxu0
  %v1334 = vadd.f32 %v1285, %v1333
  %1335 = vmatmul.bf16.gmra.mxu0 %v500
  %v1336 = vpop.f32.mrf.mxu0
  %v1337 = vadd.f32 %v1288, %v1336
  %v1338 = vpop.f32.mrf.mxu0
  %v1339 = vadd.f32 %v1290, %v1338
  %1340 = vdwg.mxu0
  %v1341 = vadd.f32 %v37, %v1302
  %v1342 = vadd.f32 %v38, %v1304
  %v1343 = vadd.f32 %v39, %v1307
  %v1344 = vadd.f32 %v40, %v1309
  %v1345 = vadd.f32 %v41, %v1312
  %v1346 = vadd.f32 %v42, %v1314
  %v1347 = vadd.f32 %v43, %v1317
  %v1348 = vadd.f32 %v44, %v1319
  %v1349 = vadd.f32 %v45, %v1322
  %v1350 = vadd.f32 %v46, %v1324
  %v1351 = vadd.f32 %v47, %v1327
  %v1352 = vadd.f32 %v48, %v1329
  %v1353 = vadd.f32 %v49, %v1332
  %v1354 = vadd.f32 %v50, %v1334
  %v1355 = vadd.f32 %v51, %v1337
  %v1356 = vadd.f32 %v52, %v1339
  %1357 = vst [vmem:[#allocation2] sm:$0xff] %v1341
  %1358 = vst [vmem:[#allocation2 + $0x8] sm:$0xff] %v1342
  %1359 = vst [vmem:[#allocation2 + $0x10] sm:$0xff] %v1343
  %1360 = vst [vmem:[#allocation2 + $0x18] sm:$0xff] %v1344
  %1361 = vst [vmem:[#allocation2 + $0x20] sm:$0xff] %v1345
  %1362 = vst [vmem:[#allocation2 + $0x28] sm:$0xff] %v1346
  %1363 = vst [vmem:[#allocation2 + $0x30] sm:$0xff] %v1347
  %1364 = vst [vmem:[#allocation2 + $0x38] sm:$0xff] %v1348
  %1365 = vst [vmem:[#allocation2 + $0x40] sm:$0xff] %v1349
  %1366 = vst [vmem:[#allocation2 + $0x48] sm:$0xff] %v1350
  %1367 = vst [vmem:[#allocation2 + $0x50] sm:$0xff] %v1351
  %1368 = vst [vmem:[#allocation2 + $0x58] sm:$0xff] %v1352
  %1369 = vst [vmem:[#allocation2 + $0x60] sm:$0xff] %v1353
  %1370 = vst [vmem:[#allocation2 + $0x68] sm:$0xff] %v1354
  %1371 = vst [vmem:[#allocation2 + $0x70] sm:$0xff] %v1355
  %1372 = vst [vmem:[#allocation2 + $0x78] sm:$0xff] %v1356
  // Predicated region
  $region22: #{discriminator_forward.7} parent=0 // pred_check
    %p1373 = pneg %p17
  $region23: #{discriminator_forward.7} parent=0 // pred_check_branch
    %1375 = sbr.rel (%p1373) target = $region25
  $region24: #{discriminator_forward.7} parent=0 // pred_region
    %v1376 = vld [vmem:[#allocation2] sm:$0xff]
    %v1377 = vld [vmem:[#allocation2 + $0x8] sm:$0xff]
    %v1378 = vld [vmem:[#allocation2 + $0x10] sm:$0xff]
    %v1379 = vld [vmem:[#allocation2 + $0x18] sm:$0xff]
    %v1380 = vld [vmem:[#allocation2 + $0x20] sm:$0xff]
    %v1381 = vld [vmem:[#allocation2 + $0x28] sm:$0xff]
    %v1382 = vld [vmem:[#allocation2 + $0x30] sm:$0xff]
    %v1383 = vld [vmem:[#allocation2 + $0x38] sm:$0xff]
    %v1384 = vld [vmem:[#allocation2 + $0x40] sm:$0xff]
    %v1385 = vld [vmem:[#allocation2 + $0x48] sm:$0xff]
    %v1386 = vld [vmem:[#allocation2 + $0x50] sm:$0xff]
    %v1387 = vld [vmem:[#allocation2 + $0x58] sm:$0xff]
    %v1388 = vld [vmem:[#allocation2 + $0x60] sm:$0xff]
    %v1389 = vld [vmem:[#allocation2 + $0x68] sm:$0xff]
    %v1390 = vld [vmem:[#allocation2 + $0x70] sm:$0xff]
    %v1391 = vld [vmem:[#allocation2 + $0x78] sm:$0xff]
    %v1392 = vadd.f32 %v1376, %v1377
    %v1393 = vadd.f32 %v1392, %v1378
    %v1394 = vadd.f32 %v1393, %v1379
    %v1395 = vadd.f32 %v1394, %v1380
    %v1396 = vadd.f32 %v1395, %v1381
    %v1397 = vadd.f32 %v1396, %v1382
    %v1398 = vadd.f32 %v1397, %v1383
    %v1399 = vadd.f32 %v1398, %v1384
    %v1400 = vadd.f32 %v1399, %v1385
    %v1401 = vadd.f32 %v1400, %v1386
    %v1402 = vadd.f32 %v1401, %v1387
    %v1403 = vadd.f32 %v1402, %v1388
    %v1404 = vadd.f32 %v1403, %v1389
    %v1405 = vadd.f32 %v1404, %v1390
    %v1406 = vadd.f32 %v1405, %v1391
    %v1407 = vrot.slane %v1406, 4
    %v1408 = vadd.f32 %v1406, %v1407
    %v1409 = vrot.slane %v1408, 2
    %v1410 = vadd.f32 %v1408, %v1409
    %v1411 = vrot.slane %v1410, 1
    %v1412 = vadd.f32 %v1410, %v1411
    %v1413 = vmul.f32 %v1412, 0.0078125
    %v1414 = vmul.f32 %v1376, %v1376
    %v1415 = vmul.f32 %v1377, %v1377
    %v1416 = vmul.f32 %v1378, %v1378
    %v1417 = vmul.f32 %v1379, %v1379
    %v1418 = vmul.f32 %v1380, %v1380
    %v1419 = vmul.f32 %v1381, %v1381
    %v1420 = vmul.f32 %v1382, %v1382
    %v1421 = vmul.f32 %v1383, %v1383
    %v1422 = vmul.f32 %v1384, %v1384
    %v1423 = vmul.f32 %v1385, %v1385
    %v1424 = vmul.f32 %v1386, %v1386
    %v1425 = vmul.f32 %v1387, %v1387
    %v1426 = vmul.f32 %v1388, %v1388
    %v1427 = vmul.f32 %v1389, %v1389
    %v1428 = vmul.f32 %v1390, %v1390
    %v1429 = vmul.f32 %v1391, %v1391
    %v1430 = vadd.f32 %v1414, %v1415
    %v1431 = vadd.f32 %v1430, %v1416
    %v1432 = vadd.f32 %v1431, %v1417
    %v1433 = vadd.f32 %v1432, %v1418
    %v1434 = vadd.f32 %v1433, %v1419
    %v1435 = vadd.f32 %v1434, %v1420
    %v1436 = vadd.f32 %v1435, %v1421
    %v1437 = vadd.f32 %v1436, %v1422
    %v1438 = vadd.f32 %v1437, %v1423
    %v1439 = vadd.f32 %v1438, %v1424
    %v1440 = vadd.f32 %v1439, %v1425
    %v1441 = vadd.f32 %v1440, %v1426
    %v1442 = vadd.f32 %v1441, %v1427
    %v1443 = vadd.f32 %v1442, %v1428
    %v1444 = vadd.f32 %v1443, %v1429
    %v1445 = vrot.slane %v1444, 4
    %v1446 = vadd.f32 %v1444, %v1445
    %v1447 = vrot.slane %v1446, 2
    %v1448 = vadd.f32 %v1446, %v1447
    %v1449 = vrot.slane %v1448, 1
    %v1450 = vadd.f32 %v1448, %v1449
    %v1451 = vmul.f32 %v1450, 0.0078125
    %v1452 = vmul.f32 %v1413, %v1413
    %v1453 = vsub.f32 %v1451, %v1452
    %v1454 = vmax.f32 %v1453, 0.0
    %v1455 = vsub.f32 %v1376, %v1413
    %v1456 = vsub.f32 %v1377, %v1413
    %v1457 = vsub.f32 %v1378, %v1413
    %v1458 = vsub.f32 %v1379, %v1413
    %v1459 = vsub.f32 %v1380, %v1413
    %v1460 = vsub.f32 %v1381, %v1413
    %v1461 = vsub.f32 %v1382, %v1413
    %v1462 = vsub.f32 %v1383, %v1413
    %v1463 = vsub.f32 %v1384, %v1413
    %v1464 = vsub.f32 %v1385, %v1413
    %v1465 = vsub.f32 %v1386, %v1413
    %v1466 = vsub.f32 %v1387, %v1413
    %v1467 = vsub.f32 %v1388, %v1413
    %v1468 = vsub.f32 %v1389, %v1413
    %v1469 = vsub.f32 %v1390, %v1413
    %v1470 = vsub.f32 %v1391, %v1413
    %v1471 = vadd.f32 %v1454, 1e-05
    %v1472 = vrsqrt.pop %v1471
    %v1473 = vmul.f32 %v1472, %v1471
    %v1474 = vmul.f32 %v1473, %v1472
    %v1475 = vmul.f32 0.5, %v1474
    %v1476 = vsub.f32 1.5, %v1475
    %v1477 = vmul.f32 %v1472, %v1476
    %vm1478 = vweird.f32 %v1471
    %vm1479 = vweird.f32 %v1472
    %vm1480 = vmor %vm1478, %vm1479
    %v1481 = vsel %vm1480, %v1472, %v1477
    %v1482 = vmul.f32 %v1455, %v1481
    %v1483 = vmul.f32 %v1456, %v1481
    %v1484 = vmul.f32 %v1457, %v1481
    %v1485 = vmul.f32 %v1458, %v1481
    %v1486 = vmul.f32 %v1459, %v1481
    %v1487 = vmul.f32 %v1460, %v1481
    %v1488 = vmul.f32 %v1461, %v1481
    %v1489 = vmul.f32 %v1462, %v1481
    %v1490 = vmul.f32 %v1463, %v1481
    %v1491 = vmul.f32 %v1464, %v1481
    %v1492 = vmul.f32 %v1465, %v1481
    %v1493 = vmul.f32 %v1466, %v1481
    %v1494 = vmul.f32 %v1467, %v1481
    %v1495 = vmul.f32 %v1468, %v1481
    %v1496 = vmul.f32 %v1469, %v1481
    %v1497 = vmul.f32 %v1470, %v1481
    %v1498 = vld [vmem:[%s2] sm:$0x1]
    %v1500 = vperm.slane %v1498, 0
    %v1502 = vmul.f32 %v1482, %v1500
    %v1503 = vmul.f32 %v1483, %v1500
    %v1504 = vmul.f32 %v1484, %v1500
    %v1505 = vmul.f32 %v1485, %v1500
    %v1506 = vmul.f32 %v1486, %v1500
    %v1507 = vmul.f32 %v1487, %v1500
    %v1508 = vmul.f32 %v1488, %v1500
    %v1509 = vmul.f32 %v1489, %v1500
    %v1510 = vmul.f32 %v1490, %v1500
    %v1511 = vmul.f32 %v1491, %v1500
    %v1512 = vmul.f32 %v1492, %v1500
    %v1513 = vmul.f32 %v1493, %v1500
    %v1514 = vmul.f32 %v1494, %v1500
    %v1515 = vmul.f32 %v1495, %v1500
    %v1516 = vmul.f32 %v1496, %v1500
    %v1517 = vmul.f32 %v1497, %v1500
    %v1518 = vld [vmem:[%s3] sm:$0x1]
    %v1520 = vperm.slane %v1518, 0
    %v1522 = vadd.f32 %v1502, %v1520
    %v1523 = vadd.f32 %v1503, %v1520
    %v1524 = vadd.f32 %v1504, %v1520
    %v1525 = vadd.f32 %v1505, %v1520
    %v1526 = vadd.f32 %v1506, %v1520
    %v1527 = vadd.f32 %v1507, %v1520
    %v1528 = vadd.f32 %v1508, %v1520
    %v1529 = vadd.f32 %v1509, %v1520
    %v1530 = vadd.f32 %v1510, %v1520
    %v1531 = vadd.f32 %v1511, %v1520
    %v1532 = vadd.f32 %v1512, %v1520
    %v1533 = vadd.f32 %v1513, %v1520
    %v1534 = vadd.f32 %v1514, %v1520
    %v1535 = vadd.f32 %v1515, %v1520
    %v1536 = vadd.f32 %v1516, %v1520
    %v1537 = vadd.f32 %v1517, %v1520
    %vm1538 = vcmp.gt.f32.partialorder %v1522, 0.0
    %vm1539 = vcmp.gt.f32.partialorder %v1523, 0.0
    %vm1540 = vcmp.gt.f32.partialorder %v1524, 0.0
    %vm1541 = vcmp.gt.f32.partialorder %v1525, 0.0
    %vm1542 = vcmp.gt.f32.partialorder %v1526, 0.0
    %vm1543 = vcmp.gt.f32.partialorder %v1527, 0.0
    %vm1544 = vcmp.gt.f32.partialorder %v1528, 0.0
    %vm1545 = vcmp.gt.f32.partialorder %v1529, 0.0
    %vm1546 = vcmp.gt.f32.partialorder %v1530, 0.0
    %vm1547 = vcmp.gt.f32.partialorder %v1531, 0.0
    %vm1548 = vcmp.gt.f32.partialorder %v1532, 0.0
    %vm1549 = vcmp.gt.f32.partialorder %v1533, 0.0
    %vm1550 = vcmp.gt.f32.partialorder %v1534, 0.0
    %vm1551 = vcmp.gt.f32.partialorder %v1535, 0.0
    %vm1552 = vcmp.gt.f32.partialorder %v1536, 0.0
    %vm1553 = vcmp.gt.f32.partialorder %v1537, 0.0
    %v1554 = vmul.f32 %v1522, 0.2
    %v1555 = vmul.f32 %v1523, 0.2
    %v1556 = vmul.f32 %v1524, 0.2
    %v1557 = vmul.f32 %v1525, 0.2
    %v1558 = vmul.f32 %v1526, 0.2
    %v1559 = vmul.f32 %v1527, 0.2
    %v1560 = vmul.f32 %v1528, 0.2
    %v1561 = vmul.f32 %v1529, 0.2
    %v1562 = vmul.f32 %v1530, 0.2
    %v1563 = vmul.f32 %v1531, 0.2
    %v1564 = vmul.f32 %v1532, 0.2
    %v1565 = vmul.f32 %v1533, 0.2
    %v1566 = vmul.f32 %v1534, 0.2
    %v1567 = vmul.f32 %v1535, 0.2
    %v1568 = vmul.f32 %v1536, 0.2
    %v1569 = vmul.f32 %v1537, 0.2
    %v1570 = vsel %vm1538, %v1522, %v1554
    %v1571 = vsel %vm1539, %v1523, %v1555
    %v1572 = vsel %vm1540, %v1524, %v1556
    %v1573 = vsel %vm1541, %v1525, %v1557
    %v1574 = vsel %vm1542, %v1526, %v1558
    %v1575 = vsel %vm1543, %v1527, %v1559
    %v1576 = vsel %vm1544, %v1528, %v1560
    %v1577 = vsel %vm1545, %v1529, %v1561
    %v1578 = vsel %vm1546, %v1530, %v1562
    %v1579 = vsel %vm1547, %v1531, %v1563
    %v1580 = vsel %vm1548, %v1532, %v1564
    %v1581 = vsel %vm1549, %v1533, %v1565
    %v1582 = vsel %vm1550, %v1534, %v1566
    %v1583 = vsel %vm1551, %v1535, %v1567
    %v1584 = vsel %vm1552, %v1536, %v1568
    %v1585 = vsel %vm1553, %v1537, %v1569
    %v1586 = vpack.c.bf16 %v1570, %v1570
    %v1587 = vpack.c.bf16 %v1571, %v1571
    %v1588 = vpack.c.bf16 %v1572, %v1572
    %v1589 = vpack.c.bf16 %v1573, %v1573
    %v1590 = vpack.c.bf16 %v1574, %v1574
    %v1591 = vpack.c.bf16 %v1575, %v1575
    %v1592 = vpack.c.bf16 %v1576, %v1576
    %v1593 = vpack.c.bf16 %v1577, %v1577
    %v1594 = vpack.c.bf16 %v1578, %v1578
    %v1595 = vpack.c.bf16 %v1579, %v1579
    %v1596 = vpack.c.bf16 %v1580, %v1580
    %v1597 = vpack.c.bf16 %v1581, %v1581
    %v1598 = vpack.c.bf16 %v1582, %v1582
    %v1599 = vpack.c.bf16 %v1583, %v1583
    %v1600 = vpack.c.bf16 %v1584, %v1584
    %v1601 = vpack.c.bf16 %v1585, %v1585
    %1602 = vst [vmem:[%s4] sm:$0xf] %v1586
    %1603 = vst [vmem:[%s4 + $0x4] sm:$0xf] %v1587
    %1604 = vst [vmem:[%s4 + $0x8] sm:$0xf] %v1588
    %1605 = vst [vmem:[%s4 + $0xc] sm:$0xf] %v1589
    %1606 = vst [vmem:[%s4 + $0x10] sm:$0xf] %v1590
    %1607 = vst [vmem:[%s4 + $0x14] sm:$0xf] %v1591
    %1608 = vst [vmem:[%s4 + $0x18] sm:$0xf] %v1592
    %1609 = vst [vmem:[%s4 + $0x1c] sm:$0xf] %v1593
    %1610 = vst [vmem:[%s4 + $0x20] sm:$0xf] %v1594
    %1611 = vst [vmem:[%s4 + $0x24] sm:$0xf] %v1595
    %1612 = vst [vmem:[%s4 + $0x28] sm:$0xf] %v1596
    %1613 = vst [vmem:[%s4 + $0x2c] sm:$0xf] %v1597
    %1614 = vst [vmem:[%s4 + $0x30] sm:$0xf] %v1598
    %1615 = vst [vmem:[%s4 + $0x34] sm:$0xf] %v1599
    %1616 = vst [vmem:[%s4 + $0x38] sm:$0xf] %v1600
    %1617 = vst [vmem:[%s4 + $0x3c] sm:$0xf] %v1601
  $region25: #{discriminator_forward.7} parent=0 // pred_fallthru
    _
  // Predicated region
  $region26: #{discriminator_forward.7} parent=0 // pred_check
    _
  $region27: #{discriminator_forward.7} parent=0 // pred_check_branch
    %1619 = sbr.rel (0) target = $region29
  $region28: #{discriminator_forward.7} parent=0 // pred_region
    _
  $region29: #{discriminator_forward.7} parent=0 // pred_fallthru
    _
  // Predicated region
  $region30: #{discriminator_forward.7} parent=0 // pred_check
    _
  $region31: #{discriminator_forward.7} parent=0 // pred_check_branch
    %1621 = sbr.rel (0) target = $region33
  $region32: #{discriminator_forward.7} parent=0 // pred_region
    _
  $region33: #{discriminator_forward.7} parent=0 // pred_fallthru
    _

// kernel: discriminator_forward.8
$region0: #{discriminator_forward.8}
  #allocation0 [shape = 'u32[]', space=smem, size = 0x4, offset = 0x4, fixed_abs, tag = 'smem constant byte address 0x4 - core index']
  #allocation1 [shape = 'u32[72,128]{1,0:T(1,128)}', space=vmem, size = 0x9000, scoped, tag = 'internal scratch']
  #allocation2 [shape = 'f32[16,128]{1,0:T(8,128)}', space=vmem, size = 0x2000, scoped, tag = 'scratch operand']
  %s0 = inlined_call_operand.vmem [shape: bf16[16,2048], index: 0, kind: input, shape index: {}]
  %s1 = inlined_call_operand.vmem [shape: bf16[2048,128], index: 1, kind: input, shape index: {}]
  %s2 = inlined_call_operand.vmem [shape: f32[1,128], index: 2, kind: input, shape index: {}]
  %s3 = inlined_call_operand.vmem [shape: f32[1,128], index: 3, kind: input, shape index: {}]
  %s4 = inlined_call_operand.vmem [shape: bf16[16,128], index: 4, kind: output, shape index: {}]
  %s5 = sld [smem:[#allocation0]]
  $region80: #{discriminator_forward.8} parent=0
    _
  %s7 = ssub.s32 1, %s5
  %s8 = scalar_select 0, %s7, %s5
  $region1: #{discriminator_forward.8} parent=0
    #allocation3 [shape = 'u8[65536]{0}', space=vmem, size = 0x10000, scoped, tag = 'input window, operand 0']
    loop: start=0, step=1, limit=4
    $region2: #{discriminator_forward.8} parent=1 // loop_pre_header
      _
    $region3: #{discriminator_forward.8} parent=1 // loop_header
      %s10 = sphi 0, %s14
      %p11 = scmp.ge.s32.totalorder %s10, 4
      %s20 = sphi 0, %s22
      %s23 = sphi 0, %s20
      %s24 = sphi 0, %s23
      %s40 = sphi 0, %s24
      %s46 = sphi 0, %s48
      %s49 = sphi 0, %s46
      %s50 = sphi 0, %s49
      %s66 = sphi 0, %s50
      %s70 = sphi 0, %s70
      %s72 = sphi 0, %s70
      %s73 = sphi 0, %s72
      %s87 = sphi 0, %s73
      %s91 = sphi 0, %s91
      %s93 = sphi 0, %s91
      %s94 = sphi 0, %s93
      %s108 = sphi 0, %s94
      %s112 = sphi 0, %s112
      %s114 = sphi 0, %s112
      %s115 = sphi 0, %s114
      %s129 = sphi 0, %s115
    $region4: #{discriminator_forward.8} parent=1 // loop_header_branch
      %13 = sbr.rel (%p11) target = $region8
    $region5: #{discriminator_forward.8} parent=1 // loop_body
      %s15 = ssub.s32 %s10, 1
      %s16 = ssub.s32 %s10, 2
      %s17 = sadd.s32 %s10, 1
      %s18 = ssub.s32 %s10, %s17
      %p19 = scmp.eq.s32.totalorder %s18, 0
      %s21 = sadd.s32 %s20, 1
      %s22 = scalar_select %p19, %s20, %s21
      %p25 = pneg %p19
      %p26 = scmp.eq.s32.totalorder %s10, 1
      %p27 = por %p25, %p26
      %p28 = scmp.ne.s32.totalorder %s20, %s23
      %p29 = scmp.eq.s32.totalorder %s10, 0
      %p30 = por %p28, %p29
      %p31 = scmp.ne.s32.totalorder %s20, %s23
      %p32 = scmp.eq.s32.totalorder %s15, 1
      %p33 = por %p31, %p32
      %p34 = scmp.ne.s32.totalorder %s23, %s24
      %p35 = scmp.eq.s32.totalorder %s15, 0
      %p36 = por %p34, %p35
      %p37 = scmp.ne.s32.totalorder %s23, %s24
      %p38 = scmp.eq.s32.totalorder %s16, 1
      %p39 = por %p37, %p38
      %p41 = scmp.ne.s32.totalorder %s24, %s40
      %p42 = scmp.eq.s32.totalorder %s16, 0
      %p43 = por %p41, %p42
      %s44 = ssub.s32 %s10, %s17
      %p45 = scmp.eq.s32.totalorder %s44, 0
      %s47 = sadd.s32 %s46, 1
      %s48 = scalar_select %p45, %s46, %s47
      %p51 = pneg %p45
      %p52 = scmp.eq.s32.totalorder %s10, 1
      %p53 = por %p51, %p52
      %p54 = scmp.ne.s32.totalorder %s46, %s49
      %p55 = scmp.eq.s32.totalorder %s10, 0
      %p56 = por %p54, %p55
      %p57 = scmp.ne.s32.totalorder %s46, %s49
      %p58 = scmp.eq.s32.totalorder %s15, 1
      %p59 = por %p57, %p58
      %p60 = scmp.ne.s32.totalorder %s49, %s50
      %p61 = scmp.eq.s32.totalorder %s15, 0
      %p62 = por %p60, %p61
      %p63 = scmp.ne.s32.totalorder %s49, %s50
      %p64 = scmp.eq.s32.totalorder %s16, 1
      %p65 = por %p63, %p64
      %p67 = scmp.ne.s32.totalorder %s50, %s66
      %p68 = scmp.eq.s32.totalorder %s16, 0
      %p69 = por %p67, %p68
      %s71 = sadd.s32 %s70, 1
      %p74 = scmp.eq.s32.totalorder %s10, 1
      %p75 = scmp.ne.s32.totalorder %s70, %s72
      %p76 = scmp.eq.s32.totalorder %s10, 0
      %p77 = por %p75, %p76
      %p78 = scmp.ne.s32.totalorder %s70, %s72
      %p79 = scmp.eq.s32.totalorder %s15, 1
      %p80 = por %p78, %p79
      %p81 = scmp.ne.s32.totalorder %s72, %s73
      %p82 = scmp.eq.s32.totalorder %s15, 0
      %p83 = por %p81, %p82
      %p84 = scmp.ne.s32.totalorder %s72, %s73
      %p85 = scmp.eq.s32.totalorder %s16, 1
      %p86 = por %p84, %p85
      %p88 = scmp.ne.s32.totalorder %s73, %s87
      %p89 = scmp.eq.s32.totalorder %s16, 0
      %p90 = por %p88, %p89
      %s92 = sadd.s32 %s91, 1
      %p95 = scmp.eq.s32.totalorder %s10, 1
      %p96 = scmp.ne.s32.totalorder %s91, %s93
      %p97 = scmp.eq.s32.totalorder %s10, 0
      %p98 = por %p96, %p97
      %p99 = scmp.ne.s32.totalorder %s91, %s93
      %p100 = scmp.eq.s32.totalorder %s15, 1
      %p101 = por %p99, %p100
      %p102 = scmp.ne.s32.totalorder %s93, %s94
      %p103 = scmp.eq.s32.totalorder %s15, 0
      %p104 = por %p102, %p103
      %p105 = scmp.ne.s32.totalorder %s93, %s94
      %p106 = scmp.eq.s32.totalorder %s16, 1
      %p107 = por %p105, %p106
      %p109 = scmp.ne.s32.totalorder %s94, %s108
      %p110 = scmp.eq.s32.totalorder %s16, 0
      %p111 = por %p109, %p110
      %s113 = sadd.s32 %s112, 1
      %p116 = scmp.eq.s32.totalorder %s10, 1
      %p117 = scmp.ne.s32.totalorder %s112, %s114
      %p118 = scmp.eq.s32.totalorder %s10, 0
      %p119 = por %p117, %p118
      %p120 = scmp.ne.s32.totalorder %s112, %s114
      %p121 = scmp.eq.s32.totalorder %s15, 1
      %p122 = por %p120, %p121
      %p123 = scmp.ne.s32.totalorder %s114, %s115
      %p124 = scmp.eq.s32.totalorder %s15, 0
      %p125 = por %p123, %p124
      %p126 = scmp.ne.s32.totalorder %s114, %s115
      %p127 = scmp.eq.s32.totalorder %s16, 1
      %p128 = por %p126, %p127
      %p130 = scmp.ne.s32.totalorder %s115, %s129
      %p131 = scmp.eq.s32.totalorder %s16, 0
      %p132 = por %p130, %p131
      %p133 = scmp.le.s32.totalorder 1, %s10
      %p134 = scmp.lt.s32.totalorder %s10, 3
      %p135 = pnand %p133, %p134
      %p136 = pneg %p135
      // Predicated region
      $region9: #{discriminator_forward.8} parent=5 // pred_check
        _
      $region10: #{discriminator_forward.8} parent=5 // pred_check_branch
        %138 = sbr.rel (%p135) target = $region12
      $region11: #{discriminator_forward.8} parent=5 // pred_region
        %s139 = ssub.s32 %s10, 1
        // Predicated region
        $region13: #{discriminator_forward.8} parent=11 // pred_check
          %p140 = pneg %p83
        $region14: #{discriminator_forward.8} parent=11 // pred_check_branch
          %142 = sbr.rel (%p140) target = $region16
        $region15: #{discriminator_forward.8} parent=11 // pred_region
          _
        $region16: #{discriminator_forward.8} parent=11 // pred_fallthru
          _
        // Predicated region
        $region17: #{discriminator_forward.8} parent=11 // pred_check
          %p143 = pneg %p104
        $region18: #{discriminator_forward.8} parent=11 // pred_check_branch
          %145 = sbr.rel (%p143) target = $region20
        $region19: #{discriminator_forward.8} parent=11 // pred_region
          _
        $region20: #{discriminator_forward.8} parent=11 // pred_fallthru
          _
      $region12: #{discriminator_forward.8} parent=5 // pred_fallthru
        _
      %p146 = scmp.lt.s32.totalorder %s10, 2
      // Predicated region
      $region21: #{discriminator_forward.8} parent=5 // pred_check
        %p147 = pneg %p146
      $region22: #{discriminator_forward.8} parent=5 // pred_check_branch
        %149 = sbr.rel (%p147) target = $region24
      $region23: #{discriminator_forward.8} parent=5 // pred_region
        // Predicated region
        $region25: #{discriminator_forward.8} parent=23 // pred_check
          %p150 = pneg %p30
        $region26: #{discriminator_forward.8} parent=23 // pred_check_branch
          %152 = sbr.rel (%p150) target = $region28
        $region27: #{discriminator_forward.8} parent=23 // pred_region
          %s153 = sand.u32 %s20, 1
          %s154 = sand.u32 %s20, 1
          %s155 = smul.addr %s154, 64
          %s156 = scalar_lea.vmem [#allocation3], %s155
          %s157 = smul.u32 8, %s10
          %s158 = smul.addr %s157, 4
          %s159 = scalar_lea.vmem %s0, %s158
          // Predicated region
          $region29: #{discriminator_forward.8} parent=27 // pred_check
            _
          $region30: #{discriminator_forward.8} parent=27 // pred_check_branch
            %161 = sbr.rel (0) target = $region32
          $region31: #{discriminator_forward.8} parent=27 // pred_region
            // Predicated region
            $region33: #{discriminator_forward.8} parent=31 // pred_check
              _
            $region34: #{discriminator_forward.8} parent=31 // pred_check_branch
              %163 = sbr.rel (0) target = $region36
            $region35: #{discriminator_forward.8} parent=31 // pred_region
              loop: start=0, step=1, limit=1
              $region37: #{discriminator_forward.8} parent=35 // loop_pre_header
                _
              $region38: #{discriminator_forward.8} parent=35 // loop_header
                %s165 = sphi 0, %s169
                %p166 = scmp.ge.s32.totalorder %s165, 1
                %s170 = sphi %s159, %s159
                %s171 = sphi %s156, %s156
              $region39: #{discriminator_forward.8} parent=35 // loop_header_branch
                %168 = sbr.rel (%p166) target = $region43
              $region40: #{discriminator_forward.8} parent=35 // loop_body
                %v172 = vld [vmem:[%s170] sm:$0xff]
                %173 = vst [vmem:[%s171] sm:$0xff] %v172
                %v174 = vld [vmem:[%s170 + $0x8] sm:$0xff]
                %175 = vst [vmem:[%s171 + $0x8] sm:$0xff] %v174
                %v176 = vld [vmem:[%s170 + $0x10] sm:$0xff]
                %177 = vst [vmem:[%s171 + $0x10] sm:$0xff] %v176
                %v178 = vld [vmem:[%s170 + $0x18] sm:$0xff]
                %179 = vst [vmem:[%s171 + $0x18] sm:$0xff] %v178
                %v180 = vld [vmem:[%s170 + $0x40] sm:$0xff]
                %181 = vst [vmem:[%s171 + $0x20] sm:$0xff] %v180
                %v182 = vld [vmem:[%s170 + $0x48] sm:$0xff]
                %183 = vst [vmem:[%s171 + $0x28] sm:$0xff] %v182
                %v184 = vld [vmem:[%s170 + $0x50] sm:$0xff]
                %185 = vst [vmem:[%s171 + $0x30] sm:$0xff] %v184
                %v186 = vld [vmem:[%s170 + $0x58] sm:$0xff]
                %187 = vst [vmem:[%s171 + $0x38] sm:$0xff] %v186
              $region41: #{discriminator_forward.8} parent=35 // loop_footer
                %s169 = sadd.s32 1, %s165
              $region42: #{discriminator_forward.8} parent=35 // loop_footer_branch
                %164 = sbr.rel target = $region38
              $region43: #{discriminator_forward.8} parent=35 // loop_exit
                _
            $region36: #{discriminator_forward.8} parent=31 // pred_fallthru
              _
            // Predicated region
            $region44: #{discriminator_forward.8} parent=31 // pred_check
              _
            $region45: #{discriminator_forward.8} parent=31 // pred_check_branch
              %189 = sbr.rel target = $region47
            $region46: #{discriminator_forward.8} parent=31 // pred_region
              _
            $region47: #{discriminator_forward.8} parent=31 // pred_fallthru
              _
          $region32: #{discriminator_forward.8} parent=27 // pred_fallthru
            _
          %190 = vnop
        $region28: #{discriminator_forward.8} parent=23 // pred_fallthru
          _
        // Predicated region
        $region48: #{discriminator_forward.8} parent=23 // pred_check
          %p191 = pneg %p56
        $region49: #{discriminator_forward.8} parent=23 // pred_check_branch
          %193 = sbr.rel (%p191) target = $region51
        $region50: #{discriminator_forward.8} parent=23 // pred_region
          %s194 = smul.u32 128, %s10
          %p195 = scmp.lt.s32.totalorder %s194, 255
          %s196 = scalar_select %p195, %s194, 255
          %s197 = smul.addr %s196, 4
          %s198 = scalar_lea.vmem %s1, %s197
          %s199 = smul.u32 128, %s10
        $region51: #{discriminator_forward.8} parent=23 // pred_fallthru
          _
      $region24: #{discriminator_forward.8} parent=5 // pred_fallthru
        _
      %p200 = scmp.le.s32.totalorder 1, %s10
      %p201 = scmp.lt.s32.totalorder %s10, 3
      %p202 = pnand %p200, %p201
      %p203 = pneg %p202
      // Predicated region
      $region52: #{discriminator_forward.8} parent=5 // pred_check
        _
      $region53: #{discriminator_forward.8} parent=5 // pred_check_branch
        %205 = sbr.rel (%p202) target = $region55
      $region54: #{discriminator_forward.8} parent=5 // pred_region
        %s206 = ssub.s32 %s10, 1
        %s207 = sand.u32 %s23, 1
        %s208 = sand.u32 %s23, 1
        %s209 = smul.addr %s208, 64
        %s210 = scalar_lea.vmem [#allocation3], %s209
        // Predicated region
        $region56: #{discriminator_forward.8} parent=54 // pred_check
          %p211 = pneg %p36
        $region57: #{discriminator_forward.8} parent=54 // pred_check_branch
          %213 = sbr.rel (%p211) target = $region59
        $region58: #{discriminator_forward.8} parent=54 // pred_region
          _
        $region59: #{discriminator_forward.8} parent=54 // pred_fallthru
          _
        %s214 = sand.u32 %s23, 1
        %s215 = sand.u32 %s23, 1
        %s216 = smul.addr %s215, 64
        %s217 = scalar_lea.vmem [#allocation3], %s216
        %p218 = pneg %p36
        %p219 = pneg %p33
        %s220 = smul.u32 128, %s15
        %p221 = scmp.lt.s32.totalorder %s220, 255
        %s222 = scalar_select %p221, %s220, 255
        %s223 = smul.addr %s222, 4
        %s224 = scalar_lea.vmem %s1, %s223
        %p225 = pneg %p62
        %p226 = pneg %p59
        %p227 = pneg %p83
        %p228 = pneg %p80
        %p229 = pneg %p104
        %p230 = pneg %p101
        %p231 = pneg %p125
        %p232 = pneg %p122
        %s233 = smul.u32 8, %s15
        %s234 = smul.u32 128, %s15
        %p235 = scmp.lt.s32.totalorder %s234, 255
        %s236 = scalar_select %p235, %s234, 255
        %s237 = smul.addr %s236, 4
        %s238 = scalar_lea.vmem %s1, %s237
        %s239 = smul.u32 128, %s15
        %p240 = scmp.eq.s32.totalorder %s15, 0
        // Predicated region
        $region60: #{discriminator_forward.8} parent=54 // pred_check
          %p241 = pneg %p240
        $region61: #{discriminator_forward.8} parent=54 // pred_check_branch
          %243 = sbr.rel (%p241) target = $region63
        $region62: #{discriminator_forward.8} parent=54 // pred_region
          %244 = vst [vmem:[#allocation2] sm:$0xff] 0.0
          %245 = vst [vmem:[#allocation2 + $0x8] sm:$0xff] 0.0
        $region63: #{discriminator_forward.8} parent=54 // pred_fallthru
          _
        %v246 = vld [vmem:[#allocation2] sm:$0xff]
        %v247 = vld [vmem:[#allocation2 + $0x8] sm:$0xff]
        %v248 = vld [vmem:[%s210] sm:$0xff]
        %v249 = vld [vmem:[%s210 + $0x8] sm:$0xff]
        %v250 = vld [vmem:[%s210 + $0x10] sm:$0xff]
        %v251 = vld [vmem:[%s210 + $0x18] sm:$0xff]
        %v252 = vld [vmem:[%s210 + $0x20] sm:$0xff]
        %v253 = vld [vmem:[%s210 + $0x28] sm:$0xff]
        %v254 = vld [vmem:[%s210 + $0x30] sm:$0xff]
        %v255 = vld [vmem:[%s210 + $0x38] sm:$0xff]
        %v256 = vld [vmem:[%s238] sm:$0xf]
        %v257 = vld [vmem:[%s238 + $0x4] sm:$0xf]
        %v258 = vld [vmem:[%s238 + $0x8] sm:$0xf]
        %v259 = vld [vmem:[%s238 + $0xc] sm:$0xf]
        %v260 = vld [vmem:[%s238 + $0x10] sm:$0xf]
        %v261 = vld [vmem:[%s238 + $0x14] sm:$0xf]
        %v262 = vld [vmem:[%s238 + $0x18] sm:$0xf]
        %v263 = vld [vmem:[%s238 + $0x1c] sm:$0xf]
        %v264 = vld [vmem:[%s238 + $0x20] sm:$0xf]
        %v265 = vld [vmem:[%s238 + $0x24] sm:$0xf]
        %v266 = vld [vmem:[%s238 + $0x28] sm:$0xf]
        %v267 = vld [vmem:[%s238 + $0x2c] sm:$0xf]
        %v268 = vld [vmem:[%s238 + $0x30] sm:$0xf]
        %v269 = vld [vmem:[%s238 + $0x34] sm:$0xf]
        %v270 = vld [vmem:[%s238 + $0x38] sm:$0xf]
        %v271 = vld [vmem:[%s238 + $0x3c] sm:$0xf]
        %v272 = vld [vmem:[%s238 + $0x40] sm:$0xf]
        %v273 = vld [vmem:[%s238 + $0x44] sm:$0xf]
        %v274 = vld [vmem:[%s238 + $0x48] sm:$0xf]
        %v275 = vld [vmem:[%s238 + $0x4c] sm:$0xf]
        %v276 = vld [vmem:[%s238 + $0x50] sm:$0xf]
        %v277 = vld [vmem:[%s238 + $0x54] sm:$0xf]
        %v278 = vld [vmem:[%s238 + $0x58] sm:$0xf]
        %v279 = vld [vmem:[%s238 + $0x5c] sm:$0xf]
        %v280 = vld [vmem:[%s238 + $0x60] sm:$0xf]
        %v281 = vld [vmem:[%s238 + $0x64] sm:$0xf]
        %v282 = vld [vmem:[%s238 + $0x68] sm:$0xf]
        %v283 = vld [vmem:[%s238 + $0x6c] sm:$0xf]
        %v284 = vld [vmem:[%s238 + $0x70] sm:$0xf]
        %v285 = vld [vmem:[%s238 + $0x74] sm:$0xf]
        %v286 = vld [vmem:[%s238 + $0x78] sm:$0xf]
        %v287 = vld [vmem:[%s238 + $0x7c] sm:$0xf]
        %v288 = vld [vmem:[%s238 + $0x80] sm:$0xf]
        %v289 = vld [vmem:[%s238 + $0x84] sm:$0xf]
        %v290 = vld [vmem:[%s238 + $0x88] sm:$0xf]
        %v291 = vld [vmem:[%s238 + $0x8c] sm:$0xf]
        %v292 = vld [vmem:[%s238 + $0x90] sm:$0xf]
        %v293 = vld [vmem:[%s238 + $0x94] sm:$0xf]
        %v294 = vld [vmem:[%s238 + $0x98] sm:$0xf]
        %v295 = vld [vmem:[%s238 + $0x9c] sm:$0xf]
        %v296 = vld [vmem:[%s238 + $0xa0] sm:$0xf]
        %v297 = vld [vmem:[%s238 + $0xa4] sm:$0xf]
        %v298 = vld [vmem:[%s238 + $0xa8] sm:$0xf]
        %v299 = vld [vmem:[%s238 + $0xac] sm:$0xf]
        %v300 = vld [vmem:[%s238 + $0xb0] sm:$0xf]
        %v301 = vld [vmem:[%s238 + $0xb4] sm:$0xf]
        %v302 = vld [vmem:[%s238 + $0xb8] sm:$0xf]
        %v303 = vld [vmem:[%s238 + $0xbc] sm:$0xf]
        %v304 = vld [vmem:[%s238 + $0xc0] sm:$0xf]
        %v305 = vld [vmem:[%s238 + $0xc4] sm:$0xf]
        %v306 = vld [vmem:[%s238 + $0xc8] sm:$0xf]
        %v307 = vld [vmem:[%s238 + $0xcc] sm:$0xf]
        %v308 = vld [vmem:[%s238 + $0xd0] sm:$0xf]
        %v309 = vld [vmem:[%s238 + $0xd4] sm:$0xf]
        %v310 = vld [vmem:[%s238 + $0xd8] sm:$0xf]
        %v311 = vld [vmem:[%s238 + $0xdc] sm:$0xf]
        %v312 = vld [vmem:[%s238 + $0xe0] sm:$0xf]
        %v313 = vld [vmem:[%s238 + $0xe4] sm:$0xf]
        %v314 = vld [vmem:[%s238 + $0xe8] sm:$0xf]
        %v315 = vld [vmem:[%s238 + $0xec] sm:$0xf]
        %v316 = vld [vmem:[%s238 + $0xf0] sm:$0xf]
        %v317 = vld [vmem:[%s238 + $0xf4] sm:$0xf]
        %v318 = vld [vmem:[%s238 + $0xf8] sm:$0xf]
        %v319 = vld [vmem:[%s238 + $0xfc] sm:$0xf]
        %v320 = vld [vmem:[%s238 + $0x100] sm:$0xf]
        %v321 = vld [vmem:[%s238 + $0x104] sm:$0xf]
        %v322 = vld [vmem:[%s238 + $0x108] sm:$0xf]
        %v323 = vld [vmem:[%s238 + $0x10c] sm:$0xf]
        %v324 = vld [vmem:[%s238 + $0x110] sm:$0xf]
        %v325 = vld [vmem:[%s238 + $0x114] sm:$0xf]
        %v326 = vld [vmem:[%s238 + $0x118] sm:$0xf]
        %v327 = vld [vmem:[%s238 + $0x11c] sm:$0xf]
        %v328 = vld [vmem:[%s238 + $0x120] sm:$0xf]
        %v329 = vld [vmem:[%s238 + $0x124] sm:$0xf]
        %v330 = vld [vmem:[%s238 + $0x128] sm:$0xf]
        %v331 = vld [vmem:[%s238 + $0x12c] sm:$0xf]
        %v332 = vld [vmem:[%s238 + $0x130] sm:$0xf]
        %v333 = vld [vmem:[%s238 + $0x134] sm:$0xf]
        %v334 = vld [vmem:[%s238 + $0x138] sm:$0xf]
        %v335 = vld [vmem:[%s238 + $0x13c] sm:$0xf]
        %v336 = vld [vmem:[%s238 + $0x140] sm:$0xf]
        %v337 = vld [vmem:[%s238 + $0x144] sm:$0xf]
        %v338 = vld [vmem:[%s238 + $0x148] sm:$0xf]
        %v339 = vld [vmem:[%s238 + $0x14c] sm:$0xf]
        %v340 = vld [vmem:[%s238 + $0x150] sm:$0xf]
        %v341 = vld [vmem:[%s238 + $0x154] sm:$0xf]
        %v342 = vld [vmem:[%s238 + $0x158] sm:$0xf]
        %v343 = vld [vmem:[%s238 + $0x15c] sm:$0xf]
        %v344 = vld [vmem:[%s238 + $0x160] sm:$0xf]
        %v345 = vld [vmem:[%s238 + $0x164] sm:$0xf]
        %v346 = vld [vmem:[%s238 + $0x168] sm:$0xf]
        %v347 = vld [vmem:[%s238 + $0x16c] sm:$0xf]
        %v348 = vld [vmem:[%s238 + $0x170] sm:$0xf]
        %v349 = vld [vmem:[%s238 + $0x174] sm:$0xf]
        %v350 = vld [vmem:[%s238 + $0x178] sm:$0xf]
        %v351 = vld [vmem:[%s238 + $0x17c] sm:$0xf]
        %v352 = vld [vmem:[%s238 + $0x180] sm:$0xf]
        %v353 = vld [vmem:[%s238 + $0x184] sm:$0xf]
        %v354 = vld [vmem:[%s238 + $0x188] sm:$0xf]
        %v355 = vld [vmem:[%s238 + $0x18c] sm:$0xf]
        %v356 = vld [vmem:[%s238 + $0x190] sm:$0xf]
        %v357 = vld [vmem:[%s238 + $0x194] sm:$0xf]
        %v358 = vld [vmem:[%s238 + $0x198] sm:$0xf]
        %v359 = vld [vmem:[%s238 + $0x19c] sm:$0xf]
        %v360 = vld [vmem:[%s238 + $0x1a0] sm:$0xf]
        %v361 = vld [vmem:[%s238 + $0x1a4] sm:$0xf]
        %v362 = vld [vmem:[%s238 + $0x1a8] sm:$0xf]
        %v363 = vld [vmem:[%s238 + $0x1ac] sm:$0xf]
        %v364 = vld [vmem:[%s238 + $0x1b0] sm:$0xf]
        %v365 = vld [vmem:[%s238 + $0x1b4] sm:$0xf]
        %v366 = vld [vmem:[%s238 + $0x1b8] sm:$0xf]
        %v367 = vld [vmem:[%s238 + $0x1bc] sm:$0xf]
        %v368 = vld [vmem:[%s238 + $0x1c0] sm:$0xf]
        %v369 = vld [vmem:[%s238 + $0x1c4] sm:$0xf]
        %v370 = vld [vmem:[%s238 + $0x1c8] sm:$0xf]
        %v371 = vld [vmem:[%s238 + $0x1cc] sm:$0xf]
        %v372 = vld [vmem:[%s238 + $0x1d0] sm:$0xf]
        %v373 = vld [vmem:[%s238 + $0x1d4] sm:$0xf]
        %v374 = vld [vmem:[%s238 + $0x1d8] sm:$0xf]
        %v375 = vld [vmem:[%s238 + $0x1dc] sm:$0xf]
        %v376 = vld [vmem:[%s238 + $0x1e0] sm:$0xf]
        %v377 = vld [vmem:[%s238 + $0x1e4] sm:$0xf]
        %v378 = vld [vmem:[%s238 + $0x1e8] sm:$0xf]
        %v379 = vld [vmem:[%s238 + $0x1ec] sm:$0xf]
        %v380 = vld [vmem:[%s238 + $0x1f0] sm:$0xf]
        %v381 = vld [vmem:[%s238 + $0x1f4] sm:$0xf]
        %v382 = vld [vmem:[%s238 + $0x1f8] sm:$0xf]
        %v383 = vld [vmem:[%s238 + $0x1fc] sm:$0xf]
        %v392 = vunpack.c.l.b16 %v248
        %v393 = vunpack.c.h.b16 %v248
        %v394 = vunpack.c.l.b16 %v249
        %v395 = vunpack.c.h.b16 %v249
        %v396 = vunpack.c.l.b16 %v250
        %v397 = vunpack.c.h.b16 %v250
        %v398 = vunpack.c.l.b16 %v251
        %v399 = vunpack.c.h.b16 %v251
        %v400 = vunpack.c.l.b16 %v252
        %v401 = vunpack.c.h.b16 %v252
        %v402 = vunpack.c.l.b16 %v253
        %v403 = vunpack.c.h.b16 %v253
        %v404 = vunpack.c.l.b16 %v254
        %v405 = vunpack.c.h.b16 %v254
        %v406 = vunpack.c.l.b16 %v255
        %v407 = vunpack.c.h.b16 %v255
        %v408 = vpack.c.b16 %v400, %v392
        %v409 = vpack.c.b16 %v401, %v393
        %v410 = vpack.c.b16 %v402, %v394
        %v411 = vpack.c.b16 %v403, %v395
        %v412 = vpack.c.b16 %v404, %v396
        %v413 = vpack.c.b16 %v405, %v397
        %v414 = vpack.c.b16 %v406, %v398
        %v415 = vpack.c.b16 %v407, %v399
        %v552 = vunpack.c.l.b16 %v256
        %v553 = vunpack.c.l.b16 %v257
        %v554 = vunpack.c.l.b16 %v258
        %v555 = vunpack.c.l.b16 %v259
        %v556 = vunpack.c.l.b16 %v260
        %v557 = vunpack.c.l.b16 %v261
        %v558 = vunpack.c.l.b16 %v262
        %v559 = vunpack.c.l.b16 %v263
        %v560 = vunpack.c.l.b16 %v264
        %v561 = vunpack.c.l.b16 %v265
        %v562 = vunpack.c.l.b16 %v266
        %v563 = vunpack.c.l.b16 %v267
        %v564 = vunpack.c.l.b16 %v268
        %v565 = vunpack.c.l.b16 %v269
        %v566 = vunpack.c.l.b16 %v270
        %v567 = vunpack.c.l.b16 %v271
        %v568 = vunpack.c.l.b16 %v272
        %v569 = vunpack.c.l.b16 %v273
        %v570 = vunpack.c.l.b16 %v274
        %v571 = vunpack.c.l.b16 %v275
        %v572 = vunpack.c.l.b16 %v276
        %v573 = vunpack.c.l.b16 %v277
        %v574 = vunpack.c.l.b16 %v278
        %v575 = vunpack.c.l.b16 %v279
        %v576 = vunpack.c.l.b16 %v280
        %v577 = vunpack.c.l.b16 %v281
        %v578 = vunpack.c.l.b16 %v282
        %v579 = vunpack.c.l.b16 %v283
        %v580 = vunpack.c.l.b16 %v284
        %v581 = vunpack.c.l.b16 %v285
        %v582 = vunpack.c.l.b16 %v286
        %v583 = vunpack.c.l.b16 %v287
        %v584 = vunpack.c.l.b16 %v288
        %v585 = vunpack.c.l.b16 %v289
        %v586 = vunpack.c.l.b16 %v290
        %v587 = vunpack.c.l.b16 %v291
        %v588 = vunpack.c.l.b16 %v292
        %v589 = vunpack.c.l.b16 %v293
        %v590 = vunpack.c.l.b16 %v294
        %v591 = vunpack.c.l.b16 %v295
        %v592 = vunpack.c.l.b16 %v296
        %v593 = vunpack.c.l.b16 %v297
        %v594 = vunpack.c.l.b16 %v298
        %v595 = vunpack.c.l.b16 %v299
        %v596 = vunpack.c.l.b16 %v300
        %v597 = vunpack.c.l.b16 %v301
        %v598 = vunpack.c.l.b16 %v302
        %v599 = vunpack.c.l.b16 %v303
        %v600 = vunpack.c.l.b16 %v304
        %v601 = vunpack.c.l.b16 %v305
        %v602 = vunpack.c.l.b16 %v306
        %v603 = vunpack.c.l.b16 %v307
        %v604 = vunpack.c.l.b16 %v308
        %v605 = vunpack.c.l.b16 %v309
        %v606 = vunpack.c.l.b16 %v310
        %v607 = vunpack.c.l.b16 %v311
        %v608 = vunpack.c.l.b16 %v312
        %v609 = vunpack.c.l.b16 %v313
        %v610 = vunpack.c.l.b16 %v314
        %v611 = vunpack.c.l.b16 %v315
        %v612 = vunpack.c.l.b16 %v316
        %v613 = vunpack.c.l.b16 %v317
        %v614 = vunpack.c.l.b16 %v318
        %v615 = vunpack.c.l.b16 %v319
        %v616 = vunpack.c.l.b16 %v320
        %v617 = vunpack.c.l.b16 %v321
        %v618 = vunpack.c.l.b16 %v322
        %v619 = vunpack.c.l.b16 %v323
        %v620 = vunpack.c.l.b16 %v324
        %v621 = vunpack.c.l.b16 %v325
        %v622 = vunpack.c.l.b16 %v326
        %v623 = vunpack.c.l.b16 %v327
        %v624 = vunpack.c.l.b16 %v328
        %v625 = vunpack.c.l.b16 %v329
        %v626 = vunpack.c.l.b16 %v330
        %v627 = vunpack.c.l.b16 %v331
        %v628 = vunpack.c.l.b16 %v332
        %v629 = vunpack.c.l.b16 %v333
        %v630 = vunpack.c.l.b16 %v334
        %v631 = vunpack.c.l.b16 %v335
        %v632 = vunpack.c.l.b16 %v336
        %v633 = vunpack.c.l.b16 %v337
        %v634 = vunpack.c.l.b16 %v338
        %v635 = vunpack.c.l.b16 %v339
        %v636 = vunpack.c.l.b16 %v340
        %v637 = vunpack.c.l.b16 %v341
        %v638 = vunpack.c.l.b16 %v342
        %v639 = vunpack.c.l.b16 %v343
        %v640 = vunpack.c.l.b16 %v344
        %v641 = vunpack.c.l.b16 %v345
        %v642 = vunpack.c.l.b16 %v346
        %v643 = vunpack.c.l.b16 %v347
        %v644 = vunpack.c.l.b16 %v348
        %v645 = vunpack.c.l.b16 %v349
        %v646 = vunpack.c.l.b16 %v350
        %v647 = vunpack.c.l.b16 %v351
        %v648 = vunpack.c.l.b16 %v352
        %v649 = vunpack.c.l.b16 %v353
        %v650 = vunpack.c.l.b16 %v354
        %v651 = vunpack.c.l.b16 %v355
        %v652 = vunpack.c.l.b16 %v356
        %v653 = vunpack.c.l.b16 %v357
        %v654 = vunpack.c.l.b16 %v358
        %v655 = vunpack.c.l.b16 %v359
        %v656 = vunpack.c.l.b16 %v360
        %v657 = vunpack.c.l.b16 %v361
        %v658 = vunpack.c.l.b16 %v362
        %v659 = vunpack.c.l.b16 %v363
        %v660 = vunpack.c.l.b16 %v364
        %v661 = vunpack.c.l.b16 %v365
        %v662 = vunpack.c.l.b16 %v366
        %v663 = vunpack.c.l.b16 %v367
        %v664 = vunpack.c.l.b16 %v368
        %v665 = vunpack.c.l.b16 %v369
        %v666 = vunpack.c.l.b16 %v370
        %v667 = vunpack.c.l.b16 %v371
        %v668 = vunpack.c.l.b16 %v372
        %v669 = vunpack.c.l.b16 %v373
        %v670 = vunpack.c.l.b16 %v374
        %v671 = vunpack.c.l.b16 %v375
        %v672 = vunpack.c.l.b16 %v376
        %v673 = vunpack.c.l.b16 %v377
        %v674 = vunpack.c.l.b16 %v378
        %v675 = vunpack.c.l.b16 %v379
        %v676 = vunpack.c.l.b16 %v380
        %v677 = vunpack.c.l.b16 %v381
        %v678 = vunpack.c.l.b16 %v382
        %v679 = vunpack.c.l.b16 %v383
        %v680 = vpack.c.b16 %v553, %v552
        %v681 = vpack.c.b16 %v555, %v554
        %v682 = vpack.c.b16 %v557, %v556
        %v683 = vpack.c.b16 %v559, %v558
        %v684 = vpack.c.b16 %v561, %v560
        %v685 = vpack.c.b16 %v563, %v562
        %v686 = vpack.c.b16 %v565, %v564
        %v687 = vpack.c.b16 %v567, %v566
        %v688 = vpack.c.b16 %v569, %v568
        %v689 = vpack.c.b16 %v571, %v570
        %v690 = vpack.c.b16 %v573, %v572
        %v691 = vpack.c.b16 %v575, %v574
        %v692 = vpack.c.b16 %v577, %v576
        %v693 = vpack.c.b16 %v579, %v578
        %v694 = vpack.c.b16 %v581, %v580
        %v695 = vpack.c.b16 %v583, %v582
        %v696 = vpack.c.b16 %v585, %v584
        %v697 = vpack.c.b16 %v587, %v586
        %v698 = vpack.c.b16 %v589, %v588
        %v699 = vpack.c.b16 %v591, %v590
        %v700 = vpack.c.b16 %v593, %v592
        %v701 = vpack.c.b16 %v595, %v594
        %v702 = vpack.c.b16 %v597, %v596
        %v703 = vpack.c.b16 %v599, %v598
        %v704 = vpack.c.b16 %v601, %v600
        %v705 = vpack.c.b16 %v603, %v602
        %v706 = vpack.c.b16 %v605, %v604
        %v707 = vpack.c.b16 %v607, %v606
        %v708 = vpack.c.b16 %v609, %v608
        %v709 = vpack.c.b16 %v611, %v610
        %v710 = vpack.c.b16 %v613, %v612
        %v711 = vpack.c.b16 %v615, %v614
        %v712 = vpack.c.b16 %v617, %v616
        %v713 = vpack.c.b16 %v619, %v618
        %v714 = vpack.c.b16 %v621, %v620
        %v715 = vpack.c.b16 %v623, %v622
        %v716 = vpack.c.b16 %v625, %v624
        %v717 = vpack.c.b16 %v627, %v626
        %v718 = vpack.c.b16 %v629, %v628
        %v719 = vpack.c.b16 %v631, %v630
        %v720 = vpack.c.b16 %v633, %v632
        %v721 = vpack.c.b16 %v635, %v634
        %v722 = vpack.c.b16 %v637, %v636
        %v723 = vpack.c.b16 %v639, %v638
        %v724 = vpack.c.b16 %v641, %v640
        %v725 = vpack.c.b16 %v643, %v642
        %v726 = vpack.c.b16 %v645, %v644
        %v727 = vpack.c.b16 %v647, %v646
        %v728 = vpack.c.b16 %v649, %v648
        %v729 = vpack.c.b16 %v651, %v650
        %v730 = vpack.c.b16 %v653, %v652
        %v731 = vpack.c.b16 %v655, %v654
        %v732 = vpack.c.b16 %v657, %v656
        %v733 = vpack.c.b16 %v659, %v658
        %v734 = vpack.c.b16 %v661, %v660
        %v735 = vpack.c.b16 %v663, %v662
        %v736 = vpack.c.b16 %v665, %v664
        %v737 = vpack.c.b16 %v667, %v666
        %v738 = vpack.c.b16 %v669, %v668
        %v739 = vpack.c.b16 %v671, %v670
        %v740 = vpack.c.b16 %v673, %v672
        %v741 = vpack.c.b16 %v675, %v674
        %v742 = vpack.c.b16 %v677, %v676
        %v743 = vpack.c.b16 %v679, %v678
        %808 = vmatpush.bf16.msra.mxu0 %v687
        %809 = vmatpush.bf16.msra.mxu0 %v686
        %810 = vmatpush.bf16.msra.mxu0 %v685
        %811 = vmatpush.bf16.msra.mxu0 %v684
        %812 = vmatpush.bf16.msra.mxu0 %v683
        %813 = vmatpush.bf16.msra.mxu0 %v682
        %814 = vmatpush.bf16.msra.mxu0 %v681
        %815 = vmatpush.bf16.msra.mxu0 %v680
        %816 = vmatmul.bf16.gmra.mxu0 %v408
        %v817 = vpop.f32.mrf.mxu0
        %v818 = vadd.f32 0.0, %v817
        %v819 = vpop.f32.mrf.mxu0
        %v820 = vadd.f32 0.0, %v819
        %821 = vdwg.mxu0
        %822 = vmatpush.bf16.msra.mxu0 %v695
        %823 = vmatpush.bf16.msra.mxu0 %v694
        %824 = vmatpush.bf16.msra.mxu0 %v693
        %825 = vmatpush.bf16.msra.mxu0 %v692
        %826 = vmatpush.bf16.msra.mxu0 %v691
        %827 = vmatpush.bf16.msra.mxu0 %v690
        %828 = vmatpush.bf16.msra.mxu0 %v689
        %829 = vmatpush.bf16.msra.mxu0 %v688
        %830 = vmatmul.bf16.gmra.mxu0 %v409
        %v831 = vpop.f32.mrf.mxu0
        %v832 = vadd.f32 %v818, %v831
        %v833 = vpop.f32.mrf.mxu0
        %v834 = vadd.f32 %v820, %v833
        %835 = vdwg.mxu0
        %836 = vmatpush.bf16.msra.mxu0 %v703
        %837 = vmatpush.bf16.msra.mxu0 %v702
        %838 = vmatpush.bf16.msra.mxu0 %v701
        %839 = vmatpush.bf16.msra.mxu0 %v700
        %840 = vmatpush.bf16.msra.mxu0 %v699
        %841 = vmatpush.bf16.msra.mxu0 %v698
        %842 = vmatpush.bf16.msra.mxu0 %v697
        %843 = vmatpush.bf16.msra.mxu0 %v696
        %844 = vmatmul.bf16.gmra.mxu0 %v410
        %v845 = vpop.f32.mrf.mxu0
        %v846 = vadd.f32 %v832, %v845
        %v847 = vpop.f32.mrf.mxu0
        %v848 = vadd.f32 %v834, %v847
        %849 = vdwg.mxu0
        %850 = vmatpush.bf16.msra.mxu0 %v711
        %851 = vmatpush.bf16.msra.mxu0 %v710
        %852 = vmatpush.bf16.msra.mxu0 %v709
        %853 = vmatpush.bf16.msra.mxu0 %v708
        %854 = vmatpush.bf16.msra.mxu0 %v707
        %855 = vmatpush.bf16.msra.mxu0 %v706
        %856 = vmatpush.bf16.msra.mxu0 %v705
        %857 = vmatpush.bf16.msra.mxu0 %v704
        %858 = vmatmul.bf16.gmra.mxu0 %v411
        %v859 = vpop.f32.mrf.mxu0
        %v860 = vadd.f32 %v846, %v859
        %v861 = vpop.f32.mrf.mxu0
        %v862 = vadd.f32 %v848, %v861
        %863 = vdwg.mxu0
        %864 = vmatpush.bf16.msra.mxu0 %v719
        %865 = vmatpush.bf16.msra.mxu0 %v718
        %866 = vmatpush.bf16.msra.mxu0 %v717
        %867 = vmatpush.bf16.msra.mxu0 %v716
        %868 = vmatpush.bf16.msra.mxu0 %v715
        %869 = vmatpush.bf16.msra.mxu0 %v714
        %870 = vmatpush.bf16.msra.mxu0 %v713
        %871 = vmatpush.bf16.msra.mxu0 %v712
        %872 = vmatmul.bf16.gmra.mxu0 %v412
        %v873 = vpop.f32.mrf.mxu0
        %v874 = vadd.f32 %v860, %v873
        %v875 = vpop.f32.mrf.mxu0
        %v876 = vadd.f32 %v862, %v875
        %877 = vdwg.mxu0
        %878 = vmatpush.bf16.msra.mxu0 %v727
        %879 = vmatpush.bf16.msra.mxu0 %v726
        %880 = vmatpush.bf16.msra.mxu0 %v725
        %881 = vmatpush.bf16.msra.mxu0 %v724
        %882 = vmatpush.bf16.msra.mxu0 %v723
        %883 = vmatpush.bf16.msra.mxu0 %v722
        %884 = vmatpush.bf16.msra.mxu0 %v721
        %885 = vmatpush.bf16.msra.mxu0 %v720
        %886 = vmatmul.bf16.gmra.mxu0 %v413
        %v887 = vpop.f32.mrf.mxu0
        %v888 = vadd.f32 %v874, %v887
        %v889 = vpop.f32.mrf.mxu0
        %v890 = vadd.f32 %v876, %v889
        %891 = vdwg.mxu0
        %892 = vmatpush.bf16.msra.mxu0 %v735
        %893 = vmatpush.bf16.msra.mxu0 %v734
        %894 = vmatpush.bf16.msra.mxu0 %v733
        %895 = vmatpush.bf16.msra.mxu0 %v732
        %896 = vmatpush.bf16.msra.mxu0 %v731
        %897 = vmatpush.bf16.msra.mxu0 %v730
        %898 = vmatpush.bf16.msra.mxu0 %v729
        %899 = vmatpush.bf16.msra.mxu0 %v728
        %900 = vmatmul.bf16.gmra.mxu0 %v414
        %v901 = vpop.f32.mrf.mxu0
        %v902 = vadd.f32 %v888, %v901
        %v903 = vpop.f32.mrf.mxu0
        %v904 = vadd.f32 %v890, %v903
        %905 = vdwg.mxu0
        %906 = vmatpush.bf16.msra.mxu0 %v743
        %907 = vmatpush.bf16.msra.mxu0 %v742
        %908 = vmatpush.bf16.msra.mxu0 %v741
        %909 = vmatpush.bf16.msra.mxu0 %v740
        %910 = vmatpush.bf16.msra.mxu0 %v739
        %911 = vmatpush.bf16.msra.mxu0 %v738
        %912 = vmatpush.bf16.msra.mxu0 %v737
        %913 = vmatpush.bf16.msra.mxu0 %v736
        %914 = vmatmul.bf16.gmra.mxu0 %v415
        %v915 = vpop.f32.mrf.mxu0
        %v916 = vadd.f32 %v902, %v915
        %v917 = vpop.f32.mrf.mxu0
        %v918 = vadd.f32 %v904, %v917
        %919 = vdwg.mxu0
        %v920 = vadd.f32 %v246, %v916
        %v921 = vadd.f32 %v247, %v918
        %922 = vst [vmem:[#allocation2] sm:$0xff] %v920
        %923 = vst [vmem:[#allocation2 + $0x8] sm:$0xff] %v921
        %p924 = scmp.eq.s32.totalorder %s15, 1
        // Predicated region
        $region64: #{discriminator_forward.8} parent=54 // pred_check
          %p925 = pneg %p924
        $region65: #{discriminator_forward.8} parent=54 // pred_check_branch
          %927 = sbr.rel (%p925) target = $region67
        $region66: #{discriminator_forward.8} parent=54 // pred_region
          %v928 = vld [vmem:[#allocation2] sm:$0xff]
          %v929 = vld [vmem:[#allocation2 + $0x8] sm:$0xff]
          %v930 = vadd.f32 %v928, %v929
          %v931 = vrot.slane %v930, 4
          %v932 = vadd.f32 %v930, %v931
          %v933 = vrot.slane %v932, 2
          %v934 = vadd.f32 %v932, %v933
          %v935 = vrot.slane %v934, 1
          %v936 = vadd.f32 %v934, %v935
          %v937 = vmul.f32 %v936, 0.0625
          %v938 = vmul.f32 %v928, %v928
          %v939 = vmul.f32 %v929, %v929
          %v940 = vadd.f32 %v938, %v939
          %v941 = vrot.slane %v940, 4
          %v942 = vadd.f32 %v940, %v941
          %v943 = vrot.slane %v942, 2
          %v944 = vadd.f32 %v942, %v943
          %v945 = vrot.slane %v944, 1
          %v946 = vadd.f32 %v944, %v945
          %v947 = vmul.f32 %v946, 0.0625
          %v948 = vmul.f32 %v937, %v937
          %v949 = vsub.f32 %v947, %v948
          %v950 = vmax.f32 %v949, 0.0
          %v951 = vsub.f32 %v928, %v937
          %v952 = vsub.f32 %v929, %v937
          %v953 = vadd.f32 %v950, 1e-05
          %v954 = vrsqrt.pop %v953
          %v955 = vmul.f32 %v954, %v953
          %v956 = vmul.f32 %v955, %v954
          %v957 = vmul.f32 0.5, %v956
          %v958 = vsub.f32 1.5, %v957
          %v959 = vmul.f32 %v954, %v958
          %vm960 = vweird.f32 %v953
          %vm961 = vweird.f32 %v954
          %vm962 = vmor %vm960, %vm961
          %v963 = vsel %vm962, %v954, %v959
          %v964 = vmul.f32 %v951, %v963
          %v965 = vmul.f32 %v952, %v963
          %v966 = vld [vmem:[%s2] sm:$0x1]
          %v968 = vperm.slane %v966, 0
          %v970 = vmul.f32 %v964, %v968
          %v971 = vmul.f32 %v965, %v968
          %v972 = vld [vmem:[%s3] sm:$0x1]
          %v974 = vperm.slane %v972, 0
          %v976 = vadd.f32 %v970, %v974
          %v977 = vadd.f32 %v971, %v974
          %vm978 = vcmp.gt.f32.partialorder %v976, 0.0
          %vm979 = vcmp.gt.f32.partialorder %v977, 0.0
          %v980 = vmul.f32 %v976, 0.2
          %v981 = vmul.f32 %v977, 0.2
          %v982 = vsel %vm978, %v976, %v980
          %v983 = vsel %vm979, %v977, %v981
          %v984 = vpack.c.bf16 %v982, %v982
          %v985 = vpack.c.bf16 %v983, %v983
          %986 = vst [vmem:[%s4] sm:$0xf] %v984
          %987 = vst [vmem:[%s4 + $0x4] sm:$0xf] %v985
        $region67: #{discriminator_forward.8} parent=54 // pred_fallthru
          _
        // Predicated region
        $region68: #{discriminator_forward.8} parent=54 // pred_check
          %p988 = pneg %p122
        $region69: #{discriminator_forward.8} parent=54 // pred_check_branch
          %990 = sbr.rel (%p988) target = $region71
        $region70: #{discriminator_forward.8} parent=54 // pred_region
          _
        $region71: #{discriminator_forward.8} parent=54 // pred_fallthru
          _
        // Predicated region
        $region72: #{discriminator_forward.8} parent=54 // pred_check
          %p991 = pneg %p122
        $region73: #{discriminator_forward.8} parent=54 // pred_check_branch
          %993 = sbr.rel (%p991) target = $region75
        $region74: #{discriminator_forward.8} parent=54 // pred_region
          _
        $region75: #{discriminator_forward.8} parent=54 // pred_fallthru
          _
      $region55: #{discriminator_forward.8} parent=5 // pred_fallthru
        _
      %p994 = scmp.le.s32.totalorder 2, %s10
      // Predicated region
      $region76: #{discriminator_forward.8} parent=5 // pred_check
        %p995 = pneg %p994
      $region77: #{discriminator_forward.8} parent=5 // pred_check_branch
        %997 = sbr.rel (%p995) target = $region79
      $region78: #{discriminator_forward.8} parent=5 // pred_region
        %s998 = ssub.s32 %s10, 2
      $region79: #{discriminator_forward.8} parent=5 // pred_fallthru
        _
    $region6: #{discriminator_forward.8} parent=1 // loop_footer
      %s14 = sadd.s32 1, %s10
    $region7: #{discriminator_forward.8} parent=1 // loop_footer_branch
      %9 = sbr.rel target = $region3
    $region8: #{discriminator_forward.8} parent=1 // loop_exit
      _

// kernel: discriminator_forward.9
$region0: #{discriminator_forward.9}
  #allocation0 [shape = 'u32[]', space=smem, size = 0x4, offset = 0x4, fixed_abs, tag = 'smem constant byte address 0x4 - core index']
  #allocation1 [shape = 'u32[72,128]{1,0:T(1,128)}', space=vmem, size = 0x9000, scoped, tag = 'internal scratch']
  #allocation2 [shape = 'f32[2,128]{1,0:T(2,128)}', space=vmem, size = 0x400, scoped, tag = 'scratch operand']
  %s0 = inlined_call_operand.vmem [shape: bf16[2,4096], index: 0, kind: input, shape index: {}]
  %s1 = inlined_call_operand.vmem [shape: bf16[4096,128], index: 1, kind: input, shape index: {}]
  %s2 = inlined_call_operand.vmem [shape: f32[1,128], index: 2, kind: input, shape index: {}]
  %s3 = inlined_call_operand.vmem [shape: f32[2,128], index: 3, kind: output, shape index: {}]
  %s4 = sld [smem:[#allocation0]]
  $region53: #{discriminator_forward.9} parent=0
    _
  %s6 = ssub.s32 1, %s4
  %s7 = scalar_select 0, %s6, %s4
  loop: start=0, step=1, limit=6
  $region2: #{discriminator_forward.9} parent=0 // loop_pre_header
    _
  $region3: #{discriminator_forward.9} parent=0 // loop_header
    %s9 = sphi 0, %s13
    %p10 = scmp.ge.s32.totalorder %s9, 6
    %s16 = sphi 0, %s28
    %s17 = sphi 0, %s24
    %s18 = sphi 0, %s16
    %s19 = sphi 0, %s17
    %s20 = sphi 0, %s18
    %s21 = sphi 0, %s19
    %s33 = sphi 0, %s35
    %s36 = sphi 0, %s33
    %s37 = sphi 0, %s36
    %s53 = sphi 0, %s37
    %s59 = sphi 0, %s61
    %s62 = sphi 0, %s59
    %s63 = sphi 0, %s62
    %s79 = sphi 0, %s63
    %s83 = sphi 0, %s83
    %s85 = sphi 0, %s83
    %s86 = sphi 0, %s85
    %s100 = sphi 0, %s86
    %s106 = sphi 0, %s108
    %s109 = sphi 0, %s106
    %s110 = sphi 0, %s109
    %s126 = sphi 0, %s110
  $region4: #{discriminator_forward.9} parent=0 // loop_header_branch
    %12 = sbr.rel (%p10) target = $region8
  $region5: #{discriminator_forward.9} parent=0 // loop_body
    %s14 = ssub.s32 %s9, 1
    %s15 = ssub.s32 %s9, 2
    %s22 = sadd.s32 1, %s17
    %p23 = scmp.ge.s32.totalorder %s22, 4
    %s24 = scalar_select %p23, 0, %s22
    %s25 = sadd.s32 1, %s16
    %s26 = scalar_select %p23, %s25, %s16
    %p27 = scmp.ge.s32.totalorder %s26, 1
    %s28 = scalar_select %p27, 0, %s26
    %s29 = ssub.s32 %s16, %s28
    %s30 = ssub.s32 %s17, %s24
    %s31 = sor.u32 %s29, %s30
    %p32 = scmp.eq.s32.totalorder %s31, 0
    %s34 = sadd.s32 %s33, 1
    %s35 = scalar_select %p32, %s33, %s34
    %p38 = pneg %p32
    %p39 = scmp.eq.s32.totalorder %s9, 3
    %p40 = por %p38, %p39
    %p41 = scmp.ne.s32.totalorder %s33, %s36
    %p42 = scmp.eq.s32.totalorder %s9, 0
    %p43 = por %p41, %p42
    %p44 = scmp.ne.s32.totalorder %s33, %s36
    %p45 = scmp.eq.s32.totalorder %s14, 3
    %p46 = por %p44, %p45
    %p47 = scmp.ne.s32.totalorder %s36, %s37
    %p48 = scmp.eq.s32.totalorder %s14, 0
    %p49 = por %p47, %p48
    %p50 = scmp.ne.s32.totalorder %s36, %s37
    %p51 = scmp.eq.s32.totalorder %s15, 3
    %p52 = por %p50, %p51
    %p54 = scmp.ne.s32.totalorder %s37, %s53
    %p55 = scmp.eq.s32.totalorder %s15, 0
    %p56 = por %p54, %p55
    %s57 = ssub.s32 %s17, %s24
    %p58 = scmp.eq.s32.totalorder %s57, 0
    %s60 = sadd.s32 %s59, 1
    %s61 = scalar_select %p58, %s59, %s60
    %p64 = pneg %p58
    %p65 = scmp.eq.s32.totalorder %s9, 3
    %p66 = por %p64, %p65
    %p67 = scmp.ne.s32.totalorder %s59, %s62
    %p68 = scmp.eq.s32.totalorder %s9, 0
    %p69 = por %p67, %p68
    %p70 = scmp.ne.s32.totalorder %s59, %s62
    %p71 = scmp.eq.s32.totalorder %s14, 3
    %p72 = por %p70, %p71
    %p73 = scmp.ne.s32.totalorder %s62, %s63
    %p74 = scmp.eq.s32.totalorder %s14, 0
    %p75 = por %p73, %p74
    %p76 = scmp.ne.s32.totalorder %s62, %s63
    %p77 = scmp.eq.s32.totalorder %s15, 3
    %p78 = por %p76, %p77
    %p80 = scmp.ne.s32.totalorder %s63, %s79
    %p81 = scmp.eq.s32.totalorder %s15, 0
    %p82 = por %p80, %p81
    %s84 = sadd.s32 %s83, 1
    %p87 = scmp.eq.s32.totalorder %s9, 3
    %p88 = scmp.ne.s32.totalorder %s83, %s85
    %p89 = scmp.eq.s32.totalorder %s9, 0
    %p90 = por %p88, %p89
    %p91 = scmp.ne.s32.totalorder %s83, %s85
    %p92 = scmp.eq.s32.totalorder %s14, 3
    %p93 = por %p91, %p92
    %p94 = scmp.ne.s32.totalorder %s85, %s86
    %p95 = scmp.eq.s32.totalorder %s14, 0
    %p96 = por %p94, %p95
    %p97 = scmp.ne.s32.totalorder %s85, %s86
    %p98 = scmp.eq.s32.totalorder %s15, 3
    %p99 = por %p97, %p98
    %p101 = scmp.ne.s32.totalorder %s86, %s100
    %p102 = scmp.eq.s32.totalorder %s15, 0
    %p103 = por %p101, %p102
    %s104 = ssub.s32 %s16, %s28
    %p105 = scmp.eq.s32.totalorder %s104, 0
    %s107 = sadd.s32 %s106, 1
    %s108 = scalar_select %p105, %s106, %s107
    %p111 = pneg %p105
    %p112 = scmp.eq.s32.totalorder %s9, 3
    %p113 = por %p111, %p112
    %p114 = scmp.ne.s32.totalorder %s106, %s109
    %p115 = scmp.eq.s32.totalorder %s9, 0
    %p116 = por %p114, %p115
    %p117 = scmp.ne.s32.totalorder %s106, %s109
    %p118 = scmp.eq.s32.totalorder %s14, 3
    %p119 = por %p117, %p118
    %p120 = scmp.ne.s32.totalorder %s109, %s110
    %p121 = scmp.eq.s32.totalorder %s14, 0
    %p122 = por %p120, %p121
    %p123 = scmp.ne.s32.totalorder %s109, %s110
    %p124 = scmp.eq.s32.totalorder %s15, 3
    %p125 = por %p123, %p124
    %p127 = scmp.ne.s32.totalorder %s110, %s126
    %p128 = scmp.eq.s32.totalorder %s15, 0
    %p129 = por %p127, %p128
    %p130 = scmp.le.s32.totalorder 1, %s9
    %p131 = scmp.lt.s32.totalorder %s9, 5
    %p132 = pnand %p130, %p131
    %p133 = pneg %p132
    // Predicated region
    $region9: #{discriminator_forward.9} parent=5 // pred_check
      _
    $region10: #{discriminator_forward.9} parent=5 // pred_check_branch
      %135 = sbr.rel (%p132) target = $region12
    $region11: #{discriminator_forward.9} parent=5 // pred_region
      %s136 = ssub.s32 %s9, 1
      // Predicated region
      $region13: #{discriminator_forward.9} parent=11 // pred_check
        %p137 = pneg %p96
      $region14: #{discriminator_forward.9} parent=11 // pred_check_branch
        %139 = sbr.rel (%p137) target = $region16
      $region15: #{discriminator_forward.9} parent=11 // pred_region
        _
      $region16: #{discriminator_forward.9} parent=11 // pred_fallthru
        _
    $region12: #{discriminator_forward.9} parent=5 // pred_fallthru
      _
    %p140 = scmp.lt.s32.totalorder %s9, 4
    // Predicated region
    $region17: #{discriminator_forward.9} parent=5 // pred_check
      %p141 = pneg %p140
    $region18: #{discriminator_forward.9} parent=5 // pred_check_branch
      %143 = sbr.rel (%p141) target = $region20
    $region19: #{discriminator_forward.9} parent=5 // pred_region
      // Predicated region
      $region21: #{discriminator_forward.9} parent=19 // pred_check
        %p144 = pneg %p43
      $region22: #{discriminator_forward.9} parent=19 // pred_check_branch
        %146 = sbr.rel (%p144) target = $region24
      $region23: #{discriminator_forward.9} parent=19 // pred_region
        %s147 = smul.u32 8, %s17
        %p148 = scmp.lt.s32.totalorder %s16, 0
        %s149 = scalar_select %p148, %s16, 0
        %p150 = scmp.lt.s32.totalorder %s147, 31
        %s151 = scalar_select %p150, %s147, 31
        %s152 = smul.addr %s149, 32
        %s153 = sadd.s32 %s151, %s152
        %s154 = scalar_lea.vmem %s0, %s153
        %s155 = smul.u32 8, %s17
      $region24: #{discriminator_forward.9} parent=19 // pred_fallthru
        _
      // Predicated region
      $region25: #{discriminator_forward.9} parent=19 // pred_check
        %p156 = pneg %p69
      $region26: #{discriminator_forward.9} parent=19 // pred_check_branch
        %158 = sbr.rel (%p156) target = $region28
      $region27: #{discriminator_forward.9} parent=19 // pred_region
        %s159 = smul.u32 128, %s17
        %p160 = scmp.lt.s32.totalorder %s159, 511
        %s161 = scalar_select %p160, %s159, 511
        %s162 = smul.addr %s161, 4
        %s163 = scalar_lea.vmem %s1, %s162
        %s164 = smul.u32 128, %s17
      $region28: #{discriminator_forward.9} parent=19 // pred_fallthru
        _
    $region20: #{discriminator_forward.9} parent=5 // pred_fallthru
      _
    %p165 = scmp.le.s32.totalorder 1, %s9
    %p166 = scmp.lt.s32.totalorder %s9, 5
    %p167 = pnand %p165, %p166
    %p168 = pneg %p167
    // Predicated region
    $region29: #{discriminator_forward.9} parent=5 // pred_check
      _
    $region30: #{discriminator_forward.9} parent=5 // pred_check_branch
      %170 = sbr.rel (%p167) target = $region32
    $region31: #{discriminator_forward.9} parent=5 // pred_region
      %s171 = ssub.s32 %s9, 1
      %s172 = smul.u32 8, %s19
      %p173 = scmp.lt.s32.totalorder %s18, 0
      %s174 = scalar_select %p173, %s18, 0
      %p175 = scmp.lt.s32.totalorder %s172, 31
      %s176 = scalar_select %p175, %s172, 31
      %s177 = smul.addr %s174, 32
      %s178 = sadd.s32 %s176, %s177
      %s179 = scalar_lea.vmem %s0, %s178
      %p180 = pneg %p49
      %p181 = pneg %p46
      %s182 = smul.u32 128, %s19
      %p183 = scmp.lt.s32.totalorder %s182, 511
      %s184 = scalar_select %p183, %s182, 511
      %s185 = smul.addr %s184, 4
      %s186 = scalar_lea.vmem %s1, %s185
      %p187 = pneg %p75
      %p188 = pneg %p72
      %p189 = pneg %p96
      %p190 = pneg %p93
      %p191 = pneg %p122
      %p192 = pneg %p119
      %p193 = scmp.lt.s32.totalorder %s18, 0
      %s194 = scalar_select %p193, %s18, 0
      %s195 = smul.addr %s194, 2
      %s196 = scalar_lea.vmem %s3, %s195
      %s197 = smul.u32 8, %s19
      %p198 = scmp.lt.s32.totalorder %s18, 0
      %s199 = scalar_select %p198, %s18, 0
      %p200 = scmp.lt.s32.totalorder %s197, 31
      %s201 = scalar_select %p200, %s197, 31
      %s202 = smul.addr %s199, 32
      %s203 = sadd.s32 %s201, %s202
      %s204 = scalar_lea.vmem %s0, %s203
      %s205 = smul.u32 8, %s19
      %s206 = smul.u32 128, %s19
      %p207 = scmp.lt.s32.totalorder %s206, 511
      %s208 = scalar_select %p207, %s206, 511
      %s209 = smul.addr %s208, 4
      %s210 = scalar_lea.vmem %s1, %s209
      %s211 = smul.u32 128, %s19
      %p212 = scmp.lt.s32.totalorder %s18, 0
      %s213 = scalar_select %p212, %s18, 0
      %s214 = smul.addr %s213, 2
      %s215 = scalar_lea.vmem %s3, %s214
      %p216 = scmp.eq.s32.totalorder %s19, 0
      // Predicated region
      $region33: #{discriminator_forward.9} parent=31 // pred_check
        %p217 = pneg %p216
      $region34: #{discriminator_forward.9} parent=31 // pred_check_branch
        %219 = sbr.rel (%p217) target = $region36
      $region35: #{discriminator_forward.9} parent=31 // pred_region
        %220 = vst [vmem:[#allocation2] sm:$0x3] 0.0
      $region36: #{discriminator_forward.9} parent=31 // pred_fallthru
        _
      %v221 = vld [vmem:[#allocation2] sm:$0x3]
      %v222 = vld [vmem:[%s204] sm:$0xff]
      %v223 = vld [vmem:[%s210] sm:$0xf]
      %v224 = vld [vmem:[%s210 + $0x4] sm:$0xf]
      %v225 = vld [vmem:[%s210 + $0x8] sm:$0xf]
      %v226 = vld [vmem:[%s210 + $0xc] sm:$0xf]
      %v227 = vld [vmem:[%s210 + $0x10] sm:$0xf]
      %v228 = vld [vmem:[%s210 + $0x14] sm:$0xf]
      %v229 = vld [vmem:[%s210 + $0x18] sm:$0xf]
      %v230 = vld [vmem:[%s210 + $0x1c] sm:$0xf]
      %v231 = vld [vmem:[%s210 + $0x20] sm:$0xf]
      %v232 = vld [vmem:[%s210 + $0x24] sm:$0xf]
      %v233 = vld [vmem:[%s210 + $0x28] sm:$0xf]
      %v234 = vld [vmem:[%s210 + $0x2c] sm:$0xf]
      %v235 = vld [vmem:[%s210 + $0x30] sm:$0xf]
      %v236 = vld [vmem:[%s210 + $0x34] sm:$0xf]
      %v237 = vld [vmem:[%s210 + $0x38] sm:$0xf]
      %v238 = vld [vmem:[%s210 + $0x3c] sm:$0xf]
      %v239 = vld [vmem:[%s210 + $0x40] sm:$0xf]
      %v240 = vld [vmem:[%s210 + $0x44] sm:$0xf]
      %v241 = vld [vmem:[%s210 + $0x48] sm:$0xf]
      %v242 = vld [vmem:[%s210 + $0x4c] sm:$0xf]
      %v243 = vld [vmem:[%s210 + $0x50] sm:$0xf]
      %v244 = vld [vmem:[%s210 + $0x54] sm:$0xf]
      %v245 = vld [vmem:[%s210 + $0x58] sm:$0xf]
      %v246 = vld [vmem:[%s210 + $0x5c] sm:$0xf]
      %v247 = vld [vmem:[%s210 + $0x60] sm:$0xf]
      %v248 = vld [vmem:[%s210 + $0x64] sm:$0xf]
      %v249 = vld [vmem:[%s210 + $0x68] sm:$0xf]
      %v250 = vld [vmem:[%s210 + $0x6c] sm:$0xf]
      %v251 = vld [vmem:[%s210 + $0x70] sm:$0xf]
      %v252 = vld [vmem:[%s210 + $0x74] sm:$0xf]
      %v253 = vld [vmem:[%s210 + $0x78] sm:$0xf]
      %v254 = vld [vmem:[%s210 + $0x7c] sm:$0xf]
      %v255 = vld [vmem:[%s210 + $0x80] sm:$0xf]
      %v256 = vld [vmem:[%s210 + $0x84] sm:$0xf]
      %v257 = vld [vmem:[%s210 + $0x88] sm:$0xf]
      %v258 = vld [vmem:[%s210 + $0x8c] sm:$0xf]
      %v259 = vld [vmem:[%s210 + $0x90] sm:$0xf]
      %v260 = vld [vmem:[%s210 + $0x94] sm:$0xf]
      %v261 = vld [vmem:[%s210 + $0x98] sm:$0xf]
      %v262 = vld [vmem:[%s210 + $0x9c] sm:$0xf]
      %v263 = vld [vmem:[%s210 + $0xa0] sm:$0xf]
      %v264 = vld [vmem:[%s210 + $0xa4] sm:$0xf]
      %v265 = vld [vmem:[%s210 + $0xa8] sm:$0xf]
      %v266 = vld [vmem:[%s210 + $0xac] sm:$0xf]
      %v267 = vld [vmem:[%s210 + $0xb0] sm:$0xf]
      %v268 = vld [vmem:[%s210 + $0xb4] sm:$0xf]
      %v269 = vld [vmem:[%s210 + $0xb8] sm:$0xf]
      %v270 = vld [vmem:[%s210 + $0xbc] sm:$0xf]
      %v271 = vld [vmem:[%s210 + $0xc0] sm:$0xf]
      %v272 = vld [vmem:[%s210 + $0xc4] sm:$0xf]
      %v273 = vld [vmem:[%s210 + $0xc8] sm:$0xf]
      %v274 = vld [vmem:[%s210 + $0xcc] sm:$0xf]
      %v275 = vld [vmem:[%s210 + $0xd0] sm:$0xf]
      %v276 = vld [vmem:[%s210 + $0xd4] sm:$0xf]
      %v277 = vld [vmem:[%s210 + $0xd8] sm:$0xf]
      %v278 = vld [vmem:[%s210 + $0xdc] sm:$0xf]
      %v279 = vld [vmem:[%s210 + $0xe0] sm:$0xf]
      %v280 = vld [vmem:[%s210 + $0xe4] sm:$0xf]
      %v281 = vld [vmem:[%s210 + $0xe8] sm:$0xf]
      %v282 = vld [vmem:[%s210 + $0xec] sm:$0xf]
      %v283 = vld [vmem:[%s210 + $0xf0] sm:$0xf]
      %v284 = vld [vmem:[%s210 + $0xf4] sm:$0xf]
      %v285 = vld [vmem:[%s210 + $0xf8] sm:$0xf]
      %v286 = vld [vmem:[%s210 + $0xfc] sm:$0xf]
      %v287 = vld [vmem:[%s210 + $0x100] sm:$0xf]
      %v288 = vld [vmem:[%s210 + $0x104] sm:$0xf]
      %v289 = vld [vmem:[%s210 + $0x108] sm:$0xf]
      %v290 = vld [vmem:[%s210 + $0x10c] sm:$0xf]
      %v291 = vld [vmem:[%s210 + $0x110] sm:$0xf]
      %v292 = vld [vmem:[%s210 + $0x114] sm:$0xf]
      %v293 = vld [vmem:[%s210 + $0x118] sm:$0xf]
      %v294 = vld [vmem:[%s210 + $0x11c] sm:$0xf]
      %v295 = vld [vmem:[%s210 + $0x120] sm:$0xf]
      %v296 = vld [vmem:[%s210 + $0x124] sm:$0xf]
      %v297 = vld [vmem:[%s210 + $0x128] sm:$0xf]
      %v298 = vld [vmem:[%s210 + $0x12c] sm:$0xf]
      %v299 = vld [vmem:[%s210 + $0x130] sm:$0xf]
      %v300 = vld [vmem:[%s210 + $0x134] sm:$0xf]
      %v301 = vld [vmem:[%s210 + $0x138] sm:$0xf]
      %v302 = vld [vmem:[%s210 + $0x13c] sm:$0xf]
      %v303 = vld [vmem:[%s210 + $0x140] sm:$0xf]
      %v304 = vld [vmem:[%s210 + $0x144] sm:$0xf]
      %v305 = vld [vmem:[%s210 + $0x148] sm:$0xf]
      %v306 = vld [vmem:[%s210 + $0x14c] sm:$0xf]
      %v307 = vld [vmem:[%s210 + $0x150] sm:$0xf]
      %v308 = vld [vmem:[%s210 + $0x154] sm:$0xf]
      %v309 = vld [vmem:[%s210 + $0x158] sm:$0xf]
      %v310 = vld [vmem:[%s210 + $0x15c] sm:$0xf]
      %v311 = vld [vmem:[%s210 + $0x160] sm:$0xf]
      %v312 = vld [vmem:[%s210 + $0x164] sm:$0xf]
      %v313 = vld [vmem:[%s210 + $0x168] sm:$0xf]
      %v314 = vld [vmem:[%s210 + $0x16c] sm:$0xf]
      %v315 = vld [vmem:[%s210 + $0x170] sm:$0xf]
      %v316 = vld [vmem:[%s210 + $0x174] sm:$0xf]
      %v317 = vld [vmem:[%s210 + $0x178] sm:$0xf]
      %v318 = vld [vmem:[%s210 + $0x17c] sm:$0xf]
      %v319 = vld [vmem:[%s210 + $0x180] sm:$0xf]
      %v320 = vld [vmem:[%s210 + $0x184] sm:$0xf]
      %v321 = vld [vmem:[%s210 + $0x188] sm:$0xf]
      %v322 = vld [vmem:[%s210 + $0x18c] sm:$0xf]
      %v323 = vld [vmem:[%s210 + $0x190] sm:$0xf]
      %v324 = vld [vmem:[%s210 + $0x194] sm:$0xf]
      %v325 = vld [vmem:[%s210 + $0x198] sm:$0xf]
      %v326 = vld [vmem:[%s210 + $0x19c] sm:$0xf]
      %v327 = vld [vmem:[%s210 + $0x1a0] sm:$0xf]
      %v328 = vld [vmem:[%s210 + $0x1a4] sm:$0xf]
      %v329 = vld [vmem:[%s210 + $0x1a8] sm:$0xf]
      %v330 = vld [vmem:[%s210 + $0x1ac] sm:$0xf]
      %v331 = vld [vmem:[%s210 + $0x1b0] sm:$0xf]
      %v332 = vld [vmem:[%s210 + $0x1b4] sm:$0xf]
      %v333 = vld [vmem:[%s210 + $0x1b8] sm:$0xf]
      %v334 = vld [vmem:[%s210 + $0x1bc] sm:$0xf]
      %v335 = vld [vmem:[%s210 + $0x1c0] sm:$0xf]
      %v336 = vld [vmem:[%s210 + $0x1c4] sm:$0xf]
      %v337 = vld [vmem:[%s210 + $0x1c8] sm:$0xf]
      %v338 = vld [vmem:[%s210 + $0x1cc] sm:$0xf]
      %v339 = vld [vmem:[%s210 + $0x1d0] sm:$0xf]
      %v340 = vld [vmem:[%s210 + $0x1d4] sm:$0xf]
      %v341 = vld [vmem:[%s210 + $0x1d8] sm:$0xf]
      %v342 = vld [vmem:[%s210 + $0x1dc] sm:$0xf]
      %v343 = vld [vmem:[%s210 + $0x1e0] sm:$0xf]
      %v344 = vld [vmem:[%s210 + $0x1e4] sm:$0xf]
      %v345 = vld [vmem:[%s210 + $0x1e8] sm:$0xf]
      %v346 = vld [vmem:[%s210 + $0x1ec] sm:$0xf]
      %v347 = vld [vmem:[%s210 + $0x1f0] sm:$0xf]
      %v348 = vld [vmem:[%s210 + $0x1f4] sm:$0xf]
      %v349 = vld [vmem:[%s210 + $0x1f8] sm:$0xf]
      %v350 = vld [vmem:[%s210 + $0x1fc] sm:$0xf]
      %352 = vst [vmem:[#allocation1] ss:$9 sm:$0xff] %v222
      %v353 = vld [vmem:[#allocation1] sm:$0xff]
      %v354 = vld [vmem:[#allocation1 + $0x9] sm:$0xff]
      %v355 = vld [vmem:[#allocation1 + $0x12] sm:$0xff]
      %v356 = vld [vmem:[#allocation1 + $0x1b] sm:$0xff]
      %v357 = vld [vmem:[#allocation1 + $0x24] sm:$0xff]
      %v358 = vld [vmem:[#allocation1 + $0x2d] sm:$0xff]
      %v359 = vld [vmem:[#allocation1 + $0x36] sm:$0xff]
      %v360 = vld [vmem:[#allocation1 + $0x3f] sm:$0xff]
      %v497 = vunpack.c.l.b16 %v223
      %v498 = vunpack.c.l.b16 %v224
      %v499 = vunpack.c.l.b16 %v225
      %v500 = vunpack.c.l.b16 %v226
      %v501 = vunpack.c.l.b16 %v227
      %v502 = vunpack.c.l.b16 %v228
      %v503 = vunpack.c.l.b16 %v229
      %v504 = vunpack.c.l.b16 %v230
      %v505 = vunpack.c.l.b16 %v231
      %v506 = vunpack.c.l.b16 %v232
      %v507 = vunpack.c.l.b16 %v233
      %v508 = vunpack.c.l.b16 %v234
      %v509 = vunpack.c.l.b16 %v235
      %v510 = vunpack.c.l.b16 %v236
      %v511 = vunpack.c.l.b16 %v237
      %v512 = vunpack.c.l.b16 %v238
      %v513 = vunpack.c.l.b16 %v239
      %v514 = vunpack.c.l.b16 %v240
      %v515 = vunpack.c.l.b16 %v241
      %v516 = vunpack.c.l.b16 %v242
      %v517 = vunpack.c.l.b16 %v243
      %v518 = vunpack.c.l.b16 %v244
      %v519 = vunpack.c.l.b16 %v245
      %v520 = vunpack.c.l.b16 %v246
      %v521 = vunpack.c.l.b16 %v247
      %v522 = vunpack.c.l.b16 %v248
      %v523 = vunpack.c.l.b16 %v249
      %v524 = vunpack.c.l.b16 %v250
      %v525 = vunpack.c.l.b16 %v251
      %v526 = vunpack.c.l.b16 %v252
      %v527 = vunpack.c.l.b16 %v253
      %v528 = vunpack.c.l.b16 %v254
      %v529 = vunpack.c.l.b16 %v255
      %v530 = vunpack.c.l.b16 %v256
      %v531 = vunpack.c.l.b16 %v257
      %v532 = vunpack.c.l.b16 %v258
      %v533 = vunpack.c.l.b16 %v259
      %v534 = vunpack.c.l.b16 %v260
      %v535 = vunpack.c.l.b16 %v261
      %v536 = vunpack.c.l.b16 %v262
      %v537 = vunpack.c.l.b16 %v263
      %v538 = vunpack.c.l.b16 %v264
      %v539 = vunpack.c.l.b16 %v265
      %v540 = vunpack.c.l.b16 %v266
      %v541 = vunpack.c.l.b16 %v267
      %v542 = vunpack.c.l.b16 %v268
      %v543 = vunpack.c.l.b16 %v269
      %v544 = vunpack.c.l.b16 %v270
      %v545 = vunpack.c.l.b16 %v271
      %v546 = vunpack.c.l.b16 %v272
      %v547 = vunpack.c.l.b16 %v273
      %v548 = vunpack.c.l.b16 %v274
      %v549 = vunpack.c.l.b16 %v275
      %v550 = vunpack.c.l.b16 %v276
      %v551 = vunpack.c.l.b16 %v277
      %v552 = vunpack.c.l.b16 %v278
      %v553 = vunpack.c.l.b16 %v279
      %v554 = vunpack.c.l.b16 %v280
      %v555 = vunpack.c.l.b16 %v281
      %v556 = vunpack.c.l.b16 %v282
      %v557 = vunpack.c.l.b16 %v283
      %v558 = vunpack.c.l.b16 %v284
      %v559 = vunpack.c.l.b16 %v285
      %v560 = vunpack.c.l.b16 %v286
      %v561 = vunpack.c.l.b16 %v287
      %v562 = vunpack.c.l.b16 %v288
      %v563 = vunpack.c.l.b16 %v289
      %v564 = vunpack.c.l.b16 %v290
      %v565 = vunpack.c.l.b16 %v291
      %v566 = vunpack.c.l.b16 %v292
      %v567 = vunpack.c.l.b16 %v293
      %v568 = vunpack.c.l.b16 %v294
      %v569 = vunpack.c.l.b16 %v295
      %v570 = vunpack.c.l.b16 %v296
      %v571 = vunpack.c.l.b16 %v297
      %v572 = vunpack.c.l.b16 %v298
      %v573 = vunpack.c.l.b16 %v299
      %v574 = vunpack.c.l.b16 %v300
      %v575 = vunpack.c.l.b16 %v301
      %v576 = vunpack.c.l.b16 %v302
      %v577 = vunpack.c.l.b16 %v303
      %v578 = vunpack.c.l.b16 %v304
      %v579 = vunpack.c.l.b16 %v305
      %v580 = vunpack.c.l.b16 %v306
      %v581 = vunpack.c.l.b16 %v307
      %v582 = vunpack.c.l.b16 %v308
      %v583 = vunpack.c.l.b16 %v309
      %v584 = vunpack.c.l.b16 %v310
      %v585 = vunpack.c.l.b16 %v311
      %v586 = vunpack.c.l.b16 %v312
      %v587 = vunpack.c.l.b16 %v313
      %v588 = vunpack.c.l.b16 %v314
      %v589 = vunpack.c.l.b16 %v315
      %v590 = vunpack.c.l.b16 %v316
      %v591 = vunpack.c.l.b16 %v317
      %v592 = vunpack.c.l.b16 %v318
      %v593 = vunpack.c.l.b16 %v319
      %v594 = vunpack.c.l.b16 %v320
      %v595 = vunpack.c.l.b16 %v321
      %v596 = vunpack.c.l.b16 %v322
      %v597 = vunpack.c.l.b16 %v323
      %v598 = vunpack.c.l.b16 %v324
      %v599 = vunpack.c.l.b16 %v325
      %v600 = vunpack.c.l.b16 %v326
      %v601 = vunpack.c.l.b16 %v327
      %v602 = vunpack.c.l.b16 %v328
      %v603 = vunpack.c.l.b16 %v329
      %v604 = vunpack.c.l.b16 %v330
      %v605 = vunpack.c.l.b16 %v331
      %v606 = vunpack.c.l.b16 %v332
      %v607 = vunpack.c.l.b16 %v333
      %v608 = vunpack.c.l.b16 %v334
      %v609 = vunpack.c.l.b16 %v335
      %v610 = vunpack.c.l.b16 %v336
      %v611 = vunpack.c.l.b16 %v337
      %v612 = vunpack.c.l.b16 %v338
      %v613 = vunpack.c.l.b16 %v339
      %v614 = vunpack.c.l.b16 %v340
      %v615 = vunpack.c.l.b16 %v341
      %v616 = vunpack.c.l.b16 %v342
      %v617 = vunpack.c.l.b16 %v343
      %v618 = vunpack.c.l.b16 %v344
      %v619 = vunpack.c.l.b16 %v345
      %v620 = vunpack.c.l.b16 %v346
      %v621 = vunpack.c.l.b16 %v347
      %v622 = vunpack.c.l.b16 %v348
      %v623 = vunpack.c.l.b16 %v349
      %v624 = vunpack.c.l.b16 %v350
      %v625 = vpack.c.b16 %v498, %v497
      %v626 = vpack.c.b16 %v500, %v499
      %v627 = vpack.c.b16 %v502, %v501
      %v628 = vpack.c.b16 %v504, %v503
      %v629 = vpack.c.b16 %v506, %v505
      %v630 = vpack.c.b16 %v508, %v507
      %v631 = vpack.c.b16 %v510, %v509
      %v632 = vpack.c.b16 %v512, %v511
      %v633 = vpack.c.b16 %v514, %v513
      %v634 = vpack.c.b16 %v516, %v515
      %v635 = vpack.c.b16 %v518, %v517
      %v636 = vpack.c.b16 %v520, %v519
      %v637 = vpack.c.b16 %v522, %v521
      %v638 = vpack.c.b16 %v524, %v523
      %v639 = vpack.c.b16 %v526, %v525
      %v640 = vpack.c.b16 %v528, %v527
      %v641 = vpack.c.b16 %v530, %v529
      %v642 = vpack.c.b16 %v532, %v531
      %v643 = vpack.c.b16 %v534, %v533
      %v644 = vpack.c.b16 %v536, %v535
      %v645 = vpack.c.b16 %v538, %v537
      %v646 = vpack.c.b16 %v540, %v539
      %v647 = vpack.c.b16 %v542, %v541
      %v648 = vpack.c.b16 %v544, %v543
      %v649 = vpack.c.b16 %v546, %v545
      %v650 = vpack.c.b16 %v548, %v547
      %v651 = vpack.c.b16 %v550, %v549
      %v652 = vpack.c.b16 %v552, %v551
      %v653 = vpack.c.b16 %v554, %v553
      %v654 = vpack.c.b16 %v556, %v555
      %v655 = vpack.c.b16 %v558, %v557
      %v656 = vpack.c.b16 %v560, %v559
      %v657 = vpack.c.b16 %v562, %v561
      %v658 = vpack.c.b16 %v564, %v563
      %v659 = vpack.c.b16 %v566, %v565
      %v660 = vpack.c.b16 %v568, %v567
      %v661 = vpack.c.b16 %v570, %v569
      %v662 = vpack.c.b16 %v572, %v571
      %v663 = vpack.c.b16 %v574, %v573
      %v664 = vpack.c.b16 %v576, %v575
      %v665 = vpack.c.b16 %v578, %v577
      %v666 = vpack.c.b16 %v580, %v579
      %v667 = vpack.c.b16 %v582, %v581
      %v668 = vpack.c.b16 %v584, %v583
      %v669 = vpack.c.b16 %v586, %v585
      %v670 = vpack.c.b16 %v588, %v587
      %v671 = vpack.c.b16 %v590, %v589
      %v672 = vpack.c.b16 %v592, %v591
      %v673 = vpack.c.b16 %v594, %v593
      %v674 = vpack.c.b16 %v596, %v595
      %v675 = vpack.c.b16 %v598, %v597
      %v676 = vpack.c.b16 %v600, %v599
      %v677 = vpack.c.b16 %v602, %v601
      %v678 = vpack.c.b16 %v604, %v603
      %v679 = vpack.c.b16 %v606, %v605
      %v680 = vpack.c.b16 %v608, %v607
      %v681 = vpack.c.b16 %v610, %v609
      %v682 = vpack.c.b16 %v612, %v611
      %v683 = vpack.c.b16 %v614, %v613
      %v684 = vpack.c.b16 %v616, %v615
      %v685 = vpack.c.b16 %v618, %v617
      %v686 = vpack.c.b16 %v620, %v619
      %v687 = vpack.c.b16 %v622, %v621
      %v688 = vpack.c.b16 %v624, %v623
      %753 = vmatpush.bf16.msra.mxu0 %v632
      %754 = vmatpush.bf16.msra.mxu0 %v631
      %755 = vmatpush.bf16.msra.mxu0 %v630
      %756 = vmatpush.bf16.msra.mxu0 %v629
      %757 = vmatpush.bf16.msra.mxu0 %v628
      %758 = vmatpush.bf16.msra.mxu0 %v627
      %759 = vmatpush.bf16.msra.mxu0 %v626
      %760 = vmatpush.bf16.msra.mxu0 %v625
      %761 = vmatmul.bf16.gmra.mxu0 %v353
      %v762 = vpop.f32.mrf.mxu0
      %v763 = vadd.f32 0.0, %v762
      %v764 = vpop.f32.mrf.mxu0
      %765 = vdwg.mxu0
      %766 = vmatpush.bf16.msra.mxu0 %v640
      %767 = vmatpush.bf16.msra.mxu0 %v639
      %768 = vmatpush.bf16.msra.mxu0 %v638
      %769 = vmatpush.bf16.msra.mxu0 %v637
      %770 = vmatpush.bf16.msra.mxu0 %v636
      %771 = vmatpush.bf16.msra.mxu0 %v635
      %772 = vmatpush.bf16.msra.mxu0 %v634
      %773 = vmatpush.bf16.msra.mxu0 %v633
      %774 = vmatmul.bf16.gmra.mxu0 %v354
      %v775 = vpop.f32.mrf.mxu0
      %v776 = vadd.f32 %v763, %v775
      %v777 = vpop.f32.mrf.mxu0
      %778 = vdwg.mxu0
      %779 = vmatpush.bf16.msra.mxu0 %v648
      %780 = vmatpush.bf16.msra.mxu0 %v647
      %781 = vmatpush.bf16.msra.mxu0 %v646
      %782 = vmatpush.bf16.msra.mxu0 %v645
      %783 = vmatpush.bf16.msra.mxu0 %v644
      %784 = vmatpush.bf16.msra.mxu0 %v643
      %785 = vmatpush.bf16.msra.mxu0 %v642
      %786 = vmatpush.bf16.msra.mxu0 %v641
      %787 = vmatmul.bf16.gmra.mxu0 %v355
      %v788 = vpop.f32.mrf.mxu0
      %v789 = vadd.f32 %v776, %v788
      %v790 = vpop.f32.mrf.mxu0
      %791 = vdwg.mxu0
      %792 = vmatpush.bf16.msra.mxu0 %v656
      %793 = vmatpush.bf16.msra.mxu0 %v655
      %794 = vmatpush.bf16.msra.mxu0 %v654
      %795 = vmatpush.bf16.msra.mxu0 %v653
      %796 = vmatpush.bf16.msra.mxu0 %v652
      %797 = vmatpush.bf16.msra.mxu0 %v651
      %798 = vmatpush.bf16.msra.mxu0 %v650
      %799 = vmatpush.bf16.msra.mxu0 %v649
      %800 = vmatmul.bf16.gmra.mxu0 %v356
      %v801 = vpop.f32.mrf.mxu0
      %v802 = vadd.f32 %v789, %v801
      %v803 = vpop.f32.mrf.mxu0
      %804 = vdwg.mxu0
      %805 = vmatpush.bf16.msra.mxu0 %v664
      %806 = vmatpush.bf16.msra.mxu0 %v663
      %807 = vmatpush.bf16.msra.mxu0 %v662
      %808 = vmatpush.bf16.msra.mxu0 %v661
      %809 = vmatpush.bf16.msra.mxu0 %v660
      %810 = vmatpush.bf16.msra.mxu0 %v659
      %811 = vmatpush.bf16.msra.mxu0 %v658
      %812 = vmatpush.bf16.msra.mxu0 %v657
      %813 = vmatmul.bf16.gmra.mxu0 %v357
      %v814 = vpop.f32.mrf.mxu0
      %v815 = vadd.f32 %v802, %v814
      %v816 = vpop.f32.mrf.mxu0
      %817 = vdwg.mxu0
      %818 = vmatpush.bf16.msra.mxu0 %v672
      %819 = vmatpush.bf16.msra.mxu0 %v671
      %820 = vmatpush.bf16.msra.mxu0 %v670
      %821 = vmatpush.bf16.msra.mxu0 %v669
      %822 = vmatpush.bf16.msra.mxu0 %v668
      %823 = vmatpush.bf16.msra.mxu0 %v667
      %824 = vmatpush.bf16.msra.mxu0 %v666
      %825 = vmatpush.bf16.msra.mxu0 %v665
      %826 = vmatmul.bf16.gmra.mxu0 %v358
      %v827 = vpop.f32.mrf.mxu0
      %v828 = vadd.f32 %v815, %v827
      %v829 = vpop.f32.mrf.mxu0
      %830 = vdwg.mxu0
      %831 = vmatpush.bf16.msra.mxu0 %v680
      %832 = vmatpush.bf16.msra.mxu0 %v679
      %833 = vmatpush.bf16.msra.mxu0 %v678
      %834 = vmatpush.bf16.msra.mxu0 %v677
      %835 = vmatpush.bf16.msra.mxu0 %v676
      %836 = vmatpush.bf16.msra.mxu0 %v675
      %837 = vmatpush.bf16.msra.mxu0 %v674
      %838 = vmatpush.bf16.msra.mxu0 %v673
      %839 = vmatmul.bf16.gmra.mxu0 %v359
      %v840 = vpop.f32.mrf.mxu0
      %v841 = vadd.f32 %v828, %v840
      %v842 = vpop.f32.mrf.mxu0
      %843 = vdwg.mxu0
      %844 = vmatpush.bf16.msra.mxu0 %v688
      %845 = vmatpush.bf16.msra.mxu0 %v687
      %846 = vmatpush.bf16.msra.mxu0 %v686
      %847 = vmatpush.bf16.msra.mxu0 %v685
      %848 = vmatpush.bf16.msra.mxu0 %v684
      %849 = vmatpush.bf16.msra.mxu0 %v683
      %850 = vmatpush.bf16.msra.mxu0 %v682
      %851 = vmatpush.bf16.msra.mxu0 %v681
      %852 = vmatmul.bf16.gmra.mxu0 %v360
      %v853 = vpop.f32.mrf.mxu0
      %v854 = vadd.f32 %v841, %v853
      %v855 = vpop.f32.mrf.mxu0
      %856 = vdwg.mxu0
      %v857 = vadd.f32 %v221, %v854
      %858 = vst [vmem:[#allocation2] sm:$0x3] %v857
      %p859 = scmp.eq.s32.totalorder %s19, 3
      // Predicated region
      $region37: #{discriminator_forward.9} parent=31 // pred_check
        %p860 = pneg %p859
      $region38: #{discriminator_forward.9} parent=31 // pred_check_branch
        %862 = sbr.rel (%p860) target = $region40
      $region39: #{discriminator_forward.9} parent=31 // pred_region
        %v863 = vld [vmem:[#allocation2] sm:$0x3]
        %v864 = vld [vmem:[%s2] sm:$0x1]
        %v866 = vperm.slane %v864, 0
        %v868 = vadd.f32 %v863, %v866
        %v869 = vsub.f32 0.0, %v868
        %v870 = vmul.f32 %v869, 1.442695
        %v871 = vpow.pop %v870
        %v872 = vadd.f32 %v871, 1.0
        %v873 = vrcp.pop %v872
        %v874 = vmin.f32 %v873, 1.0
        %875 = vst [vmem:[%s215] sm:$0x3] %v874
      $region40: #{discriminator_forward.9} parent=31 // pred_fallthru
        _
      %p876 = scmp.lt.s32.totalorder %s18, 0
      %s877 = scalar_select %p876, %s18, 0
      %s878 = smul.addr %s877, 2
      %s879 = scalar_lea.vmem %s3, %s878
      // Predicated region
      $region41: #{discriminator_forward.9} parent=31 // pred_check
        %p880 = pneg %p119
      $region42: #{discriminator_forward.9} parent=31 // pred_check_branch
        %882 = sbr.rel (%p880) target = $region44
      $region43: #{discriminator_forward.9} parent=31 // pred_region
        _
      $region44: #{discriminator_forward.9} parent=31 // pred_fallthru
        _
      // Predicated region
      $region45: #{discriminator_forward.9} parent=31 // pred_check
        %p883 = pneg %p119
      $region46: #{discriminator_forward.9} parent=31 // pred_check_branch
        %885 = sbr.rel (%p883) target = $region48
      $region47: #{discriminator_forward.9} parent=31 // pred_region
        %p886 = scmp.lt.s32.totalorder %s18, 0
        %s887 = scalar_select %p886, %s18, 0
        %s888 = smul.addr %s887, 2
        %s889 = scalar_lea.vmem %s3, %s888
      $region48: #{discriminator_forward.9} parent=31 // pred_fallthru
        _
    $region32: #{discriminator_forward.9} parent=5 // pred_fallthru
      _
    %p890 = scmp.le.s32.totalorder 2, %s9
    // Predicated region
    $region49: #{discriminator_forward.9} parent=5 // pred_check
      %p891 = pneg %p890
    $region50: #{discriminator_forward.9} parent=5 // pred_check_branch
      %893 = sbr.rel (%p891) target = $region52
    $region51: #{discriminator_forward.9} parent=5 // pred_region
      %s894 = ssub.s32 %s9, 2
    $region52: #{discriminator_forward.9} parent=5 // pred_fallthru
      _
  $region6: #{discriminator_forward.9} parent=0 // loop_footer
    %s13 = sadd.s32 1, %s9
  $region7: #{discriminator_forward.9} parent=0 // loop_footer_branch
    %8 = sbr.rel target = $region3
  $region8: #{discriminator_forward.9} parent=0 // loop_exit
    _

</llo_original>
